<compile_context>
chip_gen: v6e
topology: v6e:2x2x1
jax: 0.10.0
libtpu: 0.0.40
codegen_flags: <defaults>
</compile_context>

<pallas_src>
import functools
import math
from typing import NamedTuple

import jax
import jax.numpy as jnp
from jax.experimental import pallas as pl
from jax.experimental.pallas import tpu as pltpu

EPS = 1e-5  # nn.BatchNorm2d default eps (inference / running-stats semantics)


class _Cfg(NamedTuple):
    B: int
    w1p: int
    pad2: int; kw2: int; stride2: int; pool2: int; w2p: int
    pad3: int; kw3: int; stride3: int; pool3: int; w3p: int
    pad4: int; kw4: int; stride4: int; pool4: int; w4p: int


# ---------------------------------------------------------------------------
# In-kernel helpers
# ---------------------------------------------------------------------------
def _widen_taps(slab, kw):
    """slab: (L, C) -> patch (L - kw + 1, kw*C) with patch[i, g*C + c] == slab[i + g, c]."""
    assert kw >= 2 and (kw & (kw - 1)) == 0
    a = slab
    s = 1
    while s < kw:
        L = a.shape[0] - s
        a = jnp.concatenate([a[:L], a[s:s + L]], axis=1)
        s *= 2
    return a


def _pool_shift_relu(y, wpool, pool, shift, out_dtype):
    """Floor-mode MaxPool(1, pool) along the leading (time) axis, then (+shift, ReLU)."""
    c = y.shape[-1]
    p = jnp.max(y[: wpool * pool].reshape(wpool, pool, c), axis=1)
    return jnp.maximum(p + shift, 0.0).astype(out_dtype)


def _stack_padded_rows(blocks, pad, stride):
    """Stack per-row activation blocks with zero padding, one row every `stride` positions."""
    rows, c = blocks[0].shape
    dt = blocks[0].dtype
    head = jnp.zeros((pad, c), dt)
    tail = stride - pad - rows
    pieces = []
    for blk in blocks:
        pieces += [head, blk]
        if tail > 0:
            pieces.append(jnp.zeros((tail, c), dt))
    return jnp.concatenate(pieces, axis=0)


# ---------------------------------------------------------------------------
# The fused kernel: one grid step = one muscle group, all batch rows
# ---------------------------------------------------------------------------
def _scnn_fused_kernel(x_ref, w1_ref, sh1_ref, w2_ref, sh2_ref, w3_ref, sh3_ref,
                       w4_ref, sh4_ref, o_ref, *, cfg):
    B = cfg.B

    xg = x_ref[0]                  # (T, B) uint32: both bf16 muscle channels packed per word
    w1g = w1_ref[0]                # (2, 128, 32) bf16: per-muscle taps, BN scale folded in
    w_m0, w_m1 = w1g[0], w1g[1]
    sh1 = sh1_ref[0]               # (1, 32) f32

    # ---- Stage 1: spanning conv (2 x 128), pad 64, BN + ReLU + MaxPool(1, 8) -----------------
    zpad = jnp.zeros((64, 1), jnp.uint32)
    acts1 = []
    for b in range(B):
        col = xg[:, b:b + 1]                                    # (T, 1) u32
        padded = jnp.concatenate([zpad, col, zpad], axis=0)     # (T + 128, 1)
        q = _widen_taps(padded, 128)                            # (T + 1, 128) u32
        # Recover the two bf16 channels exactly via u32 -> f32 reinterpretation.
        m0 = pltpu.bitcast(jnp.left_shift(q, jnp.uint32(16)), jnp.float32)
        m1 = pltpu.bitcast(jnp.bitwise_and(q, jnp.uint32(0xFFFF0000)), jnp.float32)
        y1 = jnp.dot(m0.astype(jnp.bfloat16), w_m0, preferred_element_type=jnp.float32)
        y1 = y1 + jnp.dot(m1.astype(jnp.bfloat16), w_m1, preferred_element_type=jnp.float32)
        acts1.append(_pool_shift_relu(y1, cfg.w1p, 8, sh1, jnp.bfloat16))   # (w1p, 32)
    slab2 = _stack_padded_rows(acts1, cfg.pad2, cfg.stride2)                # (B*stride2, 32)

    # ---- Stage 2: conv (1 x 64), pad 32, BN + ReLU + MaxPool(1, 4) -- one K=2048 dot ----------
    y2 = jnp.dot(_widen_taps(slab2, cfg.kw2), w2_ref[...], preferred_element_type=jnp.float32)
    sh2 = sh2_ref[...]
    acts2 = [_pool_shift_relu(y2[b * cfg.stride2: b * cfg.stride2 + cfg.w2p * cfg.pool2],
                              cfg.w2p, cfg.pool2, sh2, jnp.bfloat16) for b in range(B)]
    slab3 = _stack_padded_rows(acts2, cfg.pad3, cfg.stride3)                # (B*stride3, 64)

    # ---- Stage 3: conv (1 x 32), pad 16, BN + ReLU + MaxPool(1, 2) ----------------------------
    y3 = jnp.dot(_widen_taps(slab3, cfg.kw3), w3_ref[...], preferred_element_type=jnp.float32)
    sh3 = sh3_ref[...]
    acts3 = [_pool_shift_relu(y3[b * cfg.stride3: b * cfg.stride3 + cfg.w3p * cfg.pool3],
                              cfg.w3p, cfg.pool3, sh3, jnp.bfloat16) for b in range(B)]
    slab4 = _stack_padded_rows(acts3, cfg.pad4, cfg.stride4)                # (B*stride4, 128)

    # ---- Stage 4: conv (1 x 16), pad 8, BN + ReLU + MaxPool(1, 2) + mean over positions -------
    y4 = jnp.dot(_widen_taps(slab4, cfg.kw4), w4_ref[...], preferred_element_type=jnp.float32)
    sh4 = sh4_ref[...]
    feats = []
    for b in range(B):
        a4 = _pool_shift_relu(y4[b * cfg.stride4: b * cfg.stride4 + cfg.w4p * cfg.pool4],
                              cfg.w4p, cfg.pool4, sh4, jnp.float32)         # (w4p, 256) f32
        feats.append(jnp.mean(a4, axis=0, keepdims=True))                   # (1, 256)
    o_ref[0] = jnp.concatenate(feats, axis=0)                               # (B, 256)


# ---------------------------------------------------------------------------
# Forward pass
# ---------------------------------------------------------------------------
def _round_up(v, m):
    return (v + m - 1) // m * m


def scnn2d_feature_extractor(x, kp):
    """x: (B, 1, 4, T) or (B, 4, T) -> (B, 256) features (eval-mode BatchNorm)."""
    if x.ndim == 3:
        x = x[:, None]
    B, C, muscles, T = x.shape
    assert C == 1 and muscles == 4, "expected (B, 1, 4, T) input"

    # Pack the two bf16 muscle channels of each group into one u32 word (muscle 0 of the pair in
    # the low 16 bits), laid out (group, time, batch) so time sits on the sublane axis in-kernel.
    xm = x[:, 0].astype(jnp.bfloat16)                                        # (B, 4, T)
    bits = jax.lax.bitcast_convert_type(xm, jnp.uint16).astype(jnp.uint32)   # (B, 4, T)
    packed = bits[:, 0::2, :] | (bits[:, 1::2, :] << 16)                     # (B, 2, T) u32
    xq = jnp.transpose(packed, (1, 2, 0))                                    # (2, T, B)

    # Static per-stage geometry (floor-mode pooling; "stride" = row pitch in the stacked slab,
    # rounded up to a sublane multiple; the extra trailing zeros are never read by valid taps).
    w1p = (T + 1) // 8
    w2 = w1p; stride2 = _round_up(w2 + 2 * 32, 8); w2p = (w2 + 1) // 4
    w3 = w2p; stride3 = _round_up(w3 + 2 * 16, 8); w3p = (w3 + 1) // 2
    w4 = w3p; stride4 = _round_up(w4 + 2 * 8, 8); w4p = (w4 + 1) // 2
    assert w1p >= 1 and w2p >= 1 and w3p >= 1 and w4p >= 1, "sequence too short"
    cfg = _Cfg(B=B, w1p=w1p,
               pad2=32, kw2=64, stride2=stride2, pool2=4, w2p=w2p,
               pad3=16, kw3=32, stride3=stride3, pool3=2, w3p=w3p,
               pad4=8, kw4=16, stride4=stride4, pool4=2, w4p=w4p)

    out = pl.pallas_call(
        functools.partial(_scnn_fused_kernel, cfg=cfg),
        out_shape=jax.ShapeDtypeStruct((2, B, 256), jnp.float32),
        grid=(2,),
        in_specs=[
            pl.BlockSpec((1, T, B), lambda g: (g, 0, 0)),            # packed input, one group
            pl.BlockSpec((1, 2, 128, 32), lambda g: (g, 0, 0, 0)),   # stage-1 weights (per group)
            pl.BlockSpec((1, 1, 32), lambda g: (g, 0, 0)),           # stage-1 shift  (per group)
            pl.BlockSpec((2048, 64), lambda g: (0, 0)),              # stage-2 weights (resident)
            pl.BlockSpec((1, 64), lambda g: (0, 0)),
            pl.BlockSpec((2048, 128), lambda g: (0, 0)),             # stage-3 weights (resident)
            pl.BlockSpec((1, 128), lambda g: (0, 0)),
            pl.BlockSpec((2048, 256), lambda g: (0, 0)),             # stage-4 weights (resident)
            pl.BlockSpec((1, 256), lambda g: (0, 0)),
        ],
        out_specs=pl.BlockSpec((1, B, 256), lambda g: (g, 0, 0)),
        compiler_params=pltpu.CompilerParams(
            dimension_semantics=("parallel",),
            vmem_limit_bytes=32 * 1024 * 1024),
    )(xq, kp["w1"], kp["sh1"], kp["w2"], kp["sh2"], kp["w3"], kp["sh3"], kp["w4"], kp["sh4"])

    # AdaptiveAvgPool2d((1, 1)) + flatten: positions were averaged in-kernel; average the 2 groups.
    return jnp.mean(out, axis=0)


# ---------------------------------------------------------------------------
# Host-side parameter folding (BN scale into weights, kernel-ready layouts)
# ---------------------------------------------------------------------------
def prepare_params(params):
    def scale_shift(bn, bias):
        gamma, beta, mean, var = bn
        s = gamma / jnp.sqrt(var + EPS)
        return s, (s * (bias - mean) + beta).astype(jnp.float32)

    # Stage 1: spanning conv, one (muscle, tap, out) weight block per muscle group.
    w1_blocks, sh1_blocks = [], []
    for (w, b) in params["span_conv"]:                       # w: (32, 1, 2, 128)
        s, sh = scale_shift(params["bn1"], b)
        wf = jnp.transpose(w[:, 0], (1, 2, 0)) * s[None, None, :]      # (2, 128, 32)
        w1_blocks.append(wf.astype(jnp.bfloat16))
        sh1_blocks.append(sh.reshape(1, 32))
    out = {"w1": jnp.stack(w1_blocks), "sh1": jnp.stack(sh1_blocks)}   # (2,2,128,32), (2,1,32)

    # Stages 2-4: 1-D convs; widened-patch column order is tap*Cin + cin.
    for i in (2, 3, 4):
        w, b = params[f"conv{i}"]                            # (Cout, Cin, 1, kw)
        s, sh = scale_shift(params[f"bn{i}"], b)
        cout, cin, _, kw = w.shape
        wf = jnp.transpose(w[:, :, 0, :], (2, 1, 0)) * s[None, None, :]   # (kw, Cin, Cout)
        out[f"w{i}"] = wf.reshape(kw * cin, cout).astype(jnp.bfloat16)
        out[f"sh{i}"] = sh.reshape(1, cout)
    return out


# ---------------------------------------------------------------------------
# Pure-JAX f32 reference (eval-mode BatchNorm) for correctness checking
# ---------------------------------------------------------------------------
def reference_forward(x, params):
    if x.ndim == 3:
        x = x[:, None]
    x = x.astype(jnp.float32)

    def conv(h, w, b, pad_w):
        y = jax.lax.conv_general_dilated(
            h, w, window_strides=(1, 1), padding=((0, 0), (pad_w, pad_w)),
            dimension_numbers=("NCHW", "OIHW", "NCHW"),
            precision=jax.lax.Precision.HIGHEST)
        return y + b[None, :, None, None]

    def bn_relu(h, bn):
        gamma, beta, mean, var = bn
        s = gamma / jnp.sqrt(var + EPS)
        return jax.nn.relu((h - mean[None, :, None, None]) * s[None, :, None, None]
                           + beta[None, :, None, None])

    def pool(h, k):
        n, c, hh, w = h.shape
        wk = (w // k) * k
        return jnp.max(h[..., :wk].reshape(n, c, hh, w // k, k), axis=-1)

    (wa, ba), (wb, bb) = params["span_conv"]
    h = jnp.concatenate([conv(x[:, :, 0:2, :], wa, ba, 64),
                         conv(x[:, :, 2:4, :], wb, bb, 64)], axis=2)
    h = pool(bn_relu(h, params["bn1"]), 8)
    h = pool(bn_relu(conv(h, *params["conv2"], 32), params["bn2"]), 4)
    h = pool(bn_relu(conv(h, *params["conv3"], 16), params["bn3"]), 2)
    h = pool(bn_relu(conv(h, *params["conv4"], 8), params["bn4"]), 2)
    return h.mean(axis=(2, 3))


# ---------------------------------------------------------------------------
# Deterministic parameter initialization (mirrors the PyTorch module's shapes)
# ---------------------------------------------------------------------------
def _conv_init(key, cout, cin, kh, kw):
    k1, k2 = jax.random.split(key)
    bound = 1.0 / math.sqrt(cin * kh * kw)
    w = jax.random.uniform(k1, (cout, cin, kh, kw), jnp.float32, -bound, bound)
    b = jax.random.uniform(k2, (cout,), jnp.float32, -bound, bound)
    return w, b


def _bn_init(key, c):
    k1, k2 = jax.random.split(key)
    gamma = 1.0 + 0.1 * jax.random.normal(k1, (c,), jnp.float32)
    beta = 0.1 * jax.random.normal(k2, (c,), jnp.float32)
    mean = jnp.zeros((c,), jnp.float32)
    var = jnp.ones((c,), jnp.float32)
    return gamma, beta, mean, var


def init_params(key):
    ks = jax.random.split(key, 10)
    return {
        "span_conv": [_conv_init(ks[0], 32, 1, 2, 128), _conv_init(ks[1], 32, 1, 2, 128)],
        "bn1": _bn_init(ks[2], 32),
        "conv2": _conv_init(ks[3], 64, 32, 1, 64),
        "bn2": _bn_init(ks[4], 64),
        "conv3": _conv_init(ks[5], 128, 64, 1, 32),
        "bn3": _bn_init(ks[6], 128),
        "conv4": _conv_init(ks[7], 256, 128, 1, 16),
        "bn4": _bn_init(ks[8], 256),
    }


# ---------------------------------------------------------------------------
if __name__ == "__main__":
    key = jax.random.PRNGKey(0)
    kx, kp = jax.random.split(key)

    # batch=2, 1 input channel, 4 muscles, 256 time steps (stage-1 kernel width is 128).
    x = jax.random.normal(kx, (2, 1, 4, 256), dtype=jnp.float32)
    params = init_params(kp)
    kparams = prepare_params(params)

    feats = jax.jit(scnn2d_feature_extractor)(x, kparams)
    feats = jax.block_until_ready(feats)
    assert feats.shape == (2, 256), feats.shape
    assert bool(jnp.all(jnp.isfinite(feats)))

    # Parity check against the f32 reference (bf16 weights/activations -> loose tolerance).
    ref = reference_forward(x, params)
    err = float(jnp.max(jnp.abs(feats - ref)))
    scale = float(jnp.max(jnp.abs(ref))) + 1e-6
    assert err <= 0.02 + 0.05 * scale, f"mismatch: max|diff|={err:.4f}, ref scale={scale:.4f}"

    print("KERNEL_OK")
</pallas_src>

<mosaic_0001>
module attributes {stable_mosaic.version = 11 : i64} {
  func.func @_scnn_fused_kernel(%arg0: i32, %arg1: memref<1x256x2xi32, #tpu.memory_space<vmem>>, %arg2: memref<1x2x128x32xbf16, #tpu.memory_space<vmem>>, %arg3: memref<1x1x32xf32, #tpu.memory_space<vmem>>, %arg4: memref<2048x64xbf16, #tpu.memory_space<vmem>>, %arg5: memref<1x64xf32, #tpu.memory_space<vmem>>, %arg6: memref<2048x128xbf16, #tpu.memory_space<vmem>>, %arg7: memref<1x128xf32, #tpu.memory_space<vmem>>, %arg8: memref<2048x256xbf16, #tpu.memory_space<vmem>>, %arg9: memref<1x256xf32, #tpu.memory_space<vmem>>, %arg10: memref<1x2x256xf32, #tpu.memory_space<vmem>>) attributes {dimension_semantics = [#tpu.dimension_semantics<parallel>], iteration_bounds = array<i64: 2>, scalar_prefetch = 0 : i64, scratch_operands = 0 : i64, tpu.core_type = #tpu.core_type<tc>, window_params = [{transform_indices = @transform_0, window_bounds = array<i64: 1, 256, 2>}, {transform_indices = @transform_1, window_bounds = array<i64: 1, 2, 128, 32>}, {transform_indices = @transform_2, window_bounds = array<i64: 1, 1, 32>}, {pipeline_mode = #tpu.pipeline_mode<synchronous>, transform_indices = @transform_3, window_bounds = array<i64: 2048, 64>}, {pipeline_mode = #tpu.pipeline_mode<synchronous>, transform_indices = @transform_4, window_bounds = array<i64: 1, 64>}, {pipeline_mode = #tpu.pipeline_mode<synchronous>, transform_indices = @transform_5, window_bounds = array<i64: 2048, 128>}, {pipeline_mode = #tpu.pipeline_mode<synchronous>, transform_indices = @transform_6, window_bounds = array<i64: 1, 128>}, {pipeline_mode = #tpu.pipeline_mode<synchronous>, transform_indices = @transform_7, window_bounds = array<i64: 2048, 256>}, {pipeline_mode = #tpu.pipeline_mode<synchronous>, transform_indices = @transform_8, window_bounds = array<i64: 1, 256>}, {transform_indices = @transform_9, window_bounds = array<i64: 1, 2, 256>}]} {
    %c0 = arith.constant 0 : index
    %c0_0 = arith.constant 0 : index
    %c0_1 = arith.constant 0 : index
    %0 = vector.load %arg1[%c0, %c0_0, %c0_1] : memref<1x256x2xi32, #tpu.memory_space<vmem>>, vector<1x256x2xi32>
    %1 = vector.shape_cast %0 : vector<1x256x2xi32> to vector<256x2xi32>
    %c0_2 = arith.constant 0 : index
    %c0_3 = arith.constant 0 : index
    %c0_4 = arith.constant 0 : index
    %c0_5 = arith.constant 0 : index
    %2 = vector.load %arg2[%c0_2, %c0_3, %c0_4, %c0_5] : memref<1x2x128x32xbf16, #tpu.memory_space<vmem>>, vector<1x2x128x32xbf16>
    %3 = vector.shape_cast %2 : vector<1x2x128x32xbf16> to vector<2x128x32xbf16>
    %4 = vector.extract_strided_slice %3 {offsets = [0, 0, 0], sizes = [1, 128, 32], strides = [1, 1, 1]} : vector<2x128x32xbf16> to vector<1x128x32xbf16>
    %5 = vector.shape_cast %4 : vector<1x128x32xbf16> to vector<128x32xbf16>
    %6 = vector.extract_strided_slice %3 {offsets = [1, 0, 0], sizes = [1, 128, 32], strides = [1, 1, 1]} : vector<2x128x32xbf16> to vector<1x128x32xbf16>
    %7 = vector.shape_cast %6 : vector<1x128x32xbf16> to vector<128x32xbf16>
    %c0_6 = arith.constant 0 : index
    %c0_7 = arith.constant 0 : index
    %c0_8 = arith.constant 0 : index
    %8 = vector.load %arg3[%c0_6, %c0_7, %c0_8] : memref<1x1x32xf32, #tpu.memory_space<vmem>>, vector<1x1x32xf32>
    %9 = vector.shape_cast %8 : vector<1x1x32xf32> to vector<1x32xf32>
    %c0_i32 = arith.constant 0 : i32
    %10 = vector.broadcast %c0_i32 : i32 to vector<64x1xi32>
    %11 = vector.extract_strided_slice %1 {offsets = [0, 0], sizes = [256, 1], strides = [1, 1]} : vector<256x2xi32> to vector<256x1xi32>
    %12 = tpu.concatenate %10, %11, %10 in 0 : vector<64x1xi32>, vector<256x1xi32>, vector<64x1xi32> -> vector<384x1xi32>
    %13 = vector.extract_strided_slice %12 {offsets = [0, 0], sizes = [383, 1], strides = [1, 1]} : vector<384x1xi32> to vector<383x1xi32>
    %14 = vector.extract_strided_slice %12 {offsets = [1, 0], sizes = [383, 1], strides = [1, 1]} : vector<384x1xi32> to vector<383x1xi32>
    %15 = tpu.concatenate %13, %14 in 1 : vector<383x1xi32>, vector<383x1xi32> -> vector<383x2xi32>
    %16 = vector.extract_strided_slice %15 {offsets = [0, 0], sizes = [381, 2], strides = [1, 1]} : vector<383x2xi32> to vector<381x2xi32>
    %17 = vector.extract_strided_slice %15 {offsets = [2, 0], sizes = [381, 2], strides = [1, 1]} : vector<383x2xi32> to vector<381x2xi32>
    %18 = tpu.concatenate %16, %17 in 1 : vector<381x2xi32>, vector<381x2xi32> -> vector<381x4xi32>
    %19 = vector.extract_strided_slice %18 {offsets = [0, 0], sizes = [377, 4], strides = [1, 1]} : vector<381x4xi32> to vector<377x4xi32>
    %20 = vector.extract_strided_slice %18 {offsets = [4, 0], sizes = [377, 4], strides = [1, 1]} : vector<381x4xi32> to vector<377x4xi32>
    %21 = tpu.concatenate %19, %20 in 1 : vector<377x4xi32>, vector<377x4xi32> -> vector<377x8xi32>
    %22 = vector.extract_strided_slice %21 {offsets = [0, 0], sizes = [369, 8], strides = [1, 1]} : vector<377x8xi32> to vector<369x8xi32>
    %23 = vector.extract_strided_slice %21 {offsets = [8, 0], sizes = [369, 8], strides = [1, 1]} : vector<377x8xi32> to vector<369x8xi32>
    %24 = tpu.concatenate %22, %23 in 1 : vector<369x8xi32>, vector<369x8xi32> -> vector<369x16xi32>
    %25 = vector.extract_strided_slice %24 {offsets = [0, 0], sizes = [353, 16], strides = [1, 1]} : vector<369x16xi32> to vector<353x16xi32>
    %26 = vector.extract_strided_slice %24 {offsets = [16, 0], sizes = [353, 16], strides = [1, 1]} : vector<369x16xi32> to vector<353x16xi32>
    %27 = tpu.concatenate %25, %26 in 1 : vector<353x16xi32>, vector<353x16xi32> -> vector<353x32xi32>
    %28 = vector.extract_strided_slice %27 {offsets = [0, 0], sizes = [321, 32], strides = [1, 1]} : vector<353x32xi32> to vector<321x32xi32>
    %29 = vector.extract_strided_slice %27 {offsets = [32, 0], sizes = [321, 32], strides = [1, 1]} : vector<353x32xi32> to vector<321x32xi32>
    %30 = tpu.concatenate %28, %29 in 1 : vector<321x32xi32>, vector<321x32xi32> -> vector<321x64xi32>
    %31 = vector.extract_strided_slice %30 {offsets = [0, 0], sizes = [257, 64], strides = [1, 1]} : vector<321x64xi32> to vector<257x64xi32>
    %32 = vector.extract_strided_slice %30 {offsets = [64, 0], sizes = [257, 64], strides = [1, 1]} : vector<321x64xi32> to vector<257x64xi32>
    %33 = tpu.concatenate %31, %32 in 1 : vector<257x64xi32>, vector<257x64xi32> -> vector<257x128xi32>
    %c16_i32 = arith.constant 16 : i32
    %34 = vector.broadcast %c16_i32 : i32 to vector<257x128xi32>
    %35 = arith.shli %33, %34 : vector<257x128xi32>
    %36 = tpu.bitcast %35 : vector<257x128xi32> -> vector<257x128xf32>
    %c-65536_i32 = arith.constant -65536 : i32
    %37 = vector.broadcast %c-65536_i32 : i32 to vector<257x128xi32>
    %38 = arith.andi %33, %37 : vector<257x128xi32>
    %39 = tpu.bitcast %38 : vector<257x128xi32> -> vector<257x128xf32>
    %40 = arith.truncf %36 : vector<257x128xf32> to vector<257x128xbf16>
    %cst = arith.constant dense<0.000000e+00> : vector<257x32xf32>
    %41 = tpu.matmul %40, %5, %cst {dimension_numbers = #tpu.dot_dimension_numbers<[1], [0], [0], [1], [0, 0, 1, 1], [], []>} : vector<257x128xbf16>, vector<128x32xbf16>, vector<257x32xf32> -> vector<257x32xf32>
    %42 = arith.truncf %39 : vector<257x128xf32> to vector<257x128xbf16>
    %cst_9 = arith.constant dense<0.000000e+00> : vector<257x32xf32>
    %43 = tpu.matmul %42, %7, %cst_9 {dimension_numbers = #tpu.dot_dimension_numbers<[1], [0], [0], [1], [0, 0, 1, 1], [], []>} : vector<257x128xbf16>, vector<128x32xbf16>, vector<257x32xf32> -> vector<257x32xf32>
    %44 = arith.addf %41, %43 : vector<257x32xf32>
    %45 = vector.extract_strided_slice %44 {offsets = [0, 0], sizes = [256, 32], strides = [1, 1]} : vector<257x32xf32> to vector<256x32xf32>
    %46 = vector.shape_cast %45 : vector<256x32xf32> to vector<32x8x32xf32>
    %cst_10 = arith.constant dense<0xFF800000> : vector<32x32xf32>
    %47 = vector.multi_reduction <maximumf>, %46, %cst_10 [1] : vector<32x8x32xf32> to vector<32x32xf32>
    %48 = vector.broadcast %9 : vector<1x32xf32> to vector<32x32xf32>
    %49 = arith.addf %47, %48 : vector<32x32xf32>
    %cst_11 = arith.constant 0.000000e+00 : f32
    %50 = vector.broadcast %cst_11 : f32 to vector<32x32xf32>
    %51 = arith.maximumf %49, %50 : vector<32x32xf32>
    %52 = arith.truncf %51 : vector<32x32xf32> to vector<32x32xbf16>
    %53 = vector.extract_strided_slice %1 {offsets = [0, 1], sizes = [256, 1], strides = [1, 1]} : vector<256x2xi32> to vector<256x1xi32>
    %54 = tpu.concatenate %10, %53, %10 in 0 : vector<64x1xi32>, vector<256x1xi32>, vector<64x1xi32> -> vector<384x1xi32>
    %55 = vector.extract_strided_slice %54 {offsets = [0, 0], sizes = [383, 1], strides = [1, 1]} : vector<384x1xi32> to vector<383x1xi32>
    %56 = vector.extract_strided_slice %54 {offsets = [1, 0], sizes = [383, 1], strides = [1, 1]} : vector<384x1xi32> to vector<383x1xi32>
    %57 = tpu.concatenate %55, %56 in 1 : vector<383x1xi32>, vector<383x1xi32> -> vector<383x2xi32>
    %58 = vector.extract_strided_slice %57 {offsets = [0, 0], sizes = [381, 2], strides = [1, 1]} : vector<383x2xi32> to vector<381x2xi32>
    %59 = vector.extract_strided_slice %57 {offsets = [2, 0], sizes = [381, 2], strides = [1, 1]} : vector<383x2xi32> to vector<381x2xi32>
    %60 = tpu.concatenate %58, %59 in 1 : vector<381x2xi32>, vector<381x2xi32> -> vector<381x4xi32>
    %61 = vector.extract_strided_slice %60 {offsets = [0, 0], sizes = [377, 4], strides = [1, 1]} : vector<381x4xi32> to vector<377x4xi32>
    %62 = vector.extract_strided_slice %60 {offsets = [4, 0], sizes = [377, 4], strides = [1, 1]} : vector<381x4xi32> to vector<377x4xi32>
    %63 = tpu.concatenate %61, %62 in 1 : vector<377x4xi32>, vector<377x4xi32> -> vector<377x8xi32>
    %64 = vector.extract_strided_slice %63 {offsets = [0, 0], sizes = [369, 8], strides = [1, 1]} : vector<377x8xi32> to vector<369x8xi32>
    %65 = vector.extract_strided_slice %63 {offsets = [8, 0], sizes = [369, 8], strides = [1, 1]} : vector<377x8xi32> to vector<369x8xi32>
    %66 = tpu.concatenate %64, %65 in 1 : vector<369x8xi32>, vector<369x8xi32> -> vector<369x16xi32>
    %67 = vector.extract_strided_slice %66 {offsets = [0, 0], sizes = [353, 16], strides = [1, 1]} : vector<369x16xi32> to vector<353x16xi32>
    %68 = vector.extract_strided_slice %66 {offsets = [16, 0], sizes = [353, 16], strides = [1, 1]} : vector<369x16xi32> to vector<353x16xi32>
    %69 = tpu.concatenate %67, %68 in 1 : vector<353x16xi32>, vector<353x16xi32> -> vector<353x32xi32>
    %70 = vector.extract_strided_slice %69 {offsets = [0, 0], sizes = [321, 32], strides = [1, 1]} : vector<353x32xi32> to vector<321x32xi32>
    %71 = vector.extract_strided_slice %69 {offsets = [32, 0], sizes = [321, 32], strides = [1, 1]} : vector<353x32xi32> to vector<321x32xi32>
    %72 = tpu.concatenate %70, %71 in 1 : vector<321x32xi32>, vector<321x32xi32> -> vector<321x64xi32>
    %73 = vector.extract_strided_slice %72 {offsets = [0, 0], sizes = [257, 64], strides = [1, 1]} : vector<321x64xi32> to vector<257x64xi32>
    %74 = vector.extract_strided_slice %72 {offsets = [64, 0], sizes = [257, 64], strides = [1, 1]} : vector<321x64xi32> to vector<257x64xi32>
    %75 = tpu.concatenate %73, %74 in 1 : vector<257x64xi32>, vector<257x64xi32> -> vector<257x128xi32>
    %c16_i32_12 = arith.constant 16 : i32
    %76 = vector.broadcast %c16_i32_12 : i32 to vector<257x128xi32>
    %77 = arith.shli %75, %76 : vector<257x128xi32>
    %78 = tpu.bitcast %77 : vector<257x128xi32> -> vector<257x128xf32>
    %c-65536_i32_13 = arith.constant -65536 : i32
    %79 = vector.broadcast %c-65536_i32_13 : i32 to vector<257x128xi32>
    %80 = arith.andi %75, %79 : vector<257x128xi32>
    %81 = tpu.bitcast %80 : vector<257x128xi32> -> vector<257x128xf32>
    %82 = arith.truncf %78 : vector<257x128xf32> to vector<257x128xbf16>
    %cst_14 = arith.constant dense<0.000000e+00> : vector<257x32xf32>
    %83 = tpu.matmul %82, %5, %cst_14 {dimension_numbers = #tpu.dot_dimension_numbers<[1], [0], [0], [1], [0, 0, 1, 1], [], []>} : vector<257x128xbf16>, vector<128x32xbf16>, vector<257x32xf32> -> vector<257x32xf32>
    %84 = arith.truncf %81 : vector<257x128xf32> to vector<257x128xbf16>
    %cst_15 = arith.constant dense<0.000000e+00> : vector<257x32xf32>
    %85 = tpu.matmul %84, %7, %cst_15 {dimension_numbers = #tpu.dot_dimension_numbers<[1], [0], [0], [1], [0, 0, 1, 1], [], []>} : vector<257x128xbf16>, vector<128x32xbf16>, vector<257x32xf32> -> vector<257x32xf32>
    %86 = arith.addf %83, %85 : vector<257x32xf32>
    %87 = vector.extract_strided_slice %86 {offsets = [0, 0], sizes = [256, 32], strides = [1, 1]} : vector<257x32xf32> to vector<256x32xf32>
    %88 = vector.shape_cast %87 : vector<256x32xf32> to vector<32x8x32xf32>
    %cst_16 = arith.constant dense<0xFF800000> : vector<32x32xf32>
    %89 = vector.multi_reduction <maximumf>, %88, %cst_16 [1] : vector<32x8x32xf32> to vector<32x32xf32>
    %90 = vector.broadcast %9 : vector<1x32xf32> to vector<32x32xf32>
    %91 = arith.addf %89, %90 : vector<32x32xf32>
    %cst_17 = arith.constant 0.000000e+00 : f32
    %92 = vector.broadcast %cst_17 : f32 to vector<32x32xf32>
    %93 = arith.maximumf %91, %92 : vector<32x32xf32>
    %94 = arith.truncf %93 : vector<32x32xf32> to vector<32x32xbf16>
    %cst_18 = arith.constant 0.000000e+00 : bf16
    %95 = vector.broadcast %cst_18 : bf16 to vector<32x32xbf16>
    %cst_19 = arith.constant 0.000000e+00 : bf16
    %96 = vector.broadcast %cst_19 : bf16 to vector<32x32xbf16>
    %cst_20 = arith.constant 0.000000e+00 : bf16
    %97 = vector.broadcast %cst_20 : bf16 to vector<32x32xbf16>
    %98 = tpu.concatenate %95, %52, %96, %95, %94, %97 in 0 : vector<32x32xbf16>, vector<32x32xbf16>, vector<32x32xbf16>, vector<32x32xbf16>, vector<32x32xbf16>, vector<32x32xbf16> -> vector<192x32xbf16>
    %99 = vector.extract_strided_slice %98 {offsets = [0, 0], sizes = [191, 32], strides = [1, 1]} : vector<192x32xbf16> to vector<191x32xbf16>
    %100 = vector.extract_strided_slice %98 {offsets = [1, 0], sizes = [191, 32], strides = [1, 1]} : vector<192x32xbf16> to vector<191x32xbf16>
    %101 = tpu.concatenate %99, %100 in 1 : vector<191x32xbf16>, vector<191x32xbf16> -> vector<191x64xbf16>
    %102 = vector.extract_strided_slice %101 {offsets = [0, 0], sizes = [189, 64], strides = [1, 1]} : vector<191x64xbf16> to vector<189x64xbf16>
    %103 = vector.extract_strided_slice %101 {offsets = [2, 0], sizes = [189, 64], strides = [1, 1]} : vector<191x64xbf16> to vector<189x64xbf16>
    %104 = tpu.concatenate %102, %103 in 1 : vector<189x64xbf16>, vector<189x64xbf16> -> vector<189x128xbf16>
    %105 = vector.extract_strided_slice %104 {offsets = [0, 0], sizes = [185, 128], strides = [1, 1]} : vector<189x128xbf16> to vector<185x128xbf16>
    %106 = vector.extract_strided_slice %104 {offsets = [4, 0], sizes = [185, 128], strides = [1, 1]} : vector<189x128xbf16> to vector<185x128xbf16>
    %107 = tpu.concatenate %105, %106 in 1 : vector<185x128xbf16>, vector<185x128xbf16> -> vector<185x256xbf16>
    %108 = vector.extract_strided_slice %107 {offsets = [0, 0], sizes = [177, 256], strides = [1, 1]} : vector<185x256xbf16> to vector<177x256xbf16>
    %109 = vector.extract_strided_slice %107 {offsets = [8, 0], sizes = [177, 256], strides = [1, 1]} : vector<185x256xbf16> to vector<177x256xbf16>
    %110 = tpu.concatenate %108, %109 in 1 : vector<177x256xbf16>, vector<177x256xbf16> -> vector<177x512xbf16>
    %111 = vector.extract_strided_slice %110 {offsets = [0, 0], sizes = [161, 512], strides = [1, 1]} : vector<177x512xbf16> to vector<161x512xbf16>
    %112 = vector.extract_strided_slice %110 {offsets = [16, 0], sizes = [161, 512], strides = [1, 1]} : vector<177x512xbf16> to vector<161x512xbf16>
    %113 = tpu.concatenate %111, %112 in 1 : vector<161x512xbf16>, vector<161x512xbf16> -> vector<161x1024xbf16>
    %114 = vector.extract_strided_slice %113 {offsets = [0, 0], sizes = [129, 1024], strides = [1, 1]} : vector<161x1024xbf16> to vector<129x1024xbf16>
    %115 = vector.extract_strided_slice %113 {offsets = [32, 0], sizes = [129, 1024], strides = [1, 1]} : vector<161x1024xbf16> to vector<129x1024xbf16>
    %116 = tpu.concatenate %114, %115 in 1 : vector<129x1024xbf16>, vector<129x1024xbf16> -> vector<129x2048xbf16>
    %c0_21 = arith.constant 0 : index
    %c0_22 = arith.constant 0 : index
    %117 = vector.load %arg4[%c0_21, %c0_22] : memref<2048x64xbf16, #tpu.memory_space<vmem>>, vector<2048x64xbf16>
    %cst_23 = arith.constant dense<0.000000e+00> : vector<129x64xf32>
    %118 = tpu.matmul %116, %117, %cst_23 {dimension_numbers = #tpu.dot_dimension_numbers<[1], [0], [0], [1], [0, 0, 1, 1], [], []>} : vector<129x2048xbf16>, vector<2048x64xbf16>, vector<129x64xf32> -> vector<129x64xf32>
    %c0_24 = arith.constant 0 : index
    %c0_25 = arith.constant 0 : index
    %119 = vector.load %arg5[%c0_24, %c0_25] : memref<1x64xf32, #tpu.memory_space<vmem>>, vector<1x64xf32>
    %120 = vector.extract_strided_slice %118 {offsets = [0, 0], sizes = [32, 64], strides = [1, 1]} : vector<129x64xf32> to vector<32x64xf32>
    %121 = vector.shape_cast %120 : vector<32x64xf32> to vector<8x4x64xf32>
    %cst_26 = arith.constant dense<0xFF800000> : vector<8x64xf32>
    %122 = vector.multi_reduction <maximumf>, %121, %cst_26 [1] : vector<8x4x64xf32> to vector<8x64xf32>
    %123 = vector.broadcast %119 : vector<1x64xf32> to vector<8x64xf32>
    %124 = arith.addf %122, %123 : vector<8x64xf32>
    %cst_27 = arith.constant 0.000000e+00 : f32
    %125 = vector.broadcast %cst_27 : f32 to vector<8x64xf32>
    %126 = arith.maximumf %124, %125 : vector<8x64xf32>
    %127 = arith.truncf %126 : vector<8x64xf32> to vector<8x64xbf16>
    %128 = vector.extract_strided_slice %118 {offsets = [96, 0], sizes = [32, 64], strides = [1, 1]} : vector<129x64xf32> to vector<32x64xf32>
    %129 = vector.shape_cast %128 : vector<32x64xf32> to vector<8x4x64xf32>
    %cst_28 = arith.constant dense<0xFF800000> : vector<8x64xf32>
    %130 = vector.multi_reduction <maximumf>, %129, %cst_28 [1] : vector<8x4x64xf32> to vector<8x64xf32>
    %131 = vector.broadcast %119 : vector<1x64xf32> to vector<8x64xf32>
    %132 = arith.addf %130, %131 : vector<8x64xf32>
    %cst_29 = arith.constant 0.000000e+00 : f32
    %133 = vector.broadcast %cst_29 : f32 to vector<8x64xf32>
    %134 = arith.maximumf %132, %133 : vector<8x64xf32>
    %135 = arith.truncf %134 : vector<8x64xf32> to vector<8x64xbf16>
    %cst_30 = arith.constant 0.000000e+00 : bf16
    %136 = vector.broadcast %cst_30 : bf16 to vector<16x64xbf16>
    %cst_31 = arith.constant 0.000000e+00 : bf16
    %137 = vector.broadcast %cst_31 : bf16 to vector<16x64xbf16>
    %cst_32 = arith.constant 0.000000e+00 : bf16
    %138 = vector.broadcast %cst_32 : bf16 to vector<16x64xbf16>
    %139 = tpu.concatenate %136, %127, %137, %136, %135, %138 in 0 : vector<16x64xbf16>, vector<8x64xbf16>, vector<16x64xbf16>, vector<16x64xbf16>, vector<8x64xbf16>, vector<16x64xbf16> -> vector<80x64xbf16>
    %140 = vector.extract_strided_slice %139 {offsets = [0, 0], sizes = [79, 64], strides = [1, 1]} : vector<80x64xbf16> to vector<79x64xbf16>
    %141 = vector.extract_strided_slice %139 {offsets = [1, 0], sizes = [79, 64], strides = [1, 1]} : vector<80x64xbf16> to vector<79x64xbf16>
    %142 = tpu.concatenate %140, %141 in 1 : vector<79x64xbf16>, vector<79x64xbf16> -> vector<79x128xbf16>
    %143 = vector.extract_strided_slice %142 {offsets = [0, 0], sizes = [77, 128], strides = [1, 1]} : vector<79x128xbf16> to vector<77x128xbf16>
    %144 = vector.extract_strided_slice %142 {offsets = [2, 0], sizes = [77, 128], strides = [1, 1]} : vector<79x128xbf16> to vector<77x128xbf16>
    %145 = tpu.concatenate %143, %144 in 1 : vector<77x128xbf16>, vector<77x128xbf16> -> vector<77x256xbf16>
    %146 = vector.extract_strided_slice %145 {offsets = [0, 0], sizes = [73, 256], strides = [1, 1]} : vector<77x256xbf16> to vector<73x256xbf16>
    %147 = vector.extract_strided_slice %145 {offsets = [4, 0], sizes = [73, 256], strides = [1, 1]} : vector<77x256xbf16> to vector<73x256xbf16>
    %148 = tpu.concatenate %146, %147 in 1 : vector<73x256xbf16>, vector<73x256xbf16> -> vector<73x512xbf16>
    %149 = vector.extract_strided_slice %148 {offsets = [0, 0], sizes = [65, 512], strides = [1, 1]} : vector<73x512xbf16> to vector<65x512xbf16>
    %150 = vector.extract_strided_slice %148 {offsets = [8, 0], sizes = [65, 512], strides = [1, 1]} : vector<73x512xbf16> to vector<65x512xbf16>
    %151 = tpu.concatenate %149, %150 in 1 : vector<65x512xbf16>, vector<65x512xbf16> -> vector<65x1024xbf16>
    %152 = vector.extract_strided_slice %151 {offsets = [0, 0], sizes = [49, 1024], strides = [1, 1]} : vector<65x1024xbf16> to vector<49x1024xbf16>
    %153 = vector.extract_strided_slice %151 {offsets = [16, 0], sizes = [49, 1024], strides = [1, 1]} : vector<65x1024xbf16> to vector<49x1024xbf16>
    %154 = tpu.concatenate %152, %153 in 1 : vector<49x1024xbf16>, vector<49x1024xbf16> -> vector<49x2048xbf16>
    %c0_33 = arith.constant 0 : index
    %c0_34 = arith.constant 0 : index
    %155 = vector.load %arg6[%c0_33, %c0_34] : memref<2048x128xbf16, #tpu.memory_space<vmem>>, vector<2048x128xbf16>
    %cst_35 = arith.constant dense<0.000000e+00> : vector<49x128xf32>
    %156 = tpu.matmul %154, %155, %cst_35 {dimension_numbers = #tpu.dot_dimension_numbers<[1], [0], [0], [1], [0, 0, 1, 1], [], []>} : vector<49x2048xbf16>, vector<2048x128xbf16>, vector<49x128xf32> -> vector<49x128xf32>
    %c0_36 = arith.constant 0 : index
    %c0_37 = arith.constant 0 : index
    %157 = vector.load %arg7[%c0_36, %c0_37] : memref<1x128xf32, #tpu.memory_space<vmem>>, vector<1x128xf32>
    %158 = vector.extract_strided_slice %156 {offsets = [0, 0], sizes = [8, 128], strides = [1, 1]} : vector<49x128xf32> to vector<8x128xf32>
    %159 = vector.shape_cast %158 : vector<8x128xf32> to vector<4x2x128xf32>
    %cst_38 = arith.constant dense<0xFF800000> : vector<4x128xf32>
    %160 = vector.multi_reduction <maximumf>, %159, %cst_38 [1] : vector<4x2x128xf32> to vector<4x128xf32>
    %161 = vector.broadcast %157 : vector<1x128xf32> to vector<4x128xf32>
    %162 = arith.addf %160, %161 : vector<4x128xf32>
    %cst_39 = arith.constant 0.000000e+00 : f32
    %163 = vector.broadcast %cst_39 : f32 to vector<4x128xf32>
    %164 = arith.maximumf %162, %163 : vector<4x128xf32>
    %165 = arith.truncf %164 : vector<4x128xf32> to vector<4x128xbf16>
    %166 = vector.extract_strided_slice %156 {offsets = [40, 0], sizes = [8, 128], strides = [1, 1]} : vector<49x128xf32> to vector<8x128xf32>
    %167 = vector.shape_cast %166 : vector<8x128xf32> to vector<4x2x128xf32>
    %cst_40 = arith.constant dense<0xFF800000> : vector<4x128xf32>
    %168 = vector.multi_reduction <maximumf>, %167, %cst_40 [1] : vector<4x2x128xf32> to vector<4x128xf32>
    %169 = vector.broadcast %157 : vector<1x128xf32> to vector<4x128xf32>
    %170 = arith.addf %168, %169 : vector<4x128xf32>
    %cst_41 = arith.constant 0.000000e+00 : f32
    %171 = vector.broadcast %cst_41 : f32 to vector<4x128xf32>
    %172 = arith.maximumf %170, %171 : vector<4x128xf32>
    %173 = arith.truncf %172 : vector<4x128xf32> to vector<4x128xbf16>
    %cst_42 = arith.constant 0.000000e+00 : bf16
    %174 = vector.broadcast %cst_42 : bf16 to vector<8x128xbf16>
    %cst_43 = arith.constant 0.000000e+00 : bf16
    %175 = vector.broadcast %cst_43 : bf16 to vector<12x128xbf16>
    %cst_44 = arith.constant 0.000000e+00 : bf16
    %176 = vector.broadcast %cst_44 : bf16 to vector<12x128xbf16>
    %177 = tpu.concatenate %174, %165, %175, %174, %173, %176 in 0 : vector<8x128xbf16>, vector<4x128xbf16>, vector<12x128xbf16>, vector<8x128xbf16>, vector<4x128xbf16>, vector<12x128xbf16> -> vector<48x128xbf16>
    %178 = vector.extract_strided_slice %177 {offsets = [0, 0], sizes = [47, 128], strides = [1, 1]} : vector<48x128xbf16> to vector<47x128xbf16>
    %179 = vector.extract_strided_slice %177 {offsets = [1, 0], sizes = [47, 128], strides = [1, 1]} : vector<48x128xbf16> to vector<47x128xbf16>
    %180 = tpu.concatenate %178, %179 in 1 : vector<47x128xbf16>, vector<47x128xbf16> -> vector<47x256xbf16>
    %181 = vector.extract_strided_slice %180 {offsets = [0, 0], sizes = [45, 256], strides = [1, 1]} : vector<47x256xbf16> to vector<45x256xbf16>
    %182 = vector.extract_strided_slice %180 {offsets = [2, 0], sizes = [45, 256], strides = [1, 1]} : vector<47x256xbf16> to vector<45x256xbf16>
    %183 = tpu.concatenate %181, %182 in 1 : vector<45x256xbf16>, vector<45x256xbf16> -> vector<45x512xbf16>
    %184 = vector.extract_strided_slice %183 {offsets = [0, 0], sizes = [41, 512], strides = [1, 1]} : vector<45x512xbf16> to vector<41x512xbf16>
    %185 = vector.extract_strided_slice %183 {offsets = [4, 0], sizes = [41, 512], strides = [1, 1]} : vector<45x512xbf16> to vector<41x512xbf16>
    %186 = tpu.concatenate %184, %185 in 1 : vector<41x512xbf16>, vector<41x512xbf16> -> vector<41x1024xbf16>
    %187 = vector.extract_strided_slice %186 {offsets = [0, 0], sizes = [33, 1024], strides = [1, 1]} : vector<41x1024xbf16> to vector<33x1024xbf16>
    %188 = vector.extract_strided_slice %186 {offsets = [8, 0], sizes = [33, 1024], strides = [1, 1]} : vector<41x1024xbf16> to vector<33x1024xbf16>
    %189 = tpu.concatenate %187, %188 in 1 : vector<33x1024xbf16>, vector<33x1024xbf16> -> vector<33x2048xbf16>
    %c0_45 = arith.constant 0 : index
    %c0_46 = arith.constant 0 : index
    %190 = vector.load %arg8[%c0_45, %c0_46] : memref<2048x256xbf16, #tpu.memory_space<vmem>>, vector<2048x256xbf16>
    %cst_47 = arith.constant dense<0.000000e+00> : vector<33x256xf32>
    %191 = tpu.matmul %189, %190, %cst_47 {dimension_numbers = #tpu.dot_dimension_numbers<[1], [0], [0], [1], [0, 0, 1, 1], [], []>} : vector<33x2048xbf16>, vector<2048x256xbf16>, vector<33x256xf32> -> vector<33x256xf32>
    %c0_48 = arith.constant 0 : index
    %c0_49 = arith.constant 0 : index
    %192 = vector.load %arg9[%c0_48, %c0_49] : memref<1x256xf32, #tpu.memory_space<vmem>>, vector<1x256xf32>
    %193 = vector.extract_strided_slice %191 {offsets = [0, 0], sizes = [4, 256], strides = [1, 1]} : vector<33x256xf32> to vector<4x256xf32>
    %194 = vector.shape_cast %193 : vector<4x256xf32> to vector<2x2x256xf32>
    %cst_50 = arith.constant dense<0xFF800000> : vector<2x256xf32>
    %195 = vector.multi_reduction <maximumf>, %194, %cst_50 [1] : vector<2x2x256xf32> to vector<2x256xf32>
    %196 = vector.broadcast %192 : vector<1x256xf32> to vector<2x256xf32>
    %197 = arith.addf %195, %196 : vector<2x256xf32>
    %cst_51 = arith.constant 0.000000e+00 : f32
    %198 = vector.broadcast %cst_51 : f32 to vector<2x256xf32>
    %199 = arith.maximumf %197, %198 : vector<2x256xf32>
    %cst_52 = arith.constant dense<0.000000e+00> : vector<256xf32>
    %200 = vector.multi_reduction <add>, %199, %cst_52 [0] : vector<2x256xf32> to vector<256xf32>
    %201 = vector.shape_cast %200 : vector<256xf32> to vector<1x256xf32>
    %cst_53 = arith.constant 2.000000e+00 : f32
    %202 = vector.broadcast %cst_53 : f32 to vector<1x256xf32>
    %203 = arith.divf %201, %202 : vector<1x256xf32>
    %204 = vector.extract_strided_slice %191 {offsets = [24, 0], sizes = [4, 256], strides = [1, 1]} : vector<33x256xf32> to vector<4x256xf32>
    %205 = vector.shape_cast %204 : vector<4x256xf32> to vector<2x2x256xf32>
    %cst_54 = arith.constant dense<0xFF800000> : vector<2x256xf32>
    %206 = vector.multi_reduction <maximumf>, %205, %cst_54 [1] : vector<2x2x256xf32> to vector<2x256xf32>
    %207 = vector.broadcast %192 : vector<1x256xf32> to vector<2x256xf32>
    %208 = arith.addf %206, %207 : vector<2x256xf32>
    %cst_55 = arith.constant 0.000000e+00 : f32
    %209 = vector.broadcast %cst_55 : f32 to vector<2x256xf32>
    %210 = arith.maximumf %208, %209 : vector<2x256xf32>
    %cst_56 = arith.constant dense<0.000000e+00> : vector<256xf32>
    %211 = vector.multi_reduction <add>, %210, %cst_56 [0] : vector<2x256xf32> to vector<256xf32>
    %212 = vector.shape_cast %211 : vector<256xf32> to vector<1x256xf32>
    %cst_57 = arith.constant 2.000000e+00 : f32
    %213 = vector.broadcast %cst_57 : f32 to vector<1x256xf32>
    %214 = arith.divf %212, %213 : vector<1x256xf32>
    %215 = tpu.concatenate %203, %214 in 0 : vector<1x256xf32>, vector<1x256xf32> -> vector<2x256xf32>
    %c0_58 = arith.constant 0 : index
    %c0_59 = arith.constant 0 : index
    %c0_60 = arith.constant 0 : index
    %216 = vector.load %arg10[%c0_58, %c0_59, %c0_60] : memref<1x2x256xf32, #tpu.memory_space<vmem>>, vector<1x2x256xf32>
    %217 = vector.shape_cast %216 : vector<1x2x256xf32> to vector<2x256xf32>
    %218 = vector.shape_cast %215 : vector<2x256xf32> to vector<1x2x256xf32>
    tpu.vector_store %arg10[%c0_58, %c0_59, %c0_60], %218 {strides = array<i32>} : memref<1x2x256xf32, #tpu.memory_space<vmem>>, vector<1x2x256xf32>,
    return
  }
  func.func @transform_0(%arg0: i32) -> (i32, i32, i32) {
    %c0_i32 = arith.constant 0 : i32
    %c0_i32_0 = arith.constant 0 : i32
    %c0_i32_1 = arith.constant 0 : i32
    return %arg0, %c0_i32, %c0_i32_0 : i32, i32, i32
  }
  func.func @transform_1(%arg0: i32) -> (i32, i32, i32, i32) {
    %c0_i32 = arith.constant 0 : i32
    %c0_i32_0 = arith.constant 0 : i32
    %c0_i32_1 = arith.constant 0 : i32
    %c0_i32_2 = arith.constant 0 : i32
    return %arg0, %c0_i32, %c0_i32_0, %c0_i32_1 : i32, i32, i32, i32
  }
  func.func @transform_2(%arg0: i32) -> (i32, i32, i32) {
    %c0_i32 = arith.constant 0 : i32
    %c0_i32_0 = arith.constant 0 : i32
    %c0_i32_1 = arith.constant 0 : i32
    return %arg0, %c0_i32, %c0_i32_0 : i32, i32, i32
  }
  func.func @transform_3(%arg0: i32) -> (i32, i32) {
    %c0_i32 = arith.constant 0 : i32
    %c0_i32_0 = arith.constant 0 : i32
    %c0_i32_1 = arith.constant 0 : i32
    return %c0_i32, %c0_i32_0 : i32, i32
  }
  func.func @transform_4(%arg0: i32) -> (i32, i32) {
    %c0_i32 = arith.constant 0 : i32
    %c0_i32_0 = arith.constant 0 : i32
    %c0_i32_1 = arith.constant 0 : i32
    return %c0_i32, %c0_i32_0 : i32, i32
  }
  func.func @transform_5(%arg0: i32) -> (i32, i32) {
    %c0_i32 = arith.constant 0 : i32
    %c0_i32_0 = arith.constant 0 : i32
    %c0_i32_1 = arith.constant 0 : i32
    return %c0_i32, %c0_i32_0 : i32, i32
  }
  func.func @transform_6(%arg0: i32) -> (i32, i32) {
    %c0_i32 = arith.constant 0 : i32
    %c0_i32_0 = arith.constant 0 : i32
    %c0_i32_1 = arith.constant 0 : i32
    return %c0_i32, %c0_i32_0 : i32, i32
  }
  func.func @transform_7(%arg0: i32) -> (i32, i32) {
    %c0_i32 = arith.constant 0 : i32
    %c0_i32_0 = arith.constant 0 : i32
    %c0_i32_1 = arith.constant 0 : i32
    return %c0_i32, %c0_i32_0 : i32, i32
  }
  func.func @transform_8(%arg0: i32) -> (i32, i32) {
    %c0_i32 = arith.constant 0 : i32
    %c0_i32_0 = arith.constant 0 : i32
    %c0_i32_1 = arith.constant 0 : i32
    return %c0_i32, %c0_i32_0 : i32, i32
  }
  func.func @transform_9(%arg0: i32) -> (i32, i32, i32) {
    %c0_i32 = arith.constant 0 : i32
    %c0_i32_0 = arith.constant 0 : i32
    %c0_i32_1 = arith.constant 0 : i32
    return %arg0, %c0_i32, %c0_i32_0 : i32, i32, i32
  }
}

</mosaic_0001>

<llo_original>
// kernel: scnn2d_feature_extractor.1
$region0: #{scnn2d_feature_extractor.1}
  #allocation0 [shape = 'u32[]', space=smem, size = 0x4, offset = 0x4, fixed_abs, tag = 'smem constant byte address 0x4 - core index']
  #allocation1 [shape = 'u32[144,128]{1,0:T(1,128)}', space=vmem, size = 0x12000, scoped, tag = 'internal scratch']
  %s0 = inlined_call_operand.vmem [shape: u32[2,256,2], index: 0, kind: input, shape index: {}]
  %s1 = inlined_call_operand.vmem [shape: bf16[2,2,128,32], index: 1, kind: input, shape index: {}]
  %s2 = inlined_call_operand.vmem [shape: f32[2,1,32], index: 2, kind: input, shape index: {}]
  %s3 = inlined_call_operand.vmem [shape: bf16[2048,64], index: 3, kind: input, shape index: {}]
  %s4 = inlined_call_operand.vmem [shape: f32[1,64], index: 4, kind: input, shape index: {}]
  %s5 = inlined_call_operand.vmem [shape: bf16[2048,128], index: 5, kind: input, shape index: {}]
  %s6 = inlined_call_operand.vmem [shape: f32[1,128], index: 6, kind: input, shape index: {}]
  %s7 = inlined_call_operand.vmem [shape: bf16[2048,256], index: 7, kind: input, shape index: {}]
  %s8 = inlined_call_operand.vmem [shape: f32[1,256], index: 8, kind: input, shape index: {}]
  %s9 = inlined_call_operand.vmem [shape: f32[2,2,256], index: 9, kind: output, shape index: {}]
  %s10 = sld [smem:[#allocation0]]
  $region69: #{scnn2d_feature_extractor.1} parent=0
    _
  %s12 = ssub.s32 1, %s10
  %s13 = scalar_select 0, %s12, %s10
  loop: start=0, step=1, limit=4
  $region2: #{scnn2d_feature_extractor.1} parent=0 // loop_pre_header
    _
  $region3: #{scnn2d_feature_extractor.1} parent=0 // loop_header
    %s15 = sphi 0, %s19
    %p16 = scmp.ge.s32.totalorder %s15, 4
    %s25 = sphi 0, %s27
    %s28 = sphi 0, %s25
    %s29 = sphi 0, %s28
    %s45 = sphi 0, %s29
    %s51 = sphi 0, %s53
    %s54 = sphi 0, %s51
    %s55 = sphi 0, %s54
    %s71 = sphi 0, %s55
    %s77 = sphi 0, %s79
    %s80 = sphi 0, %s77
    %s81 = sphi 0, %s80
    %s97 = sphi 0, %s81
    %s101 = sphi 0, %s101
    %s103 = sphi 0, %s101
    %s104 = sphi 0, %s103
    %s118 = sphi 0, %s104
    %s122 = sphi 0, %s122
    %s124 = sphi 0, %s122
    %s125 = sphi 0, %s124
    %s139 = sphi 0, %s125
    %s143 = sphi 0, %s143
    %s145 = sphi 0, %s143
    %s146 = sphi 0, %s145
    %s160 = sphi 0, %s146
    %s164 = sphi 0, %s164
    %s166 = sphi 0, %s164
    %s167 = sphi 0, %s166
    %s181 = sphi 0, %s167
    %s185 = sphi 0, %s185
    %s187 = sphi 0, %s185
    %s188 = sphi 0, %s187
    %s202 = sphi 0, %s188
    %s206 = sphi 0, %s206
    %s208 = sphi 0, %s206
    %s209 = sphi 0, %s208
    %s223 = sphi 0, %s209
    %s229 = sphi 0, %s231
    %s232 = sphi 0, %s229
    %s233 = sphi 0, %s232
    %s249 = sphi 0, %s233
  $region4: #{scnn2d_feature_extractor.1} parent=0 // loop_header_branch
    %18 = sbr.rel (%p16) target = $region8
  $region5: #{scnn2d_feature_extractor.1} parent=0 // loop_body
    %s20 = ssub.s32 %s15, 1
    %s21 = ssub.s32 %s15, 2
    %s22 = sadd.s32 %s15, 1
    %s23 = ssub.s32 %s15, %s22
    %p24 = scmp.eq.s32.totalorder %s23, 0
    %s26 = sadd.s32 %s25, 1
    %s27 = scalar_select %p24, %s25, %s26
    %p30 = pneg %p24
    %p31 = scmp.eq.s32.totalorder %s15, 1
    %p32 = por %p30, %p31
    %p33 = scmp.ne.s32.totalorder %s25, %s28
    %p34 = scmp.eq.s32.totalorder %s15, 0
    %p35 = por %p33, %p34
    %p36 = scmp.ne.s32.totalorder %s25, %s28
    %p37 = scmp.eq.s32.totalorder %s20, 1
    %p38 = por %p36, %p37
    %p39 = scmp.ne.s32.totalorder %s28, %s29
    %p40 = scmp.eq.s32.totalorder %s20, 0
    %p41 = por %p39, %p40
    %p42 = scmp.ne.s32.totalorder %s28, %s29
    %p43 = scmp.eq.s32.totalorder %s21, 1
    %p44 = por %p42, %p43
    %p46 = scmp.ne.s32.totalorder %s29, %s45
    %p47 = scmp.eq.s32.totalorder %s21, 0
    %p48 = por %p46, %p47
    %s49 = ssub.s32 %s15, %s22
    %p50 = scmp.eq.s32.totalorder %s49, 0
    %s52 = sadd.s32 %s51, 1
    %s53 = scalar_select %p50, %s51, %s52
    %p56 = pneg %p50
    %p57 = scmp.eq.s32.totalorder %s15, 1
    %p58 = por %p56, %p57
    %p59 = scmp.ne.s32.totalorder %s51, %s54
    %p60 = scmp.eq.s32.totalorder %s15, 0
    %p61 = por %p59, %p60
    %p62 = scmp.ne.s32.totalorder %s51, %s54
    %p63 = scmp.eq.s32.totalorder %s20, 1
    %p64 = por %p62, %p63
    %p65 = scmp.ne.s32.totalorder %s54, %s55
    %p66 = scmp.eq.s32.totalorder %s20, 0
    %p67 = por %p65, %p66
    %p68 = scmp.ne.s32.totalorder %s54, %s55
    %p69 = scmp.eq.s32.totalorder %s21, 1
    %p70 = por %p68, %p69
    %p72 = scmp.ne.s32.totalorder %s55, %s71
    %p73 = scmp.eq.s32.totalorder %s21, 0
    %p74 = por %p72, %p73
    %s75 = ssub.s32 %s15, %s22
    %p76 = scmp.eq.s32.totalorder %s75, 0
    %s78 = sadd.s32 %s77, 1
    %s79 = scalar_select %p76, %s77, %s78
    %p82 = pneg %p76
    %p83 = scmp.eq.s32.totalorder %s15, 1
    %p84 = por %p82, %p83
    %p85 = scmp.ne.s32.totalorder %s77, %s80
    %p86 = scmp.eq.s32.totalorder %s15, 0
    %p87 = por %p85, %p86
    %p88 = scmp.ne.s32.totalorder %s77, %s80
    %p89 = scmp.eq.s32.totalorder %s20, 1
    %p90 = por %p88, %p89
    %p91 = scmp.ne.s32.totalorder %s80, %s81
    %p92 = scmp.eq.s32.totalorder %s20, 0
    %p93 = por %p91, %p92
    %p94 = scmp.ne.s32.totalorder %s80, %s81
    %p95 = scmp.eq.s32.totalorder %s21, 1
    %p96 = por %p94, %p95
    %p98 = scmp.ne.s32.totalorder %s81, %s97
    %p99 = scmp.eq.s32.totalorder %s21, 0
    %p100 = por %p98, %p99
    %s102 = sadd.s32 %s101, 1
    %p105 = scmp.eq.s32.totalorder %s15, 1
    %p106 = scmp.ne.s32.totalorder %s101, %s103
    %p107 = scmp.eq.s32.totalorder %s15, 0
    %p108 = por %p106, %p107
    %p109 = scmp.ne.s32.totalorder %s101, %s103
    %p110 = scmp.eq.s32.totalorder %s20, 1
    %p111 = por %p109, %p110
    %p112 = scmp.ne.s32.totalorder %s103, %s104
    %p113 = scmp.eq.s32.totalorder %s20, 0
    %p114 = por %p112, %p113
    %p115 = scmp.ne.s32.totalorder %s103, %s104
    %p116 = scmp.eq.s32.totalorder %s21, 1
    %p117 = por %p115, %p116
    %p119 = scmp.ne.s32.totalorder %s104, %s118
    %p120 = scmp.eq.s32.totalorder %s21, 0
    %p121 = por %p119, %p120
    %s123 = sadd.s32 %s122, 1
    %p126 = scmp.eq.s32.totalorder %s15, 1
    %p127 = scmp.ne.s32.totalorder %s122, %s124
    %p128 = scmp.eq.s32.totalorder %s15, 0
    %p129 = por %p127, %p128
    %p130 = scmp.ne.s32.totalorder %s122, %s124
    %p131 = scmp.eq.s32.totalorder %s20, 1
    %p132 = por %p130, %p131
    %p133 = scmp.ne.s32.totalorder %s124, %s125
    %p134 = scmp.eq.s32.totalorder %s20, 0
    %p135 = por %p133, %p134
    %p136 = scmp.ne.s32.totalorder %s124, %s125
    %p137 = scmp.eq.s32.totalorder %s21, 1
    %p138 = por %p136, %p137
    %p140 = scmp.ne.s32.totalorder %s125, %s139
    %p141 = scmp.eq.s32.totalorder %s21, 0
    %p142 = por %p140, %p141
    %s144 = sadd.s32 %s143, 1
    %p147 = scmp.eq.s32.totalorder %s15, 1
    %p148 = scmp.ne.s32.totalorder %s143, %s145
    %p149 = scmp.eq.s32.totalorder %s15, 0
    %p150 = por %p148, %p149
    %p151 = scmp.ne.s32.totalorder %s143, %s145
    %p152 = scmp.eq.s32.totalorder %s20, 1
    %p153 = por %p151, %p152
    %p154 = scmp.ne.s32.totalorder %s145, %s146
    %p155 = scmp.eq.s32.totalorder %s20, 0
    %p156 = por %p154, %p155
    %p157 = scmp.ne.s32.totalorder %s145, %s146
    %p158 = scmp.eq.s32.totalorder %s21, 1
    %p159 = por %p157, %p158
    %p161 = scmp.ne.s32.totalorder %s146, %s160
    %p162 = scmp.eq.s32.totalorder %s21, 0
    %p163 = por %p161, %p162
    %s165 = sadd.s32 %s164, 1
    %p168 = scmp.eq.s32.totalorder %s15, 1
    %p169 = scmp.ne.s32.totalorder %s164, %s166
    %p170 = scmp.eq.s32.totalorder %s15, 0
    %p171 = por %p169, %p170
    %p172 = scmp.ne.s32.totalorder %s164, %s166
    %p173 = scmp.eq.s32.totalorder %s20, 1
    %p174 = por %p172, %p173
    %p175 = scmp.ne.s32.totalorder %s166, %s167
    %p176 = scmp.eq.s32.totalorder %s20, 0
    %p177 = por %p175, %p176
    %p178 = scmp.ne.s32.totalorder %s166, %s167
    %p179 = scmp.eq.s32.totalorder %s21, 1
    %p180 = por %p178, %p179
    %p182 = scmp.ne.s32.totalorder %s167, %s181
    %p183 = scmp.eq.s32.totalorder %s21, 0
    %p184 = por %p182, %p183
    %s186 = sadd.s32 %s185, 1
    %p189 = scmp.eq.s32.totalorder %s15, 1
    %p190 = scmp.ne.s32.totalorder %s185, %s187
    %p191 = scmp.eq.s32.totalorder %s15, 0
    %p192 = por %p190, %p191
    %p193 = scmp.ne.s32.totalorder %s185, %s187
    %p194 = scmp.eq.s32.totalorder %s20, 1
    %p195 = por %p193, %p194
    %p196 = scmp.ne.s32.totalorder %s187, %s188
    %p197 = scmp.eq.s32.totalorder %s20, 0
    %p198 = por %p196, %p197
    %p199 = scmp.ne.s32.totalorder %s187, %s188
    %p200 = scmp.eq.s32.totalorder %s21, 1
    %p201 = por %p199, %p200
    %p203 = scmp.ne.s32.totalorder %s188, %s202
    %p204 = scmp.eq.s32.totalorder %s21, 0
    %p205 = por %p203, %p204
    %s207 = sadd.s32 %s206, 1
    %p210 = scmp.eq.s32.totalorder %s15, 1
    %p211 = scmp.ne.s32.totalorder %s206, %s208
    %p212 = scmp.eq.s32.totalorder %s15, 0
    %p213 = por %p211, %p212
    %p214 = scmp.ne.s32.totalorder %s206, %s208
    %p215 = scmp.eq.s32.totalorder %s20, 1
    %p216 = por %p214, %p215
    %p217 = scmp.ne.s32.totalorder %s208, %s209
    %p218 = scmp.eq.s32.totalorder %s20, 0
    %p219 = por %p217, %p218
    %p220 = scmp.ne.s32.totalorder %s208, %s209
    %p221 = scmp.eq.s32.totalorder %s21, 1
    %p222 = por %p220, %p221
    %p224 = scmp.ne.s32.totalorder %s209, %s223
    %p225 = scmp.eq.s32.totalorder %s21, 0
    %p226 = por %p224, %p225
    %s227 = ssub.s32 %s15, %s22
    %p228 = scmp.eq.s32.totalorder %s227, 0
    %s230 = sadd.s32 %s229, 1
    %s231 = scalar_select %p228, %s229, %s230
    %p234 = pneg %p228
    %p235 = scmp.eq.s32.totalorder %s15, 1
    %p236 = por %p234, %p235
    %p237 = scmp.ne.s32.totalorder %s229, %s232
    %p238 = scmp.eq.s32.totalorder %s15, 0
    %p239 = por %p237, %p238
    %p240 = scmp.ne.s32.totalorder %s229, %s232
    %p241 = scmp.eq.s32.totalorder %s20, 1
    %p242 = por %p240, %p241
    %p243 = scmp.ne.s32.totalorder %s232, %s233
    %p244 = scmp.eq.s32.totalorder %s20, 0
    %p245 = por %p243, %p244
    %p246 = scmp.ne.s32.totalorder %s232, %s233
    %p247 = scmp.eq.s32.totalorder %s21, 1
    %p248 = por %p246, %p247
    %p250 = scmp.ne.s32.totalorder %s233, %s249
    %p251 = scmp.eq.s32.totalorder %s21, 0
    %p252 = por %p250, %p251
    %p253 = scmp.le.s32.totalorder 1, %s15
    %p254 = scmp.lt.s32.totalorder %s15, 3
    %p255 = pnand %p253, %p254
    %p256 = pneg %p255
    // Predicated region
    $region9: #{scnn2d_feature_extractor.1} parent=5 // pred_check
      _
    $region10: #{scnn2d_feature_extractor.1} parent=5 // pred_check_branch
      %258 = sbr.rel (%p255) target = $region12
    $region11: #{scnn2d_feature_extractor.1} parent=5 // pred_region
      %s259 = ssub.s32 %s15, 1
      // Predicated region
      $region13: #{scnn2d_feature_extractor.1} parent=11 // pred_check
        %p260 = pneg %p114
      $region14: #{scnn2d_feature_extractor.1} parent=11 // pred_check_branch
        %262 = sbr.rel (%p260) target = $region16
      $region15: #{scnn2d_feature_extractor.1} parent=11 // pred_region
        _
      $region16: #{scnn2d_feature_extractor.1} parent=11 // pred_fallthru
        _
      // Predicated region
      $region17: #{scnn2d_feature_extractor.1} parent=11 // pred_check
        %p263 = pneg %p135
      $region18: #{scnn2d_feature_extractor.1} parent=11 // pred_check_branch
        %265 = sbr.rel (%p263) target = $region20
      $region19: #{scnn2d_feature_extractor.1} parent=11 // pred_region
        _
      $region20: #{scnn2d_feature_extractor.1} parent=11 // pred_fallthru
        _
      // Predicated region
      $region21: #{scnn2d_feature_extractor.1} parent=11 // pred_check
        %p266 = pneg %p156
      $region22: #{scnn2d_feature_extractor.1} parent=11 // pred_check_branch
        %268 = sbr.rel (%p266) target = $region24
      $region23: #{scnn2d_feature_extractor.1} parent=11 // pred_region
        _
      $region24: #{scnn2d_feature_extractor.1} parent=11 // pred_fallthru
        _
      // Predicated region
      $region25: #{scnn2d_feature_extractor.1} parent=11 // pred_check
        %p269 = pneg %p177
      $region26: #{scnn2d_feature_extractor.1} parent=11 // pred_check_branch
        %271 = sbr.rel (%p269) target = $region28
      $region27: #{scnn2d_feature_extractor.1} parent=11 // pred_region
        _
      $region28: #{scnn2d_feature_extractor.1} parent=11 // pred_fallthru
        _
      // Predicated region
      $region29: #{scnn2d_feature_extractor.1} parent=11 // pred_check
        %p272 = pneg %p198
      $region30: #{scnn2d_feature_extractor.1} parent=11 // pred_check_branch
        %274 = sbr.rel (%p272) target = $region32
      $region31: #{scnn2d_feature_extractor.1} parent=11 // pred_region
        _
      $region32: #{scnn2d_feature_extractor.1} parent=11 // pred_fallthru
        _
      // Predicated region
      $region33: #{scnn2d_feature_extractor.1} parent=11 // pred_check
        %p275 = pneg %p219
      $region34: #{scnn2d_feature_extractor.1} parent=11 // pred_check_branch
        %277 = sbr.rel (%p275) target = $region36
      $region35: #{scnn2d_feature_extractor.1} parent=11 // pred_region
        _
      $region36: #{scnn2d_feature_extractor.1} parent=11 // pred_fallthru
        _
    $region12: #{scnn2d_feature_extractor.1} parent=5 // pred_fallthru
      _
    %p278 = scmp.lt.s32.totalorder %s15, 2
    // Predicated region
    $region37: #{scnn2d_feature_extractor.1} parent=5 // pred_check
      %p279 = pneg %p278
    $region38: #{scnn2d_feature_extractor.1} parent=5 // pred_check_branch
      %281 = sbr.rel (%p279) target = $region40
    $region39: #{scnn2d_feature_extractor.1} parent=5 // pred_region
      // Predicated region
      $region41: #{scnn2d_feature_extractor.1} parent=39 // pred_check
        %p282 = pneg %p35
      $region42: #{scnn2d_feature_extractor.1} parent=39 // pred_check_branch
        %284 = sbr.rel (%p282) target = $region44
      $region43: #{scnn2d_feature_extractor.1} parent=39 // pred_region
        %p285 = scmp.lt.s32.totalorder %s15, 1
        %s286 = scalar_select %p285, %s15, 1
        %s287 = smul.addr %s286, 32
        %s288 = smul.addr %s287, 8
        %s289 = scalar_lea.vmem %s0, %s288
      $region44: #{scnn2d_feature_extractor.1} parent=39 // pred_fallthru
        _
      // Predicated region
      $region45: #{scnn2d_feature_extractor.1} parent=39 // pred_check
        %p290 = pneg %p61
      $region46: #{scnn2d_feature_extractor.1} parent=39 // pred_check_branch
        %292 = sbr.rel (%p290) target = $region48
      $region47: #{scnn2d_feature_extractor.1} parent=39 // pred_region
        %p293 = scmp.lt.s32.totalorder %s15, 1
        %s294 = scalar_select %p293, %s15, 1
        %s295 = smul.addr %s294, 32
        %s296 = smul.addr %s295, 4
        %s297 = scalar_lea.vmem %s1, %s296
      $region48: #{scnn2d_feature_extractor.1} parent=39 // pred_fallthru
        _
      // Predicated region
      $region49: #{scnn2d_feature_extractor.1} parent=39 // pred_check
        %p298 = pneg %p87
      $region50: #{scnn2d_feature_extractor.1} parent=39 // pred_check_branch
        %300 = sbr.rel (%p298) target = $region52
      $region51: #{scnn2d_feature_extractor.1} parent=39 // pred_region
        %p301 = scmp.lt.s32.totalorder %s15, 1
        %s302 = scalar_select %p301, %s15, 1
        %s303 = scalar_lea.vmem %s2, %s302
      $region52: #{scnn2d_feature_extractor.1} parent=39 // pred_fallthru
        _
    $region40: #{scnn2d_feature_extractor.1} parent=5 // pred_fallthru
      _
    %p304 = scmp.le.s32.totalorder 1, %s15
    %p305 = scmp.lt.s32.totalorder %s15, 3
    %p306 = pnand %p304, %p305
    %p307 = pneg %p306
    // Predicated region
    $region53: #{scnn2d_feature_extractor.1} parent=5 // pred_check
      _
    $region54: #{scnn2d_feature_extractor.1} parent=5 // pred_check_branch
      %309 = sbr.rel (%p306) target = $region56
    $region55: #{scnn2d_feature_extractor.1} parent=5 // pred_region
      %s310 = ssub.s32 %s15, 1
      %p311 = scmp.lt.s32.totalorder %s20, 1
      %s312 = scalar_select %p311, %s20, 1
      %s313 = smul.addr %s312, 32
      %s314 = smul.addr %s313, 8
      %s315 = scalar_lea.vmem %s0, %s314
      %p316 = pneg %p41
      %p317 = pneg %p38
      %p318 = scmp.lt.s32.totalorder %s20, 1
      %s319 = scalar_select %p318, %s20, 1
      %s320 = smul.addr %s319, 32
      %s321 = smul.addr %s320, 4
      %s322 = scalar_lea.vmem %s1, %s321
      %p323 = pneg %p67
      %p324 = pneg %p64
      %p325 = scmp.lt.s32.totalorder %s20, 1
      %s326 = scalar_select %p325, %s20, 1
      %s327 = scalar_lea.vmem %s2, %s326
      %p328 = pneg %p93
      %p329 = pneg %p90
      %p330 = pneg %p114
      %p331 = pneg %p111
      %p332 = pneg %p135
      %p333 = pneg %p132
      %p334 = pneg %p156
      %p335 = pneg %p153
      %p336 = pneg %p177
      %p337 = pneg %p174
      %p338 = pneg %p198
      %p339 = pneg %p195
      %p340 = pneg %p219
      %p341 = pneg %p216
      %p342 = pneg %p245
      %p343 = pneg %p242
      %p344 = scmp.lt.s32.totalorder %s20, 1
      %s345 = scalar_select %p344, %s20, 1
      %s346 = smul.addr %s345, 2
      %s347 = smul.addr %s346, 2
      %s348 = scalar_lea.vmem %s9, %s347
      %p349 = scmp.lt.s32.totalorder %s20, 1
      %s350 = scalar_select %p349, %s20, 1
      %s351 = smul.addr %s350, 32
      %s352 = smul.addr %s351, 8
      %s353 = scalar_lea.vmem %s0, %s352
      %p354 = scmp.lt.s32.totalorder %s20, 1
      %s355 = scalar_select %p354, %s20, 1
      %s356 = smul.addr %s355, 32
      %s357 = smul.addr %s356, 4
      %s358 = scalar_lea.vmem %s1, %s357
      %p359 = scmp.lt.s32.totalorder %s20, 1
      %s360 = scalar_select %p359, %s20, 1
      %s361 = scalar_lea.vmem %s2, %s360
      %p362 = scmp.lt.s32.totalorder %s20, 1
      %s363 = scalar_select %p362, %s20, 1
      %s364 = smul.addr %s363, 2
      %s365 = smul.addr %s364, 2
      %s366 = scalar_lea.vmem %s9, %s365
      %v368 = vld [vmem:[%s353] sm:$0xff]
      %v369 = vld [vmem:[%s353 + $0x8] sm:$0xff]
      %v370 = vld [vmem:[%s353 + $0x10] sm:$0xff]
      %v371 = vld [vmem:[%s353 + $0x18] sm:$0xff]
      %v372 = vld [vmem:[%s353 + $0x20] sm:$0xff]
      %v373 = vld [vmem:[%s353 + $0x28] sm:$0xff]
      %v374 = vld [vmem:[%s353 + $0x30] sm:$0xff]
      %v375 = vld [vmem:[%s353 + $0x38] sm:$0xff]
      %v376 = vld [vmem:[%s353 + $0x40] sm:$0xff]
      %v377 = vld [vmem:[%s353 + $0x48] sm:$0xff]
      %v378 = vld [vmem:[%s353 + $0x50] sm:$0xff]
      %v379 = vld [vmem:[%s353 + $0x58] sm:$0xff]
      %v380 = vld [vmem:[%s353 + $0x60] sm:$0xff]
      %v381 = vld [vmem:[%s353 + $0x68] sm:$0xff]
      %v382 = vld [vmem:[%s353 + $0x70] sm:$0xff]
      %v383 = vld [vmem:[%s353 + $0x78] sm:$0xff]
      %v384 = vld [vmem:[%s353 + $0x80] sm:$0xff]
      %v385 = vld [vmem:[%s353 + $0x88] sm:$0xff]
      %v386 = vld [vmem:[%s353 + $0x90] sm:$0xff]
      %v387 = vld [vmem:[%s353 + $0x98] sm:$0xff]
      %v388 = vld [vmem:[%s353 + $0xa0] sm:$0xff]
      %v389 = vld [vmem:[%s353 + $0xa8] sm:$0xff]
      %v390 = vld [vmem:[%s353 + $0xb0] sm:$0xff]
      %v391 = vld [vmem:[%s353 + $0xb8] sm:$0xff]
      %v392 = vld [vmem:[%s353 + $0xc0] sm:$0xff]
      %v393 = vld [vmem:[%s353 + $0xc8] sm:$0xff]
      %v394 = vld [vmem:[%s353 + $0xd0] sm:$0xff]
      %v395 = vld [vmem:[%s353 + $0xd8] sm:$0xff]
      %v396 = vld [vmem:[%s353 + $0xe0] sm:$0xff]
      %v397 = vld [vmem:[%s353 + $0xe8] sm:$0xff]
      %v398 = vld [vmem:[%s353 + $0xf0] sm:$0xff]
      %v399 = vld [vmem:[%s353 + $0xf8] sm:$0xff]
      %v400 = vld [vmem:[%s358] sm:$0xf]
      %v401 = vld [vmem:[%s358 + $0x4] sm:$0xf]
      %v402 = vld [vmem:[%s358 + $0x8] sm:$0xf]
      %v403 = vld [vmem:[%s358 + $0xc] sm:$0xf]
      %v404 = vld [vmem:[%s358 + $0x10] sm:$0xf]
      %v405 = vld [vmem:[%s358 + $0x14] sm:$0xf]
      %v406 = vld [vmem:[%s358 + $0x18] sm:$0xf]
      %v407 = vld [vmem:[%s358 + $0x1c] sm:$0xf]
      %v408 = vld [vmem:[%s358 + $0x20] sm:$0xf]
      %v409 = vld [vmem:[%s358 + $0x24] sm:$0xf]
      %v410 = vld [vmem:[%s358 + $0x28] sm:$0xf]
      %v411 = vld [vmem:[%s358 + $0x2c] sm:$0xf]
      %v412 = vld [vmem:[%s358 + $0x30] sm:$0xf]
      %v413 = vld [vmem:[%s358 + $0x34] sm:$0xf]
      %v414 = vld [vmem:[%s358 + $0x38] sm:$0xf]
      %v415 = vld [vmem:[%s358 + $0x3c] sm:$0xf]
      %v416 = vld [vmem:[%s358 + $0x40] sm:$0xf]
      %v417 = vld [vmem:[%s358 + $0x44] sm:$0xf]
      %v418 = vld [vmem:[%s358 + $0x48] sm:$0xf]
      %v419 = vld [vmem:[%s358 + $0x4c] sm:$0xf]
      %v420 = vld [vmem:[%s358 + $0x50] sm:$0xf]
      %v421 = vld [vmem:[%s358 + $0x54] sm:$0xf]
      %v422 = vld [vmem:[%s358 + $0x58] sm:$0xf]
      %v423 = vld [vmem:[%s358 + $0x5c] sm:$0xf]
      %v424 = vld [vmem:[%s358 + $0x60] sm:$0xf]
      %v425 = vld [vmem:[%s358 + $0x64] sm:$0xf]
      %v426 = vld [vmem:[%s358 + $0x68] sm:$0xf]
      %v427 = vld [vmem:[%s358 + $0x6c] sm:$0xf]
      %v428 = vld [vmem:[%s358 + $0x70] sm:$0xf]
      %v429 = vld [vmem:[%s358 + $0x74] sm:$0xf]
      %v430 = vld [vmem:[%s358 + $0x78] sm:$0xf]
      %v431 = vld [vmem:[%s358 + $0x7c] sm:$0xf]
      %v432 = vld [vmem:[%s361] sm:$0x1]
      %vm433 = vcmask 1046528
      %v434 = vsel %vm433, 0, 0
      %v435 = vrot.slane %v368, 1
      %v436 = vsel %vm433, 0, %v435
      %v437 = vrot.slane %v369, 1
      %v438 = vsel %vm433, %v435, %v437
      %v439 = vrot.slane %v370, 1
      %v440 = vsel %vm433, %v437, %v439
      %v441 = vrot.slane %v371, 1
      %v442 = vsel %vm433, %v439, %v441
      %v443 = vrot.slane %v372, 1
      %v444 = vsel %vm433, %v441, %v443
      %v445 = vrot.slane %v373, 1
      %v446 = vsel %vm433, %v443, %v445
      %v447 = vrot.slane %v374, 1
      %v448 = vsel %vm433, %v445, %v447
      %v449 = vrot.slane %v375, 1
      %v450 = vsel %vm433, %v447, %v449
      %v451 = vrot.slane %v376, 1
      %v452 = vsel %vm433, %v449, %v451
      %v453 = vrot.slane %v377, 1
      %v454 = vsel %vm433, %v451, %v453
      %v455 = vrot.slane %v378, 1
      %v456 = vsel %vm433, %v453, %v455
      %v457 = vrot.slane %v379, 1
      %v458 = vsel %vm433, %v455, %v457
      %v459 = vrot.slane %v380, 1
      %v460 = vsel %vm433, %v457, %v459
      %v461 = vrot.slane %v381, 1
      %v462 = vsel %vm433, %v459, %v461
      %v463 = vrot.slane %v382, 1
      %v464 = vsel %vm433, %v461, %v463
      %v465 = vrot.slane %v383, 1
      %v466 = vsel %vm433, %v463, %v465
      %v467 = vrot.slane %v384, 1
      %v468 = vsel %vm433, %v465, %v467
      %v469 = vrot.slane %v385, 1
      %v470 = vsel %vm433, %v467, %v469
      %v471 = vrot.slane %v386, 1
      %v472 = vsel %vm433, %v469, %v471
      %v473 = vrot.slane %v387, 1
      %v474 = vsel %vm433, %v471, %v473
      %v475 = vrot.slane %v388, 1
      %v476 = vsel %vm433, %v473, %v475
      %v477 = vrot.slane %v389, 1
      %v478 = vsel %vm433, %v475, %v477
      %v479 = vrot.slane %v390, 1
      %v480 = vsel %vm433, %v477, %v479
      %v481 = vrot.slane %v391, 1
      %v482 = vsel %vm433, %v479, %v481
      %v483 = vrot.slane %v392, 1
      %v484 = vsel %vm433, %v481, %v483
      %v485 = vrot.slane %v393, 1
      %v486 = vsel %vm433, %v483, %v485
      %v487 = vrot.slane %v394, 1
      %v488 = vsel %vm433, %v485, %v487
      %v489 = vrot.slane %v395, 1
      %v490 = vsel %vm433, %v487, %v489
      %v491 = vrot.slane %v396, 1
      %v492 = vsel %vm433, %v489, %v491
      %v493 = vrot.slane %v397, 1
      %v494 = vsel %vm433, %v491, %v493
      %v495 = vrot.slane %v398, 1
      %v496 = vsel %vm433, %v493, %v495
      %v497 = vrot.slane %v399, 1
      %v498 = vsel %vm433, %v495, %v497
      %v499 = vsel %vm433, %v497, 0
      %500 = vrot.lane.b32.xlu0 %v434, 1
      %v501 = vpop.permute.xlu0 %500
      %502 = vrot.lane.b32.xlu0 %v436, 1
      %v503 = vpop.permute.xlu0 %502
      %504 = vrot.lane.b32.xlu0 %v438, 1
      %v505 = vpop.permute.xlu0 %504
      %506 = vrot.lane.b32.xlu0 %v440, 1
      %v507 = vpop.permute.xlu0 %506
      %508 = vrot.lane.b32.xlu0 %v442, 1
      %v509 = vpop.permute.xlu0 %508
      %510 = vrot.lane.b32.xlu0 %v444, 1
      %v511 = vpop.permute.xlu0 %510
      %512 = vrot.lane.b32.xlu0 %v446, 1
      %v513 = vpop.permute.xlu0 %512
      %514 = vrot.lane.b32.xlu0 %v448, 1
      %v515 = vpop.permute.xlu0 %514
      %516 = vrot.lane.b32.xlu0 %v450, 1
      %v517 = vpop.permute.xlu0 %516
      %518 = vrot.lane.b32.xlu0 %v452, 1
      %v519 = vpop.permute.xlu0 %518
      %520 = vrot.lane.b32.xlu0 %v454, 1
      %v521 = vpop.permute.xlu0 %520
      %522 = vrot.lane.b32.xlu0 %v456, 1
      %v523 = vpop.permute.xlu0 %522
      %524 = vrot.lane.b32.xlu0 %v458, 1
      %v525 = vpop.permute.xlu0 %524
      %526 = vrot.lane.b32.xlu0 %v460, 1
      %v527 = vpop.permute.xlu0 %526
      %528 = vrot.lane.b32.xlu0 %v462, 1
      %v529 = vpop.permute.xlu0 %528
      %530 = vrot.lane.b32.xlu0 %v464, 1
      %v531 = vpop.permute.xlu0 %530
      %532 = vrot.lane.b32.xlu0 %v466, 1
      %v533 = vpop.permute.xlu0 %532
      %534 = vrot.lane.b32.xlu0 %v468, 1
      %v535 = vpop.permute.xlu0 %534
      %536 = vrot.lane.b32.xlu0 %v470, 1
      %v537 = vpop.permute.xlu0 %536
      %538 = vrot.lane.b32.xlu0 %v472, 1
      %v539 = vpop.permute.xlu0 %538
      %540 = vrot.lane.b32.xlu0 %v474, 1
      %v541 = vpop.permute.xlu0 %540
      %542 = vrot.lane.b32.xlu0 %v476, 1
      %v543 = vpop.permute.xlu0 %542
      %544 = vrot.lane.b32.xlu0 %v478, 1
      %v545 = vpop.permute.xlu0 %544
      %546 = vrot.lane.b32.xlu0 %v480, 1
      %v547 = vpop.permute.xlu0 %546
      %548 = vrot.lane.b32.xlu0 %v482, 1
      %v549 = vpop.permute.xlu0 %548
      %550 = vrot.lane.b32.xlu0 %v484, 1
      %v551 = vpop.permute.xlu0 %550
      %552 = vrot.lane.b32.xlu0 %v486, 1
      %v553 = vpop.permute.xlu0 %552
      %554 = vrot.lane.b32.xlu0 %v488, 1
      %v555 = vpop.permute.xlu0 %554
      %556 = vrot.lane.b32.xlu0 %v490, 1
      %v557 = vpop.permute.xlu0 %556
      %558 = vrot.lane.b32.xlu0 %v492, 1
      %v559 = vpop.permute.xlu0 %558
      %560 = vrot.lane.b32.xlu0 %v494, 1
      %v561 = vpop.permute.xlu0 %560
      %562 = vrot.lane.b32.xlu0 %v496, 1
      %v563 = vpop.permute.xlu0 %562
      %564 = vrot.lane.b32.xlu0 %v498, 1
      %v565 = vpop.permute.xlu0 %564
      %566 = vrot.lane.b32.xlu0 %v499, 1
      %v567 = vpop.permute.xlu0 %566
      %568 = vrot.lane.b32.xlu0 0, 1
      %v569 = vpop.permute.xlu0 %568
      %vm570 = vcmask 7168
      %v571 = vsel %vm570, 0, %v501
      %v572 = vsel %vm570, 0, %v503
      %v573 = vsel %vm570, %v368, %v505
      %v574 = vsel %vm570, %v369, %v507
      %v575 = vsel %vm570, %v370, %v509
      %v576 = vsel %vm570, %v371, %v511
      %v577 = vsel %vm570, %v372, %v513
      %v578 = vsel %vm570, %v373, %v515
      %v579 = vsel %vm570, %v374, %v517
      %v580 = vsel %vm570, %v375, %v519
      %v581 = vsel %vm570, %v376, %v521
      %v582 = vsel %vm570, %v377, %v523
      %v583 = vsel %vm570, %v378, %v525
      %v584 = vsel %vm570, %v379, %v527
      %v585 = vsel %vm570, %v380, %v529
      %v586 = vsel %vm570, %v381, %v531
      %v587 = vsel %vm570, %v382, %v533
      %v588 = vsel %vm570, %v383, %v535
      %v589 = vsel %vm570, %v384, %v537
      %v590 = vsel %vm570, %v385, %v539
      %v591 = vsel %vm570, %v386, %v541
      %v592 = vsel %vm570, %v387, %v543
      %v593 = vsel %vm570, %v388, %v545
      %v594 = vsel %vm570, %v389, %v547
      %v595 = vsel %vm570, %v390, %v549
      %v596 = vsel %vm570, %v391, %v551
      %v597 = vsel %vm570, %v392, %v553
      %v598 = vsel %vm570, %v393, %v555
      %v599 = vsel %vm570, %v394, %v557
      %v600 = vsel %vm570, %v395, %v559
      %v601 = vsel %vm570, %v396, %v561
      %v602 = vsel %vm570, %v397, %v563
      %v603 = vsel %vm570, %v398, %v565
      %v604 = vsel %vm570, %v399, %v567
      %v605 = vsel %vm570, 0, %v569
      %vm606 = vcmask 1045504
      %v607 = vrot.slane %v571, 2
      %v608 = vsel %vm606, %v607, %v607
      %v609 = vrot.slane %v572, 2
      %v610 = vsel %vm606, %v607, %v609
      %v611 = vrot.slane %v573, 2
      %v612 = vsel %vm606, %v609, %v611
      %v613 = vrot.slane %v574, 2
      %v614 = vsel %vm606, %v611, %v613
      %v615 = vrot.slane %v575, 2
      %v616 = vsel %vm606, %v613, %v615
      %v617 = vrot.slane %v576, 2
      %v618 = vsel %vm606, %v615, %v617
      %v619 = vrot.slane %v577, 2
      %v620 = vsel %vm606, %v617, %v619
      %v621 = vrot.slane %v578, 2
      %v622 = vsel %vm606, %v619, %v621
      %v623 = vrot.slane %v579, 2
      %v624 = vsel %vm606, %v621, %v623
      %v625 = vrot.slane %v580, 2
      %v626 = vsel %vm606, %v623, %v625
      %v627 = vrot.slane %v581, 2
      %v628 = vsel %vm606, %v625, %v627
      %v629 = vrot.slane %v582, 2
      %v630 = vsel %vm606, %v627, %v629
      %v631 = vrot.slane %v583, 2
      %v632 = vsel %vm606, %v629, %v631
      %v633 = vrot.slane %v584, 2
      %v634 = vsel %vm606, %v631, %v633
      %v635 = vrot.slane %v585, 2
      %v636 = vsel %vm606, %v633, %v635
      %v637 = vrot.slane %v586, 2
      %v638 = vsel %vm606, %v635, %v637
      %v639 = vrot.slane %v587, 2
      %v640 = vsel %vm606, %v637, %v639
      %v641 = vrot.slane %v588, 2
      %v642 = vsel %vm606, %v639, %v641
      %v643 = vrot.slane %v589, 2
      %v644 = vsel %vm606, %v641, %v643
      %v645 = vrot.slane %v590, 2
      %v646 = vsel %vm606, %v643, %v645
      %v647 = vrot.slane %v591, 2
      %v648 = vsel %vm606, %v645, %v647
      %v649 = vrot.slane %v592, 2
      %v650 = vsel %vm606, %v647, %v649
      %v651 = vrot.slane %v593, 2
      %v652 = vsel %vm606, %v649, %v651
      %v653 = vrot.slane %v594, 2
      %v654 = vsel %vm606, %v651, %v653
      %v655 = vrot.slane %v595, 2
      %v656 = vsel %vm606, %v653, %v655
      %v657 = vrot.slane %v596, 2
      %v658 = vsel %vm606, %v655, %v657
      %v659 = vrot.slane %v597, 2
      %v660 = vsel %vm606, %v657, %v659
      %v661 = vrot.slane %v598, 2
      %v662 = vsel %vm606, %v659, %v661
      %v663 = vrot.slane %v599, 2
      %v664 = vsel %vm606, %v661, %v663
      %v665 = vrot.slane %v600, 2
      %v666 = vsel %vm606, %v663, %v665
      %v667 = vrot.slane %v601, 2
      %v668 = vsel %vm606, %v665, %v667
      %v669 = vrot.slane %v602, 2
      %v670 = vsel %vm606, %v667, %v669
      %v671 = vrot.slane %v603, 2
      %v672 = vsel %vm606, %v669, %v671
      %v673 = vrot.slane %v604, 2
      %v674 = vsel %vm606, %v671, %v673
      %v675 = vsel %vm606, %v673, %v607
      %v676 = vrot.slane %v605, 2
      %v677 = vsel %vm606, %v607, %v676
      %678 = vrot.lane.b32.xlu0 %v608, 2
      %v679 = vpop.permute.xlu0 %678
      %680 = vrot.lane.b32.xlu0 %v610, 2
      %v681 = vpop.permute.xlu0 %680
      %682 = vrot.lane.b32.xlu0 %v612, 2
      %v683 = vpop.permute.xlu0 %682
      %684 = vrot.lane.b32.xlu0 %v614, 2
      %v685 = vpop.permute.xlu0 %684
      %686 = vrot.lane.b32.xlu0 %v616, 2
      %v687 = vpop.permute.xlu0 %686
      %688 = vrot.lane.b32.xlu0 %v618, 2
      %v689 = vpop.permute.xlu0 %688
      %690 = vrot.lane.b32.xlu0 %v620, 2
      %v691 = vpop.permute.xlu0 %690
      %692 = vrot.lane.b32.xlu0 %v622, 2
      %v693 = vpop.permute.xlu0 %692
      %694 = vrot.lane.b32.xlu0 %v624, 2
      %v695 = vpop.permute.xlu0 %694
      %696 = vrot.lane.b32.xlu0 %v626, 2
      %v697 = vpop.permute.xlu0 %696
      %698 = vrot.lane.b32.xlu0 %v628, 2
      %v699 = vpop.permute.xlu0 %698
      %700 = vrot.lane.b32.xlu0 %v630, 2
      %v701 = vpop.permute.xlu0 %700
      %702 = vrot.lane.b32.xlu0 %v632, 2
      %v703 = vpop.permute.xlu0 %702
      %704 = vrot.lane.b32.xlu0 %v634, 2
      %v705 = vpop.permute.xlu0 %704
      %706 = vrot.lane.b32.xlu0 %v636, 2
      %v707 = vpop.permute.xlu0 %706
      %708 = vrot.lane.b32.xlu0 %v638, 2
      %v709 = vpop.permute.xlu0 %708
      %710 = vrot.lane.b32.xlu0 %v640, 2
      %v711 = vpop.permute.xlu0 %710
      %712 = vrot.lane.b32.xlu0 %v642, 2
      %v713 = vpop.permute.xlu0 %712
      %714 = vrot.lane.b32.xlu0 %v644, 2
      %v715 = vpop.permute.xlu0 %714
      %716 = vrot.lane.b32.xlu0 %v646, 2
      %v717 = vpop.permute.xlu0 %716
      %718 = vrot.lane.b32.xlu0 %v648, 2
      %v719 = vpop.permute.xlu0 %718
      %720 = vrot.lane.b32.xlu0 %v650, 2
      %v721 = vpop.permute.xlu0 %720
      %722 = vrot.lane.b32.xlu0 %v652, 2
      %v723 = vpop.permute.xlu0 %722
      %724 = vrot.lane.b32.xlu0 %v654, 2
      %v725 = vpop.permute.xlu0 %724
      %726 = vrot.lane.b32.xlu0 %v656, 2
      %v727 = vpop.permute.xlu0 %726
      %728 = vrot.lane.b32.xlu0 %v658, 2
      %v729 = vpop.permute.xlu0 %728
      %730 = vrot.lane.b32.xlu0 %v660, 2
      %v731 = vpop.permute.xlu0 %730
      %732 = vrot.lane.b32.xlu0 %v662, 2
      %v733 = vpop.permute.xlu0 %732
      %734 = vrot.lane.b32.xlu0 %v664, 2
      %v735 = vpop.permute.xlu0 %734
      %736 = vrot.lane.b32.xlu0 %v666, 2
      %v737 = vpop.permute.xlu0 %736
      %738 = vrot.lane.b32.xlu0 %v668, 2
      %v739 = vpop.permute.xlu0 %738
      %740 = vrot.lane.b32.xlu0 %v670, 2
      %v741 = vpop.permute.xlu0 %740
      %742 = vrot.lane.b32.xlu0 %v672, 2
      %v743 = vpop.permute.xlu0 %742
      %744 = vrot.lane.b32.xlu0 %v674, 2
      %v745 = vpop.permute.xlu0 %744
      %746 = vrot.lane.b32.xlu0 %v675, 2
      %v747 = vpop.permute.xlu0 %746
      %748 = vrot.lane.b32.xlu0 %v677, 2
      %v749 = vpop.permute.xlu0 %748
      %750 = vrot.lane.b32.xlu0 %v676, 2
      %v751 = vpop.permute.xlu0 %750
      %vm752 = vcmask 15360
      %v753 = vsel %vm752, %v571, %v679
      %v754 = vsel %vm752, %v571, %v681
      %v755 = vsel %vm752, %v572, %v683
      %v756 = vsel %vm752, %v573, %v685
      %v757 = vsel %vm752, %v574, %v687
      %v758 = vsel %vm752, %v575, %v689
      %v759 = vsel %vm752, %v576, %v691
      %v760 = vsel %vm752, %v577, %v693
      %v761 = vsel %vm752, %v578, %v695
      %v762 = vsel %vm752, %v579, %v697
      %v763 = vsel %vm752, %v580, %v699
      %v764 = vsel %vm752, %v581, %v701
      %v765 = vsel %vm752, %v582, %v703
      %v766 = vsel %vm752, %v583, %v705
      %v767 = vsel %vm752, %v584, %v707
      %v768 = vsel %vm752, %v585, %v709
      %v769 = vsel %vm752, %v586, %v711
      %v770 = vsel %vm752, %v587, %v713
      %v771 = vsel %vm752, %v588, %v715
      %v772 = vsel %vm752, %v589, %v717
      %v773 = vsel %vm752, %v590, %v719
      %v774 = vsel %vm752, %v591, %v721
      %v775 = vsel %vm752, %v592, %v723
      %v776 = vsel %vm752, %v593, %v725
      %v777 = vsel %vm752, %v594, %v727
      %v778 = vsel %vm752, %v595, %v729
      %v779 = vsel %vm752, %v596, %v731
      %v780 = vsel %vm752, %v597, %v733
      %v781 = vsel %vm752, %v598, %v735
      %v782 = vsel %vm752, %v599, %v737
      %v783 = vsel %vm752, %v600, %v739
      %v784 = vsel %vm752, %v601, %v741
      %v785 = vsel %vm752, %v602, %v743
      %v786 = vsel %vm752, %v603, %v745
      %v787 = vsel %vm752, %v604, %v747
      %v788 = vsel %vm752, %v571, %v749
      %v789 = vsel %vm752, %v605, %v751
      %vm790 = vcmask 1043456
      %v791 = vrot.slane %v753, 4
      %v792 = vsel %vm790, %v791, %v791
      %v793 = vrot.slane %v754, 4
      %v794 = vsel %vm790, %v791, %v793
      %v795 = vrot.slane %v755, 4
      %v796 = vsel %vm790, %v793, %v795
      %v797 = vrot.slane %v756, 4
      %v798 = vsel %vm790, %v795, %v797
      %v799 = vrot.slane %v757, 4
      %v800 = vsel %vm790, %v797, %v799
      %v801 = vrot.slane %v758, 4
      %v802 = vsel %vm790, %v799, %v801
      %v803 = vrot.slane %v759, 4
      %v804 = vsel %vm790, %v801, %v803
      %v805 = vrot.slane %v760, 4
      %v806 = vsel %vm790, %v803, %v805
      %v807 = vrot.slane %v761, 4
      %v808 = vsel %vm790, %v805, %v807
      %v809 = vrot.slane %v762, 4
      %v810 = vsel %vm790, %v807, %v809
      %v811 = vrot.slane %v763, 4
      %v812 = vsel %vm790, %v809, %v811
      %v813 = vrot.slane %v764, 4
      %v814 = vsel %vm790, %v811, %v813
      %v815 = vrot.slane %v765, 4
      %v816 = vsel %vm790, %v813, %v815
      %v817 = vrot.slane %v766, 4
      %v818 = vsel %vm790, %v815, %v817
      %v819 = vrot.slane %v767, 4
      %v820 = vsel %vm790, %v817, %v819
      %v821 = vrot.slane %v768, 4
      %v822 = vsel %vm790, %v819, %v821
      %v823 = vrot.slane %v769, 4
      %v824 = vsel %vm790, %v821, %v823
      %v825 = vrot.slane %v770, 4
      %v826 = vsel %vm790, %v823, %v825
      %v827 = vrot.slane %v771, 4
      %v828 = vsel %vm790, %v825, %v827
      %v829 = vrot.slane %v772, 4
      %v830 = vsel %vm790, %v827, %v829
      %v831 = vrot.slane %v773, 4
      %v832 = vsel %vm790, %v829, %v831
      %v833 = vrot.slane %v774, 4
      %v834 = vsel %vm790, %v831, %v833
      %v835 = vrot.slane %v775, 4
      %v836 = vsel %vm790, %v833, %v835
      %v837 = vrot.slane %v776, 4
      %v838 = vsel %vm790, %v835, %v837
      %v839 = vrot.slane %v777, 4
      %v840 = vsel %vm790, %v837, %v839
      %v841 = vrot.slane %v778, 4
      %v842 = vsel %vm790, %v839, %v841
      %v843 = vrot.slane %v779, 4
      %v844 = vsel %vm790, %v841, %v843
      %v845 = vrot.slane %v780, 4
      %v846 = vsel %vm790, %v843, %v845
      %v847 = vrot.slane %v781, 4
      %v848 = vsel %vm790, %v845, %v847
      %v849 = vrot.slane %v782, 4
      %v850 = vsel %vm790, %v847, %v849
      %v851 = vrot.slane %v783, 4
      %v852 = vsel %vm790, %v849, %v851
      %v853 = vrot.slane %v784, 4
      %v854 = vsel %vm790, %v851, %v853
      %v855 = vrot.slane %v785, 4
      %v856 = vsel %vm790, %v853, %v855
      %v857 = vrot.slane %v786, 4
      %v858 = vsel %vm790, %v855, %v857
      %v859 = vrot.slane %v787, 4
      %v860 = vsel %vm790, %v857, %v859
      %v861 = vsel %vm790, %v859, %v791
      %v862 = vrot.slane %v788, 4
      %v863 = vsel %vm790, %v791, %v862
      %v864 = vrot.slane %v789, 4
      %v865 = vsel %vm790, %v862, %v864
      %866 = vrot.lane.b32.xlu0 %v792, 4
      %v867 = vpop.permute.xlu0 %866
      %868 = vrot.lane.b32.xlu0 %v794, 4
      %v869 = vpop.permute.xlu0 %868
      %870 = vrot.lane.b32.xlu0 %v796, 4
      %v871 = vpop.permute.xlu0 %870
      %872 = vrot.lane.b32.xlu0 %v798, 4
      %v873 = vpop.permute.xlu0 %872
      %874 = vrot.lane.b32.xlu0 %v800, 4
      %v875 = vpop.permute.xlu0 %874
      %876 = vrot.lane.b32.xlu0 %v802, 4
      %v877 = vpop.permute.xlu0 %876
      %878 = vrot.lane.b32.xlu0 %v804, 4
      %v879 = vpop.permute.xlu0 %878
      %880 = vrot.lane.b32.xlu0 %v806, 4
      %v881 = vpop.permute.xlu0 %880
      %882 = vrot.lane.b32.xlu0 %v808, 4
      %v883 = vpop.permute.xlu0 %882
      %884 = vrot.lane.b32.xlu0 %v810, 4
      %v885 = vpop.permute.xlu0 %884
      %886 = vrot.lane.b32.xlu0 %v812, 4
      %v887 = vpop.permute.xlu0 %886
      %888 = vrot.lane.b32.xlu0 %v814, 4
      %v889 = vpop.permute.xlu0 %888
      %890 = vrot.lane.b32.xlu0 %v816, 4
      %v891 = vpop.permute.xlu0 %890
      %892 = vrot.lane.b32.xlu0 %v818, 4
      %v893 = vpop.permute.xlu0 %892
      %894 = vrot.lane.b32.xlu0 %v820, 4
      %v895 = vpop.permute.xlu0 %894
      %896 = vrot.lane.b32.xlu0 %v822, 4
      %v897 = vpop.permute.xlu0 %896
      %898 = vrot.lane.b32.xlu0 %v824, 4
      %v899 = vpop.permute.xlu0 %898
      %900 = vrot.lane.b32.xlu0 %v826, 4
      %v901 = vpop.permute.xlu0 %900
      %902 = vrot.lane.b32.xlu0 %v828, 4
      %v903 = vpop.permute.xlu0 %902
      %904 = vrot.lane.b32.xlu0 %v830, 4
      %v905 = vpop.permute.xlu0 %904
      %906 = vrot.lane.b32.xlu0 %v832, 4
      %v907 = vpop.permute.xlu0 %906
      %908 = vrot.lane.b32.xlu0 %v834, 4
      %v909 = vpop.permute.xlu0 %908
      %910 = vrot.lane.b32.xlu0 %v836, 4
      %v911 = vpop.permute.xlu0 %910
      %912 = vrot.lane.b32.xlu0 %v838, 4
      %v913 = vpop.permute.xlu0 %912
      %914 = vrot.lane.b32.xlu0 %v840, 4
      %v915 = vpop.permute.xlu0 %914
      %916 = vrot.lane.b32.xlu0 %v842, 4
      %v917 = vpop.permute.xlu0 %916
      %918 = vrot.lane.b32.xlu0 %v844, 4
      %v919 = vpop.permute.xlu0 %918
      %920 = vrot.lane.b32.xlu0 %v846, 4
      %v921 = vpop.permute.xlu0 %920
      %922 = vrot.lane.b32.xlu0 %v848, 4
      %v923 = vpop.permute.xlu0 %922
      %924 = vrot.lane.b32.xlu0 %v850, 4
      %v925 = vpop.permute.xlu0 %924
      %926 = vrot.lane.b32.xlu0 %v852, 4
      %v927 = vpop.permute.xlu0 %926
      %928 = vrot.lane.b32.xlu0 %v854, 4
      %v929 = vpop.permute.xlu0 %928
      %930 = vrot.lane.b32.xlu0 %v856, 4
      %v931 = vpop.permute.xlu0 %930
      %932 = vrot.lane.b32.xlu0 %v858, 4
      %v933 = vpop.permute.xlu0 %932
      %934 = vrot.lane.b32.xlu0 %v860, 4
      %v935 = vpop.permute.xlu0 %934
      %936 = vrot.lane.b32.xlu0 %v861, 4
      %v937 = vpop.permute.xlu0 %936
      %938 = vrot.lane.b32.xlu0 %v863, 4
      %v939 = vpop.permute.xlu0 %938
      %940 = vrot.lane.b32.xlu0 %v865, 4
      %v941 = vpop.permute.xlu0 %940
      %942 = vrot.lane.b32.xlu0 %v864, 4
      %v943 = vpop.permute.xlu0 %942
      %vm944 = vcmask 31744
      %v945 = vsel %vm944, %v753, %v867
      %v946 = vsel %vm944, %v753, %v869
      %v947 = vsel %vm944, %v754, %v871
      %v948 = vsel %vm944, %v755, %v873
      %v949 = vsel %vm944, %v756, %v875
      %v950 = vsel %vm944, %v757, %v877
      %v951 = vsel %vm944, %v758, %v879
      %v952 = vsel %vm944, %v759, %v881
      %v953 = vsel %vm944, %v760, %v883
      %v954 = vsel %vm944, %v761, %v885
      %v955 = vsel %vm944, %v762, %v887
      %v956 = vsel %vm944, %v763, %v889
      %v957 = vsel %vm944, %v764, %v891
      %v958 = vsel %vm944, %v765, %v893
      %v959 = vsel %vm944, %v766, %v895
      %v960 = vsel %vm944, %v767, %v897
      %v961 = vsel %vm944, %v768, %v899
      %v962 = vsel %vm944, %v769, %v901
      %v963 = vsel %vm944, %v770, %v903
      %v964 = vsel %vm944, %v771, %v905
      %v965 = vsel %vm944, %v772, %v907
      %v966 = vsel %vm944, %v773, %v909
      %v967 = vsel %vm944, %v774, %v911
      %v968 = vsel %vm944, %v775, %v913
      %v969 = vsel %vm944, %v776, %v915
      %v970 = vsel %vm944, %v777, %v917
      %v971 = vsel %vm944, %v778, %v919
      %v972 = vsel %vm944, %v779, %v921
      %v973 = vsel %vm944, %v780, %v923
      %v974 = vsel %vm944, %v781, %v925
      %v975 = vsel %vm944, %v782, %v927
      %v976 = vsel %vm944, %v783, %v929
      %v977 = vsel %vm944, %v784, %v931
      %v978 = vsel %vm944, %v785, %v933
      %v979 = vsel %vm944, %v786, %v935
      %v980 = vsel %vm944, %v787, %v937
      %v981 = vsel %vm944, %v753, %v939
      %v982 = vsel %vm944, %v788, %v941
      %v983 = vsel %vm944, %v789, %v943
      %984 = vrot.lane.b32.xlu0 %v945, 8
      %v985 = vpop.permute.xlu0 %984
      %986 = vrot.lane.b32.xlu0 %v946, 8
      %v987 = vpop.permute.xlu0 %986
      %988 = vrot.lane.b32.xlu0 %v947, 8
      %v989 = vpop.permute.xlu0 %988
      %990 = vrot.lane.b32.xlu0 %v948, 8
      %v991 = vpop.permute.xlu0 %990
      %992 = vrot.lane.b32.xlu0 %v949, 8
      %v993 = vpop.permute.xlu0 %992
      %994 = vrot.lane.b32.xlu0 %v950, 8
      %v995 = vpop.permute.xlu0 %994
      %996 = vrot.lane.b32.xlu0 %v951, 8
      %v997 = vpop.permute.xlu0 %996
      %998 = vrot.lane.b32.xlu0 %v952, 8
      %v999 = vpop.permute.xlu0 %998
      %1000 = vrot.lane.b32.xlu0 %v953, 8
      %v1001 = vpop.permute.xlu0 %1000
      %1002 = vrot.lane.b32.xlu0 %v954, 8
      %v1003 = vpop.permute.xlu0 %1002
      %1004 = vrot.lane.b32.xlu0 %v955, 8
      %v1005 = vpop.permute.xlu0 %1004
      %1006 = vrot.lane.b32.xlu0 %v956, 8
      %v1007 = vpop.permute.xlu0 %1006
      %1008 = vrot.lane.b32.xlu0 %v957, 8
      %v1009 = vpop.permute.xlu0 %1008
      %1010 = vrot.lane.b32.xlu0 %v958, 8
      %v1011 = vpop.permute.xlu0 %1010
      %1012 = vrot.lane.b32.xlu0 %v959, 8
      %v1013 = vpop.permute.xlu0 %1012
      %1014 = vrot.lane.b32.xlu0 %v960, 8
      %v1015 = vpop.permute.xlu0 %1014
      %1016 = vrot.lane.b32.xlu0 %v961, 8
      %v1017 = vpop.permute.xlu0 %1016
      %1018 = vrot.lane.b32.xlu0 %v962, 8
      %v1019 = vpop.permute.xlu0 %1018
      %1020 = vrot.lane.b32.xlu0 %v963, 8
      %v1021 = vpop.permute.xlu0 %1020
      %1022 = vrot.lane.b32.xlu0 %v964, 8
      %v1023 = vpop.permute.xlu0 %1022
      %1024 = vrot.lane.b32.xlu0 %v965, 8
      %v1025 = vpop.permute.xlu0 %1024
      %1026 = vrot.lane.b32.xlu0 %v966, 8
      %v1027 = vpop.permute.xlu0 %1026
      %1028 = vrot.lane.b32.xlu0 %v967, 8
      %v1029 = vpop.permute.xlu0 %1028
      %1030 = vrot.lane.b32.xlu0 %v968, 8
      %v1031 = vpop.permute.xlu0 %1030
      %1032 = vrot.lane.b32.xlu0 %v969, 8
      %v1033 = vpop.permute.xlu0 %1032
      %1034 = vrot.lane.b32.xlu0 %v970, 8
      %v1035 = vpop.permute.xlu0 %1034
      %1036 = vrot.lane.b32.xlu0 %v971, 8
      %v1037 = vpop.permute.xlu0 %1036
      %1038 = vrot.lane.b32.xlu0 %v972, 8
      %v1039 = vpop.permute.xlu0 %1038
      %1040 = vrot.lane.b32.xlu0 %v973, 8
      %v1041 = vpop.permute.xlu0 %1040
      %1042 = vrot.lane.b32.xlu0 %v974, 8
      %v1043 = vpop.permute.xlu0 %1042
      %1044 = vrot.lane.b32.xlu0 %v975, 8
      %v1045 = vpop.permute.xlu0 %1044
      %1046 = vrot.lane.b32.xlu0 %v976, 8
      %v1047 = vpop.permute.xlu0 %1046
      %1048 = vrot.lane.b32.xlu0 %v977, 8
      %v1049 = vpop.permute.xlu0 %1048
      %1050 = vrot.lane.b32.xlu0 %v978, 8
      %v1051 = vpop.permute.xlu0 %1050
      %1052 = vrot.lane.b32.xlu0 %v979, 8
      %v1053 = vpop.permute.xlu0 %1052
      %1054 = vrot.lane.b32.xlu0 %v980, 8
      %v1055 = vpop.permute.xlu0 %1054
      %1056 = vrot.lane.b32.xlu0 %v981, 8
      %v1057 = vpop.permute.xlu0 %1056
      %1058 = vrot.lane.b32.xlu0 %v982, 8
      %v1059 = vpop.permute.xlu0 %1058
      %1060 = vrot.lane.b32.xlu0 %v983, 8
      %v1061 = vpop.permute.xlu0 %1060
      %vm1062 = vcmask 64512
      %v1063 = vsel %vm1062, %v945, %v985
      %v1064 = vsel %vm1062, %v945, %v987
      %v1065 = vsel %vm1062, %v946, %v989
      %v1066 = vsel %vm1062, %v947, %v991
      %v1067 = vsel %vm1062, %v948, %v993
      %v1068 = vsel %vm1062, %v949, %v995
      %v1069 = vsel %vm1062, %v950, %v997
      %v1070 = vsel %vm1062, %v951, %v999
      %v1071 = vsel %vm1062, %v952, %v1001
      %v1072 = vsel %vm1062, %v953, %v1003
      %v1073 = vsel %vm1062, %v954, %v1005
      %v1074 = vsel %vm1062, %v955, %v1007
      %v1075 = vsel %vm1062, %v956, %v1009
      %v1076 = vsel %vm1062, %v957, %v1011
      %v1077 = vsel %vm1062, %v958, %v1013
      %v1078 = vsel %vm1062, %v959, %v1015
      %v1079 = vsel %vm1062, %v960, %v1017
      %v1080 = vsel %vm1062, %v961, %v1019
      %v1081 = vsel %vm1062, %v962, %v1021
      %v1082 = vsel %vm1062, %v963, %v1023
      %v1083 = vsel %vm1062, %v964, %v1025
      %v1084 = vsel %vm1062, %v965, %v1027
      %v1085 = vsel %vm1062, %v966, %v1029
      %v1086 = vsel %vm1062, %v967, %v1031
      %v1087 = vsel %vm1062, %v968, %v1033
      %v1088 = vsel %vm1062, %v969, %v1035
      %v1089 = vsel %vm1062, %v970, %v1037
      %v1090 = vsel %vm1062, %v971, %v1039
      %v1091 = vsel %vm1062, %v972, %v1041
      %v1092 = vsel %vm1062, %v973, %v1043
      %v1093 = vsel %vm1062, %v974, %v1045
      %v1094 = vsel %vm1062, %v975, %v1047
      %v1095 = vsel %vm1062, %v976, %v1049
      %v1096 = vsel %vm1062, %v977, %v1051
      %v1097 = vsel %vm1062, %v978, %v1053
      %v1098 = vsel %vm1062, %v979, %v1055
      %v1099 = vsel %vm1062, %v980, %v985
      %v1100 = vsel %vm1062, %v945, %v1057
      %v1101 = vsel %vm1062, %v981, %v1059
      %v1102 = vsel %vm1062, %v982, %v1061
      %1103 = vrot.lane.b32.xlu0 %v1063, 16
      %v1104 = vpop.permute.xlu0 %1103
      %1105 = vrot.lane.b32.xlu0 %v1064, 16
      %v1106 = vpop.permute.xlu0 %1105
      %1107 = vrot.lane.b32.xlu0 %v1065, 16
      %v1108 = vpop.permute.xlu0 %1107
      %1109 = vrot.lane.b32.xlu0 %v1066, 16
      %v1110 = vpop.permute.xlu0 %1109
      %1111 = vrot.lane.b32.xlu0 %v1067, 16
      %v1112 = vpop.permute.xlu0 %1111
      %1113 = vrot.lane.b32.xlu0 %v1068, 16
      %v1114 = vpop.permute.xlu0 %1113
      %1115 = vrot.lane.b32.xlu0 %v1069, 16
      %v1116 = vpop.permute.xlu0 %1115
      %1117 = vrot.lane.b32.xlu0 %v1070, 16
      %v1118 = vpop.permute.xlu0 %1117
      %1119 = vrot.lane.b32.xlu0 %v1071, 16
      %v1120 = vpop.permute.xlu0 %1119
      %1121 = vrot.lane.b32.xlu0 %v1072, 16
      %v1122 = vpop.permute.xlu0 %1121
      %1123 = vrot.lane.b32.xlu0 %v1073, 16
      %v1124 = vpop.permute.xlu0 %1123
      %1125 = vrot.lane.b32.xlu0 %v1074, 16
      %v1126 = vpop.permute.xlu0 %1125
      %1127 = vrot.lane.b32.xlu0 %v1075, 16
      %v1128 = vpop.permute.xlu0 %1127
      %1129 = vrot.lane.b32.xlu0 %v1076, 16
      %v1130 = vpop.permute.xlu0 %1129
      %1131 = vrot.lane.b32.xlu0 %v1077, 16
      %v1132 = vpop.permute.xlu0 %1131
      %1133 = vrot.lane.b32.xlu0 %v1078, 16
      %v1134 = vpop.permute.xlu0 %1133
      %1135 = vrot.lane.b32.xlu0 %v1079, 16
      %v1136 = vpop.permute.xlu0 %1135
      %1137 = vrot.lane.b32.xlu0 %v1080, 16
      %v1138 = vpop.permute.xlu0 %1137
      %1139 = vrot.lane.b32.xlu0 %v1081, 16
      %v1140 = vpop.permute.xlu0 %1139
      %1141 = vrot.lane.b32.xlu0 %v1082, 16
      %v1142 = vpop.permute.xlu0 %1141
      %1143 = vrot.lane.b32.xlu0 %v1083, 16
      %v1144 = vpop.permute.xlu0 %1143
      %1145 = vrot.lane.b32.xlu0 %v1084, 16
      %v1146 = vpop.permute.xlu0 %1145
      %1147 = vrot.lane.b32.xlu0 %v1085, 16
      %v1148 = vpop.permute.xlu0 %1147
      %1149 = vrot.lane.b32.xlu0 %v1086, 16
      %v1150 = vpop.permute.xlu0 %1149
      %1151 = vrot.lane.b32.xlu0 %v1087, 16
      %v1152 = vpop.permute.xlu0 %1151
      %1153 = vrot.lane.b32.xlu0 %v1088, 16
      %v1154 = vpop.permute.xlu0 %1153
      %1155 = vrot.lane.b32.xlu0 %v1089, 16
      %v1156 = vpop.permute.xlu0 %1155
      %1157 = vrot.lane.b32.xlu0 %v1090, 16
      %v1158 = vpop.permute.xlu0 %1157
      %1159 = vrot.lane.b32.xlu0 %v1091, 16
      %v1160 = vpop.permute.xlu0 %1159
      %1161 = vrot.lane.b32.xlu0 %v1092, 16
      %v1162 = vpop.permute.xlu0 %1161
      %1163 = vrot.lane.b32.xlu0 %v1093, 16
      %v1164 = vpop.permute.xlu0 %1163
      %1165 = vrot.lane.b32.xlu0 %v1094, 16
      %v1166 = vpop.permute.xlu0 %1165
      %1167 = vrot.lane.b32.xlu0 %v1095, 16
      %v1168 = vpop.permute.xlu0 %1167
      %1169 = vrot.lane.b32.xlu0 %v1096, 16
      %v1170 = vpop.permute.xlu0 %1169
      %1171 = vrot.lane.b32.xlu0 %v1097, 16
      %v1172 = vpop.permute.xlu0 %1171
      %1173 = vrot.lane.b32.xlu0 %v1098, 16
      %v1174 = vpop.permute.xlu0 %1173
      %1175 = vrot.lane.b32.xlu0 %v1099, 16
      %v1176 = vpop.permute.xlu0 %1175
      %1177 = vrot.lane.b32.xlu0 %v1100, 16
      %v1178 = vpop.permute.xlu0 %1177
      %1179 = vrot.lane.b32.xlu0 %v1101, 16
      %v1180 = vpop.permute.xlu0 %1179
      %1181 = vrot.lane.b32.xlu0 %v1102, 16
      %v1182 = vpop.permute.xlu0 %1181
      %vm1183 = vcmask 130048
      %v1184 = vsel %vm1183, %v1063, %v1104
      %v1185 = vsel %vm1183, %v1063, %v1106
      %v1186 = vsel %vm1183, %v1063, %v1108
      %v1187 = vsel %vm1183, %v1064, %v1110
      %v1188 = vsel %vm1183, %v1065, %v1112
      %v1189 = vsel %vm1183, %v1066, %v1114
      %v1190 = vsel %vm1183, %v1067, %v1116
      %v1191 = vsel %vm1183, %v1068, %v1118
      %v1192 = vsel %vm1183, %v1069, %v1120
      %v1193 = vsel %vm1183, %v1070, %v1122
      %v1194 = vsel %vm1183, %v1071, %v1124
      %v1195 = vsel %vm1183, %v1072, %v1126
      %v1196 = vsel %vm1183, %v1073, %v1128
      %v1197 = vsel %vm1183, %v1074, %v1130
      %v1198 = vsel %vm1183, %v1075, %v1132
      %v1199 = vsel %vm1183, %v1076, %v1134
      %v1200 = vsel %vm1183, %v1077, %v1136
      %v1201 = vsel %vm1183, %v1078, %v1138
      %v1202 = vsel %vm1183, %v1079, %v1140
      %v1203 = vsel %vm1183, %v1080, %v1142
      %v1204 = vsel %vm1183, %v1081, %v1144
      %v1205 = vsel %vm1183, %v1082, %v1146
      %v1206 = vsel %vm1183, %v1083, %v1148
      %v1207 = vsel %vm1183, %v1084, %v1150
      %v1208 = vsel %vm1183, %v1085, %v1152
      %v1209 = vsel %vm1183, %v1086, %v1154
      %v1210 = vsel %vm1183, %v1087, %v1156
      %v1211 = vsel %vm1183, %v1088, %v1158
      %v1212 = vsel %vm1183, %v1089, %v1160
      %v1213 = vsel %vm1183, %v1090, %v1162
      %v1214 = vsel %vm1183, %v1091, %v1164
      %v1215 = vsel %vm1183, %v1092, %v1166
      %v1216 = vsel %vm1183, %v1093, %v1168
      %v1217 = vsel %vm1183, %v1094, %v1170
      %v1218 = vsel %vm1183, %v1095, %v1172
      %v1219 = vsel %vm1183, %v1096, %v1174
      %v1220 = vsel %vm1183, %v1097, %v1176
      %v1221 = vsel %vm1183, %v1098, %v1104
      %v1222 = vsel %vm1183, %v1099, %v1104
      %v1223 = vsel %vm1183, %v1063, %v1178
      %v1224 = vsel %vm1183, %v1063, %v1180
      %v1225 = vsel %vm1183, %v1100, %v1182
      %1226 = vrot.lane.b32.xlu0 %v1187, 32
      %v1227 = vpop.permute.xlu0 %1226
      %1228 = vrot.lane.b32.xlu0 %v1188, 32
      %v1229 = vpop.permute.xlu0 %1228
      %1230 = vrot.lane.b32.xlu0 %v1189, 32
      %v1231 = vpop.permute.xlu0 %1230
      %1232 = vrot.lane.b32.xlu0 %v1190, 32
      %v1233 = vpop.permute.xlu0 %1232
      %1234 = vrot.lane.b32.xlu0 %v1191, 32
      %v1235 = vpop.permute.xlu0 %1234
      %1236 = vrot.lane.b32.xlu0 %v1192, 32
      %v1237 = vpop.permute.xlu0 %1236
      %1238 = vrot.lane.b32.xlu0 %v1193, 32
      %v1239 = vpop.permute.xlu0 %1238
      %1240 = vrot.lane.b32.xlu0 %v1194, 32
      %v1241 = vpop.permute.xlu0 %1240
      %1242 = vrot.lane.b32.xlu0 %v1195, 32
      %v1243 = vpop.permute.xlu0 %1242
      %1244 = vrot.lane.b32.xlu0 %v1196, 32
      %v1245 = vpop.permute.xlu0 %1244
      %1246 = vrot.lane.b32.xlu0 %v1197, 32
      %v1247 = vpop.permute.xlu0 %1246
      %1248 = vrot.lane.b32.xlu0 %v1198, 32
      %v1249 = vpop.permute.xlu0 %1248
      %1250 = vrot.lane.b32.xlu0 %v1199, 32
      %v1251 = vpop.permute.xlu0 %1250
      %1252 = vrot.lane.b32.xlu0 %v1200, 32
      %v1253 = vpop.permute.xlu0 %1252
      %1254 = vrot.lane.b32.xlu0 %v1201, 32
      %v1255 = vpop.permute.xlu0 %1254
      %1256 = vrot.lane.b32.xlu0 %v1202, 32
      %v1257 = vpop.permute.xlu0 %1256
      %1258 = vrot.lane.b32.xlu0 %v1203, 32
      %v1259 = vpop.permute.xlu0 %1258
      %1260 = vrot.lane.b32.xlu0 %v1204, 32
      %v1261 = vpop.permute.xlu0 %1260
      %1262 = vrot.lane.b32.xlu0 %v1205, 32
      %v1263 = vpop.permute.xlu0 %1262
      %1264 = vrot.lane.b32.xlu0 %v1206, 32
      %v1265 = vpop.permute.xlu0 %1264
      %1266 = vrot.lane.b32.xlu0 %v1207, 32
      %v1267 = vpop.permute.xlu0 %1266
      %1268 = vrot.lane.b32.xlu0 %v1208, 32
      %v1269 = vpop.permute.xlu0 %1268
      %1270 = vrot.lane.b32.xlu0 %v1209, 32
      %v1271 = vpop.permute.xlu0 %1270
      %1272 = vrot.lane.b32.xlu0 %v1210, 32
      %v1273 = vpop.permute.xlu0 %1272
      %1274 = vrot.lane.b32.xlu0 %v1211, 32
      %v1275 = vpop.permute.xlu0 %1274
      %1276 = vrot.lane.b32.xlu0 %v1212, 32
      %v1277 = vpop.permute.xlu0 %1276
      %1278 = vrot.lane.b32.xlu0 %v1213, 32
      %v1279 = vpop.permute.xlu0 %1278
      %1280 = vrot.lane.b32.xlu0 %v1214, 32
      %v1281 = vpop.permute.xlu0 %1280
      %1282 = vrot.lane.b32.xlu0 %v1215, 32
      %v1283 = vpop.permute.xlu0 %1282
      %1284 = vrot.lane.b32.xlu0 %v1216, 32
      %v1285 = vpop.permute.xlu0 %1284
      %1286 = vrot.lane.b32.xlu0 %v1217, 32
      %v1287 = vpop.permute.xlu0 %1286
      %1288 = vrot.lane.b32.xlu0 %v1218, 32
      %v1289 = vpop.permute.xlu0 %1288
      %1290 = vrot.lane.b32.xlu0 %v1219, 32
      %v1291 = vpop.permute.xlu0 %1290
      %1292 = vrot.lane.b32.xlu0 %v1220, 32
      %v1293 = vpop.permute.xlu0 %1292
      %1294 = vrot.lane.b32.xlu0 %v1221, 32
      %v1295 = vpop.permute.xlu0 %1294
      %1296 = vrot.lane.b32.xlu0 %v1222, 32
      %v1297 = vpop.permute.xlu0 %1296
      %1298 = vrot.lane.b32.xlu0 %v1184, 32
      %v1299 = vpop.permute.xlu0 %1298
      %1300 = vrot.lane.b32.xlu0 %v1223, 32
      %v1301 = vpop.permute.xlu0 %1300
      %1302 = vrot.lane.b32.xlu0 %v1224, 32
      %v1303 = vpop.permute.xlu0 %1302
      %1304 = vrot.lane.b32.xlu0 %v1225, 32
      %v1305 = vpop.permute.xlu0 %1304
      %vm1306 = vcmask 261120
      %v1307 = vsel %vm1306, %v1184, %v1227
      %v1308 = vsel %vm1306, %v1184, %v1229
      %v1309 = vsel %vm1306, %v1185, %v1231
      %v1310 = vsel %vm1306, %v1186, %v1233
      %v1311 = vsel %vm1306, %v1187, %v1235
      %v1312 = vsel %vm1306, %v1188, %v1237
      %v1313 = vsel %vm1306, %v1189, %v1239
      %v1314 = vsel %vm1306, %v1190, %v1241
      %v1315 = vsel %vm1306, %v1191, %v1243
      %v1316 = vsel %vm1306, %v1192, %v1245
      %v1317 = vsel %vm1306, %v1193, %v1247
      %v1318 = vsel %vm1306, %v1194, %v1249
      %v1319 = vsel %vm1306, %v1195, %v1251
      %v1320 = vsel %vm1306, %v1196, %v1253
      %v1321 = vsel %vm1306, %v1197, %v1255
      %v1322 = vsel %vm1306, %v1198, %v1257
      %v1323 = vsel %vm1306, %v1199, %v1259
      %v1324 = vsel %vm1306, %v1200, %v1261
      %v1325 = vsel %vm1306, %v1201, %v1263
      %v1326 = vsel %vm1306, %v1202, %v1265
      %v1327 = vsel %vm1306, %v1203, %v1267
      %v1328 = vsel %vm1306, %v1204, %v1269
      %v1329 = vsel %vm1306, %v1205, %v1271
      %v1330 = vsel %vm1306, %v1206, %v1273
      %v1331 = vsel %vm1306, %v1207, %v1275
      %v1332 = vsel %vm1306, %v1208, %v1277
      %v1333 = vsel %vm1306, %v1209, %v1279
      %v1334 = vsel %vm1306, %v1210, %v1281
      %v1335 = vsel %vm1306, %v1211, %v1283
      %v1336 = vsel %vm1306, %v1212, %v1285
      %v1337 = vsel %vm1306, %v1213, %v1287
      %v1338 = vsel %vm1306, %v1214, %v1289
      %v1339 = vsel %vm1306, %v1215, %v1291
      %v1340 = vsel %vm1306, %v1216, %v1293
      %v1341 = vsel %vm1306, %v1217, %v1295
      %v1342 = vsel %vm1306, %v1218, %v1297
      %v1343 = vsel %vm1306, %v1219, %v1299
      %v1344 = vsel %vm1306, %v1220, %v1299
      %v1345 = vsel %vm1306, %v1221, %v1301
      %v1346 = vsel %vm1306, %v1222, %v1303
      %v1347 = vsel %vm1306, %v1184, %v1305
      %1348 = vrot.lane.b32.xlu0 %v1315, 64
      %v1349 = vpop.permute.xlu0 %1348
      %1350 = vrot.lane.b32.xlu0 %v1316, 64
      %v1351 = vpop.permute.xlu0 %1350
      %1352 = vrot.lane.b32.xlu0 %v1317, 64
      %v1353 = vpop.permute.xlu0 %1352
      %1354 = vrot.lane.b32.xlu0 %v1318, 64
      %v1355 = vpop.permute.xlu0 %1354
      %1356 = vrot.lane.b32.xlu0 %v1319, 64
      %v1357 = vpop.permute.xlu0 %1356
      %1358 = vrot.lane.b32.xlu0 %v1320, 64
      %v1359 = vpop.permute.xlu0 %1358
      %1360 = vrot.lane.b32.xlu0 %v1321, 64
      %v1361 = vpop.permute.xlu0 %1360
      %1362 = vrot.lane.b32.xlu0 %v1322, 64
      %v1363 = vpop.permute.xlu0 %1362
      %1364 = vrot.lane.b32.xlu0 %v1323, 64
      %v1365 = vpop.permute.xlu0 %1364
      %1366 = vrot.lane.b32.xlu0 %v1324, 64
      %v1367 = vpop.permute.xlu0 %1366
      %1368 = vrot.lane.b32.xlu0 %v1325, 64
      %v1369 = vpop.permute.xlu0 %1368
      %1370 = vrot.lane.b32.xlu0 %v1326, 64
      %v1371 = vpop.permute.xlu0 %1370
      %1372 = vrot.lane.b32.xlu0 %v1327, 64
      %v1373 = vpop.permute.xlu0 %1372
      %1374 = vrot.lane.b32.xlu0 %v1328, 64
      %v1375 = vpop.permute.xlu0 %1374
      %1376 = vrot.lane.b32.xlu0 %v1329, 64
      %v1377 = vpop.permute.xlu0 %1376
      %1378 = vrot.lane.b32.xlu0 %v1330, 64
      %v1379 = vpop.permute.xlu0 %1378
      %1380 = vrot.lane.b32.xlu0 %v1331, 64
      %v1381 = vpop.permute.xlu0 %1380
      %1382 = vrot.lane.b32.xlu0 %v1332, 64
      %v1383 = vpop.permute.xlu0 %1382
      %1384 = vrot.lane.b32.xlu0 %v1333, 64
      %v1385 = vpop.permute.xlu0 %1384
      %1386 = vrot.lane.b32.xlu0 %v1334, 64
      %v1387 = vpop.permute.xlu0 %1386
      %1388 = vrot.lane.b32.xlu0 %v1335, 64
      %v1389 = vpop.permute.xlu0 %1388
      %1390 = vrot.lane.b32.xlu0 %v1336, 64
      %v1391 = vpop.permute.xlu0 %1390
      %1392 = vrot.lane.b32.xlu0 %v1337, 64
      %v1393 = vpop.permute.xlu0 %1392
      %1394 = vrot.lane.b32.xlu0 %v1338, 64
      %v1395 = vpop.permute.xlu0 %1394
      %1396 = vrot.lane.b32.xlu0 %v1339, 64
      %v1397 = vpop.permute.xlu0 %1396
      %1398 = vrot.lane.b32.xlu0 %v1340, 64
      %v1399 = vpop.permute.xlu0 %1398
      %1400 = vrot.lane.b32.xlu0 %v1341, 64
      %v1401 = vpop.permute.xlu0 %1400
      %1402 = vrot.lane.b32.xlu0 %v1342, 64
      %v1403 = vpop.permute.xlu0 %1402
      %1404 = vrot.lane.b32.xlu0 %v1343, 64
      %v1405 = vpop.permute.xlu0 %1404
      %1406 = vrot.lane.b32.xlu0 %v1344, 64
      %v1407 = vpop.permute.xlu0 %1406
      %1408 = vrot.lane.b32.xlu0 %v1345, 64
      %v1409 = vpop.permute.xlu0 %1408
      %1410 = vrot.lane.b32.xlu0 %v1346, 64
      %v1411 = vpop.permute.xlu0 %1410
      %1412 = vrot.lane.b32.xlu0 %v1347, 64
      %v1413 = vpop.permute.xlu0 %1412
      %vm1414 = vcmask 523264
      %v1415 = vsel %vm1414, %v1307, %v1349
      %v1416 = vsel %vm1414, %v1308, %v1351
      %v1417 = vsel %vm1414, %v1309, %v1353
      %v1418 = vsel %vm1414, %v1310, %v1355
      %v1419 = vsel %vm1414, %v1311, %v1357
      %v1420 = vsel %vm1414, %v1312, %v1359
      %v1421 = vsel %vm1414, %v1313, %v1361
      %v1422 = vsel %vm1414, %v1314, %v1363
      %v1423 = vsel %vm1414, %v1315, %v1365
      %v1424 = vsel %vm1414, %v1316, %v1367
      %v1425 = vsel %vm1414, %v1317, %v1369
      %v1426 = vsel %vm1414, %v1318, %v1371
      %v1427 = vsel %vm1414, %v1319, %v1373
      %v1428 = vsel %vm1414, %v1320, %v1375
      %v1429 = vsel %vm1414, %v1321, %v1377
      %v1430 = vsel %vm1414, %v1322, %v1379
      %v1431 = vsel %vm1414, %v1323, %v1381
      %v1432 = vsel %vm1414, %v1324, %v1383
      %v1433 = vsel %vm1414, %v1325, %v1385
      %v1434 = vsel %vm1414, %v1326, %v1387
      %v1435 = vsel %vm1414, %v1327, %v1389
      %v1436 = vsel %vm1414, %v1328, %v1391
      %v1437 = vsel %vm1414, %v1329, %v1393
      %v1438 = vsel %vm1414, %v1330, %v1395
      %v1439 = vsel %vm1414, %v1331, %v1397
      %v1440 = vsel %vm1414, %v1332, %v1399
      %v1441 = vsel %vm1414, %v1333, %v1401
      %v1442 = vsel %vm1414, %v1334, %v1403
      %v1443 = vsel %vm1414, %v1335, %v1405
      %v1444 = vsel %vm1414, %v1336, %v1407
      %v1445 = vsel %vm1414, %v1337, %v1409
      %v1446 = vsel %vm1414, %v1338, %v1411
      %v1447 = vsel %vm1414, %v1339, %v1413
      %v1448 = vshll.u32 %v1415, 16
      %v1449 = vshll.u32 %v1416, 16
      %v1450 = vshll.u32 %v1417, 16
      %v1451 = vshll.u32 %v1418, 16
      %v1452 = vshll.u32 %v1419, 16
      %v1453 = vshll.u32 %v1420, 16
      %v1454 = vshll.u32 %v1421, 16
      %v1455 = vshll.u32 %v1422, 16
      %v1456 = vshll.u32 %v1423, 16
      %v1457 = vshll.u32 %v1424, 16
      %v1458 = vshll.u32 %v1425, 16
      %v1459 = vshll.u32 %v1426, 16
      %v1460 = vshll.u32 %v1427, 16
      %v1461 = vshll.u32 %v1428, 16
      %v1462 = vshll.u32 %v1429, 16
      %v1463 = vshll.u32 %v1430, 16
      %v1464 = vshll.u32 %v1431, 16
      %v1465 = vshll.u32 %v1432, 16
      %v1466 = vshll.u32 %v1433, 16
      %v1467 = vshll.u32 %v1434, 16
      %v1468 = vshll.u32 %v1435, 16
      %v1469 = vshll.u32 %v1436, 16
      %v1470 = vshll.u32 %v1437, 16
      %v1471 = vshll.u32 %v1438, 16
      %v1472 = vshll.u32 %v1439, 16
      %v1473 = vshll.u32 %v1440, 16
      %v1474 = vshll.u32 %v1441, 16
      %v1475 = vshll.u32 %v1442, 16
      %v1476 = vshll.u32 %v1443, 16
      %v1477 = vshll.u32 %v1444, 16
      %v1478 = vshll.u32 %v1445, 16
      %v1479 = vshll.u32 %v1446, 16
      %v1480 = vshll.u32 %v1447, 16
      %v1514 = vand.u32 %v1415, 4294901760
      %v1515 = vand.u32 %v1416, 4294901760
      %v1516 = vand.u32 %v1417, 4294901760
      %v1517 = vand.u32 %v1418, 4294901760
      %v1518 = vand.u32 %v1419, 4294901760
      %v1519 = vand.u32 %v1420, 4294901760
      %v1520 = vand.u32 %v1421, 4294901760
      %v1521 = vand.u32 %v1422, 4294901760
      %v1522 = vand.u32 %v1423, 4294901760
      %v1523 = vand.u32 %v1424, 4294901760
      %v1524 = vand.u32 %v1425, 4294901760
      %v1525 = vand.u32 %v1426, 4294901760
      %v1526 = vand.u32 %v1427, 4294901760
      %v1527 = vand.u32 %v1428, 4294901760
      %v1528 = vand.u32 %v1429, 4294901760
      %v1529 = vand.u32 %v1430, 4294901760
      %v1530 = vand.u32 %v1431, 4294901760
      %v1531 = vand.u32 %v1432, 4294901760
      %v1532 = vand.u32 %v1433, 4294901760
      %v1533 = vand.u32 %v1434, 4294901760
      %v1534 = vand.u32 %v1435, 4294901760
      %v1535 = vand.u32 %v1436, 4294901760
      %v1536 = vand.u32 %v1437, 4294901760
      %v1537 = vand.u32 %v1438, 4294901760
      %v1538 = vand.u32 %v1439, 4294901760
      %v1539 = vand.u32 %v1440, 4294901760
      %v1540 = vand.u32 %v1441, 4294901760
      %v1541 = vand.u32 %v1442, 4294901760
      %v1542 = vand.u32 %v1443, 4294901760
      %v1543 = vand.u32 %v1444, 4294901760
      %v1544 = vand.u32 %v1445, 4294901760
      %v1545 = vand.u32 %v1446, 4294901760
      %v1546 = vand.u32 %v1447, 4294901760
      %v1580 = vpack.c.bf16 %v1449, %v1448
      %v1581 = vpack.c.bf16 %v1451, %v1450
      %v1582 = vpack.c.bf16 %v1453, %v1452
      %v1583 = vpack.c.bf16 %v1455, %v1454
      %v1584 = vpack.c.bf16 %v1457, %v1456
      %v1585 = vpack.c.bf16 %v1459, %v1458
      %v1586 = vpack.c.bf16 %v1461, %v1460
      %v1587 = vpack.c.bf16 %v1463, %v1462
      %v1588 = vpack.c.bf16 %v1465, %v1464
      %v1589 = vpack.c.bf16 %v1467, %v1466
      %v1590 = vpack.c.bf16 %v1469, %v1468
      %v1591 = vpack.c.bf16 %v1471, %v1470
      %v1592 = vpack.c.bf16 %v1473, %v1472
      %v1593 = vpack.c.bf16 %v1475, %v1474
      %v1594 = vpack.c.bf16 %v1477, %v1476
      %v1595 = vpack.c.bf16 %v1479, %v1478
      %v1596 = vpack.c.bf16 %v1480, %v1480
      %v1597 = vpack.c.bf16 %v1515, %v1514
      %v1598 = vpack.c.bf16 %v1517, %v1516
      %v1599 = vpack.c.bf16 %v1519, %v1518
      %v1600 = vpack.c.bf16 %v1521, %v1520
      %v1601 = vpack.c.bf16 %v1523, %v1522
      %v1602 = vpack.c.bf16 %v1525, %v1524
      %v1603 = vpack.c.bf16 %v1527, %v1526
      %v1604 = vpack.c.bf16 %v1529, %v1528
      %v1605 = vpack.c.bf16 %v1531, %v1530
      %v1606 = vpack.c.bf16 %v1533, %v1532
      %v1607 = vpack.c.bf16 %v1535, %v1534
      %v1608 = vpack.c.bf16 %v1537, %v1536
      %v1609 = vpack.c.bf16 %v1539, %v1538
      %v1610 = vpack.c.bf16 %v1541, %v1540
      %v1611 = vpack.c.bf16 %v1543, %v1542
      %v1612 = vpack.c.bf16 %v1545, %v1544
      %v1613 = vpack.c.bf16 %v1546, %v1546
      %v1630 = vunpack.c.l.b16 %v416
      %v1631 = vunpack.c.l.b16 %v417
      %v1632 = vunpack.c.l.b16 %v418
      %v1633 = vunpack.c.l.b16 %v419
      %v1634 = vunpack.c.l.b16 %v420
      %v1635 = vunpack.c.l.b16 %v421
      %v1636 = vunpack.c.l.b16 %v422
      %v1637 = vunpack.c.l.b16 %v423
      %v1638 = vunpack.c.l.b16 %v424
      %v1639 = vunpack.c.l.b16 %v425
      %v1640 = vunpack.c.l.b16 %v426
      %v1641 = vunpack.c.l.b16 %v427
      %v1642 = vunpack.c.l.b16 %v428
      %v1643 = vunpack.c.l.b16 %v429
      %v1644 = vunpack.c.l.b16 %v430
      %v1645 = vunpack.c.l.b16 %v431
      %v1646 = vpack.c.b16 %v1631, %v1630
      %v1647 = vpack.c.b16 %v1633, %v1632
      %v1648 = vpack.c.b16 %v1635, %v1634
      %v1649 = vpack.c.b16 %v1637, %v1636
      %v1650 = vpack.c.b16 %v1639, %v1638
      %v1651 = vpack.c.b16 %v1641, %v1640
      %v1652 = vpack.c.b16 %v1643, %v1642
      %v1653 = vpack.c.b16 %v1645, %v1644
      %1662 = vmatprep.subr.bf16.mxu0 0
      %1663 = vmatpush1.bf16.msra.mxu0 %v1653
      %1664 = vmatprep.subr.bf16.mxu0 0
      %1665 = vmatpush1.bf16.msra.mxu0 %v1652
      %1666 = vmatprep.subr.bf16.mxu0 0
      %1667 = vmatpush1.bf16.msra.mxu0 %v1651
      %1668 = vmatprep.subr.bf16.mxu0 0
      %1669 = vmatpush1.bf16.msra.mxu0 %v1650
      %1670 = vmatprep.subr.bf16.mxu0 0
      %1671 = vmatpush1.bf16.msra.mxu0 %v1649
      %1672 = vmatprep.subr.bf16.mxu0 0
      %1673 = vmatpush1.bf16.msra.mxu0 %v1648
      %1674 = vmatprep.subr.bf16.mxu0 0
      %1675 = vmatpush1.bf16.msra.mxu0 %v1647
      %1676 = vmatprep.subr.bf16.mxu0 0
      %1677 = vmatpush1.bf16.msra.mxu0 %v1646
      %1678 = vmatprep.subr.bf16.mxu0 0
      %1679 = vmatpush2.bf16.msra.mxu0 0
      %1680 = vmatprep.subr.bf16.mxu0 0
      %1681 = vmatpush2.bf16.msra.mxu0 0
      %1682 = vmatprep.subr.bf16.mxu0 0
      %1683 = vmatpush2.bf16.msra.mxu0 0
      %1684 = vmatprep.subr.bf16.mxu0 0
      %1685 = vmatpush2.bf16.msra.mxu0 0
      %1686 = vmatprep.subr.bf16.mxu0 0
      %1687 = vmatpush2.bf16.msra.mxu0 0
      %1688 = vmatprep.subr.bf16.mxu0 0
      %1689 = vmatpush2.bf16.msra.mxu0 0
      %1690 = vmatprep.subr.bf16.mxu0 0
      %1691 = vmatpush2.bf16.msra.mxu0 0
      %1692 = vmatprep.subr.bf16.mxu0 0
      %1693 = vmatpush2.bf16.msra.mxu0 0
      %1694 = vmatprep.mubr.bf16.mxu0 0
      %1695 = vmatmul.mubr.bf16.gmra.mxu0 %v1597
      %v1696 = vpop.f32.mrf.mxu0
      %v1697 = vadd.f32 0.0, %v1696
      %v1698 = vpop.f32.mrf.mxu0
      %v1699 = vpop.f32.mrf.mxu0
      %v1700 = vadd.f32 0.0, %v1699
      %v1701 = vpop.f32.mrf.mxu0
      %1702 = vmatprep.mubr.bf16.mxu0 0
      %1703 = vmatmul.mubr.bf16.gmra.mxu0 %v1598
      %v1704 = vpop.f32.mrf.mxu0
      %v1705 = vadd.f32 0.0, %v1704
      %v1706 = vpop.f32.mrf.mxu0
      %v1707 = vpop.f32.mrf.mxu0
      %v1708 = vadd.f32 0.0, %v1707
      %v1709 = vpop.f32.mrf.mxu0
      %1710 = vmatprep.mubr.bf16.mxu0 0
      %1711 = vmatmul.mubr.bf16.gmra.mxu0 %v1599
      %v1712 = vpop.f32.mrf.mxu0
      %v1713 = vadd.f32 0.0, %v1712
      %v1714 = vpop.f32.mrf.mxu0
      %v1715 = vpop.f32.mrf.mxu0
      %v1716 = vadd.f32 0.0, %v1715
      %v1717 = vpop.f32.mrf.mxu0
      %1718 = vmatprep.mubr.bf16.mxu0 0
      %1719 = vmatmul.mubr.bf16.gmra.mxu0 %v1600
      %v1720 = vpop.f32.mrf.mxu0
      %v1721 = vadd.f32 0.0, %v1720
      %v1722 = vpop.f32.mrf.mxu0
      %v1723 = vpop.f32.mrf.mxu0
      %v1724 = vadd.f32 0.0, %v1723
      %v1725 = vpop.f32.mrf.mxu0
      %1726 = vmatprep.mubr.bf16.mxu0 0
      %1727 = vmatmul.mubr.bf16.gmra.mxu0 %v1601
      %v1728 = vpop.f32.mrf.mxu0
      %v1729 = vadd.f32 0.0, %v1728
      %v1730 = vpop.f32.mrf.mxu0
      %v1731 = vpop.f32.mrf.mxu0
      %v1732 = vadd.f32 0.0, %v1731
      %v1733 = vpop.f32.mrf.mxu0
      %1734 = vmatprep.mubr.bf16.mxu0 0
      %1735 = vmatmul.mubr.bf16.gmra.mxu0 %v1602
      %v1736 = vpop.f32.mrf.mxu0
      %v1737 = vadd.f32 0.0, %v1736
      %v1738 = vpop.f32.mrf.mxu0
      %v1739 = vpop.f32.mrf.mxu0
      %v1740 = vadd.f32 0.0, %v1739
      %v1741 = vpop.f32.mrf.mxu0
      %1742 = vmatprep.mubr.bf16.mxu0 0
      %1743 = vmatmul.mubr.bf16.gmra.mxu0 %v1603
      %v1744 = vpop.f32.mrf.mxu0
      %v1745 = vadd.f32 0.0, %v1744
      %v1746 = vpop.f32.mrf.mxu0
      %v1747 = vpop.f32.mrf.mxu0
      %v1748 = vadd.f32 0.0, %v1747
      %v1749 = vpop.f32.mrf.mxu0
      %1750 = vmatprep.mubr.bf16.mxu0 0
      %1751 = vmatmul.mubr.bf16.gmra.mxu0 %v1604
      %v1752 = vpop.f32.mrf.mxu0
      %v1753 = vadd.f32 0.0, %v1752
      %v1754 = vpop.f32.mrf.mxu0
      %v1755 = vpop.f32.mrf.mxu0
      %v1756 = vadd.f32 0.0, %v1755
      %v1757 = vpop.f32.mrf.mxu0
      %1758 = vmatprep.mubr.bf16.mxu0 0
      %1759 = vmatmul.mubr.bf16.gmra.mxu0 %v1605
      %v1760 = vpop.f32.mrf.mxu0
      %v1761 = vadd.f32 0.0, %v1760
      %v1762 = vpop.f32.mrf.mxu0
      %v1763 = vpop.f32.mrf.mxu0
      %v1764 = vadd.f32 0.0, %v1763
      %v1765 = vpop.f32.mrf.mxu0
      %1766 = vmatprep.mubr.bf16.mxu0 0
      %1767 = vmatmul.mubr.bf16.gmra.mxu0 %v1606
      %v1768 = vpop.f32.mrf.mxu0
      %v1769 = vadd.f32 0.0, %v1768
      %v1770 = vpop.f32.mrf.mxu0
      %v1771 = vpop.f32.mrf.mxu0
      %v1772 = vadd.f32 0.0, %v1771
      %v1773 = vpop.f32.mrf.mxu0
      %1774 = vmatprep.mubr.bf16.mxu0 0
      %1775 = vmatmul.mubr.bf16.gmra.mxu0 %v1607
      %v1776 = vpop.f32.mrf.mxu0
      %v1777 = vadd.f32 0.0, %v1776
      %v1778 = vpop.f32.mrf.mxu0
      %v1779 = vpop.f32.mrf.mxu0
      %v1780 = vadd.f32 0.0, %v1779
      %v1781 = vpop.f32.mrf.mxu0
      %1782 = vmatprep.mubr.bf16.mxu0 0
      %1783 = vmatmul.mubr.bf16.gmra.mxu0 %v1608
      %v1784 = vpop.f32.mrf.mxu0
      %v1785 = vadd.f32 0.0, %v1784
      %v1786 = vpop.f32.mrf.mxu0
      %v1787 = vpop.f32.mrf.mxu0
      %v1788 = vadd.f32 0.0, %v1787
      %v1789 = vpop.f32.mrf.mxu0
      %1790 = vmatprep.mubr.bf16.mxu0 0
      %1791 = vmatmul.mubr.bf16.gmra.mxu0 %v1609
      %v1792 = vpop.f32.mrf.mxu0
      %v1793 = vadd.f32 0.0, %v1792
      %v1794 = vpop.f32.mrf.mxu0
      %v1795 = vpop.f32.mrf.mxu0
      %v1796 = vadd.f32 0.0, %v1795
      %v1797 = vpop.f32.mrf.mxu0
      %1798 = vmatprep.mubr.bf16.mxu0 0
      %1799 = vmatmul.mubr.bf16.gmra.mxu0 %v1610
      %v1800 = vpop.f32.mrf.mxu0
      %v1801 = vadd.f32 0.0, %v1800
      %v1802 = vpop.f32.mrf.mxu0
      %v1803 = vpop.f32.mrf.mxu0
      %v1804 = vadd.f32 0.0, %v1803
      %v1805 = vpop.f32.mrf.mxu0
      %1806 = vmatprep.mubr.bf16.mxu0 0
      %1807 = vmatmul.mubr.bf16.gmra.mxu0 %v1611
      %v1808 = vpop.f32.mrf.mxu0
      %v1809 = vadd.f32 0.0, %v1808
      %v1810 = vpop.f32.mrf.mxu0
      %v1811 = vpop.f32.mrf.mxu0
      %v1812 = vadd.f32 0.0, %v1811
      %v1813 = vpop.f32.mrf.mxu0
      %1814 = vmatprep.mubr.bf16.mxu0 0
      %1815 = vmatmul.mubr.bf16.gmra.mxu0 %v1612
      %v1816 = vpop.f32.mrf.mxu0
      %v1817 = vadd.f32 0.0, %v1816
      %v1818 = vpop.f32.mrf.mxu0
      %v1819 = vpop.f32.mrf.mxu0
      %v1820 = vadd.f32 0.0, %v1819
      %v1821 = vpop.f32.mrf.mxu0
      %1822 = vmatprep.mubr.bf16.mxu0 0
      %1823 = vmatmul.mubr.bf16.gmra.mxu0 %v1613
      %v1824 = vpop.f32.mrf.mxu0
      %v1825 = vpop.f32.mrf.mxu0
      %v1826 = vpop.f32.mrf.mxu0
      %v1827 = vpop.f32.mrf.mxu0
      %1828 = vdwg.mxu0
      %v1845 = vunpack.c.l.b16 %v400
      %v1846 = vunpack.c.l.b16 %v401
      %v1847 = vunpack.c.l.b16 %v402
      %v1848 = vunpack.c.l.b16 %v403
      %v1849 = vunpack.c.l.b16 %v404
      %v1850 = vunpack.c.l.b16 %v405
      %v1851 = vunpack.c.l.b16 %v406
      %v1852 = vunpack.c.l.b16 %v407
      %v1853 = vunpack.c.l.b16 %v408
      %v1854 = vunpack.c.l.b16 %v409
      %v1855 = vunpack.c.l.b16 %v410
      %v1856 = vunpack.c.l.b16 %v411
      %v1857 = vunpack.c.l.b16 %v412
      %v1858 = vunpack.c.l.b16 %v413
      %v1859 = vunpack.c.l.b16 %v414
      %v1860 = vunpack.c.l.b16 %v415
      %v1861 = vpack.c.b16 %v1846, %v1845
      %v1862 = vpack.c.b16 %v1848, %v1847
      %v1863 = vpack.c.b16 %v1850, %v1849
      %v1864 = vpack.c.b16 %v1852, %v1851
      %v1865 = vpack.c.b16 %v1854, %v1853
      %v1866 = vpack.c.b16 %v1856, %v1855
      %v1867 = vpack.c.b16 %v1858, %v1857
      %v1868 = vpack.c.b16 %v1860, %v1859
      %1877 = vmatprep.subr.bf16.mxu0 0
      %1878 = vmatpush1.bf16.msra.mxu0 %v1868
      %1879 = vmatprep.subr.bf16.mxu0 0
      %1880 = vmatpush1.bf16.msra.mxu0 %v1867
      %1881 = vmatprep.subr.bf16.mxu0 0
      %1882 = vmatpush1.bf16.msra.mxu0 %v1866
      %1883 = vmatprep.subr.bf16.mxu0 0
      %1884 = vmatpush1.bf16.msra.mxu0 %v1865
      %1885 = vmatprep.subr.bf16.mxu0 0
      %1886 = vmatpush1.bf16.msra.mxu0 %v1864
      %1887 = vmatprep.subr.bf16.mxu0 0
      %1888 = vmatpush1.bf16.msra.mxu0 %v1863
      %1889 = vmatprep.subr.bf16.mxu0 0
      %1890 = vmatpush1.bf16.msra.mxu0 %v1862
      %1891 = vmatprep.subr.bf16.mxu0 0
      %1892 = vmatpush1.bf16.msra.mxu0 %v1861
      %1893 = vmatprep.subr.bf16.mxu0 0
      %1894 = vmatpush2.bf16.msra.mxu0 0
      %1895 = vmatprep.subr.bf16.mxu0 0
      %1896 = vmatpush2.bf16.msra.mxu0 0
      %1897 = vmatprep.subr.bf16.mxu0 0
      %1898 = vmatpush2.bf16.msra.mxu0 0
      %1899 = vmatprep.subr.bf16.mxu0 0
      %1900 = vmatpush2.bf16.msra.mxu0 0
      %1901 = vmatprep.subr.bf16.mxu0 0
      %1902 = vmatpush2.bf16.msra.mxu0 0
      %1903 = vmatprep.subr.bf16.mxu0 0
      %1904 = vmatpush2.bf16.msra.mxu0 0
      %1905 = vmatprep.subr.bf16.mxu0 0
      %1906 = vmatpush2.bf16.msra.mxu0 0
      %1907 = vmatprep.subr.bf16.mxu0 0
      %1908 = vmatpush2.bf16.msra.mxu0 0
      %1909 = vmatprep.mubr.bf16.mxu0 0
      %1910 = vmatmul.mubr.bf16.gmra.mxu0 %v1580
      %v1911 = vpop.f32.mrf.mxu0
      %v1912 = vadd.f32 %v1697, %v1911
      %v1913 = vpop.f32.mrf.mxu0
      %v1914 = vpop.f32.mrf.mxu0
      %v1915 = vadd.f32 %v1700, %v1914
      %v1916 = vpop.f32.mrf.mxu0
      %1917 = vmatprep.mubr.bf16.mxu0 0
      %1918 = vmatmul.mubr.bf16.gmra.mxu0 %v1581
      %v1919 = vpop.f32.mrf.mxu0
      %v1920 = vadd.f32 %v1705, %v1919
      %v1921 = vpop.f32.mrf.mxu0
      %v1922 = vpop.f32.mrf.mxu0
      %v1923 = vadd.f32 %v1708, %v1922
      %v1924 = vpop.f32.mrf.mxu0
      %1925 = vmatprep.mubr.bf16.mxu0 0
      %1926 = vmatmul.mubr.bf16.gmra.mxu0 %v1582
      %v1927 = vpop.f32.mrf.mxu0
      %v1928 = vadd.f32 %v1713, %v1927
      %v1929 = vpop.f32.mrf.mxu0
      %v1930 = vpop.f32.mrf.mxu0
      %v1931 = vadd.f32 %v1716, %v1930
      %v1932 = vpop.f32.mrf.mxu0
      %1933 = vmatprep.mubr.bf16.mxu0 0
      %1934 = vmatmul.mubr.bf16.gmra.mxu0 %v1583
      %v1935 = vpop.f32.mrf.mxu0
      %v1936 = vadd.f32 %v1721, %v1935
      %v1937 = vpop.f32.mrf.mxu0
      %v1938 = vpop.f32.mrf.mxu0
      %v1939 = vadd.f32 %v1724, %v1938
      %v1940 = vpop.f32.mrf.mxu0
      %1941 = vmatprep.mubr.bf16.mxu0 0
      %1942 = vmatmul.mubr.bf16.gmra.mxu0 %v1584
      %v1943 = vpop.f32.mrf.mxu0
      %v1944 = vadd.f32 %v1729, %v1943
      %v1945 = vpop.f32.mrf.mxu0
      %v1946 = vpop.f32.mrf.mxu0
      %v1947 = vadd.f32 %v1732, %v1946
      %v1948 = vpop.f32.mrf.mxu0
      %1949 = vmatprep.mubr.bf16.mxu0 0
      %1950 = vmatmul.mubr.bf16.gmra.mxu0 %v1585
      %v1951 = vpop.f32.mrf.mxu0
      %v1952 = vadd.f32 %v1737, %v1951
      %v1953 = vpop.f32.mrf.mxu0
      %v1954 = vpop.f32.mrf.mxu0
      %v1955 = vadd.f32 %v1740, %v1954
      %v1956 = vpop.f32.mrf.mxu0
      %1957 = vmatprep.mubr.bf16.mxu0 0
      %1958 = vmatmul.mubr.bf16.gmra.mxu0 %v1586
      %v1959 = vpop.f32.mrf.mxu0
      %v1960 = vadd.f32 %v1745, %v1959
      %v1961 = vpop.f32.mrf.mxu0
      %v1962 = vpop.f32.mrf.mxu0
      %v1963 = vadd.f32 %v1748, %v1962
      %v1964 = vpop.f32.mrf.mxu0
      %1965 = vmatprep.mubr.bf16.mxu0 0
      %1966 = vmatmul.mubr.bf16.gmra.mxu0 %v1587
      %v1967 = vpop.f32.mrf.mxu0
      %v1968 = vadd.f32 %v1753, %v1967
      %v1969 = vpop.f32.mrf.mxu0
      %v1970 = vpop.f32.mrf.mxu0
      %v1971 = vadd.f32 %v1756, %v1970
      %v1972 = vpop.f32.mrf.mxu0
      %1973 = vmatprep.mubr.bf16.mxu0 0
      %1974 = vmatmul.mubr.bf16.gmra.mxu0 %v1588
      %v1975 = vpop.f32.mrf.mxu0
      %v1976 = vadd.f32 %v1761, %v1975
      %v1977 = vpop.f32.mrf.mxu0
      %v1978 = vpop.f32.mrf.mxu0
      %v1979 = vadd.f32 %v1764, %v1978
      %v1980 = vpop.f32.mrf.mxu0
      %1981 = vmatprep.mubr.bf16.mxu0 0
      %1982 = vmatmul.mubr.bf16.gmra.mxu0 %v1589
      %v1983 = vpop.f32.mrf.mxu0
      %v1984 = vadd.f32 %v1769, %v1983
      %v1985 = vpop.f32.mrf.mxu0
      %v1986 = vpop.f32.mrf.mxu0
      %v1987 = vadd.f32 %v1772, %v1986
      %v1988 = vpop.f32.mrf.mxu0
      %1989 = vmatprep.mubr.bf16.mxu0 0
      %1990 = vmatmul.mubr.bf16.gmra.mxu0 %v1590
      %v1991 = vpop.f32.mrf.mxu0
      %v1992 = vadd.f32 %v1777, %v1991
      %v1993 = vpop.f32.mrf.mxu0
      %v1994 = vpop.f32.mrf.mxu0
      %v1995 = vadd.f32 %v1780, %v1994
      %v1996 = vpop.f32.mrf.mxu0
      %1997 = vmatprep.mubr.bf16.mxu0 0
      %1998 = vmatmul.mubr.bf16.gmra.mxu0 %v1591
      %v1999 = vpop.f32.mrf.mxu0
      %v2000 = vadd.f32 %v1785, %v1999
      %v2001 = vpop.f32.mrf.mxu0
      %v2002 = vpop.f32.mrf.mxu0
      %v2003 = vadd.f32 %v1788, %v2002
      %v2004 = vpop.f32.mrf.mxu0
      %2005 = vmatprep.mubr.bf16.mxu0 0
      %2006 = vmatmul.mubr.bf16.gmra.mxu0 %v1592
      %v2007 = vpop.f32.mrf.mxu0
      %v2008 = vadd.f32 %v1793, %v2007
      %v2009 = vpop.f32.mrf.mxu0
      %v2010 = vpop.f32.mrf.mxu0
      %v2011 = vadd.f32 %v1796, %v2010
      %v2012 = vpop.f32.mrf.mxu0
      %2013 = vmatprep.mubr.bf16.mxu0 0
      %2014 = vmatmul.mubr.bf16.gmra.mxu0 %v1593
      %v2015 = vpop.f32.mrf.mxu0
      %v2016 = vadd.f32 %v1801, %v2015
      %v2017 = vpop.f32.mrf.mxu0
      %v2018 = vpop.f32.mrf.mxu0
      %v2019 = vadd.f32 %v1804, %v2018
      %v2020 = vpop.f32.mrf.mxu0
      %2021 = vmatprep.mubr.bf16.mxu0 0
      %2022 = vmatmul.mubr.bf16.gmra.mxu0 %v1594
      %v2023 = vpop.f32.mrf.mxu0
      %v2024 = vadd.f32 %v1809, %v2023
      %v2025 = vpop.f32.mrf.mxu0
      %v2026 = vpop.f32.mrf.mxu0
      %v2027 = vadd.f32 %v1812, %v2026
      %v2028 = vpop.f32.mrf.mxu0
      %2029 = vmatprep.mubr.bf16.mxu0 0
      %2030 = vmatmul.mubr.bf16.gmra.mxu0 %v1595
      %v2031 = vpop.f32.mrf.mxu0
      %v2032 = vadd.f32 %v1817, %v2031
      %v2033 = vpop.f32.mrf.mxu0
      %v2034 = vpop.f32.mrf.mxu0
      %v2035 = vadd.f32 %v1820, %v2034
      %v2036 = vpop.f32.mrf.mxu0
      %2037 = vmatprep.mubr.bf16.mxu0 0
      %2038 = vmatmul.mubr.bf16.gmra.mxu0 %v1596
      %v2039 = vpop.f32.mrf.mxu0
      %v2040 = vpop.f32.mrf.mxu0
      %v2041 = vpop.f32.mrf.mxu0
      %v2042 = vpop.f32.mrf.mxu0
      %2043 = vdwg.mxu0
      %v2044 = vsel %vm1306, %v1912, -inf
      %v2045 = vrot.slane %v2044, 4
      %v2046 = vmax.f32 %v2044, %v2045
      %v2047 = vrot.slane %v2046, 2
      %v2048 = vmax.f32 %v2046, %v2047
      %v2049 = vrot.slane %v2048, 1
      %v2050 = vmax.f32 %v2048, %v2049
      %v2051 = vsel %vm1306, %v1915, -inf
      %v2052 = vrot.slane %v2051, 4
      %v2053 = vmax.f32 %v2051, %v2052
      %v2054 = vrot.slane %v2053, 2
      %v2055 = vmax.f32 %v2053, %v2054
      %v2056 = vrot.slane %v2055, 1
      %v2057 = vmax.f32 %v2055, %v2056
      %v2058 = vsel %vm1306, %v1920, -inf
      %v2059 = vrot.slane %v2058, 4
      %v2060 = vmax.f32 %v2058, %v2059
      %v2061 = vrot.slane %v2060, 2
      %v2062 = vmax.f32 %v2060, %v2061
      %v2063 = vrot.slane %v2062, 1
      %v2064 = vmax.f32 %v2062, %v2063
      %v2065 = vsel %vm1306, %v1923, -inf
      %v2066 = vrot.slane %v2065, 4
      %v2067 = vmax.f32 %v2065, %v2066
      %v2068 = vrot.slane %v2067, 2
      %v2069 = vmax.f32 %v2067, %v2068
      %v2070 = vrot.slane %v2069, 1
      %v2071 = vmax.f32 %v2069, %v2070
      %v2072 = vsel %vm1306, %v1928, -inf
      %v2073 = vrot.slane %v2072, 4
      %v2074 = vmax.f32 %v2072, %v2073
      %v2075 = vrot.slane %v2074, 2
      %v2076 = vmax.f32 %v2074, %v2075
      %v2077 = vrot.slane %v2076, 1
      %v2078 = vmax.f32 %v2076, %v2077
      %v2079 = vsel %vm1306, %v1931, -inf
      %v2080 = vrot.slane %v2079, 4
      %v2081 = vmax.f32 %v2079, %v2080
      %v2082 = vrot.slane %v2081, 2
      %v2083 = vmax.f32 %v2081, %v2082
      %v2084 = vrot.slane %v2083, 1
      %v2085 = vmax.f32 %v2083, %v2084
      %v2086 = vsel %vm1306, %v1936, -inf
      %v2087 = vrot.slane %v2086, 4
      %v2088 = vmax.f32 %v2086, %v2087
      %v2089 = vrot.slane %v2088, 2
      %v2090 = vmax.f32 %v2088, %v2089
      %v2091 = vrot.slane %v2090, 1
      %v2092 = vmax.f32 %v2090, %v2091
      %v2093 = vsel %vm1306, %v1939, -inf
      %v2094 = vrot.slane %v2093, 4
      %v2095 = vmax.f32 %v2093, %v2094
      %v2096 = vrot.slane %v2095, 2
      %v2097 = vmax.f32 %v2095, %v2096
      %v2098 = vrot.slane %v2097, 1
      %v2099 = vmax.f32 %v2097, %v2098
      %v2100 = vsel %vm1306, %v1944, -inf
      %v2101 = vrot.slane %v2100, 4
      %v2102 = vmax.f32 %v2100, %v2101
      %v2103 = vrot.slane %v2102, 2
      %v2104 = vmax.f32 %v2102, %v2103
      %v2105 = vrot.slane %v2104, 1
      %v2106 = vmax.f32 %v2104, %v2105
      %v2107 = vsel %vm1306, %v1947, -inf
      %v2108 = vrot.slane %v2107, 4
      %v2109 = vmax.f32 %v2107, %v2108
      %v2110 = vrot.slane %v2109, 2
      %v2111 = vmax.f32 %v2109, %v2110
      %v2112 = vrot.slane %v2111, 1
      %v2113 = vmax.f32 %v2111, %v2112
      %v2114 = vsel %vm1306, %v1952, -inf
      %v2115 = vrot.slane %v2114, 4
      %v2116 = vmax.f32 %v2114, %v2115
      %v2117 = vrot.slane %v2116, 2
      %v2118 = vmax.f32 %v2116, %v2117
      %v2119 = vrot.slane %v2118, 1
      %v2120 = vmax.f32 %v2118, %v2119
      %v2121 = vsel %vm1306, %v1955, -inf
      %v2122 = vrot.slane %v2121, 4
      %v2123 = vmax.f32 %v2121, %v2122
      %v2124 = vrot.slane %v2123, 2
      %v2125 = vmax.f32 %v2123, %v2124
      %v2126 = vrot.slane %v2125, 1
      %v2127 = vmax.f32 %v2125, %v2126
      %v2128 = vsel %vm1306, %v1960, -inf
      %v2129 = vrot.slane %v2128, 4
      %v2130 = vmax.f32 %v2128, %v2129
      %v2131 = vrot.slane %v2130, 2
      %v2132 = vmax.f32 %v2130, %v2131
      %v2133 = vrot.slane %v2132, 1
      %v2134 = vmax.f32 %v2132, %v2133
      %v2135 = vsel %vm1306, %v1963, -inf
      %v2136 = vrot.slane %v2135, 4
      %v2137 = vmax.f32 %v2135, %v2136
      %v2138 = vrot.slane %v2137, 2
      %v2139 = vmax.f32 %v2137, %v2138
      %v2140 = vrot.slane %v2139, 1
      %v2141 = vmax.f32 %v2139, %v2140
      %v2142 = vsel %vm1306, %v1968, -inf
      %v2143 = vrot.slane %v2142, 4
      %v2144 = vmax.f32 %v2142, %v2143
      %v2145 = vrot.slane %v2144, 2
      %v2146 = vmax.f32 %v2144, %v2145
      %v2147 = vrot.slane %v2146, 1
      %v2148 = vmax.f32 %v2146, %v2147
      %v2149 = vsel %vm1306, %v1971, -inf
      %v2150 = vrot.slane %v2149, 4
      %v2151 = vmax.f32 %v2149, %v2150
      %v2152 = vrot.slane %v2151, 2
      %v2153 = vmax.f32 %v2151, %v2152
      %v2154 = vrot.slane %v2153, 1
      %v2155 = vmax.f32 %v2153, %v2154
      %v2156 = vsel %vm1306, %v1976, -inf
      %v2157 = vrot.slane %v2156, 4
      %v2158 = vmax.f32 %v2156, %v2157
      %v2159 = vrot.slane %v2158, 2
      %v2160 = vmax.f32 %v2158, %v2159
      %v2161 = vrot.slane %v2160, 1
      %v2162 = vmax.f32 %v2160, %v2161
      %v2163 = vsel %vm1306, %v1979, -inf
      %v2164 = vrot.slane %v2163, 4
      %v2165 = vmax.f32 %v2163, %v2164
      %v2166 = vrot.slane %v2165, 2
      %v2167 = vmax.f32 %v2165, %v2166
      %v2168 = vrot.slane %v2167, 1
      %v2169 = vmax.f32 %v2167, %v2168
      %v2170 = vsel %vm1306, %v1984, -inf
      %v2171 = vrot.slane %v2170, 4
      %v2172 = vmax.f32 %v2170, %v2171
      %v2173 = vrot.slane %v2172, 2
      %v2174 = vmax.f32 %v2172, %v2173
      %v2175 = vrot.slane %v2174, 1
      %v2176 = vmax.f32 %v2174, %v2175
      %v2177 = vsel %vm1306, %v1987, -inf
      %v2178 = vrot.slane %v2177, 4
      %v2179 = vmax.f32 %v2177, %v2178
      %v2180 = vrot.slane %v2179, 2
      %v2181 = vmax.f32 %v2179, %v2180
      %v2182 = vrot.slane %v2181, 1
      %v2183 = vmax.f32 %v2181, %v2182
      %v2184 = vsel %vm1306, %v1992, -inf
      %v2185 = vrot.slane %v2184, 4
      %v2186 = vmax.f32 %v2184, %v2185
      %v2187 = vrot.slane %v2186, 2
      %v2188 = vmax.f32 %v2186, %v2187
      %v2189 = vrot.slane %v2188, 1
      %v2190 = vmax.f32 %v2188, %v2189
      %v2191 = vsel %vm1306, %v1995, -inf
      %v2192 = vrot.slane %v2191, 4
      %v2193 = vmax.f32 %v2191, %v2192
      %v2194 = vrot.slane %v2193, 2
      %v2195 = vmax.f32 %v2193, %v2194
      %v2196 = vrot.slane %v2195, 1
      %v2197 = vmax.f32 %v2195, %v2196
      %v2198 = vsel %vm1306, %v2000, -inf
      %v2199 = vrot.slane %v2198, 4
      %v2200 = vmax.f32 %v2198, %v2199
      %v2201 = vrot.slane %v2200, 2
      %v2202 = vmax.f32 %v2200, %v2201
      %v2203 = vrot.slane %v2202, 1
      %v2204 = vmax.f32 %v2202, %v2203
      %v2205 = vsel %vm1306, %v2003, -inf
      %v2206 = vrot.slane %v2205, 4
      %v2207 = vmax.f32 %v2205, %v2206
      %v2208 = vrot.slane %v2207, 2
      %v2209 = vmax.f32 %v2207, %v2208
      %v2210 = vrot.slane %v2209, 1
      %v2211 = vmax.f32 %v2209, %v2210
      %v2212 = vsel %vm1306, %v2008, -inf
      %v2213 = vrot.slane %v2212, 4
      %v2214 = vmax.f32 %v2212, %v2213
      %v2215 = vrot.slane %v2214, 2
      %v2216 = vmax.f32 %v2214, %v2215
      %v2217 = vrot.slane %v2216, 1
      %v2218 = vmax.f32 %v2216, %v2217
      %v2219 = vsel %vm1306, %v2011, -inf
      %v2220 = vrot.slane %v2219, 4
      %v2221 = vmax.f32 %v2219, %v2220
      %v2222 = vrot.slane %v2221, 2
      %v2223 = vmax.f32 %v2221, %v2222
      %v2224 = vrot.slane %v2223, 1
      %v2225 = vmax.f32 %v2223, %v2224
      %v2226 = vsel %vm1306, %v2016, -inf
      %v2227 = vrot.slane %v2226, 4
      %v2228 = vmax.f32 %v2226, %v2227
      %v2229 = vrot.slane %v2228, 2
      %v2230 = vmax.f32 %v2228, %v2229
      %v2231 = vrot.slane %v2230, 1
      %v2232 = vmax.f32 %v2230, %v2231
      %v2233 = vsel %vm1306, %v2019, -inf
      %v2234 = vrot.slane %v2233, 4
      %v2235 = vmax.f32 %v2233, %v2234
      %v2236 = vrot.slane %v2235, 2
      %v2237 = vmax.f32 %v2235, %v2236
      %v2238 = vrot.slane %v2237, 1
      %v2239 = vmax.f32 %v2237, %v2238
      %v2240 = vsel %vm1306, %v2024, -inf
      %v2241 = vrot.slane %v2240, 4
      %v2242 = vmax.f32 %v2240, %v2241
      %v2243 = vrot.slane %v2242, 2
      %v2244 = vmax.f32 %v2242, %v2243
      %v2245 = vrot.slane %v2244, 1
      %v2246 = vmax.f32 %v2244, %v2245
      %v2247 = vsel %vm1306, %v2027, -inf
      %v2248 = vrot.slane %v2247, 4
      %v2249 = vmax.f32 %v2247, %v2248
      %v2250 = vrot.slane %v2249, 2
      %v2251 = vmax.f32 %v2249, %v2250
      %v2252 = vrot.slane %v2251, 1
      %v2253 = vmax.f32 %v2251, %v2252
      %v2254 = vsel %vm1306, %v2032, -inf
      %v2255 = vrot.slane %v2254, 4
      %v2256 = vmax.f32 %v2254, %v2255
      %v2257 = vrot.slane %v2256, 2
      %v2258 = vmax.f32 %v2256, %v2257
      %v2259 = vrot.slane %v2258, 1
      %v2260 = vmax.f32 %v2258, %v2259
      %v2261 = vsel %vm1306, %v2035, -inf
      %v2262 = vrot.slane %v2261, 4
      %v2263 = vmax.f32 %v2261, %v2262
      %v2264 = vrot.slane %v2263, 2
      %v2265 = vmax.f32 %v2263, %v2264
      %v2266 = vrot.slane %v2265, 1
      %v2267 = vmax.f32 %v2265, %v2266
      %v2269 = vlaneseq
      %v2270 = vshrl.u32 %v2269, 7
      %v2271 = vsub.s32 0, %v2270
      %v2272 = vrot.slane %v432, %v2271
      %v2274 = vadd.f32 %v2050, %v2272
      %v2275 = vadd.f32 %v2057, %v2272
      %v2276 = vadd.f32 %v2064, %v2272
      %v2277 = vadd.f32 %v2071, %v2272
      %v2278 = vadd.f32 %v2078, %v2272
      %v2279 = vadd.f32 %v2085, %v2272
      %v2280 = vadd.f32 %v2092, %v2272
      %v2281 = vadd.f32 %v2099, %v2272
      %v2282 = vadd.f32 %v2106, %v2272
      %v2283 = vadd.f32 %v2113, %v2272
      %v2284 = vadd.f32 %v2120, %v2272
      %v2285 = vadd.f32 %v2127, %v2272
      %v2286 = vadd.f32 %v2134, %v2272
      %v2287 = vadd.f32 %v2141, %v2272
      %v2288 = vadd.f32 %v2148, %v2272
      %v2289 = vadd.f32 %v2155, %v2272
      %v2290 = vadd.f32 %v2162, %v2272
      %v2291 = vadd.f32 %v2169, %v2272
      %v2292 = vadd.f32 %v2176, %v2272
      %v2293 = vadd.f32 %v2183, %v2272
      %v2294 = vadd.f32 %v2190, %v2272
      %v2295 = vadd.f32 %v2197, %v2272
      %v2296 = vadd.f32 %v2204, %v2272
      %v2297 = vadd.f32 %v2211, %v2272
      %v2298 = vadd.f32 %v2218, %v2272
      %v2299 = vadd.f32 %v2225, %v2272
      %v2300 = vadd.f32 %v2232, %v2272
      %v2301 = vadd.f32 %v2239, %v2272
      %v2302 = vadd.f32 %v2246, %v2272
      %v2303 = vadd.f32 %v2253, %v2272
      %v2304 = vadd.f32 %v2260, %v2272
      %v2305 = vadd.f32 %v2267, %v2272
      %v2306 = vmax.f32 %v2274, 0.0
      %v2307 = vmax.f32 %v2275, 0.0
      %v2308 = vmax.f32 %v2276, 0.0
      %v2309 = vmax.f32 %v2277, 0.0
      %v2310 = vmax.f32 %v2278, 0.0
      %v2311 = vmax.f32 %v2279, 0.0
      %v2312 = vmax.f32 %v2280, 0.0
      %v2313 = vmax.f32 %v2281, 0.0
      %v2314 = vmax.f32 %v2282, 0.0
      %v2315 = vmax.f32 %v2283, 0.0
      %v2316 = vmax.f32 %v2284, 0.0
      %v2317 = vmax.f32 %v2285, 0.0
      %v2318 = vmax.f32 %v2286, 0.0
      %v2319 = vmax.f32 %v2287, 0.0
      %v2320 = vmax.f32 %v2288, 0.0
      %v2321 = vmax.f32 %v2289, 0.0
      %v2322 = vmax.f32 %v2290, 0.0
      %v2323 = vmax.f32 %v2291, 0.0
      %v2324 = vmax.f32 %v2292, 0.0
      %v2325 = vmax.f32 %v2293, 0.0
      %v2326 = vmax.f32 %v2294, 0.0
      %v2327 = vmax.f32 %v2295, 0.0
      %v2328 = vmax.f32 %v2296, 0.0
      %v2329 = vmax.f32 %v2297, 0.0
      %v2330 = vmax.f32 %v2298, 0.0
      %v2331 = vmax.f32 %v2299, 0.0
      %v2332 = vmax.f32 %v2300, 0.0
      %v2333 = vmax.f32 %v2301, 0.0
      %v2334 = vmax.f32 %v2302, 0.0
      %v2335 = vmax.f32 %v2303, 0.0
      %v2336 = vmax.f32 %v2304, 0.0
      %v2337 = vmax.f32 %v2305, 0.0
      %v2338 = vpack.c.bf16 %v2306, %v2306
      %v2339 = vpack.c.bf16 %v2307, %v2307
      %v2340 = vpack.c.bf16 %v2308, %v2308
      %v2341 = vpack.c.bf16 %v2309, %v2309
      %v2342 = vpack.c.bf16 %v2310, %v2310
      %v2343 = vpack.c.bf16 %v2311, %v2311
      %v2344 = vpack.c.bf16 %v2312, %v2312
      %v2345 = vpack.c.bf16 %v2313, %v2313
      %v2346 = vpack.c.bf16 %v2314, %v2314
      %v2347 = vpack.c.bf16 %v2315, %v2315
      %v2348 = vpack.c.bf16 %v2316, %v2316
      %v2349 = vpack.c.bf16 %v2317, %v2317
      %v2350 = vpack.c.bf16 %v2318, %v2318
      %v2351 = vpack.c.bf16 %v2319, %v2319
      %v2352 = vpack.c.bf16 %v2320, %v2320
      %v2353 = vpack.c.bf16 %v2321, %v2321
      %v2354 = vpack.c.bf16 %v2322, %v2322
      %v2355 = vpack.c.bf16 %v2323, %v2323
      %v2356 = vpack.c.bf16 %v2324, %v2324
      %v2357 = vpack.c.bf16 %v2325, %v2325
      %v2358 = vpack.c.bf16 %v2326, %v2326
      %v2359 = vpack.c.bf16 %v2327, %v2327
      %v2360 = vpack.c.bf16 %v2328, %v2328
      %v2361 = vpack.c.bf16 %v2329, %v2329
      %v2362 = vpack.c.bf16 %v2330, %v2330
      %v2363 = vpack.c.bf16 %v2331, %v2331
      %v2364 = vpack.c.bf16 %v2332, %v2332
      %v2365 = vpack.c.bf16 %v2333, %v2333
      %v2366 = vpack.c.bf16 %v2334, %v2334
      %v2367 = vpack.c.bf16 %v2335, %v2335
      %v2368 = vpack.c.bf16 %v2336, %v2336
      %v2369 = vpack.c.bf16 %v2337, %v2337
      %2370 = vrot.lane.b32.xlu0 %v368, 127
      %v2371 = vpop.permute.xlu0 %2370
      %2372 = vrot.lane.b32.xlu0 %v369, 127
      %v2373 = vpop.permute.xlu0 %2372
      %2374 = vrot.lane.b32.xlu0 %v370, 127
      %v2375 = vpop.permute.xlu0 %2374
      %2376 = vrot.lane.b32.xlu0 %v371, 127
      %v2377 = vpop.permute.xlu0 %2376
      %2378 = vrot.lane.b32.xlu0 %v372, 127
      %v2379 = vpop.permute.xlu0 %2378
      %2380 = vrot.lane.b32.xlu0 %v373, 127
      %v2381 = vpop.permute.xlu0 %2380
      %2382 = vrot.lane.b32.xlu0 %v374, 127
      %v2383 = vpop.permute.xlu0 %2382
      %2384 = vrot.lane.b32.xlu0 %v375, 127
      %v2385 = vpop.permute.xlu0 %2384
      %2386 = vrot.lane.b32.xlu0 %v376, 127
      %v2387 = vpop.permute.xlu0 %2386
      %2388 = vrot.lane.b32.xlu0 %v377, 127
      %v2389 = vpop.permute.xlu0 %2388
      %2390 = vrot.lane.b32.xlu0 %v378, 127
      %v2391 = vpop.permute.xlu0 %2390
      %2392 = vrot.lane.b32.xlu0 %v379, 127
      %v2393 = vpop.permute.xlu0 %2392
      %2394 = vrot.lane.b32.xlu0 %v380, 127
      %v2395 = vpop.permute.xlu0 %2394
      %2396 = vrot.lane.b32.xlu0 %v381, 127
      %v2397 = vpop.permute.xlu0 %2396
      %2398 = vrot.lane.b32.xlu0 %v382, 127
      %v2399 = vpop.permute.xlu0 %2398
      %2400 = vrot.lane.b32.xlu0 %v383, 127
      %v2401 = vpop.permute.xlu0 %2400
      %2402 = vrot.lane.b32.xlu0 %v384, 127
      %v2403 = vpop.permute.xlu0 %2402
      %2404 = vrot.lane.b32.xlu0 %v385, 127
      %v2405 = vpop.permute.xlu0 %2404
      %2406 = vrot.lane.b32.xlu0 %v386, 127
      %v2407 = vpop.permute.xlu0 %2406
      %2408 = vrot.lane.b32.xlu0 %v387, 127
      %v2409 = vpop.permute.xlu0 %2408
      %2410 = vrot.lane.b32.xlu0 %v388, 127
      %v2411 = vpop.permute.xlu0 %2410
      %2412 = vrot.lane.b32.xlu0 %v389, 127
      %v2413 = vpop.permute.xlu0 %2412
      %2414 = vrot.lane.b32.xlu0 %v390, 127
      %v2415 = vpop.permute.xlu0 %2414
      %2416 = vrot.lane.b32.xlu0 %v391, 127
      %v2417 = vpop.permute.xlu0 %2416
      %2418 = vrot.lane.b32.xlu0 %v392, 127
      %v2419 = vpop.permute.xlu0 %2418
      %2420 = vrot.lane.b32.xlu0 %v393, 127
      %v2421 = vpop.permute.xlu0 %2420
      %2422 = vrot.lane.b32.xlu0 %v394, 127
      %v2423 = vpop.permute.xlu0 %2422
      %2424 = vrot.lane.b32.xlu0 %v395, 127
      %v2425 = vpop.permute.xlu0 %2424
      %2426 = vrot.lane.b32.xlu0 %v396, 127
      %v2427 = vpop.permute.xlu0 %2426
      %2428 = vrot.lane.b32.xlu0 %v397, 127
      %v2429 = vpop.permute.xlu0 %2428
      %2430 = vrot.lane.b32.xlu0 %v398, 127
      %v2431 = vpop.permute.xlu0 %2430
      %2432 = vrot.lane.b32.xlu0 %v399, 127
      %v2433 = vpop.permute.xlu0 %2432
      %v2434 = vrot.slane %v2371, 1
      %v2435 = vsel %vm433, 0, %v2434
      %v2436 = vrot.slane %v2373, 1
      %v2437 = vsel %vm433, %v2434, %v2436
      %v2438 = vrot.slane %v2375, 1
      %v2439 = vsel %vm433, %v2436, %v2438
      %v2440 = vrot.slane %v2377, 1
      %v2441 = vsel %vm433, %v2438, %v2440
      %v2442 = vrot.slane %v2379, 1
      %v2443 = vsel %vm433, %v2440, %v2442
      %v2444 = vrot.slane %v2381, 1
      %v2445 = vsel %vm433, %v2442, %v2444
      %v2446 = vrot.slane %v2383, 1
      %v2447 = vsel %vm433, %v2444, %v2446
      %v2448 = vrot.slane %v2385, 1
      %v2449 = vsel %vm433, %v2446, %v2448
      %v2450 = vrot.slane %v2387, 1
      %v2451 = vsel %vm433, %v2448, %v2450
      %v2452 = vrot.slane %v2389, 1
      %v2453 = vsel %vm433, %v2450, %v2452
      %v2454 = vrot.slane %v2391, 1
      %v2455 = vsel %vm433, %v2452, %v2454
      %v2456 = vrot.slane %v2393, 1
      %v2457 = vsel %vm433, %v2454, %v2456
      %v2458 = vrot.slane %v2395, 1
      %v2459 = vsel %vm433, %v2456, %v2458
      %v2460 = vrot.slane %v2397, 1
      %v2461 = vsel %vm433, %v2458, %v2460
      %v2462 = vrot.slane %v2399, 1
      %v2463 = vsel %vm433, %v2460, %v2462
      %v2464 = vrot.slane %v2401, 1
      %v2465 = vsel %vm433, %v2462, %v2464
      %v2466 = vrot.slane %v2403, 1
      %v2467 = vsel %vm433, %v2464, %v2466
      %v2468 = vrot.slane %v2405, 1
      %v2469 = vsel %vm433, %v2466, %v2468
      %v2470 = vrot.slane %v2407, 1
      %v2471 = vsel %vm433, %v2468, %v2470
      %v2472 = vrot.slane %v2409, 1
      %v2473 = vsel %vm433, %v2470, %v2472
      %v2474 = vrot.slane %v2411, 1
      %v2475 = vsel %vm433, %v2472, %v2474
      %v2476 = vrot.slane %v2413, 1
      %v2477 = vsel %vm433, %v2474, %v2476
      %v2478 = vrot.slane %v2415, 1
      %v2479 = vsel %vm433, %v2476, %v2478
      %v2480 = vrot.slane %v2417, 1
      %v2481 = vsel %vm433, %v2478, %v2480
      %v2482 = vrot.slane %v2419, 1
      %v2483 = vsel %vm433, %v2480, %v2482
      %v2484 = vrot.slane %v2421, 1
      %v2485 = vsel %vm433, %v2482, %v2484
      %v2486 = vrot.slane %v2423, 1
      %v2487 = vsel %vm433, %v2484, %v2486
      %v2488 = vrot.slane %v2425, 1
      %v2489 = vsel %vm433, %v2486, %v2488
      %v2490 = vrot.slane %v2427, 1
      %v2491 = vsel %vm433, %v2488, %v2490
      %v2492 = vrot.slane %v2429, 1
      %v2493 = vsel %vm433, %v2490, %v2492
      %v2494 = vrot.slane %v2431, 1
      %v2495 = vsel %vm433, %v2492, %v2494
      %v2496 = vrot.slane %v2433, 1
      %v2497 = vsel %vm433, %v2494, %v2496
      %v2498 = vsel %vm433, %v2496, 0
      %2499 = vrot.lane.b32.xlu0 %v2435, 1
      %v2500 = vpop.permute.xlu0 %2499
      %2501 = vrot.lane.b32.xlu0 %v2437, 1
      %v2502 = vpop.permute.xlu0 %2501
      %2503 = vrot.lane.b32.xlu0 %v2439, 1
      %v2504 = vpop.permute.xlu0 %2503
      %2505 = vrot.lane.b32.xlu0 %v2441, 1
      %v2506 = vpop.permute.xlu0 %2505
      %2507 = vrot.lane.b32.xlu0 %v2443, 1
      %v2508 = vpop.permute.xlu0 %2507
      %2509 = vrot.lane.b32.xlu0 %v2445, 1
      %v2510 = vpop.permute.xlu0 %2509
      %2511 = vrot.lane.b32.xlu0 %v2447, 1
      %v2512 = vpop.permute.xlu0 %2511
      %2513 = vrot.lane.b32.xlu0 %v2449, 1
      %v2514 = vpop.permute.xlu0 %2513
      %2515 = vrot.lane.b32.xlu0 %v2451, 1
      %v2516 = vpop.permute.xlu0 %2515
      %2517 = vrot.lane.b32.xlu0 %v2453, 1
      %v2518 = vpop.permute.xlu0 %2517
      %2519 = vrot.lane.b32.xlu0 %v2455, 1
      %v2520 = vpop.permute.xlu0 %2519
      %2521 = vrot.lane.b32.xlu0 %v2457, 1
      %v2522 = vpop.permute.xlu0 %2521
      %2523 = vrot.lane.b32.xlu0 %v2459, 1
      %v2524 = vpop.permute.xlu0 %2523
      %2525 = vrot.lane.b32.xlu0 %v2461, 1
      %v2526 = vpop.permute.xlu0 %2525
      %2527 = vrot.lane.b32.xlu0 %v2463, 1
      %v2528 = vpop.permute.xlu0 %2527
      %2529 = vrot.lane.b32.xlu0 %v2465, 1
      %v2530 = vpop.permute.xlu0 %2529
      %2531 = vrot.lane.b32.xlu0 %v2467, 1
      %v2532 = vpop.permute.xlu0 %2531
      %2533 = vrot.lane.b32.xlu0 %v2469, 1
      %v2534 = vpop.permute.xlu0 %2533
      %2535 = vrot.lane.b32.xlu0 %v2471, 1
      %v2536 = vpop.permute.xlu0 %2535
      %2537 = vrot.lane.b32.xlu0 %v2473, 1
      %v2538 = vpop.permute.xlu0 %2537
      %2539 = vrot.lane.b32.xlu0 %v2475, 1
      %v2540 = vpop.permute.xlu0 %2539
      %2541 = vrot.lane.b32.xlu0 %v2477, 1
      %v2542 = vpop.permute.xlu0 %2541
      %2543 = vrot.lane.b32.xlu0 %v2479, 1
      %v2544 = vpop.permute.xlu0 %2543
      %2545 = vrot.lane.b32.xlu0 %v2481, 1
      %v2546 = vpop.permute.xlu0 %2545
      %2547 = vrot.lane.b32.xlu0 %v2483, 1
      %v2548 = vpop.permute.xlu0 %2547
      %2549 = vrot.lane.b32.xlu0 %v2485, 1
      %v2550 = vpop.permute.xlu0 %2549
      %2551 = vrot.lane.b32.xlu0 %v2487, 1
      %v2552 = vpop.permute.xlu0 %2551
      %2553 = vrot.lane.b32.xlu0 %v2489, 1
      %v2554 = vpop.permute.xlu0 %2553
      %2555 = vrot.lane.b32.xlu0 %v2491, 1
      %v2556 = vpop.permute.xlu0 %2555
      %2557 = vrot.lane.b32.xlu0 %v2493, 1
      %v2558 = vpop.permute.xlu0 %2557
      %2559 = vrot.lane.b32.xlu0 %v2495, 1
      %v2560 = vpop.permute.xlu0 %2559
      %2561 = vrot.lane.b32.xlu0 %v2497, 1
      %v2562 = vpop.permute.xlu0 %2561
      %2563 = vrot.lane.b32.xlu0 %v2498, 1
      %v2564 = vpop.permute.xlu0 %2563
      %v2565 = vsel %vm570, 0, %v2500
      %v2566 = vsel %vm570, %v2371, %v2502
      %v2567 = vsel %vm570, %v2373, %v2504
      %v2568 = vsel %vm570, %v2375, %v2506
      %v2569 = vsel %vm570, %v2377, %v2508
      %v2570 = vsel %vm570, %v2379, %v2510
      %v2571 = vsel %vm570, %v2381, %v2512
      %v2572 = vsel %vm570, %v2383, %v2514
      %v2573 = vsel %vm570, %v2385, %v2516
      %v2574 = vsel %vm570, %v2387, %v2518
      %v2575 = vsel %vm570, %v2389, %v2520
      %v2576 = vsel %vm570, %v2391, %v2522
      %v2577 = vsel %vm570, %v2393, %v2524
      %v2578 = vsel %vm570, %v2395, %v2526
      %v2579 = vsel %vm570, %v2397, %v2528
      %v2580 = vsel %vm570, %v2399, %v2530
      %v2581 = vsel %vm570, %v2401, %v2532
      %v2582 = vsel %vm570, %v2403, %v2534
      %v2583 = vsel %vm570, %v2405, %v2536
      %v2584 = vsel %vm570, %v2407, %v2538
      %v2585 = vsel %vm570, %v2409, %v2540
      %v2586 = vsel %vm570, %v2411, %v2542
      %v2587 = vsel %vm570, %v2413, %v2544
      %v2588 = vsel %vm570, %v2415, %v2546
      %v2589 = vsel %vm570, %v2417, %v2548
      %v2590 = vsel %vm570, %v2419, %v2550
      %v2591 = vsel %vm570, %v2421, %v2552
      %v2592 = vsel %vm570, %v2423, %v2554
      %v2593 = vsel %vm570, %v2425, %v2556
      %v2594 = vsel %vm570, %v2427, %v2558
      %v2595 = vsel %vm570, %v2429, %v2560
      %v2596 = vsel %vm570, %v2431, %v2562
      %v2597 = vsel %vm570, %v2433, %v2564
      %v2598 = vrot.slane %v2565, 2
      %v2599 = vsel %vm606, %v607, %v2598
      %v2600 = vrot.slane %v2566, 2
      %v2601 = vsel %vm606, %v2598, %v2600
      %v2602 = vrot.slane %v2567, 2
      %v2603 = vsel %vm606, %v2600, %v2602
      %v2604 = vrot.slane %v2568, 2
      %v2605 = vsel %vm606, %v2602, %v2604
      %v2606 = vrot.slane %v2569, 2
      %v2607 = vsel %vm606, %v2604, %v2606
      %v2608 = vrot.slane %v2570, 2
      %v2609 = vsel %vm606, %v2606, %v2608
      %v2610 = vrot.slane %v2571, 2
      %v2611 = vsel %vm606, %v2608, %v2610
      %v2612 = vrot.slane %v2572, 2
      %v2613 = vsel %vm606, %v2610, %v2612
      %v2614 = vrot.slane %v2573, 2
      %v2615 = vsel %vm606, %v2612, %v2614
      %v2616 = vrot.slane %v2574, 2
      %v2617 = vsel %vm606, %v2614, %v2616
      %v2618 = vrot.slane %v2575, 2
      %v2619 = vsel %vm606, %v2616, %v2618
      %v2620 = vrot.slane %v2576, 2
      %v2621 = vsel %vm606, %v2618, %v2620
      %v2622 = vrot.slane %v2577, 2
      %v2623 = vsel %vm606, %v2620, %v2622
      %v2624 = vrot.slane %v2578, 2
      %v2625 = vsel %vm606, %v2622, %v2624
      %v2626 = vrot.slane %v2579, 2
      %v2627 = vsel %vm606, %v2624, %v2626
      %v2628 = vrot.slane %v2580, 2
      %v2629 = vsel %vm606, %v2626, %v2628
      %v2630 = vrot.slane %v2581, 2
      %v2631 = vsel %vm606, %v2628, %v2630
      %v2632 = vrot.slane %v2582, 2
      %v2633 = vsel %vm606, %v2630, %v2632
      %v2634 = vrot.slane %v2583, 2
      %v2635 = vsel %vm606, %v2632, %v2634
      %v2636 = vrot.slane %v2584, 2
      %v2637 = vsel %vm606, %v2634, %v2636
      %v2638 = vrot.slane %v2585, 2
      %v2639 = vsel %vm606, %v2636, %v2638
      %v2640 = vrot.slane %v2586, 2
      %v2641 = vsel %vm606, %v2638, %v2640
      %v2642 = vrot.slane %v2587, 2
      %v2643 = vsel %vm606, %v2640, %v2642
      %v2644 = vrot.slane %v2588, 2
      %v2645 = vsel %vm606, %v2642, %v2644
      %v2646 = vrot.slane %v2589, 2
      %v2647 = vsel %vm606, %v2644, %v2646
      %v2648 = vrot.slane %v2590, 2
      %v2649 = vsel %vm606, %v2646, %v2648
      %v2650 = vrot.slane %v2591, 2
      %v2651 = vsel %vm606, %v2648, %v2650
      %v2652 = vrot.slane %v2592, 2
      %v2653 = vsel %vm606, %v2650, %v2652
      %v2654 = vrot.slane %v2593, 2
      %v2655 = vsel %vm606, %v2652, %v2654
      %v2656 = vrot.slane %v2594, 2
      %v2657 = vsel %vm606, %v2654, %v2656
      %v2658 = vrot.slane %v2595, 2
      %v2659 = vsel %vm606, %v2656, %v2658
      %v2660 = vrot.slane %v2596, 2
      %v2661 = vsel %vm606, %v2658, %v2660
      %v2662 = vrot.slane %v2597, 2
      %v2663 = vsel %vm606, %v2660, %v2662
      %v2664 = vsel %vm606, %v2662, %v607
      %2665 = vrot.lane.b32.xlu0 %v2599, 2
      %v2666 = vpop.permute.xlu0 %2665
      %2667 = vrot.lane.b32.xlu0 %v2601, 2
      %v2668 = vpop.permute.xlu0 %2667
      %2669 = vrot.lane.b32.xlu0 %v2603, 2
      %v2670 = vpop.permute.xlu0 %2669
      %2671 = vrot.lane.b32.xlu0 %v2605, 2
      %v2672 = vpop.permute.xlu0 %2671
      %2673 = vrot.lane.b32.xlu0 %v2607, 2
      %v2674 = vpop.permute.xlu0 %2673
      %2675 = vrot.lane.b32.xlu0 %v2609, 2
      %v2676 = vpop.permute.xlu0 %2675
      %2677 = vrot.lane.b32.xlu0 %v2611, 2
      %v2678 = vpop.permute.xlu0 %2677
      %2679 = vrot.lane.b32.xlu0 %v2613, 2
      %v2680 = vpop.permute.xlu0 %2679
      %2681 = vrot.lane.b32.xlu0 %v2615, 2
      %v2682 = vpop.permute.xlu0 %2681
      %2683 = vrot.lane.b32.xlu0 %v2617, 2
      %v2684 = vpop.permute.xlu0 %2683
      %2685 = vrot.lane.b32.xlu0 %v2619, 2
      %v2686 = vpop.permute.xlu0 %2685
      %2687 = vrot.lane.b32.xlu0 %v2621, 2
      %v2688 = vpop.permute.xlu0 %2687
      %2689 = vrot.lane.b32.xlu0 %v2623, 2
      %v2690 = vpop.permute.xlu0 %2689
      %2691 = vrot.lane.b32.xlu0 %v2625, 2
      %v2692 = vpop.permute.xlu0 %2691
      %2693 = vrot.lane.b32.xlu0 %v2627, 2
      %v2694 = vpop.permute.xlu0 %2693
      %2695 = vrot.lane.b32.xlu0 %v2629, 2
      %v2696 = vpop.permute.xlu0 %2695
      %2697 = vrot.lane.b32.xlu0 %v2631, 2
      %v2698 = vpop.permute.xlu0 %2697
      %2699 = vrot.lane.b32.xlu0 %v2633, 2
      %v2700 = vpop.permute.xlu0 %2699
      %2701 = vrot.lane.b32.xlu0 %v2635, 2
      %v2702 = vpop.permute.xlu0 %2701
      %2703 = vrot.lane.b32.xlu0 %v2637, 2
      %v2704 = vpop.permute.xlu0 %2703
      %2705 = vrot.lane.b32.xlu0 %v2639, 2
      %v2706 = vpop.permute.xlu0 %2705
      %2707 = vrot.lane.b32.xlu0 %v2641, 2
      %v2708 = vpop.permute.xlu0 %2707
      %2709 = vrot.lane.b32.xlu0 %v2643, 2
      %v2710 = vpop.permute.xlu0 %2709
      %2711 = vrot.lane.b32.xlu0 %v2645, 2
      %v2712 = vpop.permute.xlu0 %2711
      %2713 = vrot.lane.b32.xlu0 %v2647, 2
      %v2714 = vpop.permute.xlu0 %2713
      %2715 = vrot.lane.b32.xlu0 %v2649, 2
      %v2716 = vpop.permute.xlu0 %2715
      %2717 = vrot.lane.b32.xlu0 %v2651, 2
      %v2718 = vpop.permute.xlu0 %2717
      %2719 = vrot.lane.b32.xlu0 %v2653, 2
      %v2720 = vpop.permute.xlu0 %2719
      %2721 = vrot.lane.b32.xlu0 %v2655, 2
      %v2722 = vpop.permute.xlu0 %2721
      %2723 = vrot.lane.b32.xlu0 %v2657, 2
      %v2724 = vpop.permute.xlu0 %2723
      %2725 = vrot.lane.b32.xlu0 %v2659, 2
      %v2726 = vpop.permute.xlu0 %2725
      %2727 = vrot.lane.b32.xlu0 %v2661, 2
      %v2728 = vpop.permute.xlu0 %2727
      %2729 = vrot.lane.b32.xlu0 %v2663, 2
      %v2730 = vpop.permute.xlu0 %2729
      %2731 = vrot.lane.b32.xlu0 %v2664, 2
      %v2732 = vpop.permute.xlu0 %2731
      %v2733 = vsel %vm752, %v571, %v2666
      %v2734 = vsel %vm752, %v2565, %v2668
      %v2735 = vsel %vm752, %v2566, %v2670
      %v2736 = vsel %vm752, %v2567, %v2672
      %v2737 = vsel %vm752, %v2568, %v2674
      %v2738 = vsel %vm752, %v2569, %v2676
      %v2739 = vsel %vm752, %v2570, %v2678
      %v2740 = vsel %vm752, %v2571, %v2680
      %v2741 = vsel %vm752, %v2572, %v2682
      %v2742 = vsel %vm752, %v2573, %v2684
      %v2743 = vsel %vm752, %v2574, %v2686
      %v2744 = vsel %vm752, %v2575, %v2688
      %v2745 = vsel %vm752, %v2576, %v2690
      %v2746 = vsel %vm752, %v2577, %v2692
      %v2747 = vsel %vm752, %v2578, %v2694
      %v2748 = vsel %vm752, %v2579, %v2696
      %v2749 = vsel %vm752, %v2580, %v2698
      %v2750 = vsel %vm752, %v2581, %v2700
      %v2751 = vsel %vm752, %v2582, %v2702
      %v2752 = vsel %vm752, %v2583, %v2704
      %v2753 = vsel %vm752, %v2584, %v2706
      %v2754 = vsel %vm752, %v2585, %v2708
      %v2755 = vsel %vm752, %v2586, %v2710
      %v2756 = vsel %vm752, %v2587, %v2712
      %v2757 = vsel %vm752, %v2588, %v2714
      %v2758 = vsel %vm752, %v2589, %v2716
      %v2759 = vsel %vm752, %v2590, %v2718
      %v2760 = vsel %vm752, %v2591, %v2720
      %v2761 = vsel %vm752, %v2592, %v2722
      %v2762 = vsel %vm752, %v2593, %v2724
      %v2763 = vsel %vm752, %v2594, %v2726
      %v2764 = vsel %vm752, %v2595, %v2728
      %v2765 = vsel %vm752, %v2596, %v2730
      %v2766 = vsel %vm752, %v2597, %v2732
      %v2767 = vrot.slane %v2733, 4
      %v2768 = vsel %vm790, %v791, %v2767
      %v2769 = vrot.slane %v2734, 4
      %v2770 = vsel %vm790, %v2767, %v2769
      %v2771 = vrot.slane %v2735, 4
      %v2772 = vsel %vm790, %v2769, %v2771
      %v2773 = vrot.slane %v2736, 4
      %v2774 = vsel %vm790, %v2771, %v2773
      %v2775 = vrot.slane %v2737, 4
      %v2776 = vsel %vm790, %v2773, %v2775
      %v2777 = vrot.slane %v2738, 4
      %v2778 = vsel %vm790, %v2775, %v2777
      %v2779 = vrot.slane %v2739, 4
      %v2780 = vsel %vm790, %v2777, %v2779
      %v2781 = vrot.slane %v2740, 4
      %v2782 = vsel %vm790, %v2779, %v2781
      %v2783 = vrot.slane %v2741, 4
      %v2784 = vsel %vm790, %v2781, %v2783
      %v2785 = vrot.slane %v2742, 4
      %v2786 = vsel %vm790, %v2783, %v2785
      %v2787 = vrot.slane %v2743, 4
      %v2788 = vsel %vm790, %v2785, %v2787
      %v2789 = vrot.slane %v2744, 4
      %v2790 = vsel %vm790, %v2787, %v2789
      %v2791 = vrot.slane %v2745, 4
      %v2792 = vsel %vm790, %v2789, %v2791
      %v2793 = vrot.slane %v2746, 4
      %v2794 = vsel %vm790, %v2791, %v2793
      %v2795 = vrot.slane %v2747, 4
      %v2796 = vsel %vm790, %v2793, %v2795
      %v2797 = vrot.slane %v2748, 4
      %v2798 = vsel %vm790, %v2795, %v2797
      %v2799 = vrot.slane %v2749, 4
      %v2800 = vsel %vm790, %v2797, %v2799
      %v2801 = vrot.slane %v2750, 4
      %v2802 = vsel %vm790, %v2799, %v2801
      %v2803 = vrot.slane %v2751, 4
      %v2804 = vsel %vm790, %v2801, %v2803
      %v2805 = vrot.slane %v2752, 4
      %v2806 = vsel %vm790, %v2803, %v2805
      %v2807 = vrot.slane %v2753, 4
      %v2808 = vsel %vm790, %v2805, %v2807
      %v2809 = vrot.slane %v2754, 4
      %v2810 = vsel %vm790, %v2807, %v2809
      %v2811 = vrot.slane %v2755, 4
      %v2812 = vsel %vm790, %v2809, %v2811
      %v2813 = vrot.slane %v2756, 4
      %v2814 = vsel %vm790, %v2811, %v2813
      %v2815 = vrot.slane %v2757, 4
      %v2816 = vsel %vm790, %v2813, %v2815
      %v2817 = vrot.slane %v2758, 4
      %v2818 = vsel %vm790, %v2815, %v2817
      %v2819 = vrot.slane %v2759, 4
      %v2820 = vsel %vm790, %v2817, %v2819
      %v2821 = vrot.slane %v2760, 4
      %v2822 = vsel %vm790, %v2819, %v2821
      %v2823 = vrot.slane %v2761, 4
      %v2824 = vsel %vm790, %v2821, %v2823
      %v2825 = vrot.slane %v2762, 4
      %v2826 = vsel %vm790, %v2823, %v2825
      %v2827 = vrot.slane %v2763, 4
      %v2828 = vsel %vm790, %v2825, %v2827
      %v2829 = vrot.slane %v2764, 4
      %v2830 = vsel %vm790, %v2827, %v2829
      %v2831 = vrot.slane %v2765, 4
      %v2832 = vsel %vm790, %v2829, %v2831
      %v2833 = vrot.slane %v2766, 4
      %v2834 = vsel %vm790, %v2831, %v2833
      %v2835 = vsel %vm790, %v2833, %v791
      %2836 = vrot.lane.b32.xlu0 %v2768, 4
      %v2837 = vpop.permute.xlu0 %2836
      %2838 = vrot.lane.b32.xlu0 %v2770, 4
      %v2839 = vpop.permute.xlu0 %2838
      %2840 = vrot.lane.b32.xlu0 %v2772, 4
      %v2841 = vpop.permute.xlu0 %2840
      %2842 = vrot.lane.b32.xlu0 %v2774, 4
      %v2843 = vpop.permute.xlu0 %2842
      %2844 = vrot.lane.b32.xlu0 %v2776, 4
      %v2845 = vpop.permute.xlu0 %2844
      %2846 = vrot.lane.b32.xlu0 %v2778, 4
      %v2847 = vpop.permute.xlu0 %2846
      %2848 = vrot.lane.b32.xlu0 %v2780, 4
      %v2849 = vpop.permute.xlu0 %2848
      %2850 = vrot.lane.b32.xlu0 %v2782, 4
      %v2851 = vpop.permute.xlu0 %2850
      %2852 = vrot.lane.b32.xlu0 %v2784, 4
      %v2853 = vpop.permute.xlu0 %2852
      %2854 = vrot.lane.b32.xlu0 %v2786, 4
      %v2855 = vpop.permute.xlu0 %2854
      %2856 = vrot.lane.b32.xlu0 %v2788, 4
      %v2857 = vpop.permute.xlu0 %2856
      %2858 = vrot.lane.b32.xlu0 %v2790, 4
      %v2859 = vpop.permute.xlu0 %2858
      %2860 = vrot.lane.b32.xlu0 %v2792, 4
      %v2861 = vpop.permute.xlu0 %2860
      %2862 = vrot.lane.b32.xlu0 %v2794, 4
      %v2863 = vpop.permute.xlu0 %2862
      %2864 = vrot.lane.b32.xlu0 %v2796, 4
      %v2865 = vpop.permute.xlu0 %2864
      %2866 = vrot.lane.b32.xlu0 %v2798, 4
      %v2867 = vpop.permute.xlu0 %2866
      %2868 = vrot.lane.b32.xlu0 %v2800, 4
      %v2869 = vpop.permute.xlu0 %2868
      %2870 = vrot.lane.b32.xlu0 %v2802, 4
      %v2871 = vpop.permute.xlu0 %2870
      %2872 = vrot.lane.b32.xlu0 %v2804, 4
      %v2873 = vpop.permute.xlu0 %2872
      %2874 = vrot.lane.b32.xlu0 %v2806, 4
      %v2875 = vpop.permute.xlu0 %2874
      %2876 = vrot.lane.b32.xlu0 %v2808, 4
      %v2877 = vpop.permute.xlu0 %2876
      %2878 = vrot.lane.b32.xlu0 %v2810, 4
      %v2879 = vpop.permute.xlu0 %2878
      %2880 = vrot.lane.b32.xlu0 %v2812, 4
      %v2881 = vpop.permute.xlu0 %2880
      %2882 = vrot.lane.b32.xlu0 %v2814, 4
      %v2883 = vpop.permute.xlu0 %2882
      %2884 = vrot.lane.b32.xlu0 %v2816, 4
      %v2885 = vpop.permute.xlu0 %2884
      %2886 = vrot.lane.b32.xlu0 %v2818, 4
      %v2887 = vpop.permute.xlu0 %2886
      %2888 = vrot.lane.b32.xlu0 %v2820, 4
      %v2889 = vpop.permute.xlu0 %2888
      %2890 = vrot.lane.b32.xlu0 %v2822, 4
      %v2891 = vpop.permute.xlu0 %2890
      %2892 = vrot.lane.b32.xlu0 %v2824, 4
      %v2893 = vpop.permute.xlu0 %2892
      %2894 = vrot.lane.b32.xlu0 %v2826, 4
      %v2895 = vpop.permute.xlu0 %2894
      %2896 = vrot.lane.b32.xlu0 %v2828, 4
      %v2897 = vpop.permute.xlu0 %2896
      %2898 = vrot.lane.b32.xlu0 %v2830, 4
      %v2899 = vpop.permute.xlu0 %2898
      %2900 = vrot.lane.b32.xlu0 %v2832, 4
      %v2901 = vpop.permute.xlu0 %2900
      %2902 = vrot.lane.b32.xlu0 %v2834, 4
      %v2903 = vpop.permute.xlu0 %2902
      %2904 = vrot.lane.b32.xlu0 %v2835, 4
      %v2905 = vpop.permute.xlu0 %2904
      %v2906 = vsel %vm944, %v753, %v2837
      %v2907 = vsel %vm944, %v2733, %v2839
      %v2908 = vsel %vm944, %v2734, %v2841
      %v2909 = vsel %vm944, %v2735, %v2843
      %v2910 = vsel %vm944, %v2736, %v2845
      %v2911 = vsel %vm944, %v2737, %v2847
      %v2912 = vsel %vm944, %v2738, %v2849
      %v2913 = vsel %vm944, %v2739, %v2851
      %v2914 = vsel %vm944, %v2740, %v2853
      %v2915 = vsel %vm944, %v2741, %v2855
      %v2916 = vsel %vm944, %v2742, %v2857
      %v2917 = vsel %vm944, %v2743, %v2859
      %v2918 = vsel %vm944, %v2744, %v2861
      %v2919 = vsel %vm944, %v2745, %v2863
      %v2920 = vsel %vm944, %v2746, %v2865
      %v2921 = vsel %vm944, %v2747, %v2867
      %v2922 = vsel %vm944, %v2748, %v2869
      %v2923 = vsel %vm944, %v2749, %v2871
      %v2924 = vsel %vm944, %v2750, %v2873
      %v2925 = vsel %vm944, %v2751, %v2875
      %v2926 = vsel %vm944, %v2752, %v2877
      %v2927 = vsel %vm944, %v2753, %v2879
      %v2928 = vsel %vm944, %v2754, %v2881
      %v2929 = vsel %vm944, %v2755, %v2883
      %v2930 = vsel %vm944, %v2756, %v2885
      %v2931 = vsel %vm944, %v2757, %v2887
      %v2932 = vsel %vm944, %v2758, %v2889
      %v2933 = vsel %vm944, %v2759, %v2891
      %v2934 = vsel %vm944, %v2760, %v2893
      %v2935 = vsel %vm944, %v2761, %v2895
      %v2936 = vsel %vm944, %v2762, %v2897
      %v2937 = vsel %vm944, %v2763, %v2899
      %v2938 = vsel %vm944, %v2764, %v2901
      %v2939 = vsel %vm944, %v2765, %v2903
      %v2940 = vsel %vm944, %v2766, %v2905
      %2941 = vrot.lane.b32.xlu0 %v2906, 8
      %v2942 = vpop.permute.xlu0 %2941
      %2943 = vrot.lane.b32.xlu0 %v2907, 8
      %v2944 = vpop.permute.xlu0 %2943
      %2945 = vrot.lane.b32.xlu0 %v2908, 8
      %v2946 = vpop.permute.xlu0 %2945
      %2947 = vrot.lane.b32.xlu0 %v2909, 8
      %v2948 = vpop.permute.xlu0 %2947
      %2949 = vrot.lane.b32.xlu0 %v2910, 8
      %v2950 = vpop.permute.xlu0 %2949
      %2951 = vrot.lane.b32.xlu0 %v2911, 8
      %v2952 = vpop.permute.xlu0 %2951
      %2953 = vrot.lane.b32.xlu0 %v2912, 8
      %v2954 = vpop.permute.xlu0 %2953
      %2955 = vrot.lane.b32.xlu0 %v2913, 8
      %v2956 = vpop.permute.xlu0 %2955
      %2957 = vrot.lane.b32.xlu0 %v2914, 8
      %v2958 = vpop.permute.xlu0 %2957
      %2959 = vrot.lane.b32.xlu0 %v2915, 8
      %v2960 = vpop.permute.xlu0 %2959
      %2961 = vrot.lane.b32.xlu0 %v2916, 8
      %v2962 = vpop.permute.xlu0 %2961
      %2963 = vrot.lane.b32.xlu0 %v2917, 8
      %v2964 = vpop.permute.xlu0 %2963
      %2965 = vrot.lane.b32.xlu0 %v2918, 8
      %v2966 = vpop.permute.xlu0 %2965
      %2967 = vrot.lane.b32.xlu0 %v2919, 8
      %v2968 = vpop.permute.xlu0 %2967
      %2969 = vrot.lane.b32.xlu0 %v2920, 8
      %v2970 = vpop.permute.xlu0 %2969
      %2971 = vrot.lane.b32.xlu0 %v2921, 8
      %v2972 = vpop.permute.xlu0 %2971
      %2973 = vrot.lane.b32.xlu0 %v2922, 8
      %v2974 = vpop.permute.xlu0 %2973
      %2975 = vrot.lane.b32.xlu0 %v2923, 8
      %v2976 = vpop.permute.xlu0 %2975
      %2977 = vrot.lane.b32.xlu0 %v2924, 8
      %v2978 = vpop.permute.xlu0 %2977
      %2979 = vrot.lane.b32.xlu0 %v2925, 8
      %v2980 = vpop.permute.xlu0 %2979
      %2981 = vrot.lane.b32.xlu0 %v2926, 8
      %v2982 = vpop.permute.xlu0 %2981
      %2983 = vrot.lane.b32.xlu0 %v2927, 8
      %v2984 = vpop.permute.xlu0 %2983
      %2985 = vrot.lane.b32.xlu0 %v2928, 8
      %v2986 = vpop.permute.xlu0 %2985
      %2987 = vrot.lane.b32.xlu0 %v2929, 8
      %v2988 = vpop.permute.xlu0 %2987
      %2989 = vrot.lane.b32.xlu0 %v2930, 8
      %v2990 = vpop.permute.xlu0 %2989
      %2991 = vrot.lane.b32.xlu0 %v2931, 8
      %v2992 = vpop.permute.xlu0 %2991
      %2993 = vrot.lane.b32.xlu0 %v2932, 8
      %v2994 = vpop.permute.xlu0 %2993
      %2995 = vrot.lane.b32.xlu0 %v2933, 8
      %v2996 = vpop.permute.xlu0 %2995
      %2997 = vrot.lane.b32.xlu0 %v2934, 8
      %v2998 = vpop.permute.xlu0 %2997
      %2999 = vrot.lane.b32.xlu0 %v2935, 8
      %v3000 = vpop.permute.xlu0 %2999
      %3001 = vrot.lane.b32.xlu0 %v2936, 8
      %v3002 = vpop.permute.xlu0 %3001
      %3003 = vrot.lane.b32.xlu0 %v2937, 8
      %v3004 = vpop.permute.xlu0 %3003
      %3005 = vrot.lane.b32.xlu0 %v2938, 8
      %v3006 = vpop.permute.xlu0 %3005
      %3007 = vrot.lane.b32.xlu0 %v2939, 8
      %v3008 = vpop.permute.xlu0 %3007
      %3009 = vrot.lane.b32.xlu0 %v2940, 8
      %v3010 = vpop.permute.xlu0 %3009
      %v3011 = vsel %vm1062, %v945, %v2942
      %v3012 = vsel %vm1062, %v2906, %v2944
      %v3013 = vsel %vm1062, %v2907, %v2946
      %v3014 = vsel %vm1062, %v2908, %v2948
      %v3015 = vsel %vm1062, %v2909, %v2950
      %v3016 = vsel %vm1062, %v2910, %v2952
      %v3017 = vsel %vm1062, %v2911, %v2954
      %v3018 = vsel %vm1062, %v2912, %v2956
      %v3019 = vsel %vm1062, %v2913, %v2958
      %v3020 = vsel %vm1062, %v2914, %v2960
      %v3021 = vsel %vm1062, %v2915, %v2962
      %v3022 = vsel %vm1062, %v2916, %v2964
      %v3023 = vsel %vm1062, %v2917, %v2966
      %v3024 = vsel %vm1062, %v2918, %v2968
      %v3025 = vsel %vm1062, %v2919, %v2970
      %v3026 = vsel %vm1062, %v2920, %v2972
      %v3027 = vsel %vm1062, %v2921, %v2974
      %v3028 = vsel %vm1062, %v2922, %v2976
      %v3029 = vsel %vm1062, %v2923, %v2978
      %v3030 = vsel %vm1062, %v2924, %v2980
      %v3031 = vsel %vm1062, %v2925, %v2982
      %v3032 = vsel %vm1062, %v2926, %v2984
      %v3033 = vsel %vm1062, %v2927, %v2986
      %v3034 = vsel %vm1062, %v2928, %v2988
      %v3035 = vsel %vm1062, %v2929, %v2990
      %v3036 = vsel %vm1062, %v2930, %v2992
      %v3037 = vsel %vm1062, %v2931, %v2994
      %v3038 = vsel %vm1062, %v2932, %v2996
      %v3039 = vsel %vm1062, %v2933, %v2998
      %v3040 = vsel %vm1062, %v2934, %v3000
      %v3041 = vsel %vm1062, %v2935, %v3002
      %v3042 = vsel %vm1062, %v2936, %v3004
      %v3043 = vsel %vm1062, %v2937, %v3006
      %v3044 = vsel %vm1062, %v2938, %v3008
      %v3045 = vsel %vm1062, %v2939, %v3010
      %v3046 = vsel %vm1062, %v2940, %v985
      %3047 = vrot.lane.b32.xlu0 %v3011, 16
      %v3048 = vpop.permute.xlu0 %3047
      %3049 = vrot.lane.b32.xlu0 %v3012, 16
      %v3050 = vpop.permute.xlu0 %3049
      %3051 = vrot.lane.b32.xlu0 %v3013, 16
      %v3052 = vpop.permute.xlu0 %3051
      %3053 = vrot.lane.b32.xlu0 %v3014, 16
      %v3054 = vpop.permute.xlu0 %3053
      %3055 = vrot.lane.b32.xlu0 %v3015, 16
      %v3056 = vpop.permute.xlu0 %3055
      %3057 = vrot.lane.b32.xlu0 %v3016, 16
      %v3058 = vpop.permute.xlu0 %3057
      %3059 = vrot.lane.b32.xlu0 %v3017, 16
      %v3060 = vpop.permute.xlu0 %3059
      %3061 = vrot.lane.b32.xlu0 %v3018, 16
      %v3062 = vpop.permute.xlu0 %3061
      %3063 = vrot.lane.b32.xlu0 %v3019, 16
      %v3064 = vpop.permute.xlu0 %3063
      %3065 = vrot.lane.b32.xlu0 %v3020, 16
      %v3066 = vpop.permute.xlu0 %3065
      %3067 = vrot.lane.b32.xlu0 %v3021, 16
      %v3068 = vpop.permute.xlu0 %3067
      %3069 = vrot.lane.b32.xlu0 %v3022, 16
      %v3070 = vpop.permute.xlu0 %3069
      %3071 = vrot.lane.b32.xlu0 %v3023, 16
      %v3072 = vpop.permute.xlu0 %3071
      %3073 = vrot.lane.b32.xlu0 %v3024, 16
      %v3074 = vpop.permute.xlu0 %3073
      %3075 = vrot.lane.b32.xlu0 %v3025, 16
      %v3076 = vpop.permute.xlu0 %3075
      %3077 = vrot.lane.b32.xlu0 %v3026, 16
      %v3078 = vpop.permute.xlu0 %3077
      %3079 = vrot.lane.b32.xlu0 %v3027, 16
      %v3080 = vpop.permute.xlu0 %3079
      %3081 = vrot.lane.b32.xlu0 %v3028, 16
      %v3082 = vpop.permute.xlu0 %3081
      %3083 = vrot.lane.b32.xlu0 %v3029, 16
      %v3084 = vpop.permute.xlu0 %3083
      %3085 = vrot.lane.b32.xlu0 %v3030, 16
      %v3086 = vpop.permute.xlu0 %3085
      %3087 = vrot.lane.b32.xlu0 %v3031, 16
      %v3088 = vpop.permute.xlu0 %3087
      %3089 = vrot.lane.b32.xlu0 %v3032, 16
      %v3090 = vpop.permute.xlu0 %3089
      %3091 = vrot.lane.b32.xlu0 %v3033, 16
      %v3092 = vpop.permute.xlu0 %3091
      %3093 = vrot.lane.b32.xlu0 %v3034, 16
      %v3094 = vpop.permute.xlu0 %3093
      %3095 = vrot.lane.b32.xlu0 %v3035, 16
      %v3096 = vpop.permute.xlu0 %3095
      %3097 = vrot.lane.b32.xlu0 %v3036, 16
      %v3098 = vpop.permute.xlu0 %3097
      %3099 = vrot.lane.b32.xlu0 %v3037, 16
      %v3100 = vpop.permute.xlu0 %3099
      %3101 = vrot.lane.b32.xlu0 %v3038, 16
      %v3102 = vpop.permute.xlu0 %3101
      %3103 = vrot.lane.b32.xlu0 %v3039, 16
      %v3104 = vpop.permute.xlu0 %3103
      %3105 = vrot.lane.b32.xlu0 %v3040, 16
      %v3106 = vpop.permute.xlu0 %3105
      %3107 = vrot.lane.b32.xlu0 %v3041, 16
      %v3108 = vpop.permute.xlu0 %3107
      %3109 = vrot.lane.b32.xlu0 %v3042, 16
      %v3110 = vpop.permute.xlu0 %3109
      %3111 = vrot.lane.b32.xlu0 %v3043, 16
      %v3112 = vpop.permute.xlu0 %3111
      %3113 = vrot.lane.b32.xlu0 %v3044, 16
      %v3114 = vpop.permute.xlu0 %3113
      %3115 = vrot.lane.b32.xlu0 %v3045, 16
      %v3116 = vpop.permute.xlu0 %3115
      %3117 = vrot.lane.b32.xlu0 %v3046, 16
      %v3118 = vpop.permute.xlu0 %3117
      %v3119 = vsel %vm1183, %v1063, %v3048
      %v3120 = vsel %vm1183, %v1063, %v3050
      %v3121 = vsel %vm1183, %v3011, %v3052
      %v3122 = vsel %vm1183, %v3012, %v3054
      %v3123 = vsel %vm1183, %v3013, %v3056
      %v3124 = vsel %vm1183, %v3014, %v3058
      %v3125 = vsel %vm1183, %v3015, %v3060
      %v3126 = vsel %vm1183, %v3016, %v3062
      %v3127 = vsel %vm1183, %v3017, %v3064
      %v3128 = vsel %vm1183, %v3018, %v3066
      %v3129 = vsel %vm1183, %v3019, %v3068
      %v3130 = vsel %vm1183, %v3020, %v3070
      %v3131 = vsel %vm1183, %v3021, %v3072
      %v3132 = vsel %vm1183, %v3022, %v3074
      %v3133 = vsel %vm1183, %v3023, %v3076
      %v3134 = vsel %vm1183, %v3024, %v3078
      %v3135 = vsel %vm1183, %v3025, %v3080
      %v3136 = vsel %vm1183, %v3026, %v3082
      %v3137 = vsel %vm1183, %v3027, %v3084
      %v3138 = vsel %vm1183, %v3028, %v3086
      %v3139 = vsel %vm1183, %v3029, %v3088
      %v3140 = vsel %vm1183, %v3030, %v3090
      %v3141 = vsel %vm1183, %v3031, %v3092
      %v3142 = vsel %vm1183, %v3032, %v3094
      %v3143 = vsel %vm1183, %v3033, %v3096
      %v3144 = vsel %vm1183, %v3034, %v3098
      %v3145 = vsel %vm1183, %v3035, %v3100
      %v3146 = vsel %vm1183, %v3036, %v3102
      %v3147 = vsel %vm1183, %v3037, %v3104
      %v3148 = vsel %vm1183, %v3038, %v3106
      %v3149 = vsel %vm1183, %v3039, %v3108
      %v3150 = vsel %vm1183, %v3040, %v3110
      %v3151 = vsel %vm1183, %v3041, %v3112
      %v3152 = vsel %vm1183, %v3042, %v3114
      %v3153 = vsel %vm1183, %v3043, %v3116
      %v3154 = vsel %vm1183, %v3044, %v3118
      %v3155 = vsel %vm1183, %v3045, %v1104
      %v3156 = vsel %vm1183, %v3046, %v1104
      %3157 = vrot.lane.b32.xlu0 %v3121, 32
      %v3158 = vpop.permute.xlu0 %3157
      %3159 = vrot.lane.b32.xlu0 %v3122, 32
      %v3160 = vpop.permute.xlu0 %3159
      %3161 = vrot.lane.b32.xlu0 %v3123, 32
      %v3162 = vpop.permute.xlu0 %3161
      %3163 = vrot.lane.b32.xlu0 %v3124, 32
      %v3164 = vpop.permute.xlu0 %3163
      %3165 = vrot.lane.b32.xlu0 %v3125, 32
      %v3166 = vpop.permute.xlu0 %3165
      %3167 = vrot.lane.b32.xlu0 %v3126, 32
      %v3168 = vpop.permute.xlu0 %3167
      %3169 = vrot.lane.b32.xlu0 %v3127, 32
      %v3170 = vpop.permute.xlu0 %3169
      %3171 = vrot.lane.b32.xlu0 %v3128, 32
      %v3172 = vpop.permute.xlu0 %3171
      %3173 = vrot.lane.b32.xlu0 %v3129, 32
      %v3174 = vpop.permute.xlu0 %3173
      %3175 = vrot.lane.b32.xlu0 %v3130, 32
      %v3176 = vpop.permute.xlu0 %3175
      %3177 = vrot.lane.b32.xlu0 %v3131, 32
      %v3178 = vpop.permute.xlu0 %3177
      %3179 = vrot.lane.b32.xlu0 %v3132, 32
      %v3180 = vpop.permute.xlu0 %3179
      %3181 = vrot.lane.b32.xlu0 %v3133, 32
      %v3182 = vpop.permute.xlu0 %3181
      %3183 = vrot.lane.b32.xlu0 %v3134, 32
      %v3184 = vpop.permute.xlu0 %3183
      %3185 = vrot.lane.b32.xlu0 %v3135, 32
      %v3186 = vpop.permute.xlu0 %3185
      %3187 = vrot.lane.b32.xlu0 %v3136, 32
      %v3188 = vpop.permute.xlu0 %3187
      %3189 = vrot.lane.b32.xlu0 %v3137, 32
      %v3190 = vpop.permute.xlu0 %3189
      %3191 = vrot.lane.b32.xlu0 %v3138, 32
      %v3192 = vpop.permute.xlu0 %3191
      %3193 = vrot.lane.b32.xlu0 %v3139, 32
      %v3194 = vpop.permute.xlu0 %3193
      %3195 = vrot.lane.b32.xlu0 %v3140, 32
      %v3196 = vpop.permute.xlu0 %3195
      %3197 = vrot.lane.b32.xlu0 %v3141, 32
      %v3198 = vpop.permute.xlu0 %3197
      %3199 = vrot.lane.b32.xlu0 %v3142, 32
      %v3200 = vpop.permute.xlu0 %3199
      %3201 = vrot.lane.b32.xlu0 %v3143, 32
      %v3202 = vpop.permute.xlu0 %3201
      %3203 = vrot.lane.b32.xlu0 %v3144, 32
      %v3204 = vpop.permute.xlu0 %3203
      %3205 = vrot.lane.b32.xlu0 %v3145, 32
      %v3206 = vpop.permute.xlu0 %3205
      %3207 = vrot.lane.b32.xlu0 %v3146, 32
      %v3208 = vpop.permute.xlu0 %3207
      %3209 = vrot.lane.b32.xlu0 %v3147, 32
      %v3210 = vpop.permute.xlu0 %3209
      %3211 = vrot.lane.b32.xlu0 %v3148, 32
      %v3212 = vpop.permute.xlu0 %3211
      %3213 = vrot.lane.b32.xlu0 %v3149, 32
      %v3214 = vpop.permute.xlu0 %3213
      %3215 = vrot.lane.b32.xlu0 %v3150, 32
      %v3216 = vpop.permute.xlu0 %3215
      %3217 = vrot.lane.b32.xlu0 %v3151, 32
      %v3218 = vpop.permute.xlu0 %3217
      %3219 = vrot.lane.b32.xlu0 %v3152, 32
      %v3220 = vpop.permute.xlu0 %3219
      %3221 = vrot.lane.b32.xlu0 %v3153, 32
      %v3222 = vpop.permute.xlu0 %3221
      %3223 = vrot.lane.b32.xlu0 %v3154, 32
      %v3224 = vpop.permute.xlu0 %3223
      %3225 = vrot.lane.b32.xlu0 %v3155, 32
      %v3226 = vpop.permute.xlu0 %3225
      %3227 = vrot.lane.b32.xlu0 %v3156, 32
      %v3228 = vpop.permute.xlu0 %3227
      %v3229 = vsel %vm1306, %v1184, %v3158
      %v3230 = vsel %vm1306, %v1184, %v3160
      %v3231 = vsel %vm1306, %v3119, %v3162
      %v3232 = vsel %vm1306, %v3120, %v3164
      %v3233 = vsel %vm1306, %v3121, %v3166
      %v3234 = vsel %vm1306, %v3122, %v3168
      %v3235 = vsel %vm1306, %v3123, %v3170
      %v3236 = vsel %vm1306, %v3124, %v3172
      %v3237 = vsel %vm1306, %v3125, %v3174
      %v3238 = vsel %vm1306, %v3126, %v3176
      %v3239 = vsel %vm1306, %v3127, %v3178
      %v3240 = vsel %vm1306, %v3128, %v3180
      %v3241 = vsel %vm1306, %v3129, %v3182
      %v3242 = vsel %vm1306, %v3130, %v3184
      %v3243 = vsel %vm1306, %v3131, %v3186
      %v3244 = vsel %vm1306, %v3132, %v3188
      %v3245 = vsel %vm1306, %v3133, %v3190
      %v3246 = vsel %vm1306, %v3134, %v3192
      %v3247 = vsel %vm1306, %v3135, %v3194
      %v3248 = vsel %vm1306, %v3136, %v3196
      %v3249 = vsel %vm1306, %v3137, %v3198
      %v3250 = vsel %vm1306, %v3138, %v3200
      %v3251 = vsel %vm1306, %v3139, %v3202
      %v3252 = vsel %vm1306, %v3140, %v3204
      %v3253 = vsel %vm1306, %v3141, %v3206
      %v3254 = vsel %vm1306, %v3142, %v3208
      %v3255 = vsel %vm1306, %v3143, %v3210
      %v3256 = vsel %vm1306, %v3144, %v3212
      %v3257 = vsel %vm1306, %v3145, %v3214
      %v3258 = vsel %vm1306, %v3146, %v3216
      %v3259 = vsel %vm1306, %v3147, %v3218
      %v3260 = vsel %vm1306, %v3148, %v3220
      %v3261 = vsel %vm1306, %v3149, %v3222
      %v3262 = vsel %vm1306, %v3150, %v3224
      %v3263 = vsel %vm1306, %v3151, %v3226
      %v3264 = vsel %vm1306, %v3152, %v3228
      %v3265 = vsel %vm1306, %v3153, %v1299
      %v3266 = vsel %vm1306, %v3154, %v1299
      %v3267 = vsel %vm1306, %v3155, %v1301
      %v3268 = vsel %vm1306, %v3156, %v1303
      %3269 = vrot.lane.b32.xlu0 %v3237, 64
      %v3270 = vpop.permute.xlu0 %3269
      %3271 = vrot.lane.b32.xlu0 %v3238, 64
      %v3272 = vpop.permute.xlu0 %3271
      %3273 = vrot.lane.b32.xlu0 %v3239, 64
      %v3274 = vpop.permute.xlu0 %3273
      %3275 = vrot.lane.b32.xlu0 %v3240, 64
      %v3276 = vpop.permute.xlu0 %3275
      %3277 = vrot.lane.b32.xlu0 %v3241, 64
      %v3278 = vpop.permute.xlu0 %3277
      %3279 = vrot.lane.b32.xlu0 %v3242, 64
      %v3280 = vpop.permute.xlu0 %3279
      %3281 = vrot.lane.b32.xlu0 %v3243, 64
      %v3282 = vpop.permute.xlu0 %3281
      %3283 = vrot.lane.b32.xlu0 %v3244, 64
      %v3284 = vpop.permute.xlu0 %3283
      %3285 = vrot.lane.b32.xlu0 %v3245, 64
      %v3286 = vpop.permute.xlu0 %3285
      %3287 = vrot.lane.b32.xlu0 %v3246, 64
      %v3288 = vpop.permute.xlu0 %3287
      %3289 = vrot.lane.b32.xlu0 %v3247, 64
      %v3290 = vpop.permute.xlu0 %3289
      %3291 = vrot.lane.b32.xlu0 %v3248, 64
      %v3292 = vpop.permute.xlu0 %3291
      %3293 = vrot.lane.b32.xlu0 %v3249, 64
      %v3294 = vpop.permute.xlu0 %3293
      %3295 = vrot.lane.b32.xlu0 %v3250, 64
      %v3296 = vpop.permute.xlu0 %3295
      %3297 = vrot.lane.b32.xlu0 %v3251, 64
      %v3298 = vpop.permute.xlu0 %3297
      %3299 = vrot.lane.b32.xlu0 %v3252, 64
      %v3300 = vpop.permute.xlu0 %3299
      %3301 = vrot.lane.b32.xlu0 %v3253, 64
      %v3302 = vpop.permute.xlu0 %3301
      %3303 = vrot.lane.b32.xlu0 %v3254, 64
      %v3304 = vpop.permute.xlu0 %3303
      %3305 = vrot.lane.b32.xlu0 %v3255, 64
      %v3306 = vpop.permute.xlu0 %3305
      %3307 = vrot.lane.b32.xlu0 %v3256, 64
      %v3308 = vpop.permute.xlu0 %3307
      %3309 = vrot.lane.b32.xlu0 %v3257, 64
      %v3310 = vpop.permute.xlu0 %3309
      %3311 = vrot.lane.b32.xlu0 %v3258, 64
      %v3312 = vpop.permute.xlu0 %3311
      %3313 = vrot.lane.b32.xlu0 %v3259, 64
      %v3314 = vpop.permute.xlu0 %3313
      %3315 = vrot.lane.b32.xlu0 %v3260, 64
      %v3316 = vpop.permute.xlu0 %3315
      %3317 = vrot.lane.b32.xlu0 %v3261, 64
      %v3318 = vpop.permute.xlu0 %3317
      %3319 = vrot.lane.b32.xlu0 %v3262, 64
      %v3320 = vpop.permute.xlu0 %3319
      %3321 = vrot.lane.b32.xlu0 %v3263, 64
      %v3322 = vpop.permute.xlu0 %3321
      %3323 = vrot.lane.b32.xlu0 %v3264, 64
      %v3324 = vpop.permute.xlu0 %3323
      %3325 = vrot.lane.b32.xlu0 %v3265, 64
      %v3326 = vpop.permute.xlu0 %3325
      %3327 = vrot.lane.b32.xlu0 %v3266, 64
      %v3328 = vpop.permute.xlu0 %3327
      %3329 = vrot.lane.b32.xlu0 %v3267, 64
      %v3330 = vpop.permute.xlu0 %3329
      %3331 = vrot.lane.b32.xlu0 %v3268, 64
      %v3332 = vpop.permute.xlu0 %3331
      %v3333 = vsel %vm1414, %v3229, %v3270
      %v3334 = vsel %vm1414, %v3230, %v3272
      %v3335 = vsel %vm1414, %v3231, %v3274
      %v3336 = vsel %vm1414, %v3232, %v3276
      %v3337 = vsel %vm1414, %v3233, %v3278
      %v3338 = vsel %vm1414, %v3234, %v3280
      %v3339 = vsel %vm1414, %v3235, %v3282
      %v3340 = vsel %vm1414, %v3236, %v3284
      %v3341 = vsel %vm1414, %v3237, %v3286
      %v3342 = vsel %vm1414, %v3238, %v3288
      %v3343 = vsel %vm1414, %v3239, %v3290
      %v3344 = vsel %vm1414, %v3240, %v3292
      %v3345 = vsel %vm1414, %v3241, %v3294
      %v3346 = vsel %vm1414, %v3242, %v3296
      %v3347 = vsel %vm1414, %v3243, %v3298
      %v3348 = vsel %vm1414, %v3244, %v3300
      %v3349 = vsel %vm1414, %v3245, %v3302
      %v3350 = vsel %vm1414, %v3246, %v3304
      %v3351 = vsel %vm1414, %v3247, %v3306
      %v3352 = vsel %vm1414, %v3248, %v3308
      %v3353 = vsel %vm1414, %v3249, %v3310
      %v3354 = vsel %vm1414, %v3250, %v3312
      %v3355 = vsel %vm1414, %v3251, %v3314
      %v3356 = vsel %vm1414, %v3252, %v3316
      %v3357 = vsel %vm1414, %v3253, %v3318
      %v3358 = vsel %vm1414, %v3254, %v3320
      %v3359 = vsel %vm1414, %v3255, %v3322
      %v3360 = vsel %vm1414, %v3256, %v3324
      %v3361 = vsel %vm1414, %v3257, %v3326
      %v3362 = vsel %vm1414, %v3258, %v3328
      %v3363 = vsel %vm1414, %v3259, %v3330
      %v3364 = vsel %vm1414, %v3260, %v3332
      %v3365 = vsel %vm1414, %v3261, %v1413
      %v3366 = vshll.u32 %v3333, 16
      %v3367 = vshll.u32 %v3334, 16
      %v3368 = vshll.u32 %v3335, 16
      %v3369 = vshll.u32 %v3336, 16
      %v3370 = vshll.u32 %v3337, 16
      %v3371 = vshll.u32 %v3338, 16
      %v3372 = vshll.u32 %v3339, 16
      %v3373 = vshll.u32 %v3340, 16
      %v3374 = vshll.u32 %v3341, 16
      %v3375 = vshll.u32 %v3342, 16
      %v3376 = vshll.u32 %v3343, 16
      %v3377 = vshll.u32 %v3344, 16
      %v3378 = vshll.u32 %v3345, 16
      %v3379 = vshll.u32 %v3346, 16
      %v3380 = vshll.u32 %v3347, 16
      %v3381 = vshll.u32 %v3348, 16
      %v3382 = vshll.u32 %v3349, 16
      %v3383 = vshll.u32 %v3350, 16
      %v3384 = vshll.u32 %v3351, 16
      %v3385 = vshll.u32 %v3352, 16
      %v3386 = vshll.u32 %v3353, 16
      %v3387 = vshll.u32 %v3354, 16
      %v3388 = vshll.u32 %v3355, 16
      %v3389 = vshll.u32 %v3356, 16
      %v3390 = vshll.u32 %v3357, 16
      %v3391 = vshll.u32 %v3358, 16
      %v3392 = vshll.u32 %v3359, 16
      %v3393 = vshll.u32 %v3360, 16
      %v3394 = vshll.u32 %v3361, 16
      %v3395 = vshll.u32 %v3362, 16
      %v3396 = vshll.u32 %v3363, 16
      %v3397 = vshll.u32 %v3364, 16
      %v3398 = vshll.u32 %v3365, 16
      %v3432 = vand.u32 %v3333, 4294901760
      %v3433 = vand.u32 %v3334, 4294901760
      %v3434 = vand.u32 %v3335, 4294901760
      %v3435 = vand.u32 %v3336, 4294901760
      %v3436 = vand.u32 %v3337, 4294901760
      %v3437 = vand.u32 %v3338, 4294901760
      %v3438 = vand.u32 %v3339, 4294901760
      %v3439 = vand.u32 %v3340, 4294901760
      %v3440 = vand.u32 %v3341, 4294901760
      %v3441 = vand.u32 %v3342, 4294901760
      %v3442 = vand.u32 %v3343, 4294901760
      %v3443 = vand.u32 %v3344, 4294901760
      %v3444 = vand.u32 %v3345, 4294901760
      %v3445 = vand.u32 %v3346, 4294901760
      %v3446 = vand.u32 %v3347, 4294901760
      %v3447 = vand.u32 %v3348, 4294901760
      %v3448 = vand.u32 %v3349, 4294901760
      %v3449 = vand.u32 %v3350, 4294901760
      %v3450 = vand.u32 %v3351, 4294901760
      %v3451 = vand.u32 %v3352, 4294901760
      %v3452 = vand.u32 %v3353, 4294901760
      %v3453 = vand.u32 %v3354, 4294901760
      %v3454 = vand.u32 %v3355, 4294901760
      %v3455 = vand.u32 %v3356, 4294901760
      %v3456 = vand.u32 %v3357, 4294901760
      %v3457 = vand.u32 %v3358, 4294901760
      %v3458 = vand.u32 %v3359, 4294901760
      %v3459 = vand.u32 %v3360, 4294901760
      %v3460 = vand.u32 %v3361, 4294901760
      %v3461 = vand.u32 %v3362, 4294901760
      %v3462 = vand.u32 %v3363, 4294901760
      %v3463 = vand.u32 %v3364, 4294901760
      %v3464 = vand.u32 %v3365, 4294901760
      %v3498 = vpack.c.bf16 %v3367, %v3366
      %v3499 = vpack.c.bf16 %v3369, %v3368
      %v3500 = vpack.c.bf16 %v3371, %v3370
      %v3501 = vpack.c.bf16 %v3373, %v3372
      %v3502 = vpack.c.bf16 %v3375, %v3374
      %v3503 = vpack.c.bf16 %v3377, %v3376
      %v3504 = vpack.c.bf16 %v3379, %v3378
      %v3505 = vpack.c.bf16 %v3381, %v3380
      %v3506 = vpack.c.bf16 %v3383, %v3382
      %v3507 = vpack.c.bf16 %v3385, %v3384
      %v3508 = vpack.c.bf16 %v3387, %v3386
      %v3509 = vpack.c.bf16 %v3389, %v3388
      %v3510 = vpack.c.bf16 %v3391, %v3390
      %v3511 = vpack.c.bf16 %v3393, %v3392
      %v3512 = vpack.c.bf16 %v3395, %v3394
      %v3513 = vpack.c.bf16 %v3397, %v3396
      %v3514 = vpack.c.bf16 %v3398, %v3398
      %v3515 = vpack.c.bf16 %v3433, %v3432
      %v3516 = vpack.c.bf16 %v3435, %v3434
      %v3517 = vpack.c.bf16 %v3437, %v3436
      %v3518 = vpack.c.bf16 %v3439, %v3438
      %v3519 = vpack.c.bf16 %v3441, %v3440
      %v3520 = vpack.c.bf16 %v3443, %v3442
      %v3521 = vpack.c.bf16 %v3445, %v3444
      %v3522 = vpack.c.bf16 %v3447, %v3446
      %v3523 = vpack.c.bf16 %v3449, %v3448
      %v3524 = vpack.c.bf16 %v3451, %v3450
      %v3525 = vpack.c.bf16 %v3453, %v3452
      %v3526 = vpack.c.bf16 %v3455, %v3454
      %v3527 = vpack.c.bf16 %v3457, %v3456
      %v3528 = vpack.c.bf16 %v3459, %v3458
      %v3529 = vpack.c.bf16 %v3461, %v3460
      %v3530 = vpack.c.bf16 %v3463, %v3462
      %v3531 = vpack.c.bf16 %v3464, %v3464
      %3532 = vmatprep.subr.bf16.mxu0 0
      %3533 = vmatpush1.bf16.msra.mxu0 %v1653
      %3534 = vmatprep.subr.bf16.mxu0 0
      %3535 = vmatpush1.bf16.msra.mxu0 %v1652
      %3536 = vmatprep.subr.bf16.mxu0 0
      %3537 = vmatpush1.bf16.msra.mxu0 %v1651
      %3538 = vmatprep.subr.bf16.mxu0 0
      %3539 = vmatpush1.bf16.msra.mxu0 %v1650
      %3540 = vmatprep.subr.bf16.mxu0 0
      %3541 = vmatpush1.bf16.msra.mxu0 %v1649
      %3542 = vmatprep.subr.bf16.mxu0 0
      %3543 = vmatpush1.bf16.msra.mxu0 %v1648
      %3544 = vmatprep.subr.bf16.mxu0 0
      %3545 = vmatpush1.bf16.msra.mxu0 %v1647
      %3546 = vmatprep.subr.bf16.mxu0 0
      %3547 = vmatpush1.bf16.msra.mxu0 %v1646
      %3548 = vmatprep.subr.bf16.mxu0 0
      %3549 = vmatpush2.bf16.msra.mxu0 0
      %3550 = vmatprep.subr.bf16.mxu0 0
      %3551 = vmatpush2.bf16.msra.mxu0 0
      %3552 = vmatprep.subr.bf16.mxu0 0
      %3553 = vmatpush2.bf16.msra.mxu0 0
      %3554 = vmatprep.subr.bf16.mxu0 0
      %3555 = vmatpush2.bf16.msra.mxu0 0
      %3556 = vmatprep.subr.bf16.mxu0 0
      %3557 = vmatpush2.bf16.msra.mxu0 0
      %3558 = vmatprep.subr.bf16.mxu0 0
      %3559 = vmatpush2.bf16.msra.mxu0 0
      %3560 = vmatprep.subr.bf16.mxu0 0
      %3561 = vmatpush2.bf16.msra.mxu0 0
      %3562 = vmatprep.subr.bf16.mxu0 0
      %3563 = vmatpush2.bf16.msra.mxu0 0
      %3564 = vmatprep.mubr.bf16.mxu0 0
      %3565 = vmatmul.mubr.bf16.gmra.mxu0 %v3515
      %v3566 = vpop.f32.mrf.mxu0
      %v3567 = vadd.f32 0.0, %v3566
      %v3568 = vpop.f32.mrf.mxu0
      %v3569 = vpop.f32.mrf.mxu0
      %v3570 = vadd.f32 0.0, %v3569
      %v3571 = vpop.f32.mrf.mxu0
      %3572 = vmatprep.mubr.bf16.mxu0 0
      %3573 = vmatmul.mubr.bf16.gmra.mxu0 %v3516
      %v3574 = vpop.f32.mrf.mxu0
      %v3575 = vadd.f32 0.0, %v3574
      %v3576 = vpop.f32.mrf.mxu0
      %v3577 = vpop.f32.mrf.mxu0
      %v3578 = vadd.f32 0.0, %v3577
      %v3579 = vpop.f32.mrf.mxu0
      %3580 = vmatprep.mubr.bf16.mxu0 0
      %3581 = vmatmul.mubr.bf16.gmra.mxu0 %v3517
      %v3582 = vpop.f32.mrf.mxu0
      %v3583 = vadd.f32 0.0, %v3582
      %v3584 = vpop.f32.mrf.mxu0
      %v3585 = vpop.f32.mrf.mxu0
      %v3586 = vadd.f32 0.0, %v3585
      %v3587 = vpop.f32.mrf.mxu0
      %3588 = vmatprep.mubr.bf16.mxu0 0
      %3589 = vmatmul.mubr.bf16.gmra.mxu0 %v3518
      %v3590 = vpop.f32.mrf.mxu0
      %v3591 = vadd.f32 0.0, %v3590
      %v3592 = vpop.f32.mrf.mxu0
      %v3593 = vpop.f32.mrf.mxu0
      %v3594 = vadd.f32 0.0, %v3593
      %v3595 = vpop.f32.mrf.mxu0
      %3596 = vmatprep.mubr.bf16.mxu0 0
      %3597 = vmatmul.mubr.bf16.gmra.mxu0 %v3519
      %v3598 = vpop.f32.mrf.mxu0
      %v3599 = vadd.f32 0.0, %v3598
      %v3600 = vpop.f32.mrf.mxu0
      %v3601 = vpop.f32.mrf.mxu0
      %v3602 = vadd.f32 0.0, %v3601
      %v3603 = vpop.f32.mrf.mxu0
      %3604 = vmatprep.mubr.bf16.mxu0 0
      %3605 = vmatmul.mubr.bf16.gmra.mxu0 %v3520
      %v3606 = vpop.f32.mrf.mxu0
      %v3607 = vadd.f32 0.0, %v3606
      %v3608 = vpop.f32.mrf.mxu0
      %v3609 = vpop.f32.mrf.mxu0
      %v3610 = vadd.f32 0.0, %v3609
      %v3611 = vpop.f32.mrf.mxu0
      %3612 = vmatprep.mubr.bf16.mxu0 0
      %3613 = vmatmul.mubr.bf16.gmra.mxu0 %v3521
      %v3614 = vpop.f32.mrf.mxu0
      %v3615 = vadd.f32 0.0, %v3614
      %v3616 = vpop.f32.mrf.mxu0
      %v3617 = vpop.f32.mrf.mxu0
      %v3618 = vadd.f32 0.0, %v3617
      %v3619 = vpop.f32.mrf.mxu0
      %3620 = vmatprep.mubr.bf16.mxu0 0
      %3621 = vmatmul.mubr.bf16.gmra.mxu0 %v3522
      %v3622 = vpop.f32.mrf.mxu0
      %v3623 = vadd.f32 0.0, %v3622
      %v3624 = vpop.f32.mrf.mxu0
      %v3625 = vpop.f32.mrf.mxu0
      %v3626 = vadd.f32 0.0, %v3625
      %v3627 = vpop.f32.mrf.mxu0
      %3628 = vmatprep.mubr.bf16.mxu0 0
      %3629 = vmatmul.mubr.bf16.gmra.mxu0 %v3523
      %v3630 = vpop.f32.mrf.mxu0
      %v3631 = vadd.f32 0.0, %v3630
      %v3632 = vpop.f32.mrf.mxu0
      %v3633 = vpop.f32.mrf.mxu0
      %v3634 = vadd.f32 0.0, %v3633
      %v3635 = vpop.f32.mrf.mxu0
      %3636 = vmatprep.mubr.bf16.mxu0 0
      %3637 = vmatmul.mubr.bf16.gmra.mxu0 %v3524
      %v3638 = vpop.f32.mrf.mxu0
      %v3639 = vadd.f32 0.0, %v3638
      %v3640 = vpop.f32.mrf.mxu0
      %v3641 = vpop.f32.mrf.mxu0
      %v3642 = vadd.f32 0.0, %v3641
      %v3643 = vpop.f32.mrf.mxu0
      %3644 = vmatprep.mubr.bf16.mxu0 0
      %3645 = vmatmul.mubr.bf16.gmra.mxu0 %v3525
      %v3646 = vpop.f32.mrf.mxu0
      %v3647 = vadd.f32 0.0, %v3646
      %v3648 = vpop.f32.mrf.mxu0
      %v3649 = vpop.f32.mrf.mxu0
      %v3650 = vadd.f32 0.0, %v3649
      %v3651 = vpop.f32.mrf.mxu0
      %3652 = vmatprep.mubr.bf16.mxu0 0
      %3653 = vmatmul.mubr.bf16.gmra.mxu0 %v3526
      %v3654 = vpop.f32.mrf.mxu0
      %v3655 = vadd.f32 0.0, %v3654
      %v3656 = vpop.f32.mrf.mxu0
      %v3657 = vpop.f32.mrf.mxu0
      %v3658 = vadd.f32 0.0, %v3657
      %v3659 = vpop.f32.mrf.mxu0
      %3660 = vmatprep.mubr.bf16.mxu0 0
      %3661 = vmatmul.mubr.bf16.gmra.mxu0 %v3527
      %v3662 = vpop.f32.mrf.mxu0
      %v3663 = vadd.f32 0.0, %v3662
      %v3664 = vpop.f32.mrf.mxu0
      %v3665 = vpop.f32.mrf.mxu0
      %v3666 = vadd.f32 0.0, %v3665
      %v3667 = vpop.f32.mrf.mxu0
      %3668 = vmatprep.mubr.bf16.mxu0 0
      %3669 = vmatmul.mubr.bf16.gmra.mxu0 %v3528
      %v3670 = vpop.f32.mrf.mxu0
      %v3671 = vadd.f32 0.0, %v3670
      %v3672 = vpop.f32.mrf.mxu0
      %v3673 = vpop.f32.mrf.mxu0
      %v3674 = vadd.f32 0.0, %v3673
      %v3675 = vpop.f32.mrf.mxu0
      %3676 = vmatprep.mubr.bf16.mxu0 0
      %3677 = vmatmul.mubr.bf16.gmra.mxu0 %v3529
      %v3678 = vpop.f32.mrf.mxu0
      %v3679 = vadd.f32 0.0, %v3678
      %v3680 = vpop.f32.mrf.mxu0
      %v3681 = vpop.f32.mrf.mxu0
      %v3682 = vadd.f32 0.0, %v3681
      %v3683 = vpop.f32.mrf.mxu0
      %3684 = vmatprep.mubr.bf16.mxu0 0
      %3685 = vmatmul.mubr.bf16.gmra.mxu0 %v3530
      %v3686 = vpop.f32.mrf.mxu0
      %v3687 = vadd.f32 0.0, %v3686
      %v3688 = vpop.f32.mrf.mxu0
      %v3689 = vpop.f32.mrf.mxu0
      %v3690 = vadd.f32 0.0, %v3689
      %v3691 = vpop.f32.mrf.mxu0
      %3692 = vmatprep.mubr.bf16.mxu0 0
      %3693 = vmatmul.mubr.bf16.gmra.mxu0 %v3531
      %v3694 = vpop.f32.mrf.mxu0
      %v3695 = vpop.f32.mrf.mxu0
      %v3696 = vpop.f32.mrf.mxu0
      %v3697 = vpop.f32.mrf.mxu0
      %3698 = vdwg.mxu0
      %3699 = vmatprep.subr.bf16.mxu0 0
      %3700 = vmatpush1.bf16.msra.mxu0 %v1868
      %3701 = vmatprep.subr.bf16.mxu0 0
      %3702 = vmatpush1.bf16.msra.mxu0 %v1867
      %3703 = vmatprep.subr.bf16.mxu0 0
      %3704 = vmatpush1.bf16.msra.mxu0 %v1866
      %3705 = vmatprep.subr.bf16.mxu0 0
      %3706 = vmatpush1.bf16.msra.mxu0 %v1865
      %3707 = vmatprep.subr.bf16.mxu0 0
      %3708 = vmatpush1.bf16.msra.mxu0 %v1864
      %3709 = vmatprep.subr.bf16.mxu0 0
      %3710 = vmatpush1.bf16.msra.mxu0 %v1863
      %3711 = vmatprep.subr.bf16.mxu0 0
      %3712 = vmatpush1.bf16.msra.mxu0 %v1862
      %3713 = vmatprep.subr.bf16.mxu0 0
      %3714 = vmatpush1.bf16.msra.mxu0 %v1861
      %3715 = vmatprep.subr.bf16.mxu0 0
      %3716 = vmatpush2.bf16.msra.mxu0 0
      %3717 = vmatprep.subr.bf16.mxu0 0
      %3718 = vmatpush2.bf16.msra.mxu0 0
      %3719 = vmatprep.subr.bf16.mxu0 0
      %3720 = vmatpush2.bf16.msra.mxu0 0
      %3721 = vmatprep.subr.bf16.mxu0 0
      %3722 = vmatpush2.bf16.msra.mxu0 0
      %3723 = vmatprep.subr.bf16.mxu0 0
      %3724 = vmatpush2.bf16.msra.mxu0 0
      %3725 = vmatprep.subr.bf16.mxu0 0
      %3726 = vmatpush2.bf16.msra.mxu0 0
      %3727 = vmatprep.subr.bf16.mxu0 0
      %3728 = vmatpush2.bf16.msra.mxu0 0
      %3729 = vmatprep.subr.bf16.mxu0 0
      %3730 = vmatpush2.bf16.msra.mxu0 0
      %3731 = vmatprep.mubr.bf16.mxu0 0
      %3732 = vmatmul.mubr.bf16.gmra.mxu0 %v3498
      %v3733 = vpop.f32.mrf.mxu0
      %v3734 = vadd.f32 %v3567, %v3733
      %v3735 = vpop.f32.mrf.mxu0
      %v3736 = vpop.f32.mrf.mxu0
      %v3737 = vadd.f32 %v3570, %v3736
      %v3738 = vpop.f32.mrf.mxu0
      %3739 = vmatprep.mubr.bf16.mxu0 0
      %3740 = vmatmul.mubr.bf16.gmra.mxu0 %v3499
      %v3741 = vpop.f32.mrf.mxu0
      %v3742 = vadd.f32 %v3575, %v3741
      %v3743 = vpop.f32.mrf.mxu0
      %v3744 = vpop.f32.mrf.mxu0
      %v3745 = vadd.f32 %v3578, %v3744
      %v3746 = vpop.f32.mrf.mxu0
      %3747 = vmatprep.mubr.bf16.mxu0 0
      %3748 = vmatmul.mubr.bf16.gmra.mxu0 %v3500
      %v3749 = vpop.f32.mrf.mxu0
      %v3750 = vadd.f32 %v3583, %v3749
      %v3751 = vpop.f32.mrf.mxu0
      %v3752 = vpop.f32.mrf.mxu0
      %v3753 = vadd.f32 %v3586, %v3752
      %v3754 = vpop.f32.mrf.mxu0
      %3755 = vmatprep.mubr.bf16.mxu0 0
      %3756 = vmatmul.mubr.bf16.gmra.mxu0 %v3501
      %v3757 = vpop.f32.mrf.mxu0
      %v3758 = vadd.f32 %v3591, %v3757
      %v3759 = vpop.f32.mrf.mxu0
      %v3760 = vpop.f32.mrf.mxu0
      %v3761 = vadd.f32 %v3594, %v3760
      %v3762 = vpop.f32.mrf.mxu0
      %3763 = vmatprep.mubr.bf16.mxu0 0
      %3764 = vmatmul.mubr.bf16.gmra.mxu0 %v3502
      %v3765 = vpop.f32.mrf.mxu0
      %v3766 = vadd.f32 %v3599, %v3765
      %v3767 = vpop.f32.mrf.mxu0
      %v3768 = vpop.f32.mrf.mxu0
      %v3769 = vadd.f32 %v3602, %v3768
      %v3770 = vpop.f32.mrf.mxu0
      %3771 = vmatprep.mubr.bf16.mxu0 0
      %3772 = vmatmul.mubr.bf16.gmra.mxu0 %v3503
      %v3773 = vpop.f32.mrf.mxu0
      %v3774 = vadd.f32 %v3607, %v3773
      %v3775 = vpop.f32.mrf.mxu0
      %v3776 = vpop.f32.mrf.mxu0
      %v3777 = vadd.f32 %v3610, %v3776
      %v3778 = vpop.f32.mrf.mxu0
      %3779 = vmatprep.mubr.bf16.mxu0 0
      %3780 = vmatmul.mubr.bf16.gmra.mxu0 %v3504
      %v3781 = vpop.f32.mrf.mxu0
      %v3782 = vadd.f32 %v3615, %v3781
      %v3783 = vpop.f32.mrf.mxu0
      %v3784 = vpop.f32.mrf.mxu0
      %v3785 = vadd.f32 %v3618, %v3784
      %v3786 = vpop.f32.mrf.mxu0
      %3787 = vmatprep.mubr.bf16.mxu0 0
      %3788 = vmatmul.mubr.bf16.gmra.mxu0 %v3505
      %v3789 = vpop.f32.mrf.mxu0
      %v3790 = vadd.f32 %v3623, %v3789
      %v3791 = vpop.f32.mrf.mxu0
      %v3792 = vpop.f32.mrf.mxu0
      %v3793 = vadd.f32 %v3626, %v3792
      %v3794 = vpop.f32.mrf.mxu0
      %3795 = vmatprep.mubr.bf16.mxu0 0
      %3796 = vmatmul.mubr.bf16.gmra.mxu0 %v3506
      %v3797 = vpop.f32.mrf.mxu0
      %v3798 = vadd.f32 %v3631, %v3797
      %v3799 = vpop.f32.mrf.mxu0
      %v3800 = vpop.f32.mrf.mxu0
      %v3801 = vadd.f32 %v3634, %v3800
      %v3802 = vpop.f32.mrf.mxu0
      %3803 = vmatprep.mubr.bf16.mxu0 0
      %3804 = vmatmul.mubr.bf16.gmra.mxu0 %v3507
      %v3805 = vpop.f32.mrf.mxu0
      %v3806 = vadd.f32 %v3639, %v3805
      %v3807 = vpop.f32.mrf.mxu0
      %v3808 = vpop.f32.mrf.mxu0
      %v3809 = vadd.f32 %v3642, %v3808
      %v3810 = vpop.f32.mrf.mxu0
      %3811 = vmatprep.mubr.bf16.mxu0 0
      %3812 = vmatmul.mubr.bf16.gmra.mxu0 %v3508
      %v3813 = vpop.f32.mrf.mxu0
      %v3814 = vadd.f32 %v3647, %v3813
      %v3815 = vpop.f32.mrf.mxu0
      %v3816 = vpop.f32.mrf.mxu0
      %v3817 = vadd.f32 %v3650, %v3816
      %v3818 = vpop.f32.mrf.mxu0
      %3819 = vmatprep.mubr.bf16.mxu0 0
      %3820 = vmatmul.mubr.bf16.gmra.mxu0 %v3509
      %v3821 = vpop.f32.mrf.mxu0
      %v3822 = vadd.f32 %v3655, %v3821
      %v3823 = vpop.f32.mrf.mxu0
      %v3824 = vpop.f32.mrf.mxu0
      %v3825 = vadd.f32 %v3658, %v3824
      %v3826 = vpop.f32.mrf.mxu0
      %3827 = vmatprep.mubr.bf16.mxu0 0
      %3828 = vmatmul.mubr.bf16.gmra.mxu0 %v3510
      %v3829 = vpop.f32.mrf.mxu0
      %v3830 = vadd.f32 %v3663, %v3829
      %v3831 = vpop.f32.mrf.mxu0
      %v3832 = vpop.f32.mrf.mxu0
      %v3833 = vadd.f32 %v3666, %v3832
      %v3834 = vpop.f32.mrf.mxu0
      %3835 = vmatprep.mubr.bf16.mxu0 0
      %3836 = vmatmul.mubr.bf16.gmra.mxu0 %v3511
      %v3837 = vpop.f32.mrf.mxu0
      %v3838 = vadd.f32 %v3671, %v3837
      %v3839 = vpop.f32.mrf.mxu0
      %v3840 = vpop.f32.mrf.mxu0
      %v3841 = vadd.f32 %v3674, %v3840
      %v3842 = vpop.f32.mrf.mxu0
      %3843 = vmatprep.mubr.bf16.mxu0 0
      %3844 = vmatmul.mubr.bf16.gmra.mxu0 %v3512
      %v3845 = vpop.f32.mrf.mxu0
      %v3846 = vadd.f32 %v3679, %v3845
      %v3847 = vpop.f32.mrf.mxu0
      %v3848 = vpop.f32.mrf.mxu0
      %v3849 = vadd.f32 %v3682, %v3848
      %v3850 = vpop.f32.mrf.mxu0
      %3851 = vmatprep.mubr.bf16.mxu0 0
      %3852 = vmatmul.mubr.bf16.gmra.mxu0 %v3513
      %v3853 = vpop.f32.mrf.mxu0
      %v3854 = vadd.f32 %v3687, %v3853
      %v3855 = vpop.f32.mrf.mxu0
      %v3856 = vpop.f32.mrf.mxu0
      %v3857 = vadd.f32 %v3690, %v3856
      %v3858 = vpop.f32.mrf.mxu0
      %3859 = vmatprep.mubr.bf16.mxu0 0
      %3860 = vmatmul.mubr.bf16.gmra.mxu0 %v3514
      %v3861 = vpop.f32.mrf.mxu0
      %v3862 = vpop.f32.mrf.mxu0
      %v3863 = vpop.f32.mrf.mxu0
      %v3864 = vpop.f32.mrf.mxu0
      %3865 = vdwg.mxu0
      %v3866 = vsel %vm1306, %v3734, -inf
      %v3867 = vrot.slane %v3866, 4
      %v3868 = vmax.f32 %v3866, %v3867
      %v3869 = vrot.slane %v3868, 2
      %v3870 = vmax.f32 %v3868, %v3869
      %v3871 = vrot.slane %v3870, 1
      %v3872 = vmax.f32 %v3870, %v3871
      %v3873 = vsel %vm1306, %v3737, -inf
      %v3874 = vrot.slane %v3873, 4
      %v3875 = vmax.f32 %v3873, %v3874
      %v3876 = vrot.slane %v3875, 2
      %v3877 = vmax.f32 %v3875, %v3876
      %v3878 = vrot.slane %v3877, 1
      %v3879 = vmax.f32 %v3877, %v3878
      %v3880 = vsel %vm1306, %v3742, -inf
      %v3881 = vrot.slane %v3880, 4
      %v3882 = vmax.f32 %v3880, %v3881
      %v3883 = vrot.slane %v3882, 2
      %v3884 = vmax.f32 %v3882, %v3883
      %v3885 = vrot.slane %v3884, 1
      %v3886 = vmax.f32 %v3884, %v3885
      %v3887 = vsel %vm1306, %v3745, -inf
      %v3888 = vrot.slane %v3887, 4
      %v3889 = vmax.f32 %v3887, %v3888
      %v3890 = vrot.slane %v3889, 2
      %v3891 = vmax.f32 %v3889, %v3890
      %v3892 = vrot.slane %v3891, 1
      %v3893 = vmax.f32 %v3891, %v3892
      %v3894 = vsel %vm1306, %v3750, -inf
      %v3895 = vrot.slane %v3894, 4
      %v3896 = vmax.f32 %v3894, %v3895
      %v3897 = vrot.slane %v3896, 2
      %v3898 = vmax.f32 %v3896, %v3897
      %v3899 = vrot.slane %v3898, 1
      %v3900 = vmax.f32 %v3898, %v3899
      %v3901 = vsel %vm1306, %v3753, -inf
      %v3902 = vrot.slane %v3901, 4
      %v3903 = vmax.f32 %v3901, %v3902
      %v3904 = vrot.slane %v3903, 2
      %v3905 = vmax.f32 %v3903, %v3904
      %v3906 = vrot.slane %v3905, 1
      %v3907 = vmax.f32 %v3905, %v3906
      %v3908 = vsel %vm1306, %v3758, -inf
      %v3909 = vrot.slane %v3908, 4
      %v3910 = vmax.f32 %v3908, %v3909
      %v3911 = vrot.slane %v3910, 2
      %v3912 = vmax.f32 %v3910, %v3911
      %v3913 = vrot.slane %v3912, 1
      %v3914 = vmax.f32 %v3912, %v3913
      %v3915 = vsel %vm1306, %v3761, -inf
      %v3916 = vrot.slane %v3915, 4
      %v3917 = vmax.f32 %v3915, %v3916
      %v3918 = vrot.slane %v3917, 2
      %v3919 = vmax.f32 %v3917, %v3918
      %v3920 = vrot.slane %v3919, 1
      %v3921 = vmax.f32 %v3919, %v3920
      %v3922 = vsel %vm1306, %v3766, -inf
      %v3923 = vrot.slane %v3922, 4
      %v3924 = vmax.f32 %v3922, %v3923
      %v3925 = vrot.slane %v3924, 2
      %v3926 = vmax.f32 %v3924, %v3925
      %v3927 = vrot.slane %v3926, 1
      %v3928 = vmax.f32 %v3926, %v3927
      %v3929 = vsel %vm1306, %v3769, -inf
      %v3930 = vrot.slane %v3929, 4
      %v3931 = vmax.f32 %v3929, %v3930
      %v3932 = vrot.slane %v3931, 2
      %v3933 = vmax.f32 %v3931, %v3932
      %v3934 = vrot.slane %v3933, 1
      %v3935 = vmax.f32 %v3933, %v3934
      %v3936 = vsel %vm1306, %v3774, -inf
      %v3937 = vrot.slane %v3936, 4
      %v3938 = vmax.f32 %v3936, %v3937
      %v3939 = vrot.slane %v3938, 2
      %v3940 = vmax.f32 %v3938, %v3939
      %v3941 = vrot.slane %v3940, 1
      %v3942 = vmax.f32 %v3940, %v3941
      %v3943 = vsel %vm1306, %v3777, -inf
      %v3944 = vrot.slane %v3943, 4
      %v3945 = vmax.f32 %v3943, %v3944
      %v3946 = vrot.slane %v3945, 2
      %v3947 = vmax.f32 %v3945, %v3946
      %v3948 = vrot.slane %v3947, 1
      %v3949 = vmax.f32 %v3947, %v3948
      %v3950 = vsel %vm1306, %v3782, -inf
      %v3951 = vrot.slane %v3950, 4
      %v3952 = vmax.f32 %v3950, %v3951
      %v3953 = vrot.slane %v3952, 2
      %v3954 = vmax.f32 %v3952, %v3953
      %v3955 = vrot.slane %v3954, 1
      %v3956 = vmax.f32 %v3954, %v3955
      %v3957 = vsel %vm1306, %v3785, -inf
      %v3958 = vrot.slane %v3957, 4
      %v3959 = vmax.f32 %v3957, %v3958
      %v3960 = vrot.slane %v3959, 2
      %v3961 = vmax.f32 %v3959, %v3960
      %v3962 = vrot.slane %v3961, 1
      %v3963 = vmax.f32 %v3961, %v3962
      %v3964 = vsel %vm1306, %v3790, -inf
      %v3965 = vrot.slane %v3964, 4
      %v3966 = vmax.f32 %v3964, %v3965
      %v3967 = vrot.slane %v3966, 2
      %v3968 = vmax.f32 %v3966, %v3967
      %v3969 = vrot.slane %v3968, 1
      %v3970 = vmax.f32 %v3968, %v3969
      %v3971 = vsel %vm1306, %v3793, -inf
      %v3972 = vrot.slane %v3971, 4
      %v3973 = vmax.f32 %v3971, %v3972
      %v3974 = vrot.slane %v3973, 2
      %v3975 = vmax.f32 %v3973, %v3974
      %v3976 = vrot.slane %v3975, 1
      %v3977 = vmax.f32 %v3975, %v3976
      %v3978 = vsel %vm1306, %v3798, -inf
      %v3979 = vrot.slane %v3978, 4
      %v3980 = vmax.f32 %v3978, %v3979
      %v3981 = vrot.slane %v3980, 2
      %v3982 = vmax.f32 %v3980, %v3981
      %v3983 = vrot.slane %v3982, 1
      %v3984 = vmax.f32 %v3982, %v3983
      %v3985 = vsel %vm1306, %v3801, -inf
      %v3986 = vrot.slane %v3985, 4
      %v3987 = vmax.f32 %v3985, %v3986
      %v3988 = vrot.slane %v3987, 2
      %v3989 = vmax.f32 %v3987, %v3988
      %v3990 = vrot.slane %v3989, 1
      %v3991 = vmax.f32 %v3989, %v3990
      %v3992 = vsel %vm1306, %v3806, -inf
      %v3993 = vrot.slane %v3992, 4
      %v3994 = vmax.f32 %v3992, %v3993
      %v3995 = vrot.slane %v3994, 2
      %v3996 = vmax.f32 %v3994, %v3995
      %v3997 = vrot.slane %v3996, 1
      %v3998 = vmax.f32 %v3996, %v3997
      %v3999 = vsel %vm1306, %v3809, -inf
      %v4000 = vrot.slane %v3999, 4
      %v4001 = vmax.f32 %v3999, %v4000
      %v4002 = vrot.slane %v4001, 2
      %v4003 = vmax.f32 %v4001, %v4002
      %v4004 = vrot.slane %v4003, 1
      %v4005 = vmax.f32 %v4003, %v4004
      %v4006 = vsel %vm1306, %v3814, -inf
      %v4007 = vrot.slane %v4006, 4
      %v4008 = vmax.f32 %v4006, %v4007
      %v4009 = vrot.slane %v4008, 2
      %v4010 = vmax.f32 %v4008, %v4009
      %v4011 = vrot.slane %v4010, 1
      %v4012 = vmax.f32 %v4010, %v4011
      %v4013 = vsel %vm1306, %v3817, -inf
      %v4014 = vrot.slane %v4013, 4
      %v4015 = vmax.f32 %v4013, %v4014
      %v4016 = vrot.slane %v4015, 2
      %v4017 = vmax.f32 %v4015, %v4016
      %v4018 = vrot.slane %v4017, 1
      %v4019 = vmax.f32 %v4017, %v4018
      %v4020 = vsel %vm1306, %v3822, -inf
      %v4021 = vrot.slane %v4020, 4
      %v4022 = vmax.f32 %v4020, %v4021
      %v4023 = vrot.slane %v4022, 2
      %v4024 = vmax.f32 %v4022, %v4023
      %v4025 = vrot.slane %v4024, 1
      %v4026 = vmax.f32 %v4024, %v4025
      %v4027 = vsel %vm1306, %v3825, -inf
      %v4028 = vrot.slane %v4027, 4
      %v4029 = vmax.f32 %v4027, %v4028
      %v4030 = vrot.slane %v4029, 2
      %v4031 = vmax.f32 %v4029, %v4030
      %v4032 = vrot.slane %v4031, 1
      %v4033 = vmax.f32 %v4031, %v4032
      %v4034 = vsel %vm1306, %v3830, -inf
      %v4035 = vrot.slane %v4034, 4
      %v4036 = vmax.f32 %v4034, %v4035
      %v4037 = vrot.slane %v4036, 2
      %v4038 = vmax.f32 %v4036, %v4037
      %v4039 = vrot.slane %v4038, 1
      %v4040 = vmax.f32 %v4038, %v4039
      %v4041 = vsel %vm1306, %v3833, -inf
      %v4042 = vrot.slane %v4041, 4
      %v4043 = vmax.f32 %v4041, %v4042
      %v4044 = vrot.slane %v4043, 2
      %v4045 = vmax.f32 %v4043, %v4044
      %v4046 = vrot.slane %v4045, 1
      %v4047 = vmax.f32 %v4045, %v4046
      %v4048 = vsel %vm1306, %v3838, -inf
      %v4049 = vrot.slane %v4048, 4
      %v4050 = vmax.f32 %v4048, %v4049
      %v4051 = vrot.slane %v4050, 2
      %v4052 = vmax.f32 %v4050, %v4051
      %v4053 = vrot.slane %v4052, 1
      %v4054 = vmax.f32 %v4052, %v4053
      %v4055 = vsel %vm1306, %v3841, -inf
      %v4056 = vrot.slane %v4055, 4
      %v4057 = vmax.f32 %v4055, %v4056
      %v4058 = vrot.slane %v4057, 2
      %v4059 = vmax.f32 %v4057, %v4058
      %v4060 = vrot.slane %v4059, 1
      %v4061 = vmax.f32 %v4059, %v4060
      %v4062 = vsel %vm1306, %v3846, -inf
      %v4063 = vrot.slane %v4062, 4
      %v4064 = vmax.f32 %v4062, %v4063
      %v4065 = vrot.slane %v4064, 2
      %v4066 = vmax.f32 %v4064, %v4065
      %v4067 = vrot.slane %v4066, 1
      %v4068 = vmax.f32 %v4066, %v4067
      %v4069 = vsel %vm1306, %v3849, -inf
      %v4070 = vrot.slane %v4069, 4
      %v4071 = vmax.f32 %v4069, %v4070
      %v4072 = vrot.slane %v4071, 2
      %v4073 = vmax.f32 %v4071, %v4072
      %v4074 = vrot.slane %v4073, 1
      %v4075 = vmax.f32 %v4073, %v4074
      %v4076 = vsel %vm1306, %v3854, -inf
      %v4077 = vrot.slane %v4076, 4
      %v4078 = vmax.f32 %v4076, %v4077
      %v4079 = vrot.slane %v4078, 2
      %v4080 = vmax.f32 %v4078, %v4079
      %v4081 = vrot.slane %v4080, 1
      %v4082 = vmax.f32 %v4080, %v4081
      %v4083 = vsel %vm1306, %v3857, -inf
      %v4084 = vrot.slane %v4083, 4
      %v4085 = vmax.f32 %v4083, %v4084
      %v4086 = vrot.slane %v4085, 2
      %v4087 = vmax.f32 %v4085, %v4086
      %v4088 = vrot.slane %v4087, 1
      %v4089 = vmax.f32 %v4087, %v4088
      %v4090 = vadd.f32 %v3872, %v2272
      %v4091 = vadd.f32 %v3879, %v2272
      %v4092 = vadd.f32 %v3886, %v2272
      %v4093 = vadd.f32 %v3893, %v2272
      %v4094 = vadd.f32 %v3900, %v2272
      %v4095 = vadd.f32 %v3907, %v2272
      %v4096 = vadd.f32 %v3914, %v2272
      %v4097 = vadd.f32 %v3921, %v2272
      %v4098 = vadd.f32 %v3928, %v2272
      %v4099 = vadd.f32 %v3935, %v2272
      %v4100 = vadd.f32 %v3942, %v2272
      %v4101 = vadd.f32 %v3949, %v2272
      %v4102 = vadd.f32 %v3956, %v2272
      %v4103 = vadd.f32 %v3963, %v2272
      %v4104 = vadd.f32 %v3970, %v2272
      %v4105 = vadd.f32 %v3977, %v2272
      %v4106 = vadd.f32 %v3984, %v2272
      %v4107 = vadd.f32 %v3991, %v2272
      %v4108 = vadd.f32 %v3998, %v2272
      %v4109 = vadd.f32 %v4005, %v2272
      %v4110 = vadd.f32 %v4012, %v2272
      %v4111 = vadd.f32 %v4019, %v2272
      %v4112 = vadd.f32 %v4026, %v2272
      %v4113 = vadd.f32 %v4033, %v2272
      %v4114 = vadd.f32 %v4040, %v2272
      %v4115 = vadd.f32 %v4047, %v2272
      %v4116 = vadd.f32 %v4054, %v2272
      %v4117 = vadd.f32 %v4061, %v2272
      %v4118 = vadd.f32 %v4068, %v2272
      %v4119 = vadd.f32 %v4075, %v2272
      %v4120 = vadd.f32 %v4082, %v2272
      %v4121 = vadd.f32 %v4089, %v2272
      %v4122 = vmax.f32 %v4090, 0.0
      %v4123 = vmax.f32 %v4091, 0.0
      %v4124 = vmax.f32 %v4092, 0.0
      %v4125 = vmax.f32 %v4093, 0.0
      %v4126 = vmax.f32 %v4094, 0.0
      %v4127 = vmax.f32 %v4095, 0.0
      %v4128 = vmax.f32 %v4096, 0.0
      %v4129 = vmax.f32 %v4097, 0.0
      %v4130 = vmax.f32 %v4098, 0.0
      %v4131 = vmax.f32 %v4099, 0.0
      %v4132 = vmax.f32 %v4100, 0.0
      %v4133 = vmax.f32 %v4101, 0.0
      %v4134 = vmax.f32 %v4102, 0.0
      %v4135 = vmax.f32 %v4103, 0.0
      %v4136 = vmax.f32 %v4104, 0.0
      %v4137 = vmax.f32 %v4105, 0.0
      %v4138 = vmax.f32 %v4106, 0.0
      %v4139 = vmax.f32 %v4107, 0.0
      %v4140 = vmax.f32 %v4108, 0.0
      %v4141 = vmax.f32 %v4109, 0.0
      %v4142 = vmax.f32 %v4110, 0.0
      %v4143 = vmax.f32 %v4111, 0.0
      %v4144 = vmax.f32 %v4112, 0.0
      %v4145 = vmax.f32 %v4113, 0.0
      %v4146 = vmax.f32 %v4114, 0.0
      %v4147 = vmax.f32 %v4115, 0.0
      %v4148 = vmax.f32 %v4116, 0.0
      %v4149 = vmax.f32 %v4117, 0.0
      %v4150 = vmax.f32 %v4118, 0.0
      %v4151 = vmax.f32 %v4119, 0.0
      %v4152 = vmax.f32 %v4120, 0.0
      %v4153 = vmax.f32 %v4121, 0.0
      %v4154 = vpack.c.bf16 %v4122, %v4122
      %v4155 = vpack.c.bf16 %v4123, %v4123
      %v4156 = vpack.c.bf16 %v4124, %v4124
      %v4157 = vpack.c.bf16 %v4125, %v4125
      %v4158 = vpack.c.bf16 %v4126, %v4126
      %v4159 = vpack.c.bf16 %v4127, %v4127
      %v4160 = vpack.c.bf16 %v4128, %v4128
      %v4161 = vpack.c.bf16 %v4129, %v4129
      %v4162 = vpack.c.bf16 %v4130, %v4130
      %v4163 = vpack.c.bf16 %v4131, %v4131
      %v4164 = vpack.c.bf16 %v4132, %v4132
      %v4165 = vpack.c.bf16 %v4133, %v4133
      %v4166 = vpack.c.bf16 %v4134, %v4134
      %v4167 = vpack.c.bf16 %v4135, %v4135
      %v4168 = vpack.c.bf16 %v4136, %v4136
      %v4169 = vpack.c.bf16 %v4137, %v4137
      %v4170 = vpack.c.bf16 %v4138, %v4138
      %v4171 = vpack.c.bf16 %v4139, %v4139
      %v4172 = vpack.c.bf16 %v4140, %v4140
      %v4173 = vpack.c.bf16 %v4141, %v4141
      %v4174 = vpack.c.bf16 %v4142, %v4142
      %v4175 = vpack.c.bf16 %v4143, %v4143
      %v4176 = vpack.c.bf16 %v4144, %v4144
      %v4177 = vpack.c.bf16 %v4145, %v4145
      %v4178 = vpack.c.bf16 %v4146, %v4146
      %v4179 = vpack.c.bf16 %v4147, %v4147
      %v4180 = vpack.c.bf16 %v4148, %v4148
      %v4181 = vpack.c.bf16 %v4149, %v4149
      %v4182 = vpack.c.bf16 %v4150, %v4150
      %v4183 = vpack.c.bf16 %v4151, %v4151
      %v4184 = vpack.c.bf16 %v4152, %v4152
      %v4185 = vpack.c.bf16 %v4153, %v4153
      %v4218 = vunpack.c.l.b16 %v2338
      %v4219 = vunpack.c.l.b16 %v2339
      %v4220 = vunpack.c.l.b16 %v2340
      %v4221 = vunpack.c.l.b16 %v2341
      %v4222 = vunpack.c.l.b16 %v2342
      %v4223 = vunpack.c.l.b16 %v2343
      %v4224 = vunpack.c.l.b16 %v2344
      %v4225 = vunpack.c.l.b16 %v2345
      %v4226 = vunpack.c.l.b16 %v2346
      %v4227 = vunpack.c.l.b16 %v2347
      %v4228 = vunpack.c.l.b16 %v2348
      %v4229 = vunpack.c.l.b16 %v2349
      %v4230 = vunpack.c.l.b16 %v2350
      %v4231 = vunpack.c.l.b16 %v2351
      %v4232 = vunpack.c.l.b16 %v2352
      %v4233 = vunpack.c.l.b16 %v2353
      %v4234 = vunpack.c.l.b16 %v2354
      %v4235 = vunpack.c.l.b16 %v2355
      %v4236 = vunpack.c.l.b16 %v2356
      %v4237 = vunpack.c.l.b16 %v2357
      %v4238 = vunpack.c.l.b16 %v2358
      %v4239 = vunpack.c.l.b16 %v2359
      %v4240 = vunpack.c.l.b16 %v2360
      %v4241 = vunpack.c.l.b16 %v2361
      %v4242 = vunpack.c.l.b16 %v2362
      %v4243 = vunpack.c.l.b16 %v2363
      %v4244 = vunpack.c.l.b16 %v2364
      %v4245 = vunpack.c.l.b16 %v2365
      %v4246 = vunpack.c.l.b16 %v2366
      %v4247 = vunpack.c.l.b16 %v2367
      %v4248 = vunpack.c.l.b16 %v2368
      %v4249 = vunpack.c.l.b16 %v2369
      %v4250 = vrot.slane %v4219, 7
      %vm4251 = vcmask 1041409
      %v4252 = vsel %vm4251, %v4250, %v4218
      %v4253 = vrot.slane %v4220, 6
      %vm4254 = vcmask 1042434
      %v4255 = vsel %vm4254, %v4253, %v4252
      %v4256 = vrot.slane %v4221, 5
      %vm4257 = vcmask 1043459
      %v4258 = vsel %vm4257, %v4256, %v4255
      %v4259 = vrot.slane %v4222, 4
      %vm4260 = vcmask 1044484
      %v4261 = vsel %vm4260, %v4259, %v4258
      %v4262 = vrot.slane %v4223, 3
      %vm4263 = vcmask 1045509
      %v4264 = vsel %vm4263, %v4262, %v4261
      %v4265 = vrot.slane %v4224, 2
      %vm4266 = vcmask 1046534
      %v4267 = vsel %vm4266, %v4265, %v4264
      %v4268 = vrot.slane %v4225, 1
      %vm4269 = vcmask 1047559
      %v4270 = vsel %vm4269, %v4268, %v4267
      %v4271 = vrot.slane %v4227, 7
      %v4272 = vsel %vm4251, %v4271, %v4226
      %v4273 = vrot.slane %v4228, 6
      %v4274 = vsel %vm4254, %v4273, %v4272
      %v4275 = vrot.slane %v4229, 5
      %v4276 = vsel %vm4257, %v4275, %v4274
      %v4277 = vrot.slane %v4230, 4
      %v4278 = vsel %vm4260, %v4277, %v4276
      %v4279 = vrot.slane %v4231, 3
      %v4280 = vsel %vm4263, %v4279, %v4278
      %v4281 = vrot.slane %v4232, 2
      %v4282 = vsel %vm4266, %v4281, %v4280
      %v4283 = vrot.slane %v4233, 1
      %v4284 = vsel %vm4269, %v4283, %v4282
      %v4285 = vrot.slane %v4235, 7
      %v4286 = vsel %vm4251, %v4285, %v4234
      %v4287 = vrot.slane %v4236, 6
      %v4288 = vsel %vm4254, %v4287, %v4286
      %v4289 = vrot.slane %v4237, 5
      %v4290 = vsel %vm4257, %v4289, %v4288
      %v4291 = vrot.slane %v4238, 4
      %v4292 = vsel %vm4260, %v4291, %v4290
      %v4293 = vrot.slane %v4239, 3
      %v4294 = vsel %vm4263, %v4293, %v4292
      %v4295 = vrot.slane %v4240, 2
      %v4296 = vsel %vm4266, %v4295, %v4294
      %v4297 = vrot.slane %v4241, 1
      %v4298 = vsel %vm4269, %v4297, %v4296
      %v4299 = vrot.slane %v4243, 7
      %v4300 = vsel %vm4251, %v4299, %v4242
      %v4301 = vrot.slane %v4244, 6
      %v4302 = vsel %vm4254, %v4301, %v4300
      %v4303 = vrot.slane %v4245, 5
      %v4304 = vsel %vm4257, %v4303, %v4302
      %v4305 = vrot.slane %v4246, 4
      %v4306 = vsel %vm4260, %v4305, %v4304
      %v4307 = vrot.slane %v4247, 3
      %v4308 = vsel %vm4263, %v4307, %v4306
      %v4309 = vrot.slane %v4248, 2
      %v4310 = vsel %vm4266, %v4309, %v4308
      %v4311 = vrot.slane %v4249, 1
      %v4312 = vsel %vm4269, %v4311, %v4310
      %v4313 = vpack.c.b16 %v4284, %v4270
      %v4314 = vpack.c.b16 %v4312, %v4298
      %v4347 = vunpack.c.l.b16 %v4154
      %v4348 = vunpack.c.l.b16 %v4155
      %v4349 = vunpack.c.l.b16 %v4156
      %v4350 = vunpack.c.l.b16 %v4157
      %v4351 = vunpack.c.l.b16 %v4158
      %v4352 = vunpack.c.l.b16 %v4159
      %v4353 = vunpack.c.l.b16 %v4160
      %v4354 = vunpack.c.l.b16 %v4161
      %v4355 = vunpack.c.l.b16 %v4162
      %v4356 = vunpack.c.l.b16 %v4163
      %v4357 = vunpack.c.l.b16 %v4164
      %v4358 = vunpack.c.l.b16 %v4165
      %v4359 = vunpack.c.l.b16 %v4166
      %v4360 = vunpack.c.l.b16 %v4167
      %v4361 = vunpack.c.l.b16 %v4168
      %v4362 = vunpack.c.l.b16 %v4169
      %v4363 = vunpack.c.l.b16 %v4170
      %v4364 = vunpack.c.l.b16 %v4171
      %v4365 = vunpack.c.l.b16 %v4172
      %v4366 = vunpack.c.l.b16 %v4173
      %v4367 = vunpack.c.l.b16 %v4174
      %v4368 = vunpack.c.l.b16 %v4175
      %v4369 = vunpack.c.l.b16 %v4176
      %v4370 = vunpack.c.l.b16 %v4177
      %v4371 = vunpack.c.l.b16 %v4178
      %v4372 = vunpack.c.l.b16 %v4179
      %v4373 = vunpack.c.l.b16 %v4180
      %v4374 = vunpack.c.l.b16 %v4181
      %v4375 = vunpack.c.l.b16 %v4182
      %v4376 = vunpack.c.l.b16 %v4183
      %v4377 = vunpack.c.l.b16 %v4184
      %v4378 = vunpack.c.l.b16 %v4185
      %v4379 = vrot.slane %v4348, 7
      %v4380 = vsel %vm4251, %v4379, %v4347
      %v4381 = vrot.slane %v4349, 6
      %v4382 = vsel %vm4254, %v4381, %v4380
      %v4383 = vrot.slane %v4350, 5
      %v4384 = vsel %vm4257, %v4383, %v4382
      %v4385 = vrot.slane %v4351, 4
      %v4386 = vsel %vm4260, %v4385, %v4384
      %v4387 = vrot.slane %v4352, 3
      %v4388 = vsel %vm4263, %v4387, %v4386
      %v4389 = vrot.slane %v4353, 2
      %v4390 = vsel %vm4266, %v4389, %v4388
      %v4391 = vrot.slane %v4354, 1
      %v4392 = vsel %vm4269, %v4391, %v4390
      %v4393 = vrot.slane %v4356, 7
      %v4394 = vsel %vm4251, %v4393, %v4355
      %v4395 = vrot.slane %v4357, 6
      %v4396 = vsel %vm4254, %v4395, %v4394
      %v4397 = vrot.slane %v4358, 5
      %v4398 = vsel %vm4257, %v4397, %v4396
      %v4399 = vrot.slane %v4359, 4
      %v4400 = vsel %vm4260, %v4399, %v4398
      %v4401 = vrot.slane %v4360, 3
      %v4402 = vsel %vm4263, %v4401, %v4400
      %v4403 = vrot.slane %v4361, 2
      %v4404 = vsel %vm4266, %v4403, %v4402
      %v4405 = vrot.slane %v4362, 1
      %v4406 = vsel %vm4269, %v4405, %v4404
      %v4407 = vrot.slane %v4364, 7
      %v4408 = vsel %vm4251, %v4407, %v4363
      %v4409 = vrot.slane %v4365, 6
      %v4410 = vsel %vm4254, %v4409, %v4408
      %v4411 = vrot.slane %v4366, 5
      %v4412 = vsel %vm4257, %v4411, %v4410
      %v4413 = vrot.slane %v4367, 4
      %v4414 = vsel %vm4260, %v4413, %v4412
      %v4415 = vrot.slane %v4368, 3
      %v4416 = vsel %vm4263, %v4415, %v4414
      %v4417 = vrot.slane %v4369, 2
      %v4418 = vsel %vm4266, %v4417, %v4416
      %v4419 = vrot.slane %v4370, 1
      %v4420 = vsel %vm4269, %v4419, %v4418
      %v4421 = vrot.slane %v4372, 7
      %v4422 = vsel %vm4251, %v4421, %v4371
      %v4423 = vrot.slane %v4373, 6
      %v4424 = vsel %vm4254, %v4423, %v4422
      %v4425 = vrot.slane %v4374, 5
      %v4426 = vsel %vm4257, %v4425, %v4424
      %v4427 = vrot.slane %v4375, 4
      %v4428 = vsel %vm4260, %v4427, %v4426
      %v4429 = vrot.slane %v4376, 3
      %v4430 = vsel %vm4263, %v4429, %v4428
      %v4431 = vrot.slane %v4377, 2
      %v4432 = vsel %vm4266, %v4431, %v4430
      %v4433 = vrot.slane %v4378, 1
      %v4434 = vsel %vm4269, %v4433, %v4432
      %v4435 = vpack.c.b16 %v4406, %v4392
      %v4436 = vpack.c.b16 %v4434, %v4420
      %vm4437 = vsmask.f32 7424
      %v4439 = vshrl.u32 0, 16
      %v4441 = vshll.u32 0, 16
      %v4443 = vrot.slane %v4441, 1
      %v4444 = vor.u32 %v4439, %v4443
      %v4445 = vsel %vm4437, %v4444, %v4443
      %v4447 = vshll.u32 %v4313, 16
      %v4449 = vrot.slane %v4447, 1
      %v4450 = vsel %vm4437, %v4444, %v4449
      %v4451 = vshrl.u32 %v4313, 16
      %v4453 = vor.u32 %v4451, %v4449
      %v4455 = vshll.u32 %v4314, 16
      %v4457 = vrot.slane %v4455, 1
      %v4458 = vsel %vm4437, %v4453, %v4457
      %v4459 = vshrl.u32 %v4314, 16
      %v4461 = vor.u32 %v4459, %v4457
      %v4462 = vsel %vm4437, %v4461, %v4443
      %v4464 = vshll.u32 %v4435, 16
      %v4466 = vrot.slane %v4464, 1
      %v4467 = vsel %vm4437, %v4444, %v4466
      %v4468 = vshrl.u32 %v4435, 16
      %v4470 = vor.u32 %v4468, %v4466
      %v4472 = vshll.u32 %v4436, 16
      %v4474 = vrot.slane %v4472, 1
      %v4475 = vsel %vm4437, %v4470, %v4474
      %v4476 = vshrl.u32 %v4436, 16
      %v4478 = vor.u32 %v4476, %v4474
      %v4479 = vsel %vm4437, %v4478, %v4443
      %4480 = vrot.lane.b32.xlu0 %v4445, 32
      %v4481 = vpop.permute.xlu0 %4480
      %4482 = vrot.lane.b32.xlu0 %v4450, 32
      %v4483 = vpop.permute.xlu0 %4482
      %4484 = vrot.lane.b32.xlu0 %v4458, 32
      %v4485 = vpop.permute.xlu0 %4484
      %4486 = vrot.lane.b32.xlu0 %v4462, 32
      %v4487 = vpop.permute.xlu0 %4486
      %4488 = vrot.lane.b32.xlu0 %v4467, 32
      %v4489 = vpop.permute.xlu0 %4488
      %4490 = vrot.lane.b32.xlu0 %v4475, 32
      %v4491 = vpop.permute.xlu0 %4490
      %4492 = vrot.lane.b32.xlu0 %v4479, 32
      %v4493 = vpop.permute.xlu0 %4492
      %4494 = vrot.lane.b32.xlu0 %v4444, 32
      %v4495 = vpop.permute.xlu0 %4494
      %v4497 = vsel %vm1306, 0, %v4481
      %v4499 = vsel %vm1306, 0, %v4483
      %v4501 = vsel %vm1306, %v4313, %v4485
      %v4503 = vsel %vm1306, %v4314, %v4487
      %v4505 = vsel %vm1306, 0, %v4489
      %v4507 = vsel %vm1306, %v4435, %v4491
      %v4509 = vsel %vm1306, %v4436, %v4493
      %v4511 = vsel %vm1306, 0, %v4495
      %vm4520 = vcmask 1046528
      %v4521 = vrot.slane %v4497, 1
      %v4522 = vrot.slane %v4499, 1
      %v4523 = vsel %vm4520, %v4521, %v4522
      %v4524 = vrot.slane %v4501, 1
      %v4525 = vsel %vm4520, %v4522, %v4524
      %v4526 = vrot.slane %v4503, 1
      %v4527 = vsel %vm4520, %v4524, %v4526
      %v4528 = vsel %vm4520, %v4526, %v4521
      %v4529 = vsel %vm4520, %v4521, %v4521
      %v4530 = vrot.slane %v4505, 1
      %v4531 = vsel %vm4520, %v4521, %v4530
      %v4532 = vrot.slane %v4507, 1
      %v4533 = vsel %vm4520, %v4530, %v4532
      %v4534 = vrot.slane %v4509, 1
      %v4535 = vsel %vm4520, %v4532, %v4534
      %v4536 = vsel %vm4520, %v4534, %v4521
      %v4537 = vrot.slane %v4511, 1
      %v4538 = vsel %vm4520, %v4521, %v4537
      %4539 = vrot.lane.b32.xlu0 %v4523, 64
      %v4540 = vpop.permute.xlu0 %4539
      %4541 = vrot.lane.b32.xlu0 %v4525, 64
      %v4542 = vpop.permute.xlu0 %4541
      %4543 = vrot.lane.b32.xlu0 %v4527, 64
      %v4544 = vpop.permute.xlu0 %4543
      %4545 = vrot.lane.b32.xlu0 %v4528, 64
      %v4546 = vpop.permute.xlu0 %4545
      %4547 = vrot.lane.b32.xlu0 %v4529, 64
      %v4548 = vpop.permute.xlu0 %4547
      %4549 = vrot.lane.b32.xlu0 %v4531, 64
      %v4550 = vpop.permute.xlu0 %4549
      %4551 = vrot.lane.b32.xlu0 %v4533, 64
      %v4552 = vpop.permute.xlu0 %4551
      %4553 = vrot.lane.b32.xlu0 %v4535, 64
      %v4554 = vpop.permute.xlu0 %4553
      %4555 = vrot.lane.b32.xlu0 %v4536, 64
      %v4556 = vpop.permute.xlu0 %4555
      %4557 = vrot.lane.b32.xlu0 %v4538, 64
      %v4558 = vpop.permute.xlu0 %4557
      %4559 = vrot.lane.b32.xlu0 %v4537, 64
      %v4560 = vpop.permute.xlu0 %4559
      %v4562 = vsel %vm1414, %v4497, %v4540
      %v4565 = vsel %vm1414, %v4499, %v4542
      %v4568 = vsel %vm1414, %v4501, %v4544
      %v4571 = vsel %vm1414, %v4503, %v4546
      %v4574 = vsel %vm1414, %v4497, %v4548
      %v4577 = vsel %vm1414, %v4497, %v4550
      %v4580 = vsel %vm1414, %v4505, %v4552
      %v4583 = vsel %vm1414, %v4507, %v4554
      %v4586 = vsel %vm1414, %v4509, %v4556
      %v4589 = vsel %vm1414, %v4497, %v4558
      %v4592 = vsel %vm1414, %v4511, %v4560
      %vm4605 = vcmask 1045504
      %v4606 = vrot.slane %v4562, 2
      %v4607 = vrot.slane %v4565, 2
      %v4608 = vsel %vm4605, %v4606, %v4607
      %v4609 = vrot.slane %v4568, 2
      %v4610 = vsel %vm4605, %v4607, %v4609
      %v4611 = vrot.slane %v4571, 2
      %v4612 = vsel %vm4605, %v4609, %v4611
      %v4613 = vrot.slane %v4574, 2
      %v4614 = vsel %vm4605, %v4611, %v4613
      %v4615 = vsel %vm4605, %v4613, %v4613
      %v4616 = vrot.slane %v4577, 2
      %v4617 = vsel %vm4605, %v4613, %v4616
      %v4618 = vrot.slane %v4580, 2
      %v4619 = vsel %vm4605, %v4616, %v4618
      %v4620 = vrot.slane %v4583, 2
      %v4621 = vsel %vm4605, %v4618, %v4620
      %v4622 = vrot.slane %v4586, 2
      %v4623 = vsel %vm4605, %v4620, %v4622
      %v4624 = vrot.slane %v4589, 2
      %v4625 = vsel %vm4605, %v4622, %v4624
      %v4626 = vrot.slane %v4592, 2
      %v4627 = vsel %vm4605, %v4624, %v4626
      %vm4640 = vcmask 1043456
      %v4641 = vrot.slane %v4562, 4
      %v4642 = vrot.slane %v4565, 4
      %v4643 = vsel %vm4640, %v4641, %v4642
      %v4644 = vrot.slane %v4608, 4
      %v4645 = vrot.slane %v4610, 4
      %v4646 = vsel %vm4640, %v4644, %v4645
      %v4647 = vrot.slane %v4568, 4
      %v4648 = vsel %vm4640, %v4642, %v4647
      %v4649 = vrot.slane %v4612, 4
      %v4650 = vsel %vm4640, %v4645, %v4649
      %v4651 = vrot.slane %v4571, 4
      %v4652 = vsel %vm4640, %v4647, %v4651
      %v4653 = vrot.slane %v4614, 4
      %v4654 = vsel %vm4640, %v4649, %v4653
      %v4655 = vrot.slane %v4574, 4
      %v4656 = vsel %vm4640, %v4651, %v4655
      %v4657 = vrot.slane %v4615, 4
      %v4658 = vsel %vm4640, %v4653, %v4657
      %v4659 = vsel %vm4640, %v4655, %v4655
      %v4660 = vrot.slane %v4617, 4
      %v4661 = vsel %vm4640, %v4657, %v4660
      %v4662 = vrot.slane %v4577, 4
      %v4663 = vsel %vm4640, %v4655, %v4662
      %v4664 = vrot.slane %v4619, 4
      %v4665 = vsel %vm4640, %v4660, %v4664
      %v4666 = vrot.slane %v4580, 4
      %v4667 = vsel %vm4640, %v4662, %v4666
      %v4668 = vrot.slane %v4621, 4
      %v4669 = vsel %vm4640, %v4664, %v4668
      %v4670 = vrot.slane %v4583, 4
      %v4671 = vsel %vm4640, %v4666, %v4670
      %v4672 = vrot.slane %v4623, 4
      %v4673 = vsel %vm4640, %v4668, %v4672
      %v4674 = vrot.slane %v4586, 4
      %v4675 = vsel %vm4640, %v4670, %v4674
      %v4676 = vrot.slane %v4625, 4
      %v4677 = vsel %vm4640, %v4672, %v4676
      %v4678 = vrot.slane %v4589, 4
      %v4679 = vsel %vm4640, %v4674, %v4678
      %v4680 = vrot.slane %v4627, 4
      %v4681 = vsel %vm4640, %v4676, %v4680
      %v4682 = vrot.slane %v4592, 4
      %v4683 = vsel %vm4640, %v4678, %v4682
      %v4684 = vrot.slane %v4626, 4
      %v4685 = vsel %vm4640, %v4680, %v4684
      %v4710 = vld [vmem:[%s3] sm:$0xf]
      %v4711 = vld [vmem:[%s3 + $0x4] sm:$0xf]
      %v4712 = vld [vmem:[%s3 + $0x8] sm:$0xf]
      %v4713 = vld [vmem:[%s3 + $0xc] sm:$0xf]
      %v4714 = vld [vmem:[%s3 + $0x10] sm:$0xf]
      %v4715 = vld [vmem:[%s3 + $0x14] sm:$0xf]
      %v4716 = vld [vmem:[%s3 + $0x18] sm:$0xf]
      %v4717 = vld [vmem:[%s3 + $0x1c] sm:$0xf]
      %v4718 = vld [vmem:[%s3 + $0x20] sm:$0xf]
      %v4719 = vld [vmem:[%s3 + $0x24] sm:$0xf]
      %v4720 = vld [vmem:[%s3 + $0x28] sm:$0xf]
      %v4721 = vld [vmem:[%s3 + $0x2c] sm:$0xf]
      %v4722 = vld [vmem:[%s3 + $0x30] sm:$0xf]
      %v4723 = vld [vmem:[%s3 + $0x34] sm:$0xf]
      %v4724 = vld [vmem:[%s3 + $0x38] sm:$0xf]
      %v4725 = vld [vmem:[%s3 + $0x3c] sm:$0xf]
      %v4726 = vld [vmem:[%s3 + $0x40] sm:$0xf]
      %v4727 = vld [vmem:[%s3 + $0x44] sm:$0xf]
      %v4728 = vld [vmem:[%s3 + $0x48] sm:$0xf]
      %v4729 = vld [vmem:[%s3 + $0x4c] sm:$0xf]
      %v4730 = vld [vmem:[%s3 + $0x50] sm:$0xf]
      %v4731 = vld [vmem:[%s3 + $0x54] sm:$0xf]
      %v4732 = vld [vmem:[%s3 + $0x58] sm:$0xf]
      %v4733 = vld [vmem:[%s3 + $0x5c] sm:$0xf]
      %v4734 = vld [vmem:[%s3 + $0x60] sm:$0xf]
      %v4735 = vld [vmem:[%s3 + $0x64] sm:$0xf]
      %v4736 = vld [vmem:[%s3 + $0x68] sm:$0xf]
      %v4737 = vld [vmem:[%s3 + $0x6c] sm:$0xf]
      %v4738 = vld [vmem:[%s3 + $0x70] sm:$0xf]
      %v4739 = vld [vmem:[%s3 + $0x74] sm:$0xf]
      %v4740 = vld [vmem:[%s3 + $0x78] sm:$0xf]
      %v4741 = vld [vmem:[%s3 + $0x7c] sm:$0xf]
      %v4742 = vld [vmem:[%s3 + $0x80] sm:$0xf]
      %v4743 = vld [vmem:[%s3 + $0x84] sm:$0xf]
      %v4744 = vld [vmem:[%s3 + $0x88] sm:$0xf]
      %v4745 = vld [vmem:[%s3 + $0x8c] sm:$0xf]
      %v4746 = vld [vmem:[%s3 + $0x90] sm:$0xf]
      %v4747 = vld [vmem:[%s3 + $0x94] sm:$0xf]
      %v4748 = vld [vmem:[%s3 + $0x98] sm:$0xf]
      %v4749 = vld [vmem:[%s3 + $0x9c] sm:$0xf]
      %v4750 = vld [vmem:[%s3 + $0xa0] sm:$0xf]
      %v4751 = vld [vmem:[%s3 + $0xa4] sm:$0xf]
      %v4752 = vld [vmem:[%s3 + $0xa8] sm:$0xf]
      %v4753 = vld [vmem:[%s3 + $0xac] sm:$0xf]
      %v4754 = vld [vmem:[%s3 + $0xb0] sm:$0xf]
      %v4755 = vld [vmem:[%s3 + $0xb4] sm:$0xf]
      %v4756 = vld [vmem:[%s3 + $0xb8] sm:$0xf]
      %v4757 = vld [vmem:[%s3 + $0xbc] sm:$0xf]
      %v4758 = vld [vmem:[%s3 + $0xc0] sm:$0xf]
      %v4759 = vld [vmem:[%s3 + $0xc4] sm:$0xf]
      %v4760 = vld [vmem:[%s3 + $0xc8] sm:$0xf]
      %v4761 = vld [vmem:[%s3 + $0xcc] sm:$0xf]
      %v4762 = vld [vmem:[%s3 + $0xd0] sm:$0xf]
      %v4763 = vld [vmem:[%s3 + $0xd4] sm:$0xf]
      %v4764 = vld [vmem:[%s3 + $0xd8] sm:$0xf]
      %v4765 = vld [vmem:[%s3 + $0xdc] sm:$0xf]
      %v4766 = vld [vmem:[%s3 + $0xe0] sm:$0xf]
      %v4767 = vld [vmem:[%s3 + $0xe4] sm:$0xf]
      %v4768 = vld [vmem:[%s3 + $0xe8] sm:$0xf]
      %v4769 = vld [vmem:[%s3 + $0xec] sm:$0xf]
      %v4770 = vld [vmem:[%s3 + $0xf0] sm:$0xf]
      %v4771 = vld [vmem:[%s3 + $0xf4] sm:$0xf]
      %v4772 = vld [vmem:[%s3 + $0xf8] sm:$0xf]
      %v4773 = vld [vmem:[%s3 + $0xfc] sm:$0xf]
      %v4774 = vld [vmem:[%s3 + $0x100] sm:$0xf]
      %v4775 = vld [vmem:[%s3 + $0x104] sm:$0xf]
      %v4776 = vld [vmem:[%s3 + $0x108] sm:$0xf]
      %v4777 = vld [vmem:[%s3 + $0x10c] sm:$0xf]
      %v4778 = vld [vmem:[%s3 + $0x110] sm:$0xf]
      %v4779 = vld [vmem:[%s3 + $0x114] sm:$0xf]
      %v4780 = vld [vmem:[%s3 + $0x118] sm:$0xf]
      %v4781 = vld [vmem:[%s3 + $0x11c] sm:$0xf]
      %v4782 = vld [vmem:[%s3 + $0x120] sm:$0xf]
      %v4783 = vld [vmem:[%s3 + $0x124] sm:$0xf]
      %v4784 = vld [vmem:[%s3 + $0x128] sm:$0xf]
      %v4785 = vld [vmem:[%s3 + $0x12c] sm:$0xf]
      %v4786 = vld [vmem:[%s3 + $0x130] sm:$0xf]
      %v4787 = vld [vmem:[%s3 + $0x134] sm:$0xf]
      %v4788 = vld [vmem:[%s3 + $0x138] sm:$0xf]
      %v4789 = vld [vmem:[%s3 + $0x13c] sm:$0xf]
      %v4790 = vld [vmem:[%s3 + $0x140] sm:$0xf]
      %v4791 = vld [vmem:[%s3 + $0x144] sm:$0xf]
      %v4792 = vld [vmem:[%s3 + $0x148] sm:$0xf]
      %v4793 = vld [vmem:[%s3 + $0x14c] sm:$0xf]
      %v4794 = vld [vmem:[%s3 + $0x150] sm:$0xf]
      %v4795 = vld [vmem:[%s3 + $0x154] sm:$0xf]
      %v4796 = vld [vmem:[%s3 + $0x158] sm:$0xf]
      %v4797 = vld [vmem:[%s3 + $0x15c] sm:$0xf]
      %v4798 = vld [vmem:[%s3 + $0x160] sm:$0xf]
      %v4799 = vld [vmem:[%s3 + $0x164] sm:$0xf]
      %v4800 = vld [vmem:[%s3 + $0x168] sm:$0xf]
      %v4801 = vld [vmem:[%s3 + $0x16c] sm:$0xf]
      %v4802 = vld [vmem:[%s3 + $0x170] sm:$0xf]
      %v4803 = vld [vmem:[%s3 + $0x174] sm:$0xf]
      %v4804 = vld [vmem:[%s3 + $0x178] sm:$0xf]
      %v4805 = vld [vmem:[%s3 + $0x17c] sm:$0xf]
      %v4806 = vld [vmem:[%s3 + $0x180] sm:$0xf]
      %v4807 = vld [vmem:[%s3 + $0x184] sm:$0xf]
      %v4808 = vld [vmem:[%s3 + $0x188] sm:$0xf]
      %v4809 = vld [vmem:[%s3 + $0x18c] sm:$0xf]
      %v4810 = vld [vmem:[%s3 + $0x190] sm:$0xf]
      %v4811 = vld [vmem:[%s3 + $0x194] sm:$0xf]
      %v4812 = vld [vmem:[%s3 + $0x198] sm:$0xf]
      %v4813 = vld [vmem:[%s3 + $0x19c] sm:$0xf]
      %v4814 = vld [vmem:[%s3 + $0x1a0] sm:$0xf]
      %v4815 = vld [vmem:[%s3 + $0x1a4] sm:$0xf]
      %v4816 = vld [vmem:[%s3 + $0x1a8] sm:$0xf]
      %v4817 = vld [vmem:[%s3 + $0x1ac] sm:$0xf]
      %v4818 = vld [vmem:[%s3 + $0x1b0] sm:$0xf]
      %v4819 = vld [vmem:[%s3 + $0x1b4] sm:$0xf]
      %v4820 = vld [vmem:[%s3 + $0x1b8] sm:$0xf]
      %v4821 = vld [vmem:[%s3 + $0x1bc] sm:$0xf]
      %v4822 = vld [vmem:[%s3 + $0x1c0] sm:$0xf]
      %v4823 = vld [vmem:[%s3 + $0x1c4] sm:$0xf]
      %v4824 = vld [vmem:[%s3 + $0x1c8] sm:$0xf]
      %v4825 = vld [vmem:[%s3 + $0x1cc] sm:$0xf]
      %v4826 = vld [vmem:[%s3 + $0x1d0] sm:$0xf]
      %v4827 = vld [vmem:[%s3 + $0x1d4] sm:$0xf]
      %v4828 = vld [vmem:[%s3 + $0x1d8] sm:$0xf]
      %v4829 = vld [vmem:[%s3 + $0x1dc] sm:$0xf]
      %v4830 = vld [vmem:[%s3 + $0x1e0] sm:$0xf]
      %v4831 = vld [vmem:[%s3 + $0x1e4] sm:$0xf]
      %v4832 = vld [vmem:[%s3 + $0x1e8] sm:$0xf]
      %v4833 = vld [vmem:[%s3 + $0x1ec] sm:$0xf]
      %v4834 = vld [vmem:[%s3 + $0x1f0] sm:$0xf]
      %v4835 = vld [vmem:[%s3 + $0x1f4] sm:$0xf]
      %v4836 = vld [vmem:[%s3 + $0x1f8] sm:$0xf]
      %v4837 = vld [vmem:[%s3 + $0x1fc] sm:$0xf]
      %v4838 = vld [vmem:[%s3 + $0x200] sm:$0xf]
      %v4839 = vld [vmem:[%s3 + $0x204] sm:$0xf]
      %v4840 = vld [vmem:[%s3 + $0x208] sm:$0xf]
      %v4841 = vld [vmem:[%s3 + $0x20c] sm:$0xf]
      %v4842 = vld [vmem:[%s3 + $0x210] sm:$0xf]
      %v4843 = vld [vmem:[%s3 + $0x214] sm:$0xf]
      %v4844 = vld [vmem:[%s3 + $0x218] sm:$0xf]
      %v4845 = vld [vmem:[%s3 + $0x21c] sm:$0xf]
      %v4846 = vld [vmem:[%s3 + $0x220] sm:$0xf]
      %v4847 = vld [vmem:[%s3 + $0x224] sm:$0xf]
      %v4848 = vld [vmem:[%s3 + $0x228] sm:$0xf]
      %v4849 = vld [vmem:[%s3 + $0x22c] sm:$0xf]
      %v4850 = vld [vmem:[%s3 + $0x230] sm:$0xf]
      %v4851 = vld [vmem:[%s3 + $0x234] sm:$0xf]
      %v4852 = vld [vmem:[%s3 + $0x238] sm:$0xf]
      %v4853 = vld [vmem:[%s3 + $0x23c] sm:$0xf]
      %v4854 = vld [vmem:[%s3 + $0x240] sm:$0xf]
      %v4855 = vld [vmem:[%s3 + $0x244] sm:$0xf]
      %v4856 = vld [vmem:[%s3 + $0x248] sm:$0xf]
      %v4857 = vld [vmem:[%s3 + $0x24c] sm:$0xf]
      %v4858 = vld [vmem:[%s3 + $0x250] sm:$0xf]
      %v4859 = vld [vmem:[%s3 + $0x254] sm:$0xf]
      %v4860 = vld [vmem:[%s3 + $0x258] sm:$0xf]
      %v4861 = vld [vmem:[%s3 + $0x25c] sm:$0xf]
      %v4862 = vld [vmem:[%s3 + $0x260] sm:$0xf]
      %v4863 = vld [vmem:[%s3 + $0x264] sm:$0xf]
      %v4864 = vld [vmem:[%s3 + $0x268] sm:$0xf]
      %v4865 = vld [vmem:[%s3 + $0x26c] sm:$0xf]
      %v4866 = vld [vmem:[%s3 + $0x270] sm:$0xf]
      %v4867 = vld [vmem:[%s3 + $0x274] sm:$0xf]
      %v4868 = vld [vmem:[%s3 + $0x278] sm:$0xf]
      %v4869 = vld [vmem:[%s3 + $0x27c] sm:$0xf]
      %v4870 = vld [vmem:[%s3 + $0x280] sm:$0xf]
      %v4871 = vld [vmem:[%s3 + $0x284] sm:$0xf]
      %v4872 = vld [vmem:[%s3 + $0x288] sm:$0xf]
      %v4873 = vld [vmem:[%s3 + $0x28c] sm:$0xf]
      %v4874 = vld [vmem:[%s3 + $0x290] sm:$0xf]
      %v4875 = vld [vmem:[%s3 + $0x294] sm:$0xf]
      %v4876 = vld [vmem:[%s3 + $0x298] sm:$0xf]
      %v4877 = vld [vmem:[%s3 + $0x29c] sm:$0xf]
      %v4878 = vld [vmem:[%s3 + $0x2a0] sm:$0xf]
      %v4879 = vld [vmem:[%s3 + $0x2a4] sm:$0xf]
      %v4880 = vld [vmem:[%s3 + $0x2a8] sm:$0xf]
      %v4881 = vld [vmem:[%s3 + $0x2ac] sm:$0xf]
      %v4882 = vld [vmem:[%s3 + $0x2b0] sm:$0xf]
      %v4883 = vld [vmem:[%s3 + $0x2b4] sm:$0xf]
      %v4884 = vld [vmem:[%s3 + $0x2b8] sm:$0xf]
      %v4885 = vld [vmem:[%s3 + $0x2bc] sm:$0xf]
      %v4886 = vld [vmem:[%s3 + $0x2c0] sm:$0xf]
      %v4887 = vld [vmem:[%s3 + $0x2c4] sm:$0xf]
      %v4888 = vld [vmem:[%s3 + $0x2c8] sm:$0xf]
      %v4889 = vld [vmem:[%s3 + $0x2cc] sm:$0xf]
      %v4890 = vld [vmem:[%s3 + $0x2d0] sm:$0xf]
      %v4891 = vld [vmem:[%s3 + $0x2d4] sm:$0xf]
      %v4892 = vld [vmem:[%s3 + $0x2d8] sm:$0xf]
      %v4893 = vld [vmem:[%s3 + $0x2dc] sm:$0xf]
      %v4894 = vld [vmem:[%s3 + $0x2e0] sm:$0xf]
      %v4895 = vld [vmem:[%s3 + $0x2e4] sm:$0xf]
      %v4896 = vld [vmem:[%s3 + $0x2e8] sm:$0xf]
      %v4897 = vld [vmem:[%s3 + $0x2ec] sm:$0xf]
      %v4898 = vld [vmem:[%s3 + $0x2f0] sm:$0xf]
      %v4899 = vld [vmem:[%s3 + $0x2f4] sm:$0xf]
      %v4900 = vld [vmem:[%s3 + $0x2f8] sm:$0xf]
      %v4901 = vld [vmem:[%s3 + $0x2fc] sm:$0xf]
      %v4902 = vld [vmem:[%s3 + $0x300] sm:$0xf]
      %v4903 = vld [vmem:[%s3 + $0x304] sm:$0xf]
      %v4904 = vld [vmem:[%s3 + $0x308] sm:$0xf]
      %v4905 = vld [vmem:[%s3 + $0x30c] sm:$0xf]
      %v4906 = vld [vmem:[%s3 + $0x310] sm:$0xf]
      %v4907 = vld [vmem:[%s3 + $0x314] sm:$0xf]
      %v4908 = vld [vmem:[%s3 + $0x318] sm:$0xf]
      %v4909 = vld [vmem:[%s3 + $0x31c] sm:$0xf]
      %v4910 = vld [vmem:[%s3 + $0x320] sm:$0xf]
      %v4911 = vld [vmem:[%s3 + $0x324] sm:$0xf]
      %v4912 = vld [vmem:[%s3 + $0x328] sm:$0xf]
      %v4913 = vld [vmem:[%s3 + $0x32c] sm:$0xf]
      %v4914 = vld [vmem:[%s3 + $0x330] sm:$0xf]
      %v4915 = vld [vmem:[%s3 + $0x334] sm:$0xf]
      %v4916 = vld [vmem:[%s3 + $0x338] sm:$0xf]
      %v4917 = vld [vmem:[%s3 + $0x33c] sm:$0xf]
      %v4918 = vld [vmem:[%s3 + $0x340] sm:$0xf]
      %v4919 = vld [vmem:[%s3 + $0x344] sm:$0xf]
      %v4920 = vld [vmem:[%s3 + $0x348] sm:$0xf]
      %v4921 = vld [vmem:[%s3 + $0x34c] sm:$0xf]
      %v4922 = vld [vmem:[%s3 + $0x350] sm:$0xf]
      %v4923 = vld [vmem:[%s3 + $0x354] sm:$0xf]
      %v4924 = vld [vmem:[%s3 + $0x358] sm:$0xf]
      %v4925 = vld [vmem:[%s3 + $0x35c] sm:$0xf]
      %v4926 = vld [vmem:[%s3 + $0x360] sm:$0xf]
      %v4927 = vld [vmem:[%s3 + $0x364] sm:$0xf]
      %v4928 = vld [vmem:[%s3 + $0x368] sm:$0xf]
      %v4929 = vld [vmem:[%s3 + $0x36c] sm:$0xf]
      %v4930 = vld [vmem:[%s3 + $0x370] sm:$0xf]
      %v4931 = vld [vmem:[%s3 + $0x374] sm:$0xf]
      %v4932 = vld [vmem:[%s3 + $0x378] sm:$0xf]
      %v4933 = vld [vmem:[%s3 + $0x37c] sm:$0xf]
      %v4934 = vld [vmem:[%s3 + $0x380] sm:$0xf]
      %v4935 = vld [vmem:[%s3 + $0x384] sm:$0xf]
      %v4936 = vld [vmem:[%s3 + $0x388] sm:$0xf]
      %v4937 = vld [vmem:[%s3 + $0x38c] sm:$0xf]
      %v4938 = vld [vmem:[%s3 + $0x390] sm:$0xf]
      %v4939 = vld [vmem:[%s3 + $0x394] sm:$0xf]
      %v4940 = vld [vmem:[%s3 + $0x398] sm:$0xf]
      %v4941 = vld [vmem:[%s3 + $0x39c] sm:$0xf]
      %v4942 = vld [vmem:[%s3 + $0x3a0] sm:$0xf]
      %v4943 = vld [vmem:[%s3 + $0x3a4] sm:$0xf]
      %v4944 = vld [vmem:[%s3 + $0x3a8] sm:$0xf]
      %v4945 = vld [vmem:[%s3 + $0x3ac] sm:$0xf]
      %v4946 = vld [vmem:[%s3 + $0x3b0] sm:$0xf]
      %v4947 = vld [vmem:[%s3 + $0x3b4] sm:$0xf]
      %v4948 = vld [vmem:[%s3 + $0x3b8] sm:$0xf]
      %v4949 = vld [vmem:[%s3 + $0x3bc] sm:$0xf]
      %v4950 = vld [vmem:[%s3 + $0x3c0] sm:$0xf]
      %v4951 = vld [vmem:[%s3 + $0x3c4] sm:$0xf]
      %v4952 = vld [vmem:[%s3 + $0x3c8] sm:$0xf]
      %v4953 = vld [vmem:[%s3 + $0x3cc] sm:$0xf]
      %v4954 = vld [vmem:[%s3 + $0x3d0] sm:$0xf]
      %v4955 = vld [vmem:[%s3 + $0x3d4] sm:$0xf]
      %v4956 = vld [vmem:[%s3 + $0x3d8] sm:$0xf]
      %v4957 = vld [vmem:[%s3 + $0x3dc] sm:$0xf]
      %v4958 = vld [vmem:[%s3 + $0x3e0] sm:$0xf]
      %v4959 = vld [vmem:[%s3 + $0x3e4] sm:$0xf]
      %v4960 = vld [vmem:[%s3 + $0x3e8] sm:$0xf]
      %v4961 = vld [vmem:[%s3 + $0x3ec] sm:$0xf]
      %v4962 = vld [vmem:[%s3 + $0x3f0] sm:$0xf]
      %v4963 = vld [vmem:[%s3 + $0x3f4] sm:$0xf]
      %v4964 = vld [vmem:[%s3 + $0x3f8] sm:$0xf]
      %v4965 = vld [vmem:[%s3 + $0x3fc] sm:$0xf]
      %v5222 = vunpack.c.l.b16 %v4710
      %v5223 = vunpack.c.l.b16 %v4711
      %v5224 = vunpack.c.l.b16 %v4712
      %v5225 = vunpack.c.l.b16 %v4713
      %v5226 = vunpack.c.l.b16 %v4714
      %v5227 = vunpack.c.l.b16 %v4715
      %v5228 = vunpack.c.l.b16 %v4716
      %v5229 = vunpack.c.l.b16 %v4717
      %v5230 = vunpack.c.l.b16 %v4718
      %v5231 = vunpack.c.l.b16 %v4719
      %v5232 = vunpack.c.l.b16 %v4720
      %v5233 = vunpack.c.l.b16 %v4721
      %v5234 = vunpack.c.l.b16 %v4722
      %v5235 = vunpack.c.l.b16 %v4723
      %v5236 = vunpack.c.l.b16 %v4724
      %v5237 = vunpack.c.l.b16 %v4725
      %v5238 = vunpack.c.l.b16 %v4726
      %v5239 = vunpack.c.l.b16 %v4727
      %v5240 = vunpack.c.l.b16 %v4728
      %v5241 = vunpack.c.l.b16 %v4729
      %v5242 = vunpack.c.l.b16 %v4730
      %v5243 = vunpack.c.l.b16 %v4731
      %v5244 = vunpack.c.l.b16 %v4732
      %v5245 = vunpack.c.l.b16 %v4733
      %v5246 = vunpack.c.l.b16 %v4734
      %v5247 = vunpack.c.l.b16 %v4735
      %v5248 = vunpack.c.l.b16 %v4736
      %v5249 = vunpack.c.l.b16 %v4737
      %v5250 = vunpack.c.l.b16 %v4738
      %v5251 = vunpack.c.l.b16 %v4739
      %v5252 = vunpack.c.l.b16 %v4740
      %v5253 = vunpack.c.l.b16 %v4741
      %v5254 = vunpack.c.l.b16 %v4742
      %v5255 = vunpack.c.l.b16 %v4743
      %v5256 = vunpack.c.l.b16 %v4744
      %v5257 = vunpack.c.l.b16 %v4745
      %v5258 = vunpack.c.l.b16 %v4746
      %v5259 = vunpack.c.l.b16 %v4747
      %v5260 = vunpack.c.l.b16 %v4748
      %v5261 = vunpack.c.l.b16 %v4749
      %v5262 = vunpack.c.l.b16 %v4750
      %v5263 = vunpack.c.l.b16 %v4751
      %v5264 = vunpack.c.l.b16 %v4752
      %v5265 = vunpack.c.l.b16 %v4753
      %v5266 = vunpack.c.l.b16 %v4754
      %v5267 = vunpack.c.l.b16 %v4755
      %v5268 = vunpack.c.l.b16 %v4756
      %v5269 = vunpack.c.l.b16 %v4757
      %v5270 = vunpack.c.l.b16 %v4758
      %v5271 = vunpack.c.l.b16 %v4759
      %v5272 = vunpack.c.l.b16 %v4760
      %v5273 = vunpack.c.l.b16 %v4761
      %v5274 = vunpack.c.l.b16 %v4762
      %v5275 = vunpack.c.l.b16 %v4763
      %v5276 = vunpack.c.l.b16 %v4764
      %v5277 = vunpack.c.l.b16 %v4765
      %v5278 = vunpack.c.l.b16 %v4766
      %v5279 = vunpack.c.l.b16 %v4767
      %v5280 = vunpack.c.l.b16 %v4768
      %v5281 = vunpack.c.l.b16 %v4769
      %v5282 = vunpack.c.l.b16 %v4770
      %v5283 = vunpack.c.l.b16 %v4771
      %v5284 = vunpack.c.l.b16 %v4772
      %v5285 = vunpack.c.l.b16 %v4773
      %v5286 = vunpack.c.l.b16 %v4774
      %v5287 = vunpack.c.l.b16 %v4775
      %v5288 = vunpack.c.l.b16 %v4776
      %v5289 = vunpack.c.l.b16 %v4777
      %v5290 = vunpack.c.l.b16 %v4778
      %v5291 = vunpack.c.l.b16 %v4779
      %v5292 = vunpack.c.l.b16 %v4780
      %v5293 = vunpack.c.l.b16 %v4781
      %v5294 = vunpack.c.l.b16 %v4782
      %v5295 = vunpack.c.l.b16 %v4783
      %v5296 = vunpack.c.l.b16 %v4784
      %v5297 = vunpack.c.l.b16 %v4785
      %v5298 = vunpack.c.l.b16 %v4786
      %v5299 = vunpack.c.l.b16 %v4787
      %v5300 = vunpack.c.l.b16 %v4788
      %v5301 = vunpack.c.l.b16 %v4789
      %v5302 = vunpack.c.l.b16 %v4790
      %v5303 = vunpack.c.l.b16 %v4791
      %v5304 = vunpack.c.l.b16 %v4792
      %v5305 = vunpack.c.l.b16 %v4793
      %v5306 = vunpack.c.l.b16 %v4794
      %v5307 = vunpack.c.l.b16 %v4795
      %v5308 = vunpack.c.l.b16 %v4796
      %v5309 = vunpack.c.l.b16 %v4797
      %v5310 = vunpack.c.l.b16 %v4798
      %v5311 = vunpack.c.l.b16 %v4799
      %v5312 = vunpack.c.l.b16 %v4800
      %v5313 = vunpack.c.l.b16 %v4801
      %v5314 = vunpack.c.l.b16 %v4802
      %v5315 = vunpack.c.l.b16 %v4803
      %v5316 = vunpack.c.l.b16 %v4804
      %v5317 = vunpack.c.l.b16 %v4805
      %v5318 = vunpack.c.l.b16 %v4806
      %v5319 = vunpack.c.l.b16 %v4807
      %v5320 = vunpack.c.l.b16 %v4808
      %v5321 = vunpack.c.l.b16 %v4809
      %v5322 = vunpack.c.l.b16 %v4810
      %v5323 = vunpack.c.l.b16 %v4811
      %v5324 = vunpack.c.l.b16 %v4812
      %v5325 = vunpack.c.l.b16 %v4813
      %v5326 = vunpack.c.l.b16 %v4814
      %v5327 = vunpack.c.l.b16 %v4815
      %v5328 = vunpack.c.l.b16 %v4816
      %v5329 = vunpack.c.l.b16 %v4817
      %v5330 = vunpack.c.l.b16 %v4818
      %v5331 = vunpack.c.l.b16 %v4819
      %v5332 = vunpack.c.l.b16 %v4820
      %v5333 = vunpack.c.l.b16 %v4821
      %v5334 = vunpack.c.l.b16 %v4822
      %v5335 = vunpack.c.l.b16 %v4823
      %v5336 = vunpack.c.l.b16 %v4824
      %v5337 = vunpack.c.l.b16 %v4825
      %v5338 = vunpack.c.l.b16 %v4826
      %v5339 = vunpack.c.l.b16 %v4827
      %v5340 = vunpack.c.l.b16 %v4828
      %v5341 = vunpack.c.l.b16 %v4829
      %v5342 = vunpack.c.l.b16 %v4830
      %v5343 = vunpack.c.l.b16 %v4831
      %v5344 = vunpack.c.l.b16 %v4832
      %v5345 = vunpack.c.l.b16 %v4833
      %v5346 = vunpack.c.l.b16 %v4834
      %v5347 = vunpack.c.l.b16 %v4835
      %v5348 = vunpack.c.l.b16 %v4836
      %v5349 = vunpack.c.l.b16 %v4837
      %v5350 = vunpack.c.l.b16 %v4838
      %v5351 = vunpack.c.l.b16 %v4839
      %v5352 = vunpack.c.l.b16 %v4840
      %v5353 = vunpack.c.l.b16 %v4841
      %v5354 = vunpack.c.l.b16 %v4842
      %v5355 = vunpack.c.l.b16 %v4843
      %v5356 = vunpack.c.l.b16 %v4844
      %v5357 = vunpack.c.l.b16 %v4845
      %v5358 = vunpack.c.l.b16 %v4846
      %v5359 = vunpack.c.l.b16 %v4847
      %v5360 = vunpack.c.l.b16 %v4848
      %v5361 = vunpack.c.l.b16 %v4849
      %v5362 = vunpack.c.l.b16 %v4850
      %v5363 = vunpack.c.l.b16 %v4851
      %v5364 = vunpack.c.l.b16 %v4852
      %v5365 = vunpack.c.l.b16 %v4853
      %v5366 = vunpack.c.l.b16 %v4854
      %v5367 = vunpack.c.l.b16 %v4855
      %v5368 = vunpack.c.l.b16 %v4856
      %v5369 = vunpack.c.l.b16 %v4857
      %v5370 = vunpack.c.l.b16 %v4858
      %v5371 = vunpack.c.l.b16 %v4859
      %v5372 = vunpack.c.l.b16 %v4860
      %v5373 = vunpack.c.l.b16 %v4861
      %v5374 = vunpack.c.l.b16 %v4862
      %v5375 = vunpack.c.l.b16 %v4863
      %v5376 = vunpack.c.l.b16 %v4864
      %v5377 = vunpack.c.l.b16 %v4865
      %v5378 = vunpack.c.l.b16 %v4866
      %v5379 = vunpack.c.l.b16 %v4867
      %v5380 = vunpack.c.l.b16 %v4868
      %v5381 = vunpack.c.l.b16 %v4869
      %v5382 = vunpack.c.l.b16 %v4870
      %v5383 = vunpack.c.l.b16 %v4871
      %v5384 = vunpack.c.l.b16 %v4872
      %v5385 = vunpack.c.l.b16 %v4873
      %v5386 = vunpack.c.l.b16 %v4874
      %v5387 = vunpack.c.l.b16 %v4875
      %v5388 = vunpack.c.l.b16 %v4876
      %v5389 = vunpack.c.l.b16 %v4877
      %v5390 = vunpack.c.l.b16 %v4878
      %v5391 = vunpack.c.l.b16 %v4879
      %v5392 = vunpack.c.l.b16 %v4880
      %v5393 = vunpack.c.l.b16 %v4881
      %v5394 = vunpack.c.l.b16 %v4882
      %v5395 = vunpack.c.l.b16 %v4883
      %v5396 = vunpack.c.l.b16 %v4884
      %v5397 = vunpack.c.l.b16 %v4885
      %v5398 = vunpack.c.l.b16 %v4886
      %v5399 = vunpack.c.l.b16 %v4887
      %v5400 = vunpack.c.l.b16 %v4888
      %v5401 = vunpack.c.l.b16 %v4889
      %v5402 = vunpack.c.l.b16 %v4890
      %v5403 = vunpack.c.l.b16 %v4891
      %v5404 = vunpack.c.l.b16 %v4892
      %v5405 = vunpack.c.l.b16 %v4893
      %v5406 = vunpack.c.l.b16 %v4894
      %v5407 = vunpack.c.l.b16 %v4895
      %v5408 = vunpack.c.l.b16 %v4896
      %v5409 = vunpack.c.l.b16 %v4897
      %v5410 = vunpack.c.l.b16 %v4898
      %v5411 = vunpack.c.l.b16 %v4899
      %v5412 = vunpack.c.l.b16 %v4900
      %v5413 = vunpack.c.l.b16 %v4901
      %v5414 = vunpack.c.l.b16 %v4902
      %v5415 = vunpack.c.l.b16 %v4903
      %v5416 = vunpack.c.l.b16 %v4904
      %v5417 = vunpack.c.l.b16 %v4905
      %v5418 = vunpack.c.l.b16 %v4906
      %v5419 = vunpack.c.l.b16 %v4907
      %v5420 = vunpack.c.l.b16 %v4908
      %v5421 = vunpack.c.l.b16 %v4909
      %v5422 = vunpack.c.l.b16 %v4910
      %v5423 = vunpack.c.l.b16 %v4911
      %v5424 = vunpack.c.l.b16 %v4912
      %v5425 = vunpack.c.l.b16 %v4913
      %v5426 = vunpack.c.l.b16 %v4914
      %v5427 = vunpack.c.l.b16 %v4915
      %v5428 = vunpack.c.l.b16 %v4916
      %v5429 = vunpack.c.l.b16 %v4917
      %v5430 = vunpack.c.l.b16 %v4918
      %v5431 = vunpack.c.l.b16 %v4919
      %v5432 = vunpack.c.l.b16 %v4920
      %v5433 = vunpack.c.l.b16 %v4921
      %v5434 = vunpack.c.l.b16 %v4922
      %v5435 = vunpack.c.l.b16 %v4923
      %v5436 = vunpack.c.l.b16 %v4924
      %v5437 = vunpack.c.l.b16 %v4925
      %v5438 = vunpack.c.l.b16 %v4926
      %v5439 = vunpack.c.l.b16 %v4927
      %v5440 = vunpack.c.l.b16 %v4928
      %v5441 = vunpack.c.l.b16 %v4929
      %v5442 = vunpack.c.l.b16 %v4930
      %v5443 = vunpack.c.l.b16 %v4931
      %v5444 = vunpack.c.l.b16 %v4932
      %v5445 = vunpack.c.l.b16 %v4933
      %v5446 = vunpack.c.l.b16 %v4934
      %v5447 = vunpack.c.l.b16 %v4935
      %v5448 = vunpack.c.l.b16 %v4936
      %v5449 = vunpack.c.l.b16 %v4937
      %v5450 = vunpack.c.l.b16 %v4938
      %v5451 = vunpack.c.l.b16 %v4939
      %v5452 = vunpack.c.l.b16 %v4940
      %v5453 = vunpack.c.l.b16 %v4941
      %v5454 = vunpack.c.l.b16 %v4942
      %v5455 = vunpack.c.l.b16 %v4943
      %v5456 = vunpack.c.l.b16 %v4944
      %v5457 = vunpack.c.l.b16 %v4945
      %v5458 = vunpack.c.l.b16 %v4946
      %v5459 = vunpack.c.l.b16 %v4947
      %v5460 = vunpack.c.l.b16 %v4948
      %v5461 = vunpack.c.l.b16 %v4949
      %v5462 = vunpack.c.l.b16 %v4950
      %v5463 = vunpack.c.l.b16 %v4951
      %v5464 = vunpack.c.l.b16 %v4952
      %v5465 = vunpack.c.l.b16 %v4953
      %v5466 = vunpack.c.l.b16 %v4954
      %v5467 = vunpack.c.l.b16 %v4955
      %v5468 = vunpack.c.l.b16 %v4956
      %v5469 = vunpack.c.l.b16 %v4957
      %v5470 = vunpack.c.l.b16 %v4958
      %v5471 = vunpack.c.l.b16 %v4959
      %v5472 = vunpack.c.l.b16 %v4960
      %v5473 = vunpack.c.l.b16 %v4961
      %v5474 = vunpack.c.l.b16 %v4962
      %v5475 = vunpack.c.l.b16 %v4963
      %v5476 = vunpack.c.l.b16 %v4964
      %v5477 = vunpack.c.l.b16 %v4965
      %v5478 = vpack.c.b16 %v5223, %v5222
      %v5479 = vpack.c.b16 %v5225, %v5224
      %v5480 = vpack.c.b16 %v5227, %v5226
      %v5481 = vpack.c.b16 %v5229, %v5228
      %v5482 = vpack.c.b16 %v5231, %v5230
      %v5483 = vpack.c.b16 %v5233, %v5232
      %v5484 = vpack.c.b16 %v5235, %v5234
      %v5485 = vpack.c.b16 %v5237, %v5236
      %v5486 = vpack.c.b16 %v5239, %v5238
      %v5487 = vpack.c.b16 %v5241, %v5240
      %v5488 = vpack.c.b16 %v5243, %v5242
      %v5489 = vpack.c.b16 %v5245, %v5244
      %v5490 = vpack.c.b16 %v5247, %v5246
      %v5491 = vpack.c.b16 %v5249, %v5248
      %v5492 = vpack.c.b16 %v5251, %v5250
      %v5493 = vpack.c.b16 %v5253, %v5252
      %v5494 = vpack.c.b16 %v5255, %v5254
      %v5495 = vpack.c.b16 %v5257, %v5256
      %v5496 = vpack.c.b16 %v5259, %v5258
      %v5497 = vpack.c.b16 %v5261, %v5260
      %v5498 = vpack.c.b16 %v5263, %v5262
      %v5499 = vpack.c.b16 %v5265, %v5264
      %v5500 = vpack.c.b16 %v5267, %v5266
      %v5501 = vpack.c.b16 %v5269, %v5268
      %v5502 = vpack.c.b16 %v5271, %v5270
      %v5503 = vpack.c.b16 %v5273, %v5272
      %v5504 = vpack.c.b16 %v5275, %v5274
      %v5505 = vpack.c.b16 %v5277, %v5276
      %v5506 = vpack.c.b16 %v5279, %v5278
      %v5507 = vpack.c.b16 %v5281, %v5280
      %v5508 = vpack.c.b16 %v5283, %v5282
      %v5509 = vpack.c.b16 %v5285, %v5284
      %v5510 = vpack.c.b16 %v5287, %v5286
      %v5511 = vpack.c.b16 %v5289, %v5288
      %v5512 = vpack.c.b16 %v5291, %v5290
      %v5513 = vpack.c.b16 %v5293, %v5292
      %v5514 = vpack.c.b16 %v5295, %v5294
      %v5515 = vpack.c.b16 %v5297, %v5296
      %v5516 = vpack.c.b16 %v5299, %v5298
      %v5517 = vpack.c.b16 %v5301, %v5300
      %v5518 = vpack.c.b16 %v5303, %v5302
      %v5519 = vpack.c.b16 %v5305, %v5304
      %v5520 = vpack.c.b16 %v5307, %v5306
      %v5521 = vpack.c.b16 %v5309, %v5308
      %v5522 = vpack.c.b16 %v5311, %v5310
      %v5523 = vpack.c.b16 %v5313, %v5312
      %v5524 = vpack.c.b16 %v5315, %v5314
      %v5525 = vpack.c.b16 %v5317, %v5316
      %v5526 = vpack.c.b16 %v5319, %v5318
      %v5527 = vpack.c.b16 %v5321, %v5320
      %v5528 = vpack.c.b16 %v5323, %v5322
      %v5529 = vpack.c.b16 %v5325, %v5324
      %v5530 = vpack.c.b16 %v5327, %v5326
      %v5531 = vpack.c.b16 %v5329, %v5328
      %v5532 = vpack.c.b16 %v5331, %v5330
      %v5533 = vpack.c.b16 %v5333, %v5332
      %v5534 = vpack.c.b16 %v5335, %v5334
      %v5535 = vpack.c.b16 %v5337, %v5336
      %v5536 = vpack.c.b16 %v5339, %v5338
      %v5537 = vpack.c.b16 %v5341, %v5340
      %v5538 = vpack.c.b16 %v5343, %v5342
      %v5539 = vpack.c.b16 %v5345, %v5344
      %v5540 = vpack.c.b16 %v5347, %v5346
      %v5541 = vpack.c.b16 %v5349, %v5348
      %v5542 = vpack.c.b16 %v5351, %v5350
      %v5543 = vpack.c.b16 %v5353, %v5352
      %v5544 = vpack.c.b16 %v5355, %v5354
      %v5545 = vpack.c.b16 %v5357, %v5356
      %v5546 = vpack.c.b16 %v5359, %v5358
      %v5547 = vpack.c.b16 %v5361, %v5360
      %v5548 = vpack.c.b16 %v5363, %v5362
      %v5549 = vpack.c.b16 %v5365, %v5364
      %v5550 = vpack.c.b16 %v5367, %v5366
      %v5551 = vpack.c.b16 %v5369, %v5368
      %v5552 = vpack.c.b16 %v5371, %v5370
      %v5553 = vpack.c.b16 %v5373, %v5372
      %v5554 = vpack.c.b16 %v5375, %v5374
      %v5555 = vpack.c.b16 %v5377, %v5376
      %v5556 = vpack.c.b16 %v5379, %v5378
      %v5557 = vpack.c.b16 %v5381, %v5380
      %v5558 = vpack.c.b16 %v5383, %v5382
      %v5559 = vpack.c.b16 %v5385, %v5384
      %v5560 = vpack.c.b16 %v5387, %v5386
      %v5561 = vpack.c.b16 %v5389, %v5388
      %v5562 = vpack.c.b16 %v5391, %v5390
      %v5563 = vpack.c.b16 %v5393, %v5392
      %v5564 = vpack.c.b16 %v5395, %v5394
      %v5565 = vpack.c.b16 %v5397, %v5396
      %v5566 = vpack.c.b16 %v5399, %v5398
      %v5567 = vpack.c.b16 %v5401, %v5400
      %v5568 = vpack.c.b16 %v5403, %v5402
      %v5569 = vpack.c.b16 %v5405, %v5404
      %v5570 = vpack.c.b16 %v5407, %v5406
      %v5571 = vpack.c.b16 %v5409, %v5408
      %v5572 = vpack.c.b16 %v5411, %v5410
      %v5573 = vpack.c.b16 %v5413, %v5412
      %v5574 = vpack.c.b16 %v5415, %v5414
      %v5575 = vpack.c.b16 %v5417, %v5416
      %v5576 = vpack.c.b16 %v5419, %v5418
      %v5577 = vpack.c.b16 %v5421, %v5420
      %v5578 = vpack.c.b16 %v5423, %v5422
      %v5579 = vpack.c.b16 %v5425, %v5424
      %v5580 = vpack.c.b16 %v5427, %v5426
      %v5581 = vpack.c.b16 %v5429, %v5428
      %v5582 = vpack.c.b16 %v5431, %v5430
      %v5583 = vpack.c.b16 %v5433, %v5432
      %v5584 = vpack.c.b16 %v5435, %v5434
      %v5585 = vpack.c.b16 %v5437, %v5436
      %v5586 = vpack.c.b16 %v5439, %v5438
      %v5587 = vpack.c.b16 %v5441, %v5440
      %v5588 = vpack.c.b16 %v5443, %v5442
      %v5589 = vpack.c.b16 %v5445, %v5444
      %v5590 = vpack.c.b16 %v5447, %v5446
      %v5591 = vpack.c.b16 %v5449, %v5448
      %v5592 = vpack.c.b16 %v5451, %v5450
      %v5593 = vpack.c.b16 %v5453, %v5452
      %v5594 = vpack.c.b16 %v5455, %v5454
      %v5595 = vpack.c.b16 %v5457, %v5456
      %v5596 = vpack.c.b16 %v5459, %v5458
      %v5597 = vpack.c.b16 %v5461, %v5460
      %v5598 = vpack.c.b16 %v5463, %v5462
      %v5599 = vpack.c.b16 %v5465, %v5464
      %v5600 = vpack.c.b16 %v5467, %v5466
      %v5601 = vpack.c.b16 %v5469, %v5468
      %v5602 = vpack.c.b16 %v5471, %v5470
      %v5603 = vpack.c.b16 %v5473, %v5472
      %v5604 = vpack.c.b16 %v5475, %v5474
      %v5605 = vpack.c.b16 %v5477, %v5476
      %5734 = vmatprep.subr.bf16.mxu0 0
      %5735 = vmatpush1.bf16.msra.mxu0 %v5485
      %5736 = vmatprep.subr.bf16.mxu0 0
      %5737 = vmatpush1.bf16.msra.mxu0 %v5484
      %5738 = vmatprep.subr.bf16.mxu0 0
      %5739 = vmatpush1.bf16.msra.mxu0 %v5483
      %5740 = vmatprep.subr.bf16.mxu0 0
      %5741 = vmatpush1.bf16.msra.mxu0 %v5482
      %5742 = vmatprep.subr.bf16.mxu0 0
      %5743 = vmatpush1.bf16.msra.mxu0 %v5481
      %5744 = vmatprep.subr.bf16.mxu0 0
      %5745 = vmatpush1.bf16.msra.mxu0 %v5480
      %5746 = vmatprep.subr.bf16.mxu0 0
      %5747 = vmatpush1.bf16.msra.mxu0 %v5479
      %5748 = vmatprep.subr.bf16.mxu0 0
      %5749 = vmatpush1.bf16.msra.mxu0 %v5478
      %5750 = vmatprep.subr.bf16.mxu0 0
      %5751 = vmatpush2.bf16.msra.mxu0 %v5493
      %5752 = vmatprep.subr.bf16.mxu0 0
      %5753 = vmatpush2.bf16.msra.mxu0 %v5492
      %5754 = vmatprep.subr.bf16.mxu0 0
      %5755 = vmatpush2.bf16.msra.mxu0 %v5491
      %5756 = vmatprep.subr.bf16.mxu0 0
      %5757 = vmatpush2.bf16.msra.mxu0 %v5490
      %5758 = vmatprep.subr.bf16.mxu0 0
      %5759 = vmatpush2.bf16.msra.mxu0 %v5489
      %5760 = vmatprep.subr.bf16.mxu0 0
      %5761 = vmatpush2.bf16.msra.mxu0 %v5488
      %5762 = vmatprep.subr.bf16.mxu0 0
      %5763 = vmatpush2.bf16.msra.mxu0 %v5487
      %5764 = vmatprep.subr.bf16.mxu0 0
      %5765 = vmatpush2.bf16.msra.mxu0 %v5486
      %5766 = vmatprep.mubr.bf16.mxu0 %v4608
      %5767 = vmatmul.mubr.bf16.gmra.mxu0 %v4562
      %v5768 = vpop.f32.mrf.mxu0
      %v5769 = vadd.f32 0.0, %v5768
      %v5770 = vpop.f32.mrf.mxu0
      %v5771 = vpop.f32.mrf.mxu0
      %v5772 = vadd.f32 0.0, %v5771
      %v5773 = vpop.f32.mrf.mxu0
      %5774 = vmatprep.mubr.bf16.mxu0 %v4610
      %5775 = vmatmul.mubr.bf16.gmra.mxu0 %v4565
      %v5776 = vpop.f32.mrf.mxu0
      %v5777 = vadd.f32 0.0, %v5776
      %v5778 = vpop.f32.mrf.mxu0
      %v5779 = vpop.f32.mrf.mxu0
      %v5780 = vadd.f32 0.0, %v5779
      %v5781 = vpop.f32.mrf.mxu0
      %5782 = vmatprep.mubr.bf16.mxu0 %v4612
      %5783 = vmatmul.mubr.bf16.gmra.mxu0 %v4568
      %v5784 = vpop.f32.mrf.mxu0
      %v5785 = vpop.f32.mrf.mxu0
      %v5786 = vpop.f32.mrf.mxu0
      %v5787 = vpop.f32.mrf.mxu0
      %5788 = vmatprep.mubr.bf16.mxu0 %v4614
      %5789 = vmatmul.mubr.bf16.gmra.mxu0 %v4571
      %v5790 = vpop.f32.mrf.mxu0
      %v5791 = vpop.f32.mrf.mxu0
      %v5792 = vpop.f32.mrf.mxu0
      %v5793 = vpop.f32.mrf.mxu0
      %5794 = vmatprep.mubr.bf16.mxu0 %v4615
      %5795 = vmatmul.mubr.bf16.gmra.mxu0 %v4574
      %v5796 = vpop.f32.mrf.mxu0
      %v5797 = vpop.f32.mrf.mxu0
      %v5798 = vpop.f32.mrf.mxu0
      %v5799 = vpop.f32.mrf.mxu0
      %5800 = vmatprep.mubr.bf16.mxu0 %v4617
      %5801 = vmatmul.mubr.bf16.gmra.mxu0 %v4574
      %v5802 = vpop.f32.mrf.mxu0
      %v5803 = vpop.f32.mrf.mxu0
      %v5804 = vpop.f32.mrf.mxu0
      %v5805 = vpop.f32.mrf.mxu0
      %5806 = vmatprep.mubr.bf16.mxu0 %v4619
      %5807 = vmatmul.mubr.bf16.gmra.mxu0 %v4577
      %v5808 = vpop.f32.mrf.mxu0
      %v5809 = vadd.f32 0.0, %v5808
      %v5810 = vpop.f32.mrf.mxu0
      %v5811 = vpop.f32.mrf.mxu0
      %v5812 = vadd.f32 0.0, %v5811
      %v5813 = vpop.f32.mrf.mxu0
      %5814 = vmatprep.mubr.bf16.mxu0 %v4621
      %5815 = vmatmul.mubr.bf16.gmra.mxu0 %v4580
      %v5816 = vpop.f32.mrf.mxu0
      %v5817 = vadd.f32 0.0, %v5816
      %v5818 = vpop.f32.mrf.mxu0
      %v5819 = vpop.f32.mrf.mxu0
      %v5820 = vadd.f32 0.0, %v5819
      %v5821 = vpop.f32.mrf.mxu0
      %5822 = vmatprep.mubr.bf16.mxu0 %v4623
      %5823 = vmatmul.mubr.bf16.gmra.mxu0 %v4583
      %v5824 = vpop.f32.mrf.mxu0
      %v5825 = vpop.f32.mrf.mxu0
      %v5826 = vpop.f32.mrf.mxu0
      %v5827 = vpop.f32.mrf.mxu0
      %5828 = vdwg.mxu0
      %5829 = vmatprep.subr.bf16.mxu0 0
      %5830 = vmatpush1.bf16.msra.mxu0 %v5501
      %5831 = vmatprep.subr.bf16.mxu0 0
      %5832 = vmatpush1.bf16.msra.mxu0 %v5500
      %5833 = vmatprep.subr.bf16.mxu0 0
      %5834 = vmatpush1.bf16.msra.mxu0 %v5499
      %5835 = vmatprep.subr.bf16.mxu0 0
      %5836 = vmatpush1.bf16.msra.mxu0 %v5498
      %5837 = vmatprep.subr.bf16.mxu0 0
      %5838 = vmatpush1.bf16.msra.mxu0 %v5497
      %5839 = vmatprep.subr.bf16.mxu0 0
      %5840 = vmatpush1.bf16.msra.mxu0 %v5496
      %5841 = vmatprep.subr.bf16.mxu0 0
      %5842 = vmatpush1.bf16.msra.mxu0 %v5495
      %5843 = vmatprep.subr.bf16.mxu0 0
      %5844 = vmatpush1.bf16.msra.mxu0 %v5494
      %5845 = vmatprep.subr.bf16.mxu0 0
      %5846 = vmatpush2.bf16.msra.mxu0 %v5509
      %5847 = vmatprep.subr.bf16.mxu0 0
      %5848 = vmatpush2.bf16.msra.mxu0 %v5508
      %5849 = vmatprep.subr.bf16.mxu0 0
      %5850 = vmatpush2.bf16.msra.mxu0 %v5507
      %5851 = vmatprep.subr.bf16.mxu0 0
      %5852 = vmatpush2.bf16.msra.mxu0 %v5506
      %5853 = vmatprep.subr.bf16.mxu0 0
      %5854 = vmatpush2.bf16.msra.mxu0 %v5505
      %5855 = vmatprep.subr.bf16.mxu0 0
      %5856 = vmatpush2.bf16.msra.mxu0 %v5504
      %5857 = vmatprep.subr.bf16.mxu0 0
      %5858 = vmatpush2.bf16.msra.mxu0 %v5503
      %5859 = vmatprep.subr.bf16.mxu0 0
      %5860 = vmatpush2.bf16.msra.mxu0 %v5502
      %5861 = vmatprep.mubr.bf16.mxu0 %v4646
      %5862 = vmatmul.mubr.bf16.gmra.mxu0 %v4643
      %v5863 = vpop.f32.mrf.mxu0
      %v5864 = vadd.f32 %v5769, %v5863
      %v5865 = vpop.f32.mrf.mxu0
      %v5866 = vpop.f32.mrf.mxu0
      %v5867 = vadd.f32 %v5772, %v5866
      %v5868 = vpop.f32.mrf.mxu0
      %5869 = vmatprep.mubr.bf16.mxu0 %v4650
      %5870 = vmatmul.mubr.bf16.gmra.mxu0 %v4648
      %v5871 = vpop.f32.mrf.mxu0
      %v5872 = vadd.f32 %v5777, %v5871
      %v5873 = vpop.f32.mrf.mxu0
      %v5874 = vpop.f32.mrf.mxu0
      %v5875 = vadd.f32 %v5780, %v5874
      %v5876 = vpop.f32.mrf.mxu0
      %5877 = vmatprep.mubr.bf16.mxu0 %v4654
      %5878 = vmatmul.mubr.bf16.gmra.mxu0 %v4652
      %v5879 = vpop.f32.mrf.mxu0
      %v5880 = vpop.f32.mrf.mxu0
      %v5881 = vpop.f32.mrf.mxu0
      %v5882 = vpop.f32.mrf.mxu0
      %5883 = vmatprep.mubr.bf16.mxu0 %v4658
      %5884 = vmatmul.mubr.bf16.gmra.mxu0 %v4656
      %v5885 = vpop.f32.mrf.mxu0
      %v5886 = vpop.f32.mrf.mxu0
      %v5887 = vpop.f32.mrf.mxu0
      %v5888 = vpop.f32.mrf.mxu0
      %5889 = vmatprep.mubr.bf16.mxu0 %v4661
      %5890 = vmatmul.mubr.bf16.gmra.mxu0 %v4659
      %v5891 = vpop.f32.mrf.mxu0
      %v5892 = vpop.f32.mrf.mxu0
      %v5893 = vpop.f32.mrf.mxu0
      %v5894 = vpop.f32.mrf.mxu0
      %5895 = vmatprep.mubr.bf16.mxu0 %v4665
      %5896 = vmatmul.mubr.bf16.gmra.mxu0 %v4663
      %v5897 = vpop.f32.mrf.mxu0
      %v5898 = vpop.f32.mrf.mxu0
      %v5899 = vpop.f32.mrf.mxu0
      %v5900 = vpop.f32.mrf.mxu0
      %5901 = vmatprep.mubr.bf16.mxu0 %v4669
      %5902 = vmatmul.mubr.bf16.gmra.mxu0 %v4667
      %v5903 = vpop.f32.mrf.mxu0
      %v5904 = vadd.f32 %v5809, %v5903
      %v5905 = vpop.f32.mrf.mxu0
      %v5906 = vpop.f32.mrf.mxu0
      %v5907 = vadd.f32 %v5812, %v5906
      %v5908 = vpop.f32.mrf.mxu0
      %5909 = vmatprep.mubr.bf16.mxu0 %v4673
      %5910 = vmatmul.mubr.bf16.gmra.mxu0 %v4671
      %v5911 = vpop.f32.mrf.mxu0
      %v5912 = vadd.f32 %v5817, %v5911
      %v5913 = vpop.f32.mrf.mxu0
      %v5914 = vpop.f32.mrf.mxu0
      %v5915 = vadd.f32 %v5820, %v5914
      %v5916 = vpop.f32.mrf.mxu0
      %5917 = vmatprep.mubr.bf16.mxu0 %v4677
      %5918 = vmatmul.mubr.bf16.gmra.mxu0 %v4675
      %v5919 = vpop.f32.mrf.mxu0
      %v5920 = vpop.f32.mrf.mxu0
      %v5921 = vpop.f32.mrf.mxu0
      %v5922 = vpop.f32.mrf.mxu0
      %5923 = vdwg.mxu0
      %5924 = vmatprep.subr.bf16.mxu0 0
      %5925 = vmatpush1.bf16.msra.mxu0 %v5517
      %5926 = vmatprep.subr.bf16.mxu0 0
      %5927 = vmatpush1.bf16.msra.mxu0 %v5516
      %5928 = vmatprep.subr.bf16.mxu0 0
      %5929 = vmatpush1.bf16.msra.mxu0 %v5515
      %5930 = vmatprep.subr.bf16.mxu0 0
      %5931 = vmatpush1.bf16.msra.mxu0 %v5514
      %5932 = vmatprep.subr.bf16.mxu0 0
      %5933 = vmatpush1.bf16.msra.mxu0 %v5513
      %5934 = vmatprep.subr.bf16.mxu0 0
      %5935 = vmatpush1.bf16.msra.mxu0 %v5512
      %5936 = vmatprep.subr.bf16.mxu0 0
      %5937 = vmatpush1.bf16.msra.mxu0 %v5511
      %5938 = vmatprep.subr.bf16.mxu0 0
      %5939 = vmatpush1.bf16.msra.mxu0 %v5510
      %5940 = vmatprep.subr.bf16.mxu0 0
      %5941 = vmatpush2.bf16.msra.mxu0 %v5525
      %5942 = vmatprep.subr.bf16.mxu0 0
      %5943 = vmatpush2.bf16.msra.mxu0 %v5524
      %5944 = vmatprep.subr.bf16.mxu0 0
      %5945 = vmatpush2.bf16.msra.mxu0 %v5523
      %5946 = vmatprep.subr.bf16.mxu0 0
      %5947 = vmatpush2.bf16.msra.mxu0 %v5522
      %5948 = vmatprep.subr.bf16.mxu0 0
      %5949 = vmatpush2.bf16.msra.mxu0 %v5521
      %5950 = vmatprep.subr.bf16.mxu0 0
      %5951 = vmatpush2.bf16.msra.mxu0 %v5520
      %5952 = vmatprep.subr.bf16.mxu0 0
      %5953 = vmatpush2.bf16.msra.mxu0 %v5519
      %5954 = vmatprep.subr.bf16.mxu0 0
      %5955 = vmatpush2.bf16.msra.mxu0 %v5518
      %5956 = vmatprep.mubr.bf16.mxu0 %v4610
      %5957 = vmatmul.mubr.bf16.gmra.mxu0 %v4565
      %v5958 = vpop.f32.mrf.mxu0
      %v5959 = vadd.f32 %v5864, %v5958
      %v5960 = vpop.f32.mrf.mxu0
      %v5961 = vpop.f32.mrf.mxu0
      %v5962 = vadd.f32 %v5867, %v5961
      %v5963 = vpop.f32.mrf.mxu0
      %5964 = vmatprep.mubr.bf16.mxu0 %v4612
      %5965 = vmatmul.mubr.bf16.gmra.mxu0 %v4568
      %v5966 = vpop.f32.mrf.mxu0
      %v5967 = vadd.f32 %v5872, %v5966
      %v5968 = vpop.f32.mrf.mxu0
      %v5969 = vpop.f32.mrf.mxu0
      %v5970 = vadd.f32 %v5875, %v5969
      %v5971 = vpop.f32.mrf.mxu0
      %5972 = vmatprep.mubr.bf16.mxu0 %v4614
      %5973 = vmatmul.mubr.bf16.gmra.mxu0 %v4571
      %v5974 = vpop.f32.mrf.mxu0
      %v5975 = vpop.f32.mrf.mxu0
      %v5976 = vpop.f32.mrf.mxu0
      %v5977 = vpop.f32.mrf.mxu0
      %5978 = vmatprep.mubr.bf16.mxu0 %v4615
      %5979 = vmatmul.mubr.bf16.gmra.mxu0 %v4574
      %v5980 = vpop.f32.mrf.mxu0
      %v5981 = vpop.f32.mrf.mxu0
      %v5982 = vpop.f32.mrf.mxu0
      %v5983 = vpop.f32.mrf.mxu0
      %5984 = vmatprep.mubr.bf16.mxu0 %v4617
      %5985 = vmatmul.mubr.bf16.gmra.mxu0 %v4574
      %v5986 = vpop.f32.mrf.mxu0
      %v5987 = vpop.f32.mrf.mxu0
      %v5988 = vpop.f32.mrf.mxu0
      %v5989 = vpop.f32.mrf.mxu0
      %5990 = vmatprep.mubr.bf16.mxu0 %v4619
      %5991 = vmatmul.mubr.bf16.gmra.mxu0 %v4577
      %v5992 = vpop.f32.mrf.mxu0
      %v5993 = vpop.f32.mrf.mxu0
      %v5994 = vpop.f32.mrf.mxu0
      %v5995 = vpop.f32.mrf.mxu0
      %5996 = vmatprep.mubr.bf16.mxu0 %v4621
      %5997 = vmatmul.mubr.bf16.gmra.mxu0 %v4580
      %v5998 = vpop.f32.mrf.mxu0
      %v5999 = vadd.f32 %v5904, %v5998
      %v6000 = vpop.f32.mrf.mxu0
      %v6001 = vpop.f32.mrf.mxu0
      %v6002 = vadd.f32 %v5907, %v6001
      %v6003 = vpop.f32.mrf.mxu0
      %6004 = vmatprep.mubr.bf16.mxu0 %v4623
      %6005 = vmatmul.mubr.bf16.gmra.mxu0 %v4583
      %v6006 = vpop.f32.mrf.mxu0
      %v6007 = vadd.f32 %v5912, %v6006
      %v6008 = vpop.f32.mrf.mxu0
      %v6009 = vpop.f32.mrf.mxu0
      %v6010 = vadd.f32 %v5915, %v6009
      %v6011 = vpop.f32.mrf.mxu0
      %6012 = vmatprep.mubr.bf16.mxu0 %v4625
      %6013 = vmatmul.mubr.bf16.gmra.mxu0 %v4586
      %v6014 = vpop.f32.mrf.mxu0
      %v6015 = vpop.f32.mrf.mxu0
      %v6016 = vpop.f32.mrf.mxu0
      %v6017 = vpop.f32.mrf.mxu0
      %6018 = vdwg.mxu0
      %6019 = vmatprep.subr.bf16.mxu0 0
      %6020 = vmatpush1.bf16.msra.mxu0 %v5533
      %6021 = vmatprep.subr.bf16.mxu0 0
      %6022 = vmatpush1.bf16.msra.mxu0 %v5532
      %6023 = vmatprep.subr.bf16.mxu0 0
      %6024 = vmatpush1.bf16.msra.mxu0 %v5531
      %6025 = vmatprep.subr.bf16.mxu0 0
      %6026 = vmatpush1.bf16.msra.mxu0 %v5530
      %6027 = vmatprep.subr.bf16.mxu0 0
      %6028 = vmatpush1.bf16.msra.mxu0 %v5529
      %6029 = vmatprep.subr.bf16.mxu0 0
      %6030 = vmatpush1.bf16.msra.mxu0 %v5528
      %6031 = vmatprep.subr.bf16.mxu0 0
      %6032 = vmatpush1.bf16.msra.mxu0 %v5527
      %6033 = vmatprep.subr.bf16.mxu0 0
      %6034 = vmatpush1.bf16.msra.mxu0 %v5526
      %6035 = vmatprep.subr.bf16.mxu0 0
      %6036 = vmatpush2.bf16.msra.mxu0 %v5541
      %6037 = vmatprep.subr.bf16.mxu0 0
      %6038 = vmatpush2.bf16.msra.mxu0 %v5540
      %6039 = vmatprep.subr.bf16.mxu0 0
      %6040 = vmatpush2.bf16.msra.mxu0 %v5539
      %6041 = vmatprep.subr.bf16.mxu0 0
      %6042 = vmatpush2.bf16.msra.mxu0 %v5538
      %6043 = vmatprep.subr.bf16.mxu0 0
      %6044 = vmatpush2.bf16.msra.mxu0 %v5537
      %6045 = vmatprep.subr.bf16.mxu0 0
      %6046 = vmatpush2.bf16.msra.mxu0 %v5536
      %6047 = vmatprep.subr.bf16.mxu0 0
      %6048 = vmatpush2.bf16.msra.mxu0 %v5535
      %6049 = vmatprep.subr.bf16.mxu0 0
      %6050 = vmatpush2.bf16.msra.mxu0 %v5534
      %6051 = vmatprep.mubr.bf16.mxu0 %v4650
      %6052 = vmatmul.mubr.bf16.gmra.mxu0 %v4648
      %v6053 = vpop.f32.mrf.mxu0
      %v6054 = vadd.f32 %v5959, %v6053
      %v6055 = vpop.f32.mrf.mxu0
      %v6056 = vpop.f32.mrf.mxu0
      %v6057 = vadd.f32 %v5962, %v6056
      %v6058 = vpop.f32.mrf.mxu0
      %6059 = vmatprep.mubr.bf16.mxu0 %v4654
      %6060 = vmatmul.mubr.bf16.gmra.mxu0 %v4652
      %v6061 = vpop.f32.mrf.mxu0
      %v6062 = vadd.f32 %v5967, %v6061
      %v6063 = vpop.f32.mrf.mxu0
      %v6064 = vpop.f32.mrf.mxu0
      %v6065 = vadd.f32 %v5970, %v6064
      %v6066 = vpop.f32.mrf.mxu0
      %6067 = vmatprep.mubr.bf16.mxu0 %v4658
      %6068 = vmatmul.mubr.bf16.gmra.mxu0 %v4656
      %v6069 = vpop.f32.mrf.mxu0
      %v6070 = vpop.f32.mrf.mxu0
      %v6071 = vpop.f32.mrf.mxu0
      %v6072 = vpop.f32.mrf.mxu0
      %6073 = vmatprep.mubr.bf16.mxu0 %v4661
      %6074 = vmatmul.mubr.bf16.gmra.mxu0 %v4659
      %v6075 = vpop.f32.mrf.mxu0
      %v6076 = vpop.f32.mrf.mxu0
      %v6077 = vpop.f32.mrf.mxu0
      %v6078 = vpop.f32.mrf.mxu0
      %6079 = vmatprep.mubr.bf16.mxu0 %v4665
      %6080 = vmatmul.mubr.bf16.gmra.mxu0 %v4663
      %v6081 = vpop.f32.mrf.mxu0
      %v6082 = vpop.f32.mrf.mxu0
      %v6083 = vpop.f32.mrf.mxu0
      %v6084 = vpop.f32.mrf.mxu0
      %6085 = vmatprep.mubr.bf16.mxu0 %v4669
      %6086 = vmatmul.mubr.bf16.gmra.mxu0 %v4667
      %v6087 = vpop.f32.mrf.mxu0
      %v6088 = vpop.f32.mrf.mxu0
      %v6089 = vpop.f32.mrf.mxu0
      %v6090 = vpop.f32.mrf.mxu0
      %6091 = vmatprep.mubr.bf16.mxu0 %v4673
      %6092 = vmatmul.mubr.bf16.gmra.mxu0 %v4671
      %v6093 = vpop.f32.mrf.mxu0
      %v6094 = vadd.f32 %v5999, %v6093
      %v6095 = vpop.f32.mrf.mxu0
      %v6096 = vpop.f32.mrf.mxu0
      %v6097 = vadd.f32 %v6002, %v6096
      %v6098 = vpop.f32.mrf.mxu0
      %6099 = vmatprep.mubr.bf16.mxu0 %v4677
      %6100 = vmatmul.mubr.bf16.gmra.mxu0 %v4675
      %v6101 = vpop.f32.mrf.mxu0
      %v6102 = vadd.f32 %v6007, %v6101
      %v6103 = vpop.f32.mrf.mxu0
      %v6104 = vpop.f32.mrf.mxu0
      %v6105 = vadd.f32 %v6010, %v6104
      %v6106 = vpop.f32.mrf.mxu0
      %6107 = vmatprep.mubr.bf16.mxu0 %v4681
      %6108 = vmatmul.mubr.bf16.gmra.mxu0 %v4679
      %v6109 = vpop.f32.mrf.mxu0
      %v6110 = vpop.f32.mrf.mxu0
      %v6111 = vpop.f32.mrf.mxu0
      %v6112 = vpop.f32.mrf.mxu0
      %6113 = vdwg.mxu0
      %6114 = vmatprep.subr.bf16.mxu0 0
      %6115 = vmatpush1.bf16.msra.mxu0 %v5549
      %6116 = vmatprep.subr.bf16.mxu0 0
      %6117 = vmatpush1.bf16.msra.mxu0 %v5548
      %6118 = vmatprep.subr.bf16.mxu0 0
      %6119 = vmatpush1.bf16.msra.mxu0 %v5547
      %6120 = vmatprep.subr.bf16.mxu0 0
      %6121 = vmatpush1.bf16.msra.mxu0 %v5546
      %6122 = vmatprep.subr.bf16.mxu0 0
      %6123 = vmatpush1.bf16.msra.mxu0 %v5545
      %6124 = vmatprep.subr.bf16.mxu0 0
      %6125 = vmatpush1.bf16.msra.mxu0 %v5544
      %6126 = vmatprep.subr.bf16.mxu0 0
      %6127 = vmatpush1.bf16.msra.mxu0 %v5543
      %6128 = vmatprep.subr.bf16.mxu0 0
      %6129 = vmatpush1.bf16.msra.mxu0 %v5542
      %6130 = vmatprep.subr.bf16.mxu0 0
      %6131 = vmatpush2.bf16.msra.mxu0 %v5557
      %6132 = vmatprep.subr.bf16.mxu0 0
      %6133 = vmatpush2.bf16.msra.mxu0 %v5556
      %6134 = vmatprep.subr.bf16.mxu0 0
      %6135 = vmatpush2.bf16.msra.mxu0 %v5555
      %6136 = vmatprep.subr.bf16.mxu0 0
      %6137 = vmatpush2.bf16.msra.mxu0 %v5554
      %6138 = vmatprep.subr.bf16.mxu0 0
      %6139 = vmatpush2.bf16.msra.mxu0 %v5553
      %6140 = vmatprep.subr.bf16.mxu0 0
      %6141 = vmatpush2.bf16.msra.mxu0 %v5552
      %6142 = vmatprep.subr.bf16.mxu0 0
      %6143 = vmatpush2.bf16.msra.mxu0 %v5551
      %6144 = vmatprep.subr.bf16.mxu0 0
      %6145 = vmatpush2.bf16.msra.mxu0 %v5550
      %6146 = vmatprep.mubr.bf16.mxu0 %v4612
      %6147 = vmatmul.mubr.bf16.gmra.mxu0 %v4568
      %v6148 = vpop.f32.mrf.mxu0
      %v6149 = vadd.f32 %v6054, %v6148
      %v6150 = vpop.f32.mrf.mxu0
      %v6151 = vpop.f32.mrf.mxu0
      %v6152 = vadd.f32 %v6057, %v6151
      %v6153 = vpop.f32.mrf.mxu0
      %6154 = vmatprep.mubr.bf16.mxu0 %v4614
      %6155 = vmatmul.mubr.bf16.gmra.mxu0 %v4571
      %v6156 = vpop.f32.mrf.mxu0
      %v6157 = vadd.f32 %v6062, %v6156
      %v6158 = vpop.f32.mrf.mxu0
      %v6159 = vpop.f32.mrf.mxu0
      %v6160 = vadd.f32 %v6065, %v6159
      %v6161 = vpop.f32.mrf.mxu0
      %6162 = vmatprep.mubr.bf16.mxu0 %v4615
      %6163 = vmatmul.mubr.bf16.gmra.mxu0 %v4574
      %v6164 = vpop.f32.mrf.mxu0
      %v6165 = vpop.f32.mrf.mxu0
      %v6166 = vpop.f32.mrf.mxu0
      %v6167 = vpop.f32.mrf.mxu0
      %6168 = vmatprep.mubr.bf16.mxu0 %v4617
      %6169 = vmatmul.mubr.bf16.gmra.mxu0 %v4574
      %v6170 = vpop.f32.mrf.mxu0
      %v6171 = vpop.f32.mrf.mxu0
      %v6172 = vpop.f32.mrf.mxu0
      %v6173 = vpop.f32.mrf.mxu0
      %6174 = vmatprep.mubr.bf16.mxu0 %v4619
      %6175 = vmatmul.mubr.bf16.gmra.mxu0 %v4577
      %v6176 = vpop.f32.mrf.mxu0
      %v6177 = vpop.f32.mrf.mxu0
      %v6178 = vpop.f32.mrf.mxu0
      %v6179 = vpop.f32.mrf.mxu0
      %6180 = vmatprep.mubr.bf16.mxu0 %v4621
      %6181 = vmatmul.mubr.bf16.gmra.mxu0 %v4580
      %v6182 = vpop.f32.mrf.mxu0
      %v6183 = vpop.f32.mrf.mxu0
      %v6184 = vpop.f32.mrf.mxu0
      %v6185 = vpop.f32.mrf.mxu0
      %6186 = vmatprep.mubr.bf16.mxu0 %v4623
      %6187 = vmatmul.mubr.bf16.gmra.mxu0 %v4583
      %v6188 = vpop.f32.mrf.mxu0
      %v6189 = vadd.f32 %v6094, %v6188
      %v6190 = vpop.f32.mrf.mxu0
      %v6191 = vpop.f32.mrf.mxu0
      %v6192 = vadd.f32 %v6097, %v6191
      %v6193 = vpop.f32.mrf.mxu0
      %6194 = vmatprep.mubr.bf16.mxu0 %v4625
      %6195 = vmatmul.mubr.bf16.gmra.mxu0 %v4586
      %v6196 = vpop.f32.mrf.mxu0
      %v6197 = vadd.f32 %v6102, %v6196
      %v6198 = vpop.f32.mrf.mxu0
      %v6199 = vpop.f32.mrf.mxu0
      %v6200 = vadd.f32 %v6105, %v6199
      %v6201 = vpop.f32.mrf.mxu0
      %6202 = vmatprep.mubr.bf16.mxu0 %v4627
      %6203 = vmatmul.mubr.bf16.gmra.mxu0 %v4589
      %v6204 = vpop.f32.mrf.mxu0
      %v6205 = vpop.f32.mrf.mxu0
      %v6206 = vpop.f32.mrf.mxu0
      %v6207 = vpop.f32.mrf.mxu0
      %6208 = vdwg.mxu0
      %6209 = vmatprep.subr.bf16.mxu0 0
      %6210 = vmatpush1.bf16.msra.mxu0 %v5565
      %6211 = vmatprep.subr.bf16.mxu0 0
      %6212 = vmatpush1.bf16.msra.mxu0 %v5564
      %6213 = vmatprep.subr.bf16.mxu0 0
      %6214 = vmatpush1.bf16.msra.mxu0 %v5563
      %6215 = vmatprep.subr.bf16.mxu0 0
      %6216 = vmatpush1.bf16.msra.mxu0 %v5562
      %6217 = vmatprep.subr.bf16.mxu0 0
      %6218 = vmatpush1.bf16.msra.mxu0 %v5561
      %6219 = vmatprep.subr.bf16.mxu0 0
      %6220 = vmatpush1.bf16.msra.mxu0 %v5560
      %6221 = vmatprep.subr.bf16.mxu0 0
      %6222 = vmatpush1.bf16.msra.mxu0 %v5559
      %6223 = vmatprep.subr.bf16.mxu0 0
      %6224 = vmatpush1.bf16.msra.mxu0 %v5558
      %6225 = vmatprep.subr.bf16.mxu0 0
      %6226 = vmatpush2.bf16.msra.mxu0 %v5573
      %6227 = vmatprep.subr.bf16.mxu0 0
      %6228 = vmatpush2.bf16.msra.mxu0 %v5572
      %6229 = vmatprep.subr.bf16.mxu0 0
      %6230 = vmatpush2.bf16.msra.mxu0 %v5571
      %6231 = vmatprep.subr.bf16.mxu0 0
      %6232 = vmatpush2.bf16.msra.mxu0 %v5570
      %6233 = vmatprep.subr.bf16.mxu0 0
      %6234 = vmatpush2.bf16.msra.mxu0 %v5569
      %6235 = vmatprep.subr.bf16.mxu0 0
      %6236 = vmatpush2.bf16.msra.mxu0 %v5568
      %6237 = vmatprep.subr.bf16.mxu0 0
      %6238 = vmatpush2.bf16.msra.mxu0 %v5567
      %6239 = vmatprep.subr.bf16.mxu0 0
      %6240 = vmatpush2.bf16.msra.mxu0 %v5566
      %6241 = vmatprep.mubr.bf16.mxu0 %v4654
      %6242 = vmatmul.mubr.bf16.gmra.mxu0 %v4652
      %v6243 = vpop.f32.mrf.mxu0
      %v6244 = vadd.f32 %v6149, %v6243
      %v6245 = vpop.f32.mrf.mxu0
      %v6246 = vpop.f32.mrf.mxu0
      %v6247 = vadd.f32 %v6152, %v6246
      %v6248 = vpop.f32.mrf.mxu0
      %6249 = vmatprep.mubr.bf16.mxu0 %v4658
      %6250 = vmatmul.mubr.bf16.gmra.mxu0 %v4656
      %v6251 = vpop.f32.mrf.mxu0
      %v6252 = vadd.f32 %v6157, %v6251
      %v6253 = vpop.f32.mrf.mxu0
      %v6254 = vpop.f32.mrf.mxu0
      %v6255 = vadd.f32 %v6160, %v6254
      %v6256 = vpop.f32.mrf.mxu0
      %6257 = vmatprep.mubr.bf16.mxu0 %v4661
      %6258 = vmatmul.mubr.bf16.gmra.mxu0 %v4659
      %v6259 = vpop.f32.mrf.mxu0
      %v6260 = vpop.f32.mrf.mxu0
      %v6261 = vpop.f32.mrf.mxu0
      %v6262 = vpop.f32.mrf.mxu0
      %6263 = vmatprep.mubr.bf16.mxu0 %v4665
      %6264 = vmatmul.mubr.bf16.gmra.mxu0 %v4663
      %v6265 = vpop.f32.mrf.mxu0
      %v6266 = vpop.f32.mrf.mxu0
      %v6267 = vpop.f32.mrf.mxu0
      %v6268 = vpop.f32.mrf.mxu0
      %6269 = vmatprep.mubr.bf16.mxu0 %v4669
      %6270 = vmatmul.mubr.bf16.gmra.mxu0 %v4667
      %v6271 = vpop.f32.mrf.mxu0
      %v6272 = vpop.f32.mrf.mxu0
      %v6273 = vpop.f32.mrf.mxu0
      %v6274 = vpop.f32.mrf.mxu0
      %6275 = vmatprep.mubr.bf16.mxu0 %v4673
      %6276 = vmatmul.mubr.bf16.gmra.mxu0 %v4671
      %v6277 = vpop.f32.mrf.mxu0
      %v6278 = vpop.f32.mrf.mxu0
      %v6279 = vpop.f32.mrf.mxu0
      %v6280 = vpop.f32.mrf.mxu0
      %6281 = vmatprep.mubr.bf16.mxu0 %v4677
      %6282 = vmatmul.mubr.bf16.gmra.mxu0 %v4675
      %v6283 = vpop.f32.mrf.mxu0
      %v6284 = vadd.f32 %v6189, %v6283
      %v6285 = vpop.f32.mrf.mxu0
      %v6286 = vpop.f32.mrf.mxu0
      %v6287 = vadd.f32 %v6192, %v6286
      %v6288 = vpop.f32.mrf.mxu0
      %6289 = vmatprep.mubr.bf16.mxu0 %v4681
      %6290 = vmatmul.mubr.bf16.gmra.mxu0 %v4679
      %v6291 = vpop.f32.mrf.mxu0
      %v6292 = vadd.f32 %v6197, %v6291
      %v6293 = vpop.f32.mrf.mxu0
      %v6294 = vpop.f32.mrf.mxu0
      %v6295 = vadd.f32 %v6200, %v6294
      %v6296 = vpop.f32.mrf.mxu0
      %6297 = vmatprep.mubr.bf16.mxu0 %v4685
      %6298 = vmatmul.mubr.bf16.gmra.mxu0 %v4683
      %v6299 = vpop.f32.mrf.mxu0
      %v6300 = vpop.f32.mrf.mxu0
      %v6301 = vpop.f32.mrf.mxu0
      %v6302 = vpop.f32.mrf.mxu0
      %6303 = vdwg.mxu0
      %6304 = vmatprep.subr.bf16.mxu0 0
      %6305 = vmatpush1.bf16.msra.mxu0 %v5581
      %6306 = vmatprep.subr.bf16.mxu0 0
      %6307 = vmatpush1.bf16.msra.mxu0 %v5580
      %6308 = vmatprep.subr.bf16.mxu0 0
      %6309 = vmatpush1.bf16.msra.mxu0 %v5579
      %6310 = vmatprep.subr.bf16.mxu0 0
      %6311 = vmatpush1.bf16.msra.mxu0 %v5578
      %6312 = vmatprep.subr.bf16.mxu0 0
      %6313 = vmatpush1.bf16.msra.mxu0 %v5577
      %6314 = vmatprep.subr.bf16.mxu0 0
      %6315 = vmatpush1.bf16.msra.mxu0 %v5576
      %6316 = vmatprep.subr.bf16.mxu0 0
      %6317 = vmatpush1.bf16.msra.mxu0 %v5575
      %6318 = vmatprep.subr.bf16.mxu0 0
      %6319 = vmatpush1.bf16.msra.mxu0 %v5574
      %6320 = vmatprep.subr.bf16.mxu0 0
      %6321 = vmatpush2.bf16.msra.mxu0 %v5589
      %6322 = vmatprep.subr.bf16.mxu0 0
      %6323 = vmatpush2.bf16.msra.mxu0 %v5588
      %6324 = vmatprep.subr.bf16.mxu0 0
      %6325 = vmatpush2.bf16.msra.mxu0 %v5587
      %6326 = vmatprep.subr.bf16.mxu0 0
      %6327 = vmatpush2.bf16.msra.mxu0 %v5586
      %6328 = vmatprep.subr.bf16.mxu0 0
      %6329 = vmatpush2.bf16.msra.mxu0 %v5585
      %6330 = vmatprep.subr.bf16.mxu0 0
      %6331 = vmatpush2.bf16.msra.mxu0 %v5584
      %6332 = vmatprep.subr.bf16.mxu0 0
      %6333 = vmatpush2.bf16.msra.mxu0 %v5583
      %6334 = vmatprep.subr.bf16.mxu0 0
      %6335 = vmatpush2.bf16.msra.mxu0 %v5582
      %6336 = vmatprep.mubr.bf16.mxu0 %v4614
      %6337 = vmatmul.mubr.bf16.gmra.mxu0 %v4571
      %v6338 = vpop.f32.mrf.mxu0
      %v6339 = vadd.f32 %v6244, %v6338
      %v6340 = vpop.f32.mrf.mxu0
      %v6341 = vpop.f32.mrf.mxu0
      %v6342 = vadd.f32 %v6247, %v6341
      %v6343 = vpop.f32.mrf.mxu0
      %6344 = vmatprep.mubr.bf16.mxu0 %v4615
      %6345 = vmatmul.mubr.bf16.gmra.mxu0 %v4574
      %v6346 = vpop.f32.mrf.mxu0
      %v6347 = vadd.f32 %v6252, %v6346
      %v6348 = vpop.f32.mrf.mxu0
      %v6349 = vpop.f32.mrf.mxu0
      %v6350 = vadd.f32 %v6255, %v6349
      %v6351 = vpop.f32.mrf.mxu0
      %6352 = vmatprep.mubr.bf16.mxu0 %v4617
      %6353 = vmatmul.mubr.bf16.gmra.mxu0 %v4574
      %v6354 = vpop.f32.mrf.mxu0
      %v6355 = vpop.f32.mrf.mxu0
      %v6356 = vpop.f32.mrf.mxu0
      %v6357 = vpop.f32.mrf.mxu0
      %6358 = vmatprep.mubr.bf16.mxu0 %v4619
      %6359 = vmatmul.mubr.bf16.gmra.mxu0 %v4577
      %v6360 = vpop.f32.mrf.mxu0
      %v6361 = vpop.f32.mrf.mxu0
      %v6362 = vpop.f32.mrf.mxu0
      %v6363 = vpop.f32.mrf.mxu0
      %6364 = vmatprep.mubr.bf16.mxu0 %v4621
      %6365 = vmatmul.mubr.bf16.gmra.mxu0 %v4580
      %v6366 = vpop.f32.mrf.mxu0
      %v6367 = vpop.f32.mrf.mxu0
      %v6368 = vpop.f32.mrf.mxu0
      %v6369 = vpop.f32.mrf.mxu0
      %6370 = vmatprep.mubr.bf16.mxu0 %v4623
      %6371 = vmatmul.mubr.bf16.gmra.mxu0 %v4583
      %v6372 = vpop.f32.mrf.mxu0
      %v6373 = vpop.f32.mrf.mxu0
      %v6374 = vpop.f32.mrf.mxu0
      %v6375 = vpop.f32.mrf.mxu0
      %6376 = vmatprep.mubr.bf16.mxu0 %v4625
      %6377 = vmatmul.mubr.bf16.gmra.mxu0 %v4586
      %v6378 = vpop.f32.mrf.mxu0
      %v6379 = vadd.f32 %v6284, %v6378
      %v6380 = vpop.f32.mrf.mxu0
      %v6381 = vpop.f32.mrf.mxu0
      %v6382 = vadd.f32 %v6287, %v6381
      %v6383 = vpop.f32.mrf.mxu0
      %6384 = vmatprep.mubr.bf16.mxu0 %v4627
      %6385 = vmatmul.mubr.bf16.gmra.mxu0 %v4589
      %v6386 = vpop.f32.mrf.mxu0
      %v6387 = vadd.f32 %v6292, %v6386
      %v6388 = vpop.f32.mrf.mxu0
      %v6389 = vpop.f32.mrf.mxu0
      %v6390 = vadd.f32 %v6295, %v6389
      %v6391 = vpop.f32.mrf.mxu0
      %6392 = vmatprep.mubr.bf16.mxu0 %v4626
      %6393 = vmatmul.mubr.bf16.gmra.mxu0 %v4592
      %v6394 = vpop.f32.mrf.mxu0
      %v6395 = vpop.f32.mrf.mxu0
      %v6396 = vpop.f32.mrf.mxu0
      %v6397 = vpop.f32.mrf.mxu0
      %6398 = vdwg.mxu0
      %6399 = vmatprep.subr.bf16.mxu0 0
      %6400 = vmatpush1.bf16.msra.mxu0 %v5597
      %6401 = vmatprep.subr.bf16.mxu0 0
      %6402 = vmatpush1.bf16.msra.mxu0 %v5596
      %6403 = vmatprep.subr.bf16.mxu0 0
      %6404 = vmatpush1.bf16.msra.mxu0 %v5595
      %6405 = vmatprep.subr.bf16.mxu0 0
      %6406 = vmatpush1.bf16.msra.mxu0 %v5594
      %6407 = vmatprep.subr.bf16.mxu0 0
      %6408 = vmatpush1.bf16.msra.mxu0 %v5593
      %6409 = vmatprep.subr.bf16.mxu0 0
      %6410 = vmatpush1.bf16.msra.mxu0 %v5592
      %6411 = vmatprep.subr.bf16.mxu0 0
      %6412 = vmatpush1.bf16.msra.mxu0 %v5591
      %6413 = vmatprep.subr.bf16.mxu0 0
      %6414 = vmatpush1.bf16.msra.mxu0 %v5590
      %6415 = vmatprep.subr.bf16.mxu0 0
      %6416 = vmatpush2.bf16.msra.mxu0 %v5605
      %6417 = vmatprep.subr.bf16.mxu0 0
      %6418 = vmatpush2.bf16.msra.mxu0 %v5604
      %6419 = vmatprep.subr.bf16.mxu0 0
      %6420 = vmatpush2.bf16.msra.mxu0 %v5603
      %6421 = vmatprep.subr.bf16.mxu0 0
      %6422 = vmatpush2.bf16.msra.mxu0 %v5602
      %6423 = vmatprep.subr.bf16.mxu0 0
      %6424 = vmatpush2.bf16.msra.mxu0 %v5601
      %6425 = vmatprep.subr.bf16.mxu0 0
      %6426 = vmatpush2.bf16.msra.mxu0 %v5600
      %6427 = vmatprep.subr.bf16.mxu0 0
      %6428 = vmatpush2.bf16.msra.mxu0 %v5599
      %6429 = vmatprep.subr.bf16.mxu0 0
      %6430 = vmatpush2.bf16.msra.mxu0 %v5598
      %6431 = vmatprep.mubr.bf16.mxu0 %v4658
      %6432 = vmatmul.mubr.bf16.gmra.mxu0 %v4656
      %v6433 = vpop.f32.mrf.mxu0
      %v6434 = vadd.f32 %v6339, %v6433
      %v6435 = vpop.f32.mrf.mxu0
      %v6436 = vpop.f32.mrf.mxu0
      %v6437 = vadd.f32 %v6342, %v6436
      %v6438 = vpop.f32.mrf.mxu0
      %6439 = vmatprep.mubr.bf16.mxu0 %v4661
      %6440 = vmatmul.mubr.bf16.gmra.mxu0 %v4659
      %v6441 = vpop.f32.mrf.mxu0
      %v6442 = vadd.f32 %v6347, %v6441
      %v6443 = vpop.f32.mrf.mxu0
      %v6444 = vpop.f32.mrf.mxu0
      %v6445 = vadd.f32 %v6350, %v6444
      %v6446 = vpop.f32.mrf.mxu0
      %6447 = vmatprep.mubr.bf16.mxu0 %v4665
      %6448 = vmatmul.mubr.bf16.gmra.mxu0 %v4663
      %v6449 = vpop.f32.mrf.mxu0
      %v6450 = vpop.f32.mrf.mxu0
      %v6451 = vpop.f32.mrf.mxu0
      %v6452 = vpop.f32.mrf.mxu0
      %6453 = vmatprep.mubr.bf16.mxu0 %v4669
      %6454 = vmatmul.mubr.bf16.gmra.mxu0 %v4667
      %v6455 = vpop.f32.mrf.mxu0
      %v6456 = vpop.f32.mrf.mxu0
      %v6457 = vpop.f32.mrf.mxu0
      %v6458 = vpop.f32.mrf.mxu0
      %6459 = vmatprep.mubr.bf16.mxu0 %v4673
      %6460 = vmatmul.mubr.bf16.gmra.mxu0 %v4671
      %v6461 = vpop.f32.mrf.mxu0
      %v6462 = vpop.f32.mrf.mxu0
      %v6463 = vpop.f32.mrf.mxu0
      %v6464 = vpop.f32.mrf.mxu0
      %6465 = vmatprep.mubr.bf16.mxu0 %v4677
      %6466 = vmatmul.mubr.bf16.gmra.mxu0 %v4675
      %v6467 = vpop.f32.mrf.mxu0
      %v6468 = vpop.f32.mrf.mxu0
      %v6469 = vpop.f32.mrf.mxu0
      %v6470 = vpop.f32.mrf.mxu0
      %6471 = vmatprep.mubr.bf16.mxu0 %v4681
      %6472 = vmatmul.mubr.bf16.gmra.mxu0 %v4679
      %v6473 = vpop.f32.mrf.mxu0
      %v6474 = vadd.f32 %v6379, %v6473
      %v6475 = vpop.f32.mrf.mxu0
      %v6476 = vpop.f32.mrf.mxu0
      %v6477 = vadd.f32 %v6382, %v6476
      %v6478 = vpop.f32.mrf.mxu0
      %6479 = vmatprep.mubr.bf16.mxu0 %v4685
      %6480 = vmatmul.mubr.bf16.gmra.mxu0 %v4683
      %v6481 = vpop.f32.mrf.mxu0
      %v6482 = vadd.f32 %v6387, %v6481
      %v6483 = vpop.f32.mrf.mxu0
      %v6484 = vpop.f32.mrf.mxu0
      %v6485 = vadd.f32 %v6390, %v6484
      %v6486 = vpop.f32.mrf.mxu0
      %6487 = vmatprep.mubr.bf16.mxu0 %v4684
      %6488 = vmatmul.mubr.bf16.gmra.mxu0 %v4682
      %v6489 = vpop.f32.mrf.mxu0
      %v6490 = vpop.f32.mrf.mxu0
      %v6491 = vpop.f32.mrf.mxu0
      %v6492 = vpop.f32.mrf.mxu0
      %6493 = vdwg.mxu0
      %v6494 = vld [vmem:[%s4] sm:$0x1]
      %v6499 = vcombine.high %v6434, %v6434
      %v6500 = vcombine.high %v6437, %v6437
      %v6501 = vcombine.high %v6442, %v6442
      %v6502 = vcombine.high %v6445, %v6445
      %vm6507 = vcmask 519168
      %v6508 = vsel %vm6507, %v6434, -inf
      %v6509 = vrot.slane %v6508, 4
      %v6510 = vmax.f32 %v6508, %v6509
      %v6511 = vrot.slane %v6510, 2
      %v6512 = vmax.f32 %v6510, %v6511
      %v6513 = vrot.slane %v6512, 1
      %v6514 = vmax.f32 %v6512, %v6513
      %v6515 = vsel %vm6507, %v6499, -inf
      %v6516 = vrot.slane %v6515, 4
      %v6517 = vmax.f32 %v6515, %v6516
      %v6518 = vrot.slane %v6517, 2
      %v6519 = vmax.f32 %v6517, %v6518
      %v6520 = vrot.slane %v6519, 1
      %v6521 = vmax.f32 %v6519, %v6520
      %v6522 = vsel %vm6507, %v6437, -inf
      %v6523 = vrot.slane %v6522, 4
      %v6524 = vmax.f32 %v6522, %v6523
      %v6525 = vrot.slane %v6524, 2
      %v6526 = vmax.f32 %v6524, %v6525
      %v6527 = vrot.slane %v6526, 1
      %v6528 = vmax.f32 %v6526, %v6527
      %v6529 = vsel %vm6507, %v6500, -inf
      %v6530 = vrot.slane %v6529, 4
      %v6531 = vmax.f32 %v6529, %v6530
      %v6532 = vrot.slane %v6531, 2
      %v6533 = vmax.f32 %v6531, %v6532
      %v6534 = vrot.slane %v6533, 1
      %v6535 = vmax.f32 %v6533, %v6534
      %v6536 = vsel %vm6507, %v6442, -inf
      %v6537 = vrot.slane %v6536, 4
      %v6538 = vmax.f32 %v6536, %v6537
      %v6539 = vrot.slane %v6538, 2
      %v6540 = vmax.f32 %v6538, %v6539
      %v6541 = vrot.slane %v6540, 1
      %v6542 = vmax.f32 %v6540, %v6541
      %v6543 = vsel %vm6507, %v6501, -inf
      %v6544 = vrot.slane %v6543, 4
      %v6545 = vmax.f32 %v6543, %v6544
      %v6546 = vrot.slane %v6545, 2
      %v6547 = vmax.f32 %v6545, %v6546
      %v6548 = vrot.slane %v6547, 1
      %v6549 = vmax.f32 %v6547, %v6548
      %v6550 = vsel %vm6507, %v6445, -inf
      %v6551 = vrot.slane %v6550, 4
      %v6552 = vmax.f32 %v6550, %v6551
      %v6553 = vrot.slane %v6552, 2
      %v6554 = vmax.f32 %v6552, %v6553
      %v6555 = vrot.slane %v6554, 1
      %v6556 = vmax.f32 %v6554, %v6555
      %v6557 = vsel %vm6507, %v6502, -inf
      %v6558 = vrot.slane %v6557, 4
      %v6559 = vmax.f32 %v6557, %v6558
      %v6560 = vrot.slane %v6559, 2
      %v6561 = vmax.f32 %v6559, %v6560
      %v6562 = vrot.slane %v6561, 1
      %v6563 = vmax.f32 %v6561, %v6562
      %v6565 = vlaneseq
      %v6566 = vshrl.u32 %v6565, 7
      %v6567 = vsub.s32 0, %v6566
      %v6568 = vrot.slane %v6494, %v6567
      %v6570 = vadd.f32 %v6514, %v6568
      %v6571 = vadd.f32 %v6521, %v6568
      %v6572 = vadd.f32 %v6528, %v6568
      %v6573 = vadd.f32 %v6535, %v6568
      %v6574 = vadd.f32 %v6542, %v6568
      %v6575 = vadd.f32 %v6549, %v6568
      %v6576 = vadd.f32 %v6556, %v6568
      %v6577 = vadd.f32 %v6563, %v6568
      %v6578 = vmax.f32 %v6570, 0.0
      %v6579 = vmax.f32 %v6571, 0.0
      %v6580 = vmax.f32 %v6572, 0.0
      %v6581 = vmax.f32 %v6573, 0.0
      %v6582 = vmax.f32 %v6574, 0.0
      %v6583 = vmax.f32 %v6575, 0.0
      %v6584 = vmax.f32 %v6576, 0.0
      %v6585 = vmax.f32 %v6577, 0.0
      %v6586 = vpack.c.bf16 %v6578, %v6578
      %v6587 = vpack.c.bf16 %v6579, %v6579
      %v6588 = vpack.c.bf16 %v6580, %v6580
      %v6589 = vpack.c.bf16 %v6581, %v6581
      %v6590 = vpack.c.bf16 %v6582, %v6582
      %v6591 = vpack.c.bf16 %v6583, %v6583
      %v6592 = vpack.c.bf16 %v6584, %v6584
      %v6593 = vpack.c.bf16 %v6585, %v6585
      %v6598 = vcombine.high %v6474, %v6474
      %v6599 = vcombine.high %v6477, %v6477
      %v6600 = vcombine.high %v6482, %v6482
      %v6601 = vcombine.high %v6485, %v6485
      %v6606 = vsel %vm6507, %v6474, -inf
      %v6607 = vrot.slane %v6606, 4
      %v6608 = vmax.f32 %v6606, %v6607
      %v6609 = vrot.slane %v6608, 2
      %v6610 = vmax.f32 %v6608, %v6609
      %v6611 = vrot.slane %v6610, 1
      %v6612 = vmax.f32 %v6610, %v6611
      %v6613 = vsel %vm6507, %v6598, -inf
      %v6614 = vrot.slane %v6613, 4
      %v6615 = vmax.f32 %v6613, %v6614
      %v6616 = vrot.slane %v6615, 2
      %v6617 = vmax.f32 %v6615, %v6616
      %v6618 = vrot.slane %v6617, 1
      %v6619 = vmax.f32 %v6617, %v6618
      %v6620 = vsel %vm6507, %v6477, -inf
      %v6621 = vrot.slane %v6620, 4
      %v6622 = vmax.f32 %v6620, %v6621
      %v6623 = vrot.slane %v6622, 2
      %v6624 = vmax.f32 %v6622, %v6623
      %v6625 = vrot.slane %v6624, 1
      %v6626 = vmax.f32 %v6624, %v6625
      %v6627 = vsel %vm6507, %v6599, -inf
      %v6628 = vrot.slane %v6627, 4
      %v6629 = vmax.f32 %v6627, %v6628
      %v6630 = vrot.slane %v6629, 2
      %v6631 = vmax.f32 %v6629, %v6630
      %v6632 = vrot.slane %v6631, 1
      %v6633 = vmax.f32 %v6631, %v6632
      %v6634 = vsel %vm6507, %v6482, -inf
      %v6635 = vrot.slane %v6634, 4
      %v6636 = vmax.f32 %v6634, %v6635
      %v6637 = vrot.slane %v6636, 2
      %v6638 = vmax.f32 %v6636, %v6637
      %v6639 = vrot.slane %v6638, 1
      %v6640 = vmax.f32 %v6638, %v6639
      %v6641 = vsel %vm6507, %v6600, -inf
      %v6642 = vrot.slane %v6641, 4
      %v6643 = vmax.f32 %v6641, %v6642
      %v6644 = vrot.slane %v6643, 2
      %v6645 = vmax.f32 %v6643, %v6644
      %v6646 = vrot.slane %v6645, 1
      %v6647 = vmax.f32 %v6645, %v6646
      %v6648 = vsel %vm6507, %v6485, -inf
      %v6649 = vrot.slane %v6648, 4
      %v6650 = vmax.f32 %v6648, %v6649
      %v6651 = vrot.slane %v6650, 2
      %v6652 = vmax.f32 %v6650, %v6651
      %v6653 = vrot.slane %v6652, 1
      %v6654 = vmax.f32 %v6652, %v6653
      %v6655 = vsel %vm6507, %v6601, -inf
      %v6656 = vrot.slane %v6655, 4
      %v6657 = vmax.f32 %v6655, %v6656
      %v6658 = vrot.slane %v6657, 2
      %v6659 = vmax.f32 %v6657, %v6658
      %v6660 = vrot.slane %v6659, 1
      %v6661 = vmax.f32 %v6659, %v6660
      %v6662 = vadd.f32 %v6612, %v6568
      %v6663 = vadd.f32 %v6619, %v6568
      %v6664 = vadd.f32 %v6626, %v6568
      %v6665 = vadd.f32 %v6633, %v6568
      %v6666 = vadd.f32 %v6640, %v6568
      %v6667 = vadd.f32 %v6647, %v6568
      %v6668 = vadd.f32 %v6654, %v6568
      %v6669 = vadd.f32 %v6661, %v6568
      %v6670 = vmax.f32 %v6662, 0.0
      %v6671 = vmax.f32 %v6663, 0.0
      %v6672 = vmax.f32 %v6664, 0.0
      %v6673 = vmax.f32 %v6665, 0.0
      %v6674 = vmax.f32 %v6666, 0.0
      %v6675 = vmax.f32 %v6667, 0.0
      %v6676 = vmax.f32 %v6668, 0.0
      %v6677 = vmax.f32 %v6669, 0.0
      %v6678 = vpack.c.bf16 %v6670, %v6670
      %v6679 = vpack.c.bf16 %v6671, %v6671
      %v6680 = vpack.c.bf16 %v6672, %v6672
      %v6681 = vpack.c.bf16 %v6673, %v6673
      %v6682 = vpack.c.bf16 %v6674, %v6674
      %v6683 = vpack.c.bf16 %v6675, %v6675
      %v6684 = vpack.c.bf16 %v6676, %v6676
      %v6685 = vpack.c.bf16 %v6677, %v6677
      %v6694 = vunpack.c.l.b16 %v6586
      %v6695 = vunpack.c.l.b16 %v6587
      %v6696 = vunpack.c.l.b16 %v6588
      %v6697 = vunpack.c.l.b16 %v6589
      %v6698 = vunpack.c.l.b16 %v6590
      %v6699 = vunpack.c.l.b16 %v6591
      %v6700 = vunpack.c.l.b16 %v6592
      %v6701 = vunpack.c.l.b16 %v6593
      %v6702 = vrot.slane %v6695, 7
      %v6703 = vsel %vm4251, %v6702, %v6694
      %v6704 = vrot.slane %v6696, 6
      %v6705 = vsel %vm4254, %v6704, %v6703
      %v6706 = vrot.slane %v6697, 5
      %v6707 = vsel %vm4257, %v6706, %v6705
      %v6708 = vrot.slane %v6698, 4
      %v6709 = vsel %vm4260, %v6708, %v6707
      %v6710 = vrot.slane %v6699, 3
      %v6711 = vsel %vm4263, %v6710, %v6709
      %v6712 = vrot.slane %v6700, 2
      %v6713 = vsel %vm4266, %v6712, %v6711
      %v6714 = vrot.slane %v6701, 1
      %v6715 = vsel %vm4269, %v6714, %v6713
      %v6716 = vpack.c.b16 %v6715, %v6715
      %v6725 = vunpack.c.l.b16 %v6678
      %v6726 = vunpack.c.l.b16 %v6679
      %v6727 = vunpack.c.l.b16 %v6680
      %v6728 = vunpack.c.l.b16 %v6681
      %v6729 = vunpack.c.l.b16 %v6682
      %v6730 = vunpack.c.l.b16 %v6683
      %v6731 = vunpack.c.l.b16 %v6684
      %v6732 = vunpack.c.l.b16 %v6685
      %v6733 = vrot.slane %v6726, 7
      %v6734 = vsel %vm4251, %v6733, %v6725
      %v6735 = vrot.slane %v6727, 6
      %v6736 = vsel %vm4254, %v6735, %v6734
      %v6737 = vrot.slane %v6728, 5
      %v6738 = vsel %vm4257, %v6737, %v6736
      %v6739 = vrot.slane %v6729, 4
      %v6740 = vsel %vm4260, %v6739, %v6738
      %v6741 = vrot.slane %v6730, 3
      %v6742 = vsel %vm4263, %v6741, %v6740
      %v6743 = vrot.slane %v6731, 2
      %v6744 = vsel %vm4266, %v6743, %v6742
      %v6745 = vrot.slane %v6732, 1
      %v6746 = vsel %vm4269, %v6745, %v6744
      %v6747 = vpack.c.b16 %v6746, %v6746
      %v6749 = vsel %vm790, %v6716, 0
      %v6751 = vsel %vm790, 0, %v6747
      %v6752 = vshll.u32 %v6749, 16
      %v6754 = vrot.slane %v6752, 1
      %v6755 = vsel %vm4437, %v4444, %v6754
      %v6756 = vshrl.u32 %v6749, 16
      %v6758 = vor.u32 %v6756, %v6754
      %v6759 = vsel %vm4437, %v6758, %v4443
      %v6760 = vshll.u32 %v6751, 16
      %v6762 = vrot.slane %v6760, 1
      %v6763 = vsel %vm4437, %v4444, %v6762
      %v6764 = vshrl.u32 %v6751, 16
      %v6766 = vor.u32 %v6764, %v6762
      %v6767 = vsel %vm4437, %v6766, %v4443
      %6768 = vrot.lane.b32.xlu0 %v6755, 64
      %v6769 = vpop.permute.xlu0 %6768
      %6770 = vrot.lane.b32.xlu0 %v6759, 64
      %v6771 = vpop.permute.xlu0 %6770
      %6772 = vrot.lane.b32.xlu0 %v6763, 64
      %v6773 = vpop.permute.xlu0 %6772
      %6774 = vrot.lane.b32.xlu0 %v6767, 64
      %v6775 = vpop.permute.xlu0 %6774
      %6776 = vrot.lane.b32.xlu0 %v4444, 64
      %v6777 = vpop.permute.xlu0 %6776
      %v6779 = vsel %vm1414, 0, %v6769
      %v6782 = vsel %vm1414, %v6749, %v6771
      %v6785 = vsel %vm1414, 0, %v6773
      %v6788 = vsel %vm1414, %v6751, %v6775
      %v6791 = vsel %vm1414, 0, %v6777
      %v6798 = vrot.slane %v6779, 1
      %v6799 = vrot.slane %v6782, 1
      %v6800 = vsel %vm4520, %v6798, %v6799
      %v6801 = vrot.slane %v6785, 1
      %v6802 = vsel %vm4520, %v6799, %v6801
      %v6803 = vrot.slane %v6788, 1
      %v6804 = vsel %vm4520, %v6801, %v6803
      %v6805 = vrot.slane %v6791, 1
      %v6806 = vsel %vm4520, %v6803, %v6805
      %v6812 = vrot.slane %v6779, 2
      %v6813 = vrot.slane %v6782, 2
      %v6814 = vsel %vm4605, %v6812, %v6813
      %v6815 = vrot.slane %v6800, 2
      %v6816 = vrot.slane %v6802, 2
      %v6817 = vsel %vm4605, %v6815, %v6816
      %v6818 = vrot.slane %v6785, 2
      %v6819 = vsel %vm4605, %v6813, %v6818
      %v6820 = vrot.slane %v6804, 2
      %v6821 = vsel %vm4605, %v6816, %v6820
      %v6822 = vrot.slane %v6788, 2
      %v6823 = vsel %vm4605, %v6818, %v6822
      %v6824 = vrot.slane %v6806, 2
      %v6825 = vsel %vm4605, %v6820, %v6824
      %v6826 = vrot.slane %v6791, 2
      %v6827 = vsel %vm4605, %v6822, %v6826
      %v6828 = vrot.slane %v6805, 2
      %v6829 = vsel %vm4605, %v6824, %v6828
      %v6840 = vrot.slane %v6779, 4
      %v6841 = vrot.slane %v6782, 4
      %v6842 = vsel %vm4640, %v6840, %v6841
      %v6843 = vrot.slane %v6800, 4
      %v6844 = vrot.slane %v6802, 4
      %v6845 = vsel %vm4640, %v6843, %v6844
      %v6846 = vrot.slane %v6814, 4
      %v6847 = vrot.slane %v6819, 4
      %v6848 = vsel %vm4640, %v6846, %v6847
      %v6849 = vrot.slane %v6817, 4
      %v6850 = vrot.slane %v6821, 4
      %v6851 = vsel %vm4640, %v6849, %v6850
      %v6852 = vrot.slane %v6785, 4
      %v6853 = vsel %vm4640, %v6841, %v6852
      %v6854 = vrot.slane %v6804, 4
      %v6855 = vsel %vm4640, %v6844, %v6854
      %v6856 = vrot.slane %v6823, 4
      %v6857 = vsel %vm4640, %v6847, %v6856
      %v6858 = vrot.slane %v6825, 4
      %v6859 = vsel %vm4640, %v6850, %v6858
      %v6860 = vrot.slane %v6788, 4
      %v6861 = vsel %vm4640, %v6852, %v6860
      %v6862 = vrot.slane %v6806, 4
      %v6863 = vsel %vm4640, %v6854, %v6862
      %v6864 = vrot.slane %v6827, 4
      %v6865 = vsel %vm4640, %v6856, %v6864
      %v6866 = vrot.slane %v6829, 4
      %v6867 = vsel %vm4640, %v6858, %v6866
      %v6868 = vrot.slane %v6791, 4
      %v6869 = vsel %vm4640, %v6860, %v6868
      %v6870 = vrot.slane %v6805, 4
      %v6871 = vsel %vm4640, %v6862, %v6870
      %v6872 = vrot.slane %v6826, 4
      %v6873 = vsel %vm4640, %v6864, %v6872
      %v6874 = vrot.slane %v6828, 4
      %v6875 = vsel %vm4640, %v6866, %v6874
      %v6896 = vld [vmem:[%s5] sm:$0xf]
      %v6897 = vld [vmem:[%s5 + $0x4] sm:$0xf]
      %v6898 = vld [vmem:[%s5 + $0x8] sm:$0xf]
      %v6899 = vld [vmem:[%s5 + $0xc] sm:$0xf]
      %v6900 = vld [vmem:[%s5 + $0x10] sm:$0xf]
      %v6901 = vld [vmem:[%s5 + $0x14] sm:$0xf]
      %v6902 = vld [vmem:[%s5 + $0x18] sm:$0xf]
      %v6903 = vld [vmem:[%s5 + $0x1c] sm:$0xf]
      %v6904 = vld [vmem:[%s5 + $0x20] sm:$0xf]
      %v6905 = vld [vmem:[%s5 + $0x24] sm:$0xf]
      %v6906 = vld [vmem:[%s5 + $0x28] sm:$0xf]
      %v6907 = vld [vmem:[%s5 + $0x2c] sm:$0xf]
      %v6908 = vld [vmem:[%s5 + $0x30] sm:$0xf]
      %v6909 = vld [vmem:[%s5 + $0x34] sm:$0xf]
      %v6910 = vld [vmem:[%s5 + $0x38] sm:$0xf]
      %v6911 = vld [vmem:[%s5 + $0x3c] sm:$0xf]
      %v6912 = vld [vmem:[%s5 + $0x40] sm:$0xf]
      %v6913 = vld [vmem:[%s5 + $0x44] sm:$0xf]
      %v6914 = vld [vmem:[%s5 + $0x48] sm:$0xf]
      %v6915 = vld [vmem:[%s5 + $0x4c] sm:$0xf]
      %v6916 = vld [vmem:[%s5 + $0x50] sm:$0xf]
      %v6917 = vld [vmem:[%s5 + $0x54] sm:$0xf]
      %v6918 = vld [vmem:[%s5 + $0x58] sm:$0xf]
      %v6919 = vld [vmem:[%s5 + $0x5c] sm:$0xf]
      %v6920 = vld [vmem:[%s5 + $0x60] sm:$0xf]
      %v6921 = vld [vmem:[%s5 + $0x64] sm:$0xf]
      %v6922 = vld [vmem:[%s5 + $0x68] sm:$0xf]
      %v6923 = vld [vmem:[%s5 + $0x6c] sm:$0xf]
      %v6924 = vld [vmem:[%s5 + $0x70] sm:$0xf]
      %v6925 = vld [vmem:[%s5 + $0x74] sm:$0xf]
      %v6926 = vld [vmem:[%s5 + $0x78] sm:$0xf]
      %v6927 = vld [vmem:[%s5 + $0x7c] sm:$0xf]
      %v6928 = vld [vmem:[%s5 + $0x80] sm:$0xf]
      %v6929 = vld [vmem:[%s5 + $0x84] sm:$0xf]
      %v6930 = vld [vmem:[%s5 + $0x88] sm:$0xf]
      %v6931 = vld [vmem:[%s5 + $0x8c] sm:$0xf]
      %v6932 = vld [vmem:[%s5 + $0x90] sm:$0xf]
      %v6933 = vld [vmem:[%s5 + $0x94] sm:$0xf]
      %v6934 = vld [vmem:[%s5 + $0x98] sm:$0xf]
      %v6935 = vld [vmem:[%s5 + $0x9c] sm:$0xf]
      %v6936 = vld [vmem:[%s5 + $0xa0] sm:$0xf]
      %v6937 = vld [vmem:[%s5 + $0xa4] sm:$0xf]
      %v6938 = vld [vmem:[%s5 + $0xa8] sm:$0xf]
      %v6939 = vld [vmem:[%s5 + $0xac] sm:$0xf]
      %v6940 = vld [vmem:[%s5 + $0xb0] sm:$0xf]
      %v6941 = vld [vmem:[%s5 + $0xb4] sm:$0xf]
      %v6942 = vld [vmem:[%s5 + $0xb8] sm:$0xf]
      %v6943 = vld [vmem:[%s5 + $0xbc] sm:$0xf]
      %v6944 = vld [vmem:[%s5 + $0xc0] sm:$0xf]
      %v6945 = vld [vmem:[%s5 + $0xc4] sm:$0xf]
      %v6946 = vld [vmem:[%s5 + $0xc8] sm:$0xf]
      %v6947 = vld [vmem:[%s5 + $0xcc] sm:$0xf]
      %v6948 = vld [vmem:[%s5 + $0xd0] sm:$0xf]
      %v6949 = vld [vmem:[%s5 + $0xd4] sm:$0xf]
      %v6950 = vld [vmem:[%s5 + $0xd8] sm:$0xf]
      %v6951 = vld [vmem:[%s5 + $0xdc] sm:$0xf]
      %v6952 = vld [vmem:[%s5 + $0xe0] sm:$0xf]
      %v6953 = vld [vmem:[%s5 + $0xe4] sm:$0xf]
      %v6954 = vld [vmem:[%s5 + $0xe8] sm:$0xf]
      %v6955 = vld [vmem:[%s5 + $0xec] sm:$0xf]
      %v6956 = vld [vmem:[%s5 + $0xf0] sm:$0xf]
      %v6957 = vld [vmem:[%s5 + $0xf4] sm:$0xf]
      %v6958 = vld [vmem:[%s5 + $0xf8] sm:$0xf]
      %v6959 = vld [vmem:[%s5 + $0xfc] sm:$0xf]
      %v6960 = vld [vmem:[%s5 + $0x100] sm:$0xf]
      %v6961 = vld [vmem:[%s5 + $0x104] sm:$0xf]
      %v6962 = vld [vmem:[%s5 + $0x108] sm:$0xf]
      %v6963 = vld [vmem:[%s5 + $0x10c] sm:$0xf]
      %v6964 = vld [vmem:[%s5 + $0x110] sm:$0xf]
      %v6965 = vld [vmem:[%s5 + $0x114] sm:$0xf]
      %v6966 = vld [vmem:[%s5 + $0x118] sm:$0xf]
      %v6967 = vld [vmem:[%s5 + $0x11c] sm:$0xf]
      %v6968 = vld [vmem:[%s5 + $0x120] sm:$0xf]
      %v6969 = vld [vmem:[%s5 + $0x124] sm:$0xf]
      %v6970 = vld [vmem:[%s5 + $0x128] sm:$0xf]
      %v6971 = vld [vmem:[%s5 + $0x12c] sm:$0xf]
      %v6972 = vld [vmem:[%s5 + $0x130] sm:$0xf]
      %v6973 = vld [vmem:[%s5 + $0x134] sm:$0xf]
      %v6974 = vld [vmem:[%s5 + $0x138] sm:$0xf]
      %v6975 = vld [vmem:[%s5 + $0x13c] sm:$0xf]
      %v6976 = vld [vmem:[%s5 + $0x140] sm:$0xf]
      %v6977 = vld [vmem:[%s5 + $0x144] sm:$0xf]
      %v6978 = vld [vmem:[%s5 + $0x148] sm:$0xf]
      %v6979 = vld [vmem:[%s5 + $0x14c] sm:$0xf]
      %v6980 = vld [vmem:[%s5 + $0x150] sm:$0xf]
      %v6981 = vld [vmem:[%s5 + $0x154] sm:$0xf]
      %v6982 = vld [vmem:[%s5 + $0x158] sm:$0xf]
      %v6983 = vld [vmem:[%s5 + $0x15c] sm:$0xf]
      %v6984 = vld [vmem:[%s5 + $0x160] sm:$0xf]
      %v6985 = vld [vmem:[%s5 + $0x164] sm:$0xf]
      %v6986 = vld [vmem:[%s5 + $0x168] sm:$0xf]
      %v6987 = vld [vmem:[%s5 + $0x16c] sm:$0xf]
      %v6988 = vld [vmem:[%s5 + $0x170] sm:$0xf]
      %v6989 = vld [vmem:[%s5 + $0x174] sm:$0xf]
      %v6990 = vld [vmem:[%s5 + $0x178] sm:$0xf]
      %v6991 = vld [vmem:[%s5 + $0x17c] sm:$0xf]
      %v6992 = vld [vmem:[%s5 + $0x180] sm:$0xf]
      %v6993 = vld [vmem:[%s5 + $0x184] sm:$0xf]
      %v6994 = vld [vmem:[%s5 + $0x188] sm:$0xf]
      %v6995 = vld [vmem:[%s5 + $0x18c] sm:$0xf]
      %v6996 = vld [vmem:[%s5 + $0x190] sm:$0xf]
      %v6997 = vld [vmem:[%s5 + $0x194] sm:$0xf]
      %v6998 = vld [vmem:[%s5 + $0x198] sm:$0xf]
      %v6999 = vld [vmem:[%s5 + $0x19c] sm:$0xf]
      %v7000 = vld [vmem:[%s5 + $0x1a0] sm:$0xf]
      %v7001 = vld [vmem:[%s5 + $0x1a4] sm:$0xf]
      %v7002 = vld [vmem:[%s5 + $0x1a8] sm:$0xf]
      %v7003 = vld [vmem:[%s5 + $0x1ac] sm:$0xf]
      %v7004 = vld [vmem:[%s5 + $0x1b0] sm:$0xf]
      %v7005 = vld [vmem:[%s5 + $0x1b4] sm:$0xf]
      %v7006 = vld [vmem:[%s5 + $0x1b8] sm:$0xf]
      %v7007 = vld [vmem:[%s5 + $0x1bc] sm:$0xf]
      %v7008 = vld [vmem:[%s5 + $0x1c0] sm:$0xf]
      %v7009 = vld [vmem:[%s5 + $0x1c4] sm:$0xf]
      %v7010 = vld [vmem:[%s5 + $0x1c8] sm:$0xf]
      %v7011 = vld [vmem:[%s5 + $0x1cc] sm:$0xf]
      %v7012 = vld [vmem:[%s5 + $0x1d0] sm:$0xf]
      %v7013 = vld [vmem:[%s5 + $0x1d4] sm:$0xf]
      %v7014 = vld [vmem:[%s5 + $0x1d8] sm:$0xf]
      %v7015 = vld [vmem:[%s5 + $0x1dc] sm:$0xf]
      %v7016 = vld [vmem:[%s5 + $0x1e0] sm:$0xf]
      %v7017 = vld [vmem:[%s5 + $0x1e4] sm:$0xf]
      %v7018 = vld [vmem:[%s5 + $0x1e8] sm:$0xf]
      %v7019 = vld [vmem:[%s5 + $0x1ec] sm:$0xf]
      %v7020 = vld [vmem:[%s5 + $0x1f0] sm:$0xf]
      %v7021 = vld [vmem:[%s5 + $0x1f4] sm:$0xf]
      %v7022 = vld [vmem:[%s5 + $0x1f8] sm:$0xf]
      %v7023 = vld [vmem:[%s5 + $0x1fc] sm:$0xf]
      %v7024 = vld [vmem:[%s5 + $0x200] sm:$0xf]
      %v7025 = vld [vmem:[%s5 + $0x204] sm:$0xf]
      %v7026 = vld [vmem:[%s5 + $0x208] sm:$0xf]
      %v7027 = vld [vmem:[%s5 + $0x20c] sm:$0xf]
      %v7028 = vld [vmem:[%s5 + $0x210] sm:$0xf]
      %v7029 = vld [vmem:[%s5 + $0x214] sm:$0xf]
      %v7030 = vld [vmem:[%s5 + $0x218] sm:$0xf]
      %v7031 = vld [vmem:[%s5 + $0x21c] sm:$0xf]
      %v7032 = vld [vmem:[%s5 + $0x220] sm:$0xf]
      %v7033 = vld [vmem:[%s5 + $0x224] sm:$0xf]
      %v7034 = vld [vmem:[%s5 + $0x228] sm:$0xf]
      %v7035 = vld [vmem:[%s5 + $0x22c] sm:$0xf]
      %v7036 = vld [vmem:[%s5 + $0x230] sm:$0xf]
      %v7037 = vld [vmem:[%s5 + $0x234] sm:$0xf]
      %v7038 = vld [vmem:[%s5 + $0x238] sm:$0xf]
      %v7039 = vld [vmem:[%s5 + $0x23c] sm:$0xf]
      %v7040 = vld [vmem:[%s5 + $0x240] sm:$0xf]
      %v7041 = vld [vmem:[%s5 + $0x244] sm:$0xf]
      %v7042 = vld [vmem:[%s5 + $0x248] sm:$0xf]
      %v7043 = vld [vmem:[%s5 + $0x24c] sm:$0xf]
      %v7044 = vld [vmem:[%s5 + $0x250] sm:$0xf]
      %v7045 = vld [vmem:[%s5 + $0x254] sm:$0xf]
      %v7046 = vld [vmem:[%s5 + $0x258] sm:$0xf]
      %v7047 = vld [vmem:[%s5 + $0x25c] sm:$0xf]
      %v7048 = vld [vmem:[%s5 + $0x260] sm:$0xf]
      %v7049 = vld [vmem:[%s5 + $0x264] sm:$0xf]
      %v7050 = vld [vmem:[%s5 + $0x268] sm:$0xf]
      %v7051 = vld [vmem:[%s5 + $0x26c] sm:$0xf]
      %v7052 = vld [vmem:[%s5 + $0x270] sm:$0xf]
      %v7053 = vld [vmem:[%s5 + $0x274] sm:$0xf]
      %v7054 = vld [vmem:[%s5 + $0x278] sm:$0xf]
      %v7055 = vld [vmem:[%s5 + $0x27c] sm:$0xf]
      %v7056 = vld [vmem:[%s5 + $0x280] sm:$0xf]
      %v7057 = vld [vmem:[%s5 + $0x284] sm:$0xf]
      %v7058 = vld [vmem:[%s5 + $0x288] sm:$0xf]
      %v7059 = vld [vmem:[%s5 + $0x28c] sm:$0xf]
      %v7060 = vld [vmem:[%s5 + $0x290] sm:$0xf]
      %v7061 = vld [vmem:[%s5 + $0x294] sm:$0xf]
      %v7062 = vld [vmem:[%s5 + $0x298] sm:$0xf]
      %v7063 = vld [vmem:[%s5 + $0x29c] sm:$0xf]
      %v7064 = vld [vmem:[%s5 + $0x2a0] sm:$0xf]
      %v7065 = vld [vmem:[%s5 + $0x2a4] sm:$0xf]
      %v7066 = vld [vmem:[%s5 + $0x2a8] sm:$0xf]
      %v7067 = vld [vmem:[%s5 + $0x2ac] sm:$0xf]
      %v7068 = vld [vmem:[%s5 + $0x2b0] sm:$0xf]
      %v7069 = vld [vmem:[%s5 + $0x2b4] sm:$0xf]
      %v7070 = vld [vmem:[%s5 + $0x2b8] sm:$0xf]
      %v7071 = vld [vmem:[%s5 + $0x2bc] sm:$0xf]
      %v7072 = vld [vmem:[%s5 + $0x2c0] sm:$0xf]
      %v7073 = vld [vmem:[%s5 + $0x2c4] sm:$0xf]
      %v7074 = vld [vmem:[%s5 + $0x2c8] sm:$0xf]
      %v7075 = vld [vmem:[%s5 + $0x2cc] sm:$0xf]
      %v7076 = vld [vmem:[%s5 + $0x2d0] sm:$0xf]
      %v7077 = vld [vmem:[%s5 + $0x2d4] sm:$0xf]
      %v7078 = vld [vmem:[%s5 + $0x2d8] sm:$0xf]
      %v7079 = vld [vmem:[%s5 + $0x2dc] sm:$0xf]
      %v7080 = vld [vmem:[%s5 + $0x2e0] sm:$0xf]
      %v7081 = vld [vmem:[%s5 + $0x2e4] sm:$0xf]
      %v7082 = vld [vmem:[%s5 + $0x2e8] sm:$0xf]
      %v7083 = vld [vmem:[%s5 + $0x2ec] sm:$0xf]
      %v7084 = vld [vmem:[%s5 + $0x2f0] sm:$0xf]
      %v7085 = vld [vmem:[%s5 + $0x2f4] sm:$0xf]
      %v7086 = vld [vmem:[%s5 + $0x2f8] sm:$0xf]
      %v7087 = vld [vmem:[%s5 + $0x2fc] sm:$0xf]
      %v7088 = vld [vmem:[%s5 + $0x300] sm:$0xf]
      %v7089 = vld [vmem:[%s5 + $0x304] sm:$0xf]
      %v7090 = vld [vmem:[%s5 + $0x308] sm:$0xf]
      %v7091 = vld [vmem:[%s5 + $0x30c] sm:$0xf]
      %v7092 = vld [vmem:[%s5 + $0x310] sm:$0xf]
      %v7093 = vld [vmem:[%s5 + $0x314] sm:$0xf]
      %v7094 = vld [vmem:[%s5 + $0x318] sm:$0xf]
      %v7095 = vld [vmem:[%s5 + $0x31c] sm:$0xf]
      %v7096 = vld [vmem:[%s5 + $0x320] sm:$0xf]
      %v7097 = vld [vmem:[%s5 + $0x324] sm:$0xf]
      %v7098 = vld [vmem:[%s5 + $0x328] sm:$0xf]
      %v7099 = vld [vmem:[%s5 + $0x32c] sm:$0xf]
      %v7100 = vld [vmem:[%s5 + $0x330] sm:$0xf]
      %v7101 = vld [vmem:[%s5 + $0x334] sm:$0xf]
      %v7102 = vld [vmem:[%s5 + $0x338] sm:$0xf]
      %v7103 = vld [vmem:[%s5 + $0x33c] sm:$0xf]
      %v7104 = vld [vmem:[%s5 + $0x340] sm:$0xf]
      %v7105 = vld [vmem:[%s5 + $0x344] sm:$0xf]
      %v7106 = vld [vmem:[%s5 + $0x348] sm:$0xf]
      %v7107 = vld [vmem:[%s5 + $0x34c] sm:$0xf]
      %v7108 = vld [vmem:[%s5 + $0x350] sm:$0xf]
      %v7109 = vld [vmem:[%s5 + $0x354] sm:$0xf]
      %v7110 = vld [vmem:[%s5 + $0x358] sm:$0xf]
      %v7111 = vld [vmem:[%s5 + $0x35c] sm:$0xf]
      %v7112 = vld [vmem:[%s5 + $0x360] sm:$0xf]
      %v7113 = vld [vmem:[%s5 + $0x364] sm:$0xf]
      %v7114 = vld [vmem:[%s5 + $0x368] sm:$0xf]
      %v7115 = vld [vmem:[%s5 + $0x36c] sm:$0xf]
      %v7116 = vld [vmem:[%s5 + $0x370] sm:$0xf]
      %v7117 = vld [vmem:[%s5 + $0x374] sm:$0xf]
      %v7118 = vld [vmem:[%s5 + $0x378] sm:$0xf]
      %v7119 = vld [vmem:[%s5 + $0x37c] sm:$0xf]
      %v7120 = vld [vmem:[%s5 + $0x380] sm:$0xf]
      %v7121 = vld [vmem:[%s5 + $0x384] sm:$0xf]
      %v7122 = vld [vmem:[%s5 + $0x388] sm:$0xf]
      %v7123 = vld [vmem:[%s5 + $0x38c] sm:$0xf]
      %v7124 = vld [vmem:[%s5 + $0x390] sm:$0xf]
      %v7125 = vld [vmem:[%s5 + $0x394] sm:$0xf]
      %v7126 = vld [vmem:[%s5 + $0x398] sm:$0xf]
      %v7127 = vld [vmem:[%s5 + $0x39c] sm:$0xf]
      %v7128 = vld [vmem:[%s5 + $0x3a0] sm:$0xf]
      %v7129 = vld [vmem:[%s5 + $0x3a4] sm:$0xf]
      %v7130 = vld [vmem:[%s5 + $0x3a8] sm:$0xf]
      %v7131 = vld [vmem:[%s5 + $0x3ac] sm:$0xf]
      %v7132 = vld [vmem:[%s5 + $0x3b0] sm:$0xf]
      %v7133 = vld [vmem:[%s5 + $0x3b4] sm:$0xf]
      %v7134 = vld [vmem:[%s5 + $0x3b8] sm:$0xf]
      %v7135 = vld [vmem:[%s5 + $0x3bc] sm:$0xf]
      %v7136 = vld [vmem:[%s5 + $0x3c0] sm:$0xf]
      %v7137 = vld [vmem:[%s5 + $0x3c4] sm:$0xf]
      %v7138 = vld [vmem:[%s5 + $0x3c8] sm:$0xf]
      %v7139 = vld [vmem:[%s5 + $0x3cc] sm:$0xf]
      %v7140 = vld [vmem:[%s5 + $0x3d0] sm:$0xf]
      %v7141 = vld [vmem:[%s5 + $0x3d4] sm:$0xf]
      %v7142 = vld [vmem:[%s5 + $0x3d8] sm:$0xf]
      %v7143 = vld [vmem:[%s5 + $0x3dc] sm:$0xf]
      %v7144 = vld [vmem:[%s5 + $0x3e0] sm:$0xf]
      %v7145 = vld [vmem:[%s5 + $0x3e4] sm:$0xf]
      %v7146 = vld [vmem:[%s5 + $0x3e8] sm:$0xf]
      %v7147 = vld [vmem:[%s5 + $0x3ec] sm:$0xf]
      %v7148 = vld [vmem:[%s5 + $0x3f0] sm:$0xf]
      %v7149 = vld [vmem:[%s5 + $0x3f4] sm:$0xf]
      %v7150 = vld [vmem:[%s5 + $0x3f8] sm:$0xf]
      %v7151 = vld [vmem:[%s5 + $0x3fc] sm:$0xf]
      %v7408 = vunpack.c.l.b16 %v6896
      %v7409 = vunpack.c.l.b16 %v6897
      %v7410 = vunpack.c.l.b16 %v6898
      %v7411 = vunpack.c.l.b16 %v6899
      %v7412 = vunpack.c.l.b16 %v6900
      %v7413 = vunpack.c.l.b16 %v6901
      %v7414 = vunpack.c.l.b16 %v6902
      %v7415 = vunpack.c.l.b16 %v6903
      %v7416 = vunpack.c.l.b16 %v6904
      %v7417 = vunpack.c.l.b16 %v6905
      %v7418 = vunpack.c.l.b16 %v6906
      %v7419 = vunpack.c.l.b16 %v6907
      %v7420 = vunpack.c.l.b16 %v6908
      %v7421 = vunpack.c.l.b16 %v6909
      %v7422 = vunpack.c.l.b16 %v6910
      %v7423 = vunpack.c.l.b16 %v6911
      %v7424 = vunpack.c.l.b16 %v6912
      %v7425 = vunpack.c.l.b16 %v6913
      %v7426 = vunpack.c.l.b16 %v6914
      %v7427 = vunpack.c.l.b16 %v6915
      %v7428 = vunpack.c.l.b16 %v6916
      %v7429 = vunpack.c.l.b16 %v6917
      %v7430 = vunpack.c.l.b16 %v6918
      %v7431 = vunpack.c.l.b16 %v6919
      %v7432 = vunpack.c.l.b16 %v6920
      %v7433 = vunpack.c.l.b16 %v6921
      %v7434 = vunpack.c.l.b16 %v6922
      %v7435 = vunpack.c.l.b16 %v6923
      %v7436 = vunpack.c.l.b16 %v6924
      %v7437 = vunpack.c.l.b16 %v6925
      %v7438 = vunpack.c.l.b16 %v6926
      %v7439 = vunpack.c.l.b16 %v6927
      %v7440 = vunpack.c.l.b16 %v6928
      %v7441 = vunpack.c.l.b16 %v6929
      %v7442 = vunpack.c.l.b16 %v6930
      %v7443 = vunpack.c.l.b16 %v6931
      %v7444 = vunpack.c.l.b16 %v6932
      %v7445 = vunpack.c.l.b16 %v6933
      %v7446 = vunpack.c.l.b16 %v6934
      %v7447 = vunpack.c.l.b16 %v6935
      %v7448 = vunpack.c.l.b16 %v6936
      %v7449 = vunpack.c.l.b16 %v6937
      %v7450 = vunpack.c.l.b16 %v6938
      %v7451 = vunpack.c.l.b16 %v6939
      %v7452 = vunpack.c.l.b16 %v6940
      %v7453 = vunpack.c.l.b16 %v6941
      %v7454 = vunpack.c.l.b16 %v6942
      %v7455 = vunpack.c.l.b16 %v6943
      %v7456 = vunpack.c.l.b16 %v6944
      %v7457 = vunpack.c.l.b16 %v6945
      %v7458 = vunpack.c.l.b16 %v6946
      %v7459 = vunpack.c.l.b16 %v6947
      %v7460 = vunpack.c.l.b16 %v6948
      %v7461 = vunpack.c.l.b16 %v6949
      %v7462 = vunpack.c.l.b16 %v6950
      %v7463 = vunpack.c.l.b16 %v6951
      %v7464 = vunpack.c.l.b16 %v6952
      %v7465 = vunpack.c.l.b16 %v6953
      %v7466 = vunpack.c.l.b16 %v6954
      %v7467 = vunpack.c.l.b16 %v6955
      %v7468 = vunpack.c.l.b16 %v6956
      %v7469 = vunpack.c.l.b16 %v6957
      %v7470 = vunpack.c.l.b16 %v6958
      %v7471 = vunpack.c.l.b16 %v6959
      %v7472 = vunpack.c.l.b16 %v6960
      %v7473 = vunpack.c.l.b16 %v6961
      %v7474 = vunpack.c.l.b16 %v6962
      %v7475 = vunpack.c.l.b16 %v6963
      %v7476 = vunpack.c.l.b16 %v6964
      %v7477 = vunpack.c.l.b16 %v6965
      %v7478 = vunpack.c.l.b16 %v6966
      %v7479 = vunpack.c.l.b16 %v6967
      %v7480 = vunpack.c.l.b16 %v6968
      %v7481 = vunpack.c.l.b16 %v6969
      %v7482 = vunpack.c.l.b16 %v6970
      %v7483 = vunpack.c.l.b16 %v6971
      %v7484 = vunpack.c.l.b16 %v6972
      %v7485 = vunpack.c.l.b16 %v6973
      %v7486 = vunpack.c.l.b16 %v6974
      %v7487 = vunpack.c.l.b16 %v6975
      %v7488 = vunpack.c.l.b16 %v6976
      %v7489 = vunpack.c.l.b16 %v6977
      %v7490 = vunpack.c.l.b16 %v6978
      %v7491 = vunpack.c.l.b16 %v6979
      %v7492 = vunpack.c.l.b16 %v6980
      %v7493 = vunpack.c.l.b16 %v6981
      %v7494 = vunpack.c.l.b16 %v6982
      %v7495 = vunpack.c.l.b16 %v6983
      %v7496 = vunpack.c.l.b16 %v6984
      %v7497 = vunpack.c.l.b16 %v6985
      %v7498 = vunpack.c.l.b16 %v6986
      %v7499 = vunpack.c.l.b16 %v6987
      %v7500 = vunpack.c.l.b16 %v6988
      %v7501 = vunpack.c.l.b16 %v6989
      %v7502 = vunpack.c.l.b16 %v6990
      %v7503 = vunpack.c.l.b16 %v6991
      %v7504 = vunpack.c.l.b16 %v6992
      %v7505 = vunpack.c.l.b16 %v6993
      %v7506 = vunpack.c.l.b16 %v6994
      %v7507 = vunpack.c.l.b16 %v6995
      %v7508 = vunpack.c.l.b16 %v6996
      %v7509 = vunpack.c.l.b16 %v6997
      %v7510 = vunpack.c.l.b16 %v6998
      %v7511 = vunpack.c.l.b16 %v6999
      %v7512 = vunpack.c.l.b16 %v7000
      %v7513 = vunpack.c.l.b16 %v7001
      %v7514 = vunpack.c.l.b16 %v7002
      %v7515 = vunpack.c.l.b16 %v7003
      %v7516 = vunpack.c.l.b16 %v7004
      %v7517 = vunpack.c.l.b16 %v7005
      %v7518 = vunpack.c.l.b16 %v7006
      %v7519 = vunpack.c.l.b16 %v7007
      %v7520 = vunpack.c.l.b16 %v7008
      %v7521 = vunpack.c.l.b16 %v7009
      %v7522 = vunpack.c.l.b16 %v7010
      %v7523 = vunpack.c.l.b16 %v7011
      %v7524 = vunpack.c.l.b16 %v7012
      %v7525 = vunpack.c.l.b16 %v7013
      %v7526 = vunpack.c.l.b16 %v7014
      %v7527 = vunpack.c.l.b16 %v7015
      %v7528 = vunpack.c.l.b16 %v7016
      %v7529 = vunpack.c.l.b16 %v7017
      %v7530 = vunpack.c.l.b16 %v7018
      %v7531 = vunpack.c.l.b16 %v7019
      %v7532 = vunpack.c.l.b16 %v7020
      %v7533 = vunpack.c.l.b16 %v7021
      %v7534 = vunpack.c.l.b16 %v7022
      %v7535 = vunpack.c.l.b16 %v7023
      %v7536 = vunpack.c.l.b16 %v7024
      %v7537 = vunpack.c.l.b16 %v7025
      %v7538 = vunpack.c.l.b16 %v7026
      %v7539 = vunpack.c.l.b16 %v7027
      %v7540 = vunpack.c.l.b16 %v7028
      %v7541 = vunpack.c.l.b16 %v7029
      %v7542 = vunpack.c.l.b16 %v7030
      %v7543 = vunpack.c.l.b16 %v7031
      %v7544 = vunpack.c.l.b16 %v7032
      %v7545 = vunpack.c.l.b16 %v7033
      %v7546 = vunpack.c.l.b16 %v7034
      %v7547 = vunpack.c.l.b16 %v7035
      %v7548 = vunpack.c.l.b16 %v7036
      %v7549 = vunpack.c.l.b16 %v7037
      %v7550 = vunpack.c.l.b16 %v7038
      %v7551 = vunpack.c.l.b16 %v7039
      %v7552 = vunpack.c.l.b16 %v7040
      %v7553 = vunpack.c.l.b16 %v7041
      %v7554 = vunpack.c.l.b16 %v7042
      %v7555 = vunpack.c.l.b16 %v7043
      %v7556 = vunpack.c.l.b16 %v7044
      %v7557 = vunpack.c.l.b16 %v7045
      %v7558 = vunpack.c.l.b16 %v7046
      %v7559 = vunpack.c.l.b16 %v7047
      %v7560 = vunpack.c.l.b16 %v7048
      %v7561 = vunpack.c.l.b16 %v7049
      %v7562 = vunpack.c.l.b16 %v7050
      %v7563 = vunpack.c.l.b16 %v7051
      %v7564 = vunpack.c.l.b16 %v7052
      %v7565 = vunpack.c.l.b16 %v7053
      %v7566 = vunpack.c.l.b16 %v7054
      %v7567 = vunpack.c.l.b16 %v7055
      %v7568 = vunpack.c.l.b16 %v7056
      %v7569 = vunpack.c.l.b16 %v7057
      %v7570 = vunpack.c.l.b16 %v7058
      %v7571 = vunpack.c.l.b16 %v7059
      %v7572 = vunpack.c.l.b16 %v7060
      %v7573 = vunpack.c.l.b16 %v7061
      %v7574 = vunpack.c.l.b16 %v7062
      %v7575 = vunpack.c.l.b16 %v7063
      %v7576 = vunpack.c.l.b16 %v7064
      %v7577 = vunpack.c.l.b16 %v7065
      %v7578 = vunpack.c.l.b16 %v7066
      %v7579 = vunpack.c.l.b16 %v7067
      %v7580 = vunpack.c.l.b16 %v7068
      %v7581 = vunpack.c.l.b16 %v7069
      %v7582 = vunpack.c.l.b16 %v7070
      %v7583 = vunpack.c.l.b16 %v7071
      %v7584 = vunpack.c.l.b16 %v7072
      %v7585 = vunpack.c.l.b16 %v7073
      %v7586 = vunpack.c.l.b16 %v7074
      %v7587 = vunpack.c.l.b16 %v7075
      %v7588 = vunpack.c.l.b16 %v7076
      %v7589 = vunpack.c.l.b16 %v7077
      %v7590 = vunpack.c.l.b16 %v7078
      %v7591 = vunpack.c.l.b16 %v7079
      %v7592 = vunpack.c.l.b16 %v7080
      %v7593 = vunpack.c.l.b16 %v7081
      %v7594 = vunpack.c.l.b16 %v7082
      %v7595 = vunpack.c.l.b16 %v7083
      %v7596 = vunpack.c.l.b16 %v7084
      %v7597 = vunpack.c.l.b16 %v7085
      %v7598 = vunpack.c.l.b16 %v7086
      %v7599 = vunpack.c.l.b16 %v7087
      %v7600 = vunpack.c.l.b16 %v7088
      %v7601 = vunpack.c.l.b16 %v7089
      %v7602 = vunpack.c.l.b16 %v7090
      %v7603 = vunpack.c.l.b16 %v7091
      %v7604 = vunpack.c.l.b16 %v7092
      %v7605 = vunpack.c.l.b16 %v7093
      %v7606 = vunpack.c.l.b16 %v7094
      %v7607 = vunpack.c.l.b16 %v7095
      %v7608 = vunpack.c.l.b16 %v7096
      %v7609 = vunpack.c.l.b16 %v7097
      %v7610 = vunpack.c.l.b16 %v7098
      %v7611 = vunpack.c.l.b16 %v7099
      %v7612 = vunpack.c.l.b16 %v7100
      %v7613 = vunpack.c.l.b16 %v7101
      %v7614 = vunpack.c.l.b16 %v7102
      %v7615 = vunpack.c.l.b16 %v7103
      %v7616 = vunpack.c.l.b16 %v7104
      %v7617 = vunpack.c.l.b16 %v7105
      %v7618 = vunpack.c.l.b16 %v7106
      %v7619 = vunpack.c.l.b16 %v7107
      %v7620 = vunpack.c.l.b16 %v7108
      %v7621 = vunpack.c.l.b16 %v7109
      %v7622 = vunpack.c.l.b16 %v7110
      %v7623 = vunpack.c.l.b16 %v7111
      %v7624 = vunpack.c.l.b16 %v7112
      %v7625 = vunpack.c.l.b16 %v7113
      %v7626 = vunpack.c.l.b16 %v7114
      %v7627 = vunpack.c.l.b16 %v7115
      %v7628 = vunpack.c.l.b16 %v7116
      %v7629 = vunpack.c.l.b16 %v7117
      %v7630 = vunpack.c.l.b16 %v7118
      %v7631 = vunpack.c.l.b16 %v7119
      %v7632 = vunpack.c.l.b16 %v7120
      %v7633 = vunpack.c.l.b16 %v7121
      %v7634 = vunpack.c.l.b16 %v7122
      %v7635 = vunpack.c.l.b16 %v7123
      %v7636 = vunpack.c.l.b16 %v7124
      %v7637 = vunpack.c.l.b16 %v7125
      %v7638 = vunpack.c.l.b16 %v7126
      %v7639 = vunpack.c.l.b16 %v7127
      %v7640 = vunpack.c.l.b16 %v7128
      %v7641 = vunpack.c.l.b16 %v7129
      %v7642 = vunpack.c.l.b16 %v7130
      %v7643 = vunpack.c.l.b16 %v7131
      %v7644 = vunpack.c.l.b16 %v7132
      %v7645 = vunpack.c.l.b16 %v7133
      %v7646 = vunpack.c.l.b16 %v7134
      %v7647 = vunpack.c.l.b16 %v7135
      %v7648 = vunpack.c.l.b16 %v7136
      %v7649 = vunpack.c.l.b16 %v7137
      %v7650 = vunpack.c.l.b16 %v7138
      %v7651 = vunpack.c.l.b16 %v7139
      %v7652 = vunpack.c.l.b16 %v7140
      %v7653 = vunpack.c.l.b16 %v7141
      %v7654 = vunpack.c.l.b16 %v7142
      %v7655 = vunpack.c.l.b16 %v7143
      %v7656 = vunpack.c.l.b16 %v7144
      %v7657 = vunpack.c.l.b16 %v7145
      %v7658 = vunpack.c.l.b16 %v7146
      %v7659 = vunpack.c.l.b16 %v7147
      %v7660 = vunpack.c.l.b16 %v7148
      %v7661 = vunpack.c.l.b16 %v7149
      %v7662 = vunpack.c.l.b16 %v7150
      %v7663 = vunpack.c.l.b16 %v7151
      %v7664 = vpack.c.b16 %v7409, %v7408
      %v7665 = vpack.c.b16 %v7411, %v7410
      %v7666 = vpack.c.b16 %v7413, %v7412
      %v7667 = vpack.c.b16 %v7415, %v7414
      %v7668 = vpack.c.b16 %v7417, %v7416
      %v7669 = vpack.c.b16 %v7419, %v7418
      %v7670 = vpack.c.b16 %v7421, %v7420
      %v7671 = vpack.c.b16 %v7423, %v7422
      %v7672 = vpack.c.b16 %v7425, %v7424
      %v7673 = vpack.c.b16 %v7427, %v7426
      %v7674 = vpack.c.b16 %v7429, %v7428
      %v7675 = vpack.c.b16 %v7431, %v7430
      %v7676 = vpack.c.b16 %v7433, %v7432
      %v7677 = vpack.c.b16 %v7435, %v7434
      %v7678 = vpack.c.b16 %v7437, %v7436
      %v7679 = vpack.c.b16 %v7439, %v7438
      %v7680 = vpack.c.b16 %v7441, %v7440
      %v7681 = vpack.c.b16 %v7443, %v7442
      %v7682 = vpack.c.b16 %v7445, %v7444
      %v7683 = vpack.c.b16 %v7447, %v7446
      %v7684 = vpack.c.b16 %v7449, %v7448
      %v7685 = vpack.c.b16 %v7451, %v7450
      %v7686 = vpack.c.b16 %v7453, %v7452
      %v7687 = vpack.c.b16 %v7455, %v7454
      %v7688 = vpack.c.b16 %v7457, %v7456
      %v7689 = vpack.c.b16 %v7459, %v7458
      %v7690 = vpack.c.b16 %v7461, %v7460
      %v7691 = vpack.c.b16 %v7463, %v7462
      %v7692 = vpack.c.b16 %v7465, %v7464
      %v7693 = vpack.c.b16 %v7467, %v7466
      %v7694 = vpack.c.b16 %v7469, %v7468
      %v7695 = vpack.c.b16 %v7471, %v7470
      %v7696 = vpack.c.b16 %v7473, %v7472
      %v7697 = vpack.c.b16 %v7475, %v7474
      %v7698 = vpack.c.b16 %v7477, %v7476
      %v7699 = vpack.c.b16 %v7479, %v7478
      %v7700 = vpack.c.b16 %v7481, %v7480
      %v7701 = vpack.c.b16 %v7483, %v7482
      %v7702 = vpack.c.b16 %v7485, %v7484
      %v7703 = vpack.c.b16 %v7487, %v7486
      %v7704 = vpack.c.b16 %v7489, %v7488
      %v7705 = vpack.c.b16 %v7491, %v7490
      %v7706 = vpack.c.b16 %v7493, %v7492
      %v7707 = vpack.c.b16 %v7495, %v7494
      %v7708 = vpack.c.b16 %v7497, %v7496
      %v7709 = vpack.c.b16 %v7499, %v7498
      %v7710 = vpack.c.b16 %v7501, %v7500
      %v7711 = vpack.c.b16 %v7503, %v7502
      %v7712 = vpack.c.b16 %v7505, %v7504
      %v7713 = vpack.c.b16 %v7507, %v7506
      %v7714 = vpack.c.b16 %v7509, %v7508
      %v7715 = vpack.c.b16 %v7511, %v7510
      %v7716 = vpack.c.b16 %v7513, %v7512
      %v7717 = vpack.c.b16 %v7515, %v7514
      %v7718 = vpack.c.b16 %v7517, %v7516
      %v7719 = vpack.c.b16 %v7519, %v7518
      %v7720 = vpack.c.b16 %v7521, %v7520
      %v7721 = vpack.c.b16 %v7523, %v7522
      %v7722 = vpack.c.b16 %v7525, %v7524
      %v7723 = vpack.c.b16 %v7527, %v7526
      %v7724 = vpack.c.b16 %v7529, %v7528
      %v7725 = vpack.c.b16 %v7531, %v7530
      %v7726 = vpack.c.b16 %v7533, %v7532
      %v7727 = vpack.c.b16 %v7535, %v7534
      %v7728 = vpack.c.b16 %v7537, %v7536
      %v7729 = vpack.c.b16 %v7539, %v7538
      %v7730 = vpack.c.b16 %v7541, %v7540
      %v7731 = vpack.c.b16 %v7543, %v7542
      %v7732 = vpack.c.b16 %v7545, %v7544
      %v7733 = vpack.c.b16 %v7547, %v7546
      %v7734 = vpack.c.b16 %v7549, %v7548
      %v7735 = vpack.c.b16 %v7551, %v7550
      %v7736 = vpack.c.b16 %v7553, %v7552
      %v7737 = vpack.c.b16 %v7555, %v7554
      %v7738 = vpack.c.b16 %v7557, %v7556
      %v7739 = vpack.c.b16 %v7559, %v7558
      %v7740 = vpack.c.b16 %v7561, %v7560
      %v7741 = vpack.c.b16 %v7563, %v7562
      %v7742 = vpack.c.b16 %v7565, %v7564
      %v7743 = vpack.c.b16 %v7567, %v7566
      %v7744 = vpack.c.b16 %v7569, %v7568
      %v7745 = vpack.c.b16 %v7571, %v7570
      %v7746 = vpack.c.b16 %v7573, %v7572
      %v7747 = vpack.c.b16 %v7575, %v7574
      %v7748 = vpack.c.b16 %v7577, %v7576
      %v7749 = vpack.c.b16 %v7579, %v7578
      %v7750 = vpack.c.b16 %v7581, %v7580
      %v7751 = vpack.c.b16 %v7583, %v7582
      %v7752 = vpack.c.b16 %v7585, %v7584
      %v7753 = vpack.c.b16 %v7587, %v7586
      %v7754 = vpack.c.b16 %v7589, %v7588
      %v7755 = vpack.c.b16 %v7591, %v7590
      %v7756 = vpack.c.b16 %v7593, %v7592
      %v7757 = vpack.c.b16 %v7595, %v7594
      %v7758 = vpack.c.b16 %v7597, %v7596
      %v7759 = vpack.c.b16 %v7599, %v7598
      %v7760 = vpack.c.b16 %v7601, %v7600
      %v7761 = vpack.c.b16 %v7603, %v7602
      %v7762 = vpack.c.b16 %v7605, %v7604
      %v7763 = vpack.c.b16 %v7607, %v7606
      %v7764 = vpack.c.b16 %v7609, %v7608
      %v7765 = vpack.c.b16 %v7611, %v7610
      %v7766 = vpack.c.b16 %v7613, %v7612
      %v7767 = vpack.c.b16 %v7615, %v7614
      %v7768 = vpack.c.b16 %v7617, %v7616
      %v7769 = vpack.c.b16 %v7619, %v7618
      %v7770 = vpack.c.b16 %v7621, %v7620
      %v7771 = vpack.c.b16 %v7623, %v7622
      %v7772 = vpack.c.b16 %v7625, %v7624
      %v7773 = vpack.c.b16 %v7627, %v7626
      %v7774 = vpack.c.b16 %v7629, %v7628
      %v7775 = vpack.c.b16 %v7631, %v7630
      %v7776 = vpack.c.b16 %v7633, %v7632
      %v7777 = vpack.c.b16 %v7635, %v7634
      %v7778 = vpack.c.b16 %v7637, %v7636
      %v7779 = vpack.c.b16 %v7639, %v7638
      %v7780 = vpack.c.b16 %v7641, %v7640
      %v7781 = vpack.c.b16 %v7643, %v7642
      %v7782 = vpack.c.b16 %v7645, %v7644
      %v7783 = vpack.c.b16 %v7647, %v7646
      %v7784 = vpack.c.b16 %v7649, %v7648
      %v7785 = vpack.c.b16 %v7651, %v7650
      %v7786 = vpack.c.b16 %v7653, %v7652
      %v7787 = vpack.c.b16 %v7655, %v7654
      %v7788 = vpack.c.b16 %v7657, %v7656
      %v7789 = vpack.c.b16 %v7659, %v7658
      %v7790 = vpack.c.b16 %v7661, %v7660
      %v7791 = vpack.c.b16 %v7663, %v7662
      %7920 = vmatprep.subr.bf16.mxu0 0
      %7921 = vmatpush1.bf16.msra.mxu0 %v7671
      %7922 = vmatprep.subr.bf16.mxu0 0
      %7923 = vmatpush1.bf16.msra.mxu0 %v7670
      %7924 = vmatprep.subr.bf16.mxu0 0
      %7925 = vmatpush1.bf16.msra.mxu0 %v7669
      %7926 = vmatprep.subr.bf16.mxu0 0
      %7927 = vmatpush1.bf16.msra.mxu0 %v7668
      %7928 = vmatprep.subr.bf16.mxu0 0
      %7929 = vmatpush1.bf16.msra.mxu0 %v7667
      %7930 = vmatprep.subr.bf16.mxu0 0
      %7931 = vmatpush1.bf16.msra.mxu0 %v7666
      %7932 = vmatprep.subr.bf16.mxu0 0
      %7933 = vmatpush1.bf16.msra.mxu0 %v7665
      %7934 = vmatprep.subr.bf16.mxu0 0
      %7935 = vmatpush1.bf16.msra.mxu0 %v7664
      %7936 = vmatprep.subr.bf16.mxu0 0
      %7937 = vmatpush2.bf16.msra.mxu0 %v7679
      %7938 = vmatprep.subr.bf16.mxu0 0
      %7939 = vmatpush2.bf16.msra.mxu0 %v7678
      %7940 = vmatprep.subr.bf16.mxu0 0
      %7941 = vmatpush2.bf16.msra.mxu0 %v7677
      %7942 = vmatprep.subr.bf16.mxu0 0
      %7943 = vmatpush2.bf16.msra.mxu0 %v7676
      %7944 = vmatprep.subr.bf16.mxu0 0
      %7945 = vmatpush2.bf16.msra.mxu0 %v7675
      %7946 = vmatprep.subr.bf16.mxu0 0
      %7947 = vmatpush2.bf16.msra.mxu0 %v7674
      %7948 = vmatprep.subr.bf16.mxu0 0
      %7949 = vmatpush2.bf16.msra.mxu0 %v7673
      %7950 = vmatprep.subr.bf16.mxu0 0
      %7951 = vmatpush2.bf16.msra.mxu0 %v7672
      %7952 = vmatprep.mubr.bf16.mxu0 %v6800
      %7953 = vmatmul.mubr.bf16.gmra.mxu0 %v6779
      %v7954 = vpop.f32.mrf.mxu0
      %v7955 = vadd.f32 0.0, %v7954
      %v7956 = vpop.f32.mrf.mxu0
      %v7957 = vpop.f32.mrf.mxu0
      %v7958 = vpop.f32.mrf.mxu0
      %7959 = vmatprep.mubr.bf16.mxu0 %v6802
      %7960 = vmatmul.mubr.bf16.gmra.mxu0 %v6782
      %v7961 = vpop.f32.mrf.mxu0
      %v7962 = vpop.f32.mrf.mxu0
      %v7963 = vpop.f32.mrf.mxu0
      %v7964 = vpop.f32.mrf.mxu0
      %7965 = vmatprep.mubr.bf16.mxu0 %v6804
      %7966 = vmatmul.mubr.bf16.gmra.mxu0 %v6785
      %v7967 = vpop.f32.mrf.mxu0
      %v7968 = vpop.f32.mrf.mxu0
      %v7969 = vpop.f32.mrf.mxu0
      %v7970 = vadd.f32 0.0, %v7969
      %v7971 = vpop.f32.mrf.mxu0
      %7972 = vmatprep.mubr.bf16.mxu0 %v6806
      %7973 = vmatmul.mubr.bf16.gmra.mxu0 %v6788
      %v7974 = vpop.f32.mrf.mxu0
      %v7975 = vpop.f32.mrf.mxu0
      %v7976 = vpop.f32.mrf.mxu0
      %v7977 = vpop.f32.mrf.mxu0
      %7978 = vdwg.mxu0
      %7979 = vmatprep.subr.bf16.mxu0 0
      %7980 = vmatpush1.bf16.msra.mxu0 %v7687
      %7981 = vmatprep.subr.bf16.mxu0 0
      %7982 = vmatpush1.bf16.msra.mxu0 %v7686
      %7983 = vmatprep.subr.bf16.mxu0 0
      %7984 = vmatpush1.bf16.msra.mxu0 %v7685
      %7985 = vmatprep.subr.bf16.mxu0 0
      %7986 = vmatpush1.bf16.msra.mxu0 %v7684
      %7987 = vmatprep.subr.bf16.mxu0 0
      %7988 = vmatpush1.bf16.msra.mxu0 %v7683
      %7989 = vmatprep.subr.bf16.mxu0 0
      %7990 = vmatpush1.bf16.msra.mxu0 %v7682
      %7991 = vmatprep.subr.bf16.mxu0 0
      %7992 = vmatpush1.bf16.msra.mxu0 %v7681
      %7993 = vmatprep.subr.bf16.mxu0 0
      %7994 = vmatpush1.bf16.msra.mxu0 %v7680
      %7995 = vmatprep.subr.bf16.mxu0 0
      %7996 = vmatpush2.bf16.msra.mxu0 %v7695
      %7997 = vmatprep.subr.bf16.mxu0 0
      %7998 = vmatpush2.bf16.msra.mxu0 %v7694
      %7999 = vmatprep.subr.bf16.mxu0 0
      %8000 = vmatpush2.bf16.msra.mxu0 %v7693
      %8001 = vmatprep.subr.bf16.mxu0 0
      %8002 = vmatpush2.bf16.msra.mxu0 %v7692
      %8003 = vmatprep.subr.bf16.mxu0 0
      %8004 = vmatpush2.bf16.msra.mxu0 %v7691
      %8005 = vmatprep.subr.bf16.mxu0 0
      %8006 = vmatpush2.bf16.msra.mxu0 %v7690
      %8007 = vmatprep.subr.bf16.mxu0 0
      %8008 = vmatpush2.bf16.msra.mxu0 %v7689
      %8009 = vmatprep.subr.bf16.mxu0 0
      %8010 = vmatpush2.bf16.msra.mxu0 %v7688
      %8011 = vmatprep.mubr.bf16.mxu0 %v6817
      %8012 = vmatmul.mubr.bf16.gmra.mxu0 %v6814
      %v8013 = vpop.f32.mrf.mxu0
      %v8014 = vadd.f32 %v7955, %v8013
      %v8015 = vpop.f32.mrf.mxu0
      %v8016 = vpop.f32.mrf.mxu0
      %v8017 = vpop.f32.mrf.mxu0
      %8018 = vmatprep.mubr.bf16.mxu0 %v6821
      %8019 = vmatmul.mubr.bf16.gmra.mxu0 %v6819
      %v8020 = vpop.f32.mrf.mxu0
      %v8021 = vpop.f32.mrf.mxu0
      %v8022 = vpop.f32.mrf.mxu0
      %v8023 = vpop.f32.mrf.mxu0
      %8024 = vmatprep.mubr.bf16.mxu0 %v6825
      %8025 = vmatmul.mubr.bf16.gmra.mxu0 %v6823
      %v8026 = vpop.f32.mrf.mxu0
      %v8027 = vpop.f32.mrf.mxu0
      %v8028 = vpop.f32.mrf.mxu0
      %v8029 = vadd.f32 %v7970, %v8028
      %v8030 = vpop.f32.mrf.mxu0
      %8031 = vmatprep.mubr.bf16.mxu0 %v6829
      %8032 = vmatmul.mubr.bf16.gmra.mxu0 %v6827
      %v8033 = vpop.f32.mrf.mxu0
      %v8034 = vpop.f32.mrf.mxu0
      %v8035 = vpop.f32.mrf.mxu0
      %v8036 = vpop.f32.mrf.mxu0
      %8037 = vdwg.mxu0
      %8038 = vmatprep.subr.bf16.mxu0 0
      %8039 = vmatpush1.bf16.msra.mxu0 %v7703
      %8040 = vmatprep.subr.bf16.mxu0 0
      %8041 = vmatpush1.bf16.msra.mxu0 %v7702
      %8042 = vmatprep.subr.bf16.mxu0 0
      %8043 = vmatpush1.bf16.msra.mxu0 %v7701
      %8044 = vmatprep.subr.bf16.mxu0 0
      %8045 = vmatpush1.bf16.msra.mxu0 %v7700
      %8046 = vmatprep.subr.bf16.mxu0 0
      %8047 = vmatpush1.bf16.msra.mxu0 %v7699
      %8048 = vmatprep.subr.bf16.mxu0 0
      %8049 = vmatpush1.bf16.msra.mxu0 %v7698
      %8050 = vmatprep.subr.bf16.mxu0 0
      %8051 = vmatpush1.bf16.msra.mxu0 %v7697
      %8052 = vmatprep.subr.bf16.mxu0 0
      %8053 = vmatpush1.bf16.msra.mxu0 %v7696
      %8054 = vmatprep.subr.bf16.mxu0 0
      %8055 = vmatpush2.bf16.msra.mxu0 %v7711
      %8056 = vmatprep.subr.bf16.mxu0 0
      %8057 = vmatpush2.bf16.msra.mxu0 %v7710
      %8058 = vmatprep.subr.bf16.mxu0 0
      %8059 = vmatpush2.bf16.msra.mxu0 %v7709
      %8060 = vmatprep.subr.bf16.mxu0 0
      %8061 = vmatpush2.bf16.msra.mxu0 %v7708
      %8062 = vmatprep.subr.bf16.mxu0 0
      %8063 = vmatpush2.bf16.msra.mxu0 %v7707
      %8064 = vmatprep.subr.bf16.mxu0 0
      %8065 = vmatpush2.bf16.msra.mxu0 %v7706
      %8066 = vmatprep.subr.bf16.mxu0 0
      %8067 = vmatpush2.bf16.msra.mxu0 %v7705
      %8068 = vmatprep.subr.bf16.mxu0 0
      %8069 = vmatpush2.bf16.msra.mxu0 %v7704
      %8070 = vmatprep.mubr.bf16.mxu0 %v6845
      %8071 = vmatmul.mubr.bf16.gmra.mxu0 %v6842
      %v8072 = vpop.f32.mrf.mxu0
      %v8073 = vadd.f32 %v8014, %v8072
      %v8074 = vpop.f32.mrf.mxu0
      %v8075 = vpop.f32.mrf.mxu0
      %v8076 = vpop.f32.mrf.mxu0
      %8077 = vmatprep.mubr.bf16.mxu0 %v6855
      %8078 = vmatmul.mubr.bf16.gmra.mxu0 %v6853
      %v8079 = vpop.f32.mrf.mxu0
      %v8080 = vpop.f32.mrf.mxu0
      %v8081 = vpop.f32.mrf.mxu0
      %v8082 = vpop.f32.mrf.mxu0
      %8083 = vmatprep.mubr.bf16.mxu0 %v6863
      %8084 = vmatmul.mubr.bf16.gmra.mxu0 %v6861
      %v8085 = vpop.f32.mrf.mxu0
      %v8086 = vpop.f32.mrf.mxu0
      %v8087 = vpop.f32.mrf.mxu0
      %v8088 = vadd.f32 %v8029, %v8087
      %v8089 = vpop.f32.mrf.mxu0
      %8090 = vmatprep.mubr.bf16.mxu0 %v6871
      %8091 = vmatmul.mubr.bf16.gmra.mxu0 %v6869
      %v8092 = vpop.f32.mrf.mxu0
      %v8093 = vpop.f32.mrf.mxu0
      %v8094 = vpop.f32.mrf.mxu0
      %v8095 = vpop.f32.mrf.mxu0
      %8096 = vdwg.mxu0
      %8097 = vmatprep.subr.bf16.mxu0 0
      %8098 = vmatpush1.bf16.msra.mxu0 %v7719
      %8099 = vmatprep.subr.bf16.mxu0 0
      %8100 = vmatpush1.bf16.msra.mxu0 %v7718
      %8101 = vmatprep.subr.bf16.mxu0 0
      %8102 = vmatpush1.bf16.msra.mxu0 %v7717
      %8103 = vmatprep.subr.bf16.mxu0 0
      %8104 = vmatpush1.bf16.msra.mxu0 %v7716
      %8105 = vmatprep.subr.bf16.mxu0 0
      %8106 = vmatpush1.bf16.msra.mxu0 %v7715
      %8107 = vmatprep.subr.bf16.mxu0 0
      %8108 = vmatpush1.bf16.msra.mxu0 %v7714
      %8109 = vmatprep.subr.bf16.mxu0 0
      %8110 = vmatpush1.bf16.msra.mxu0 %v7713
      %8111 = vmatprep.subr.bf16.mxu0 0
      %8112 = vmatpush1.bf16.msra.mxu0 %v7712
      %8113 = vmatprep.subr.bf16.mxu0 0
      %8114 = vmatpush2.bf16.msra.mxu0 %v7727
      %8115 = vmatprep.subr.bf16.mxu0 0
      %8116 = vmatpush2.bf16.msra.mxu0 %v7726
      %8117 = vmatprep.subr.bf16.mxu0 0
      %8118 = vmatpush2.bf16.msra.mxu0 %v7725
      %8119 = vmatprep.subr.bf16.mxu0 0
      %8120 = vmatpush2.bf16.msra.mxu0 %v7724
      %8121 = vmatprep.subr.bf16.mxu0 0
      %8122 = vmatpush2.bf16.msra.mxu0 %v7723
      %8123 = vmatprep.subr.bf16.mxu0 0
      %8124 = vmatpush2.bf16.msra.mxu0 %v7722
      %8125 = vmatprep.subr.bf16.mxu0 0
      %8126 = vmatpush2.bf16.msra.mxu0 %v7721
      %8127 = vmatprep.subr.bf16.mxu0 0
      %8128 = vmatpush2.bf16.msra.mxu0 %v7720
      %8129 = vmatprep.mubr.bf16.mxu0 %v6851
      %8130 = vmatmul.mubr.bf16.gmra.mxu0 %v6848
      %v8131 = vpop.f32.mrf.mxu0
      %v8132 = vadd.f32 %v8073, %v8131
      %v8133 = vpop.f32.mrf.mxu0
      %v8134 = vpop.f32.mrf.mxu0
      %v8135 = vpop.f32.mrf.mxu0
      %8136 = vmatprep.mubr.bf16.mxu0 %v6859
      %8137 = vmatmul.mubr.bf16.gmra.mxu0 %v6857
      %v8138 = vpop.f32.mrf.mxu0
      %v8139 = vpop.f32.mrf.mxu0
      %v8140 = vpop.f32.mrf.mxu0
      %v8141 = vpop.f32.mrf.mxu0
      %8142 = vmatprep.mubr.bf16.mxu0 %v6867
      %8143 = vmatmul.mubr.bf16.gmra.mxu0 %v6865
      %v8144 = vpop.f32.mrf.mxu0
      %v8145 = vpop.f32.mrf.mxu0
      %v8146 = vpop.f32.mrf.mxu0
      %v8147 = vadd.f32 %v8088, %v8146
      %v8148 = vpop.f32.mrf.mxu0
      %8149 = vmatprep.mubr.bf16.mxu0 %v6875
      %8150 = vmatmul.mubr.bf16.gmra.mxu0 %v6873
      %v8151 = vpop.f32.mrf.mxu0
      %v8152 = vpop.f32.mrf.mxu0
      %v8153 = vpop.f32.mrf.mxu0
      %v8154 = vpop.f32.mrf.mxu0
      %8155 = vdwg.mxu0
      %8156 = vmatprep.subr.bf16.mxu0 0
      %8157 = vmatpush1.bf16.msra.mxu0 %v7735
      %8158 = vmatprep.subr.bf16.mxu0 0
      %8159 = vmatpush1.bf16.msra.mxu0 %v7734
      %8160 = vmatprep.subr.bf16.mxu0 0
      %8161 = vmatpush1.bf16.msra.mxu0 %v7733
      %8162 = vmatprep.subr.bf16.mxu0 0
      %8163 = vmatpush1.bf16.msra.mxu0 %v7732
      %8164 = vmatprep.subr.bf16.mxu0 0
      %8165 = vmatpush1.bf16.msra.mxu0 %v7731
      %8166 = vmatprep.subr.bf16.mxu0 0
      %8167 = vmatpush1.bf16.msra.mxu0 %v7730
      %8168 = vmatprep.subr.bf16.mxu0 0
      %8169 = vmatpush1.bf16.msra.mxu0 %v7729
      %8170 = vmatprep.subr.bf16.mxu0 0
      %8171 = vmatpush1.bf16.msra.mxu0 %v7728
      %8172 = vmatprep.subr.bf16.mxu0 0
      %8173 = vmatpush2.bf16.msra.mxu0 %v7743
      %8174 = vmatprep.subr.bf16.mxu0 0
      %8175 = vmatpush2.bf16.msra.mxu0 %v7742
      %8176 = vmatprep.subr.bf16.mxu0 0
      %8177 = vmatpush2.bf16.msra.mxu0 %v7741
      %8178 = vmatprep.subr.bf16.mxu0 0
      %8179 = vmatpush2.bf16.msra.mxu0 %v7740
      %8180 = vmatprep.subr.bf16.mxu0 0
      %8181 = vmatpush2.bf16.msra.mxu0 %v7739
      %8182 = vmatprep.subr.bf16.mxu0 0
      %8183 = vmatpush2.bf16.msra.mxu0 %v7738
      %8184 = vmatprep.subr.bf16.mxu0 0
      %8185 = vmatpush2.bf16.msra.mxu0 %v7737
      %8186 = vmatprep.subr.bf16.mxu0 0
      %8187 = vmatpush2.bf16.msra.mxu0 %v7736
      %8188 = vmatprep.mubr.bf16.mxu0 %v6802
      %8189 = vmatmul.mubr.bf16.gmra.mxu0 %v6782
      %v8190 = vpop.f32.mrf.mxu0
      %v8191 = vadd.f32 %v8132, %v8190
      %v8192 = vpop.f32.mrf.mxu0
      %v8193 = vpop.f32.mrf.mxu0
      %v8194 = vpop.f32.mrf.mxu0
      %8195 = vmatprep.mubr.bf16.mxu0 %v6804
      %8196 = vmatmul.mubr.bf16.gmra.mxu0 %v6785
      %v8197 = vpop.f32.mrf.mxu0
      %v8198 = vpop.f32.mrf.mxu0
      %v8199 = vpop.f32.mrf.mxu0
      %v8200 = vpop.f32.mrf.mxu0
      %8201 = vmatprep.mubr.bf16.mxu0 %v6806
      %8202 = vmatmul.mubr.bf16.gmra.mxu0 %v6788
      %v8203 = vpop.f32.mrf.mxu0
      %v8204 = vpop.f32.mrf.mxu0
      %v8205 = vpop.f32.mrf.mxu0
      %v8206 = vadd.f32 %v8147, %v8205
      %v8207 = vpop.f32.mrf.mxu0
      %8208 = vmatprep.mubr.bf16.mxu0 %v6805
      %8209 = vmatmul.mubr.bf16.gmra.mxu0 %v6791
      %v8210 = vpop.f32.mrf.mxu0
      %v8211 = vpop.f32.mrf.mxu0
      %v8212 = vpop.f32.mrf.mxu0
      %v8213 = vpop.f32.mrf.mxu0
      %8214 = vdwg.mxu0
      %8215 = vmatprep.subr.bf16.mxu0 0
      %8216 = vmatpush1.bf16.msra.mxu0 %v7751
      %8217 = vmatprep.subr.bf16.mxu0 0
      %8218 = vmatpush1.bf16.msra.mxu0 %v7750
      %8219 = vmatprep.subr.bf16.mxu0 0
      %8220 = vmatpush1.bf16.msra.mxu0 %v7749
      %8221 = vmatprep.subr.bf16.mxu0 0
      %8222 = vmatpush1.bf16.msra.mxu0 %v7748
      %8223 = vmatprep.subr.bf16.mxu0 0
      %8224 = vmatpush1.bf16.msra.mxu0 %v7747
      %8225 = vmatprep.subr.bf16.mxu0 0
      %8226 = vmatpush1.bf16.msra.mxu0 %v7746
      %8227 = vmatprep.subr.bf16.mxu0 0
      %8228 = vmatpush1.bf16.msra.mxu0 %v7745
      %8229 = vmatprep.subr.bf16.mxu0 0
      %8230 = vmatpush1.bf16.msra.mxu0 %v7744
      %8231 = vmatprep.subr.bf16.mxu0 0
      %8232 = vmatpush2.bf16.msra.mxu0 %v7759
      %8233 = vmatprep.subr.bf16.mxu0 0
      %8234 = vmatpush2.bf16.msra.mxu0 %v7758
      %8235 = vmatprep.subr.bf16.mxu0 0
      %8236 = vmatpush2.bf16.msra.mxu0 %v7757
      %8237 = vmatprep.subr.bf16.mxu0 0
      %8238 = vmatpush2.bf16.msra.mxu0 %v7756
      %8239 = vmatprep.subr.bf16.mxu0 0
      %8240 = vmatpush2.bf16.msra.mxu0 %v7755
      %8241 = vmatprep.subr.bf16.mxu0 0
      %8242 = vmatpush2.bf16.msra.mxu0 %v7754
      %8243 = vmatprep.subr.bf16.mxu0 0
      %8244 = vmatpush2.bf16.msra.mxu0 %v7753
      %8245 = vmatprep.subr.bf16.mxu0 0
      %8246 = vmatpush2.bf16.msra.mxu0 %v7752
      %8247 = vmatprep.mubr.bf16.mxu0 %v6821
      %8248 = vmatmul.mubr.bf16.gmra.mxu0 %v6819
      %v8249 = vpop.f32.mrf.mxu0
      %v8250 = vadd.f32 %v8191, %v8249
      %v8251 = vpop.f32.mrf.mxu0
      %v8252 = vpop.f32.mrf.mxu0
      %v8253 = vpop.f32.mrf.mxu0
      %8254 = vmatprep.mubr.bf16.mxu0 %v6825
      %8255 = vmatmul.mubr.bf16.gmra.mxu0 %v6823
      %v8256 = vpop.f32.mrf.mxu0
      %v8257 = vpop.f32.mrf.mxu0
      %v8258 = vpop.f32.mrf.mxu0
      %v8259 = vpop.f32.mrf.mxu0
      %8260 = vmatprep.mubr.bf16.mxu0 %v6829
      %8261 = vmatmul.mubr.bf16.gmra.mxu0 %v6827
      %v8262 = vpop.f32.mrf.mxu0
      %v8263 = vpop.f32.mrf.mxu0
      %v8264 = vpop.f32.mrf.mxu0
      %v8265 = vadd.f32 %v8206, %v8264
      %v8266 = vpop.f32.mrf.mxu0
      %8267 = vmatprep.mubr.bf16.mxu0 %v6828
      %8268 = vmatmul.mubr.bf16.gmra.mxu0 %v6826
      %v8269 = vpop.f32.mrf.mxu0
      %v8270 = vpop.f32.mrf.mxu0
      %v8271 = vpop.f32.mrf.mxu0
      %v8272 = vpop.f32.mrf.mxu0
      %8273 = vdwg.mxu0
      %8274 = vmatprep.subr.bf16.mxu0 0
      %8275 = vmatpush1.bf16.msra.mxu0 %v7767
      %8276 = vmatprep.subr.bf16.mxu0 0
      %8277 = vmatpush1.bf16.msra.mxu0 %v7766
      %8278 = vmatprep.subr.bf16.mxu0 0
      %8279 = vmatpush1.bf16.msra.mxu0 %v7765
      %8280 = vmatprep.subr.bf16.mxu0 0
      %8281 = vmatpush1.bf16.msra.mxu0 %v7764
      %8282 = vmatprep.subr.bf16.mxu0 0
      %8283 = vmatpush1.bf16.msra.mxu0 %v7763
      %8284 = vmatprep.subr.bf16.mxu0 0
      %8285 = vmatpush1.bf16.msra.mxu0 %v7762
      %8286 = vmatprep.subr.bf16.mxu0 0
      %8287 = vmatpush1.bf16.msra.mxu0 %v7761
      %8288 = vmatprep.subr.bf16.mxu0 0
      %8289 = vmatpush1.bf16.msra.mxu0 %v7760
      %8290 = vmatprep.subr.bf16.mxu0 0
      %8291 = vmatpush2.bf16.msra.mxu0 %v7775
      %8292 = vmatprep.subr.bf16.mxu0 0
      %8293 = vmatpush2.bf16.msra.mxu0 %v7774
      %8294 = vmatprep.subr.bf16.mxu0 0
      %8295 = vmatpush2.bf16.msra.mxu0 %v7773
      %8296 = vmatprep.subr.bf16.mxu0 0
      %8297 = vmatpush2.bf16.msra.mxu0 %v7772
      %8298 = vmatprep.subr.bf16.mxu0 0
      %8299 = vmatpush2.bf16.msra.mxu0 %v7771
      %8300 = vmatprep.subr.bf16.mxu0 0
      %8301 = vmatpush2.bf16.msra.mxu0 %v7770
      %8302 = vmatprep.subr.bf16.mxu0 0
      %8303 = vmatpush2.bf16.msra.mxu0 %v7769
      %8304 = vmatprep.subr.bf16.mxu0 0
      %8305 = vmatpush2.bf16.msra.mxu0 %v7768
      %8306 = vmatprep.mubr.bf16.mxu0 %v6855
      %8307 = vmatmul.mubr.bf16.gmra.mxu0 %v6853
      %v8308 = vpop.f32.mrf.mxu0
      %v8309 = vadd.f32 %v8250, %v8308
      %v8310 = vpop.f32.mrf.mxu0
      %v8311 = vpop.f32.mrf.mxu0
      %v8312 = vpop.f32.mrf.mxu0
      %8313 = vmatprep.mubr.bf16.mxu0 %v6863
      %8314 = vmatmul.mubr.bf16.gmra.mxu0 %v6861
      %v8315 = vpop.f32.mrf.mxu0
      %v8316 = vpop.f32.mrf.mxu0
      %v8317 = vpop.f32.mrf.mxu0
      %v8318 = vpop.f32.mrf.mxu0
      %8319 = vmatprep.mubr.bf16.mxu0 %v6871
      %8320 = vmatmul.mubr.bf16.gmra.mxu0 %v6869
      %v8321 = vpop.f32.mrf.mxu0
      %v8322 = vpop.f32.mrf.mxu0
      %v8323 = vpop.f32.mrf.mxu0
      %v8324 = vadd.f32 %v8265, %v8323
      %v8325 = vpop.f32.mrf.mxu0
      %8326 = vmatprep.mubr.bf16.mxu0 %v6870
      %8327 = vmatmul.mubr.bf16.gmra.mxu0 %v6868
      %v8328 = vpop.f32.mrf.mxu0
      %v8329 = vpop.f32.mrf.mxu0
      %v8330 = vpop.f32.mrf.mxu0
      %v8331 = vpop.f32.mrf.mxu0
      %8332 = vdwg.mxu0
      %8333 = vmatprep.subr.bf16.mxu0 0
      %8334 = vmatpush1.bf16.msra.mxu0 %v7783
      %8335 = vmatprep.subr.bf16.mxu0 0
      %8336 = vmatpush1.bf16.msra.mxu0 %v7782
      %8337 = vmatprep.subr.bf16.mxu0 0
      %8338 = vmatpush1.bf16.msra.mxu0 %v7781
      %8339 = vmatprep.subr.bf16.mxu0 0
      %8340 = vmatpush1.bf16.msra.mxu0 %v7780
      %8341 = vmatprep.subr.bf16.mxu0 0
      %8342 = vmatpush1.bf16.msra.mxu0 %v7779
      %8343 = vmatprep.subr.bf16.mxu0 0
      %8344 = vmatpush1.bf16.msra.mxu0 %v7778
      %8345 = vmatprep.subr.bf16.mxu0 0
      %8346 = vmatpush1.bf16.msra.mxu0 %v7777
      %8347 = vmatprep.subr.bf16.mxu0 0
      %8348 = vmatpush1.bf16.msra.mxu0 %v7776
      %8349 = vmatprep.subr.bf16.mxu0 0
      %8350 = vmatpush2.bf16.msra.mxu0 %v7791
      %8351 = vmatprep.subr.bf16.mxu0 0
      %8352 = vmatpush2.bf16.msra.mxu0 %v7790
      %8353 = vmatprep.subr.bf16.mxu0 0
      %8354 = vmatpush2.bf16.msra.mxu0 %v7789
      %8355 = vmatprep.subr.bf16.mxu0 0
      %8356 = vmatpush2.bf16.msra.mxu0 %v7788
      %8357 = vmatprep.subr.bf16.mxu0 0
      %8358 = vmatpush2.bf16.msra.mxu0 %v7787
      %8359 = vmatprep.subr.bf16.mxu0 0
      %8360 = vmatpush2.bf16.msra.mxu0 %v7786
      %8361 = vmatprep.subr.bf16.mxu0 0
      %8362 = vmatpush2.bf16.msra.mxu0 %v7785
      %8363 = vmatprep.subr.bf16.mxu0 0
      %8364 = vmatpush2.bf16.msra.mxu0 %v7784
      %8365 = vmatprep.mubr.bf16.mxu0 %v6859
      %8366 = vmatmul.mubr.bf16.gmra.mxu0 %v6857
      %v8367 = vpop.f32.mrf.mxu0
      %v8368 = vadd.f32 %v8309, %v8367
      %v8369 = vpop.f32.mrf.mxu0
      %v8370 = vpop.f32.mrf.mxu0
      %v8371 = vpop.f32.mrf.mxu0
      %8372 = vmatprep.mubr.bf16.mxu0 %v6867
      %8373 = vmatmul.mubr.bf16.gmra.mxu0 %v6865
      %v8374 = vpop.f32.mrf.mxu0
      %v8375 = vpop.f32.mrf.mxu0
      %v8376 = vpop.f32.mrf.mxu0
      %v8377 = vpop.f32.mrf.mxu0
      %8378 = vmatprep.mubr.bf16.mxu0 %v6875
      %8379 = vmatmul.mubr.bf16.gmra.mxu0 %v6873
      %v8380 = vpop.f32.mrf.mxu0
      %v8381 = vpop.f32.mrf.mxu0
      %v8382 = vpop.f32.mrf.mxu0
      %v8383 = vadd.f32 %v8324, %v8382
      %v8384 = vpop.f32.mrf.mxu0
      %8385 = vmatprep.mubr.bf16.mxu0 %v6874
      %8386 = vmatmul.mubr.bf16.gmra.mxu0 %v6872
      %v8387 = vpop.f32.mrf.mxu0
      %v8388 = vpop.f32.mrf.mxu0
      %v8389 = vpop.f32.mrf.mxu0
      %v8390 = vpop.f32.mrf.mxu0
      %8391 = vdwg.mxu0
      %v8392 = vld [vmem:[%s6] sm:$0x1]
      %v8394 = vcombine.high %v8368, %v8368
      %v8396 = vunpack.c.l.s4 1983009808
      %v8397 = vunpack.c.0.s8 %v8396
      %v8398 = vlaneseq
      %v8399 = vshrl.u32 %v8398, 7
      %v8400 = vsub.s32 %v8397, %v8399
      %v8401 = vrot.slane %v8368, %v8400
      %v8403 = vunpack.c.l.s4 1983009808
      %v8404 = vunpack.c.0.s8 %v8403
      %v8405 = vlaneseq
      %v8406 = vshrl.u32 %v8405, 7
      %v8407 = vsub.s32 %v8404, %v8406
      %v8408 = vrot.slane %v8394, %v8407
      %v8409 = vcombine.high %v8401, %v8401
      %v8410 = vcombine.high %v8408, %v8408
      %vm8415 = vcmask 1041408
      %v8416 = vsel %vm8415, %v8401, -inf
      %v8417 = vrot.slane %v8416, 4
      %v8418 = vmax.f32 %v8416, %v8417
      %v8419 = vrot.slane %v8418, 2
      %v8420 = vmax.f32 %v8418, %v8419
      %v8421 = vrot.slane %v8420, 1
      %v8422 = vmax.f32 %v8420, %v8421
      %v8423 = vsel %vm8415, %v8409, -inf
      %v8424 = vrot.slane %v8423, 4
      %v8425 = vmax.f32 %v8423, %v8424
      %v8426 = vrot.slane %v8425, 2
      %v8427 = vmax.f32 %v8425, %v8426
      %v8428 = vrot.slane %v8427, 1
      %v8429 = vmax.f32 %v8427, %v8428
      %v8430 = vsel %vm8415, %v8408, -inf
      %v8431 = vrot.slane %v8430, 4
      %v8432 = vmax.f32 %v8430, %v8431
      %v8433 = vrot.slane %v8432, 2
      %v8434 = vmax.f32 %v8432, %v8433
      %v8435 = vrot.slane %v8434, 1
      %v8436 = vmax.f32 %v8434, %v8435
      %v8437 = vsel %vm8415, %v8410, -inf
      %v8438 = vrot.slane %v8437, 4
      %v8439 = vmax.f32 %v8437, %v8438
      %v8440 = vrot.slane %v8439, 2
      %v8441 = vmax.f32 %v8439, %v8440
      %v8442 = vrot.slane %v8441, 1
      %v8443 = vmax.f32 %v8441, %v8442
      %v8445 = vlaneseq
      %v8446 = vshrl.u32 %v8445, 7
      %v8447 = vsub.s32 0, %v8446
      %v8448 = vrot.slane %v8392, %v8447
      %v8450 = vadd.f32 %v8422, %v8448
      %v8451 = vadd.f32 %v8429, %v8448
      %v8452 = vadd.f32 %v8436, %v8448
      %v8453 = vadd.f32 %v8443, %v8448
      %v8454 = vmax.f32 %v8450, 0.0
      %v8455 = vmax.f32 %v8451, 0.0
      %v8456 = vmax.f32 %v8452, 0.0
      %v8457 = vmax.f32 %v8453, 0.0
      %v8458 = vpack.c.bf16 %v8454, %v8454
      %v8459 = vpack.c.bf16 %v8455, %v8455
      %v8460 = vpack.c.bf16 %v8456, %v8456
      %v8461 = vpack.c.bf16 %v8457, %v8457
      %v8463 = vcombine.high %v8383, %v8383
      %v8465 = vunpack.c.l.s4 1983009808
      %v8466 = vunpack.c.0.s8 %v8465
      %v8467 = vlaneseq
      %v8468 = vshrl.u32 %v8467, 7
      %v8469 = vsub.s32 %v8466, %v8468
      %v8470 = vrot.slane %v8383, %v8469
      %v8472 = vunpack.c.l.s4 1983009808
      %v8473 = vunpack.c.0.s8 %v8472
      %v8474 = vlaneseq
      %v8475 = vshrl.u32 %v8474, 7
      %v8476 = vsub.s32 %v8473, %v8475
      %v8477 = vrot.slane %v8463, %v8476
      %v8478 = vcombine.high %v8470, %v8470
      %v8479 = vcombine.high %v8477, %v8477
      %v8484 = vsel %vm8415, %v8470, -inf
      %v8485 = vrot.slane %v8484, 4
      %v8486 = vmax.f32 %v8484, %v8485
      %v8487 = vrot.slane %v8486, 2
      %v8488 = vmax.f32 %v8486, %v8487
      %v8489 = vrot.slane %v8488, 1
      %v8490 = vmax.f32 %v8488, %v8489
      %v8491 = vsel %vm8415, %v8478, -inf
      %v8492 = vrot.slane %v8491, 4
      %v8493 = vmax.f32 %v8491, %v8492
      %v8494 = vrot.slane %v8493, 2
      %v8495 = vmax.f32 %v8493, %v8494
      %v8496 = vrot.slane %v8495, 1
      %v8497 = vmax.f32 %v8495, %v8496
      %v8498 = vsel %vm8415, %v8477, -inf
      %v8499 = vrot.slane %v8498, 4
      %v8500 = vmax.f32 %v8498, %v8499
      %v8501 = vrot.slane %v8500, 2
      %v8502 = vmax.f32 %v8500, %v8501
      %v8503 = vrot.slane %v8502, 1
      %v8504 = vmax.f32 %v8502, %v8503
      %v8505 = vsel %vm8415, %v8479, -inf
      %v8506 = vrot.slane %v8505, 4
      %v8507 = vmax.f32 %v8505, %v8506
      %v8508 = vrot.slane %v8507, 2
      %v8509 = vmax.f32 %v8507, %v8508
      %v8510 = vrot.slane %v8509, 1
      %v8511 = vmax.f32 %v8509, %v8510
      %v8512 = vadd.f32 %v8490, %v8448
      %v8513 = vadd.f32 %v8497, %v8448
      %v8514 = vadd.f32 %v8504, %v8448
      %v8515 = vadd.f32 %v8511, %v8448
      %v8516 = vmax.f32 %v8512, 0.0
      %v8517 = vmax.f32 %v8513, 0.0
      %v8518 = vmax.f32 %v8514, 0.0
      %v8519 = vmax.f32 %v8515, 0.0
      %v8520 = vpack.c.bf16 %v8516, %v8516
      %v8521 = vpack.c.bf16 %v8517, %v8517
      %v8522 = vpack.c.bf16 %v8518, %v8518
      %v8523 = vpack.c.bf16 %v8519, %v8519
      %v8528 = vunpack.c.l.b16 %v8458
      %v8529 = vunpack.c.l.b16 %v8459
      %v8530 = vunpack.c.l.b16 %v8460
      %v8531 = vunpack.c.l.b16 %v8461
      %v8532 = vrot.slane %v8529, 7
      %v8533 = vsel %vm4251, %v8532, %v8528
      %v8534 = vrot.slane %v8530, 6
      %v8535 = vsel %vm4254, %v8534, %v8533
      %v8536 = vrot.slane %v8531, 5
      %v8537 = vsel %vm4257, %v8536, %v8535
      %v8538 = vpack.c.b16 %v8537, %v8537
      %v8543 = vunpack.c.l.b16 %v8520
      %v8544 = vunpack.c.l.b16 %v8521
      %v8545 = vunpack.c.l.b16 %v8522
      %v8546 = vunpack.c.l.b16 %v8523
      %v8547 = vrot.slane %v8544, 7
      %v8548 = vsel %vm4251, %v8547, %v8543
      %v8549 = vrot.slane %v8545, 6
      %v8550 = vsel %vm4254, %v8549, %v8548
      %v8551 = vrot.slane %v8546, 5
      %v8552 = vsel %vm4257, %v8551, %v8550
      %v8553 = vpack.c.b16 %v8552, %v8552
      %v8555 = vsel %vm790, 0, %v8538
      %v8556 = vsel %vm606, %v8555, 0
      %v8560 = vsel %vm8415, %v8553, 0
      %v8562 = vshrl.u32 %v8556, 16
      %v8564 = vshll.u32 %v8556, 16
      %v8566 = vrot.slane %v8564, 1
      %v8567 = vor.u32 %v8562, %v8566
      %v8568 = vsel %vm4437, %v8567, %v4443
      %v8569 = vshll.u32 %v8560, 16
      %v8571 = vrot.slane %v8569, 1
      %v8572 = vsel %vm4437, %v4444, %v8571
      %v8573 = vshrl.u32 %v8560, 16
      %v8575 = vor.u32 %v8573, %v8571
      %v8582 = vrot.slane %v8556, 1
      %v8583 = vrot.slane 0, 1
      %v8584 = vsel %vm4520, %v8582, %v8583
      %v8585 = vrot.slane %v8568, 1
      %v8586 = vrot.slane %v8572, 1
      %v8587 = vsel %vm4520, %v8585, %v8586
      %v8588 = vrot.slane %v8560, 1
      %v8589 = vsel %vm4520, %v8583, %v8588
      %v8590 = vrot.slane %v8575, 1
      %v8591 = vsel %vm4520, %v8586, %v8590
      %v8598 = vrot.slane %v8556, 2
      %v8599 = vrot.slane 0, 2
      %v8600 = vsel %vm4605, %v8598, %v8599
      %v8601 = vrot.slane %v8568, 2
      %v8602 = vrot.slane %v8572, 2
      %v8603 = vsel %vm4605, %v8601, %v8602
      %v8604 = vrot.slane %v8584, 2
      %v8605 = vrot.slane %v8589, 2
      %v8606 = vsel %vm4605, %v8604, %v8605
      %v8607 = vrot.slane %v8587, 2
      %v8608 = vrot.slane %v8591, 2
      %v8609 = vsel %vm4605, %v8607, %v8608
      %v8610 = vrot.slane %v8560, 2
      %v8611 = vsel %vm4605, %v8599, %v8610
      %v8612 = vrot.slane %v8575, 2
      %v8613 = vsel %vm4605, %v8602, %v8612
      %v8614 = vrot.slane %v8588, 2
      %v8615 = vsel %vm4605, %v8605, %v8614
      %v8616 = vrot.slane %v8590, 2
      %v8617 = vsel %vm4605, %v8608, %v8616
      %v8630 = vrot.slane %v8556, 4
      %v8631 = vrot.slane 0, 4
      %v8632 = vsel %vm4640, %v8630, %v8631
      %v8633 = vrot.slane %v8568, 4
      %v8634 = vrot.slane %v8572, 4
      %v8635 = vsel %vm4640, %v8633, %v8634
      %v8636 = vrot.slane %v8584, 4
      %v8637 = vrot.slane %v8589, 4
      %v8638 = vsel %vm4640, %v8636, %v8637
      %v8639 = vrot.slane %v8587, 4
      %v8640 = vrot.slane %v8591, 4
      %v8641 = vsel %vm4640, %v8639, %v8640
      %v8642 = vrot.slane %v8600, 4
      %v8643 = vrot.slane %v8611, 4
      %v8644 = vsel %vm4640, %v8642, %v8643
      %v8645 = vrot.slane %v8603, 4
      %v8646 = vrot.slane %v8613, 4
      %v8647 = vsel %vm4640, %v8645, %v8646
      %v8648 = vrot.slane %v8606, 4
      %v8649 = vrot.slane %v8615, 4
      %v8650 = vsel %vm4640, %v8648, %v8649
      %v8651 = vrot.slane %v8609, 4
      %v8652 = vrot.slane %v8617, 4
      %v8653 = vsel %vm4640, %v8651, %v8652
      %v8654 = vrot.slane %v8560, 4
      %v8655 = vsel %vm4640, %v8631, %v8654
      %v8656 = vrot.slane %v8575, 4
      %v8657 = vsel %vm4640, %v8634, %v8656
      %v8658 = vrot.slane %v8588, 4
      %v8659 = vsel %vm4640, %v8637, %v8658
      %v8660 = vrot.slane %v8590, 4
      %v8661 = vsel %vm4640, %v8640, %v8660
      %v8662 = vrot.slane %v8610, 4
      %v8663 = vsel %vm4640, %v8643, %v8662
      %v8664 = vrot.slane %v8612, 4
      %v8665 = vsel %vm4640, %v8646, %v8664
      %v8666 = vrot.slane %v8614, 4
      %v8667 = vsel %vm4640, %v8649, %v8666
      %v8668 = vrot.slane %v8616, 4
      %v8669 = vsel %vm4640, %v8652, %v8668
      %v8694 = vld [vmem:[%s7] sm:$0xff]
      %v8695 = vld [vmem:[%s7 + $0x8] sm:$0xff]
      %v8696 = vld [vmem:[%s7 + $0x10] sm:$0xff]
      %v8697 = vld [vmem:[%s7 + $0x18] sm:$0xff]
      %v8698 = vld [vmem:[%s7 + $0x20] sm:$0xff]
      %v8699 = vld [vmem:[%s7 + $0x28] sm:$0xff]
      %v8700 = vld [vmem:[%s7 + $0x30] sm:$0xff]
      %v8701 = vld [vmem:[%s7 + $0x38] sm:$0xff]
      %v8702 = vld [vmem:[%s7 + $0x40] sm:$0xff]
      %v8703 = vld [vmem:[%s7 + $0x48] sm:$0xff]
      %v8704 = vld [vmem:[%s7 + $0x50] sm:$0xff]
      %v8705 = vld [vmem:[%s7 + $0x58] sm:$0xff]
      %v8706 = vld [vmem:[%s7 + $0x60] sm:$0xff]
      %v8707 = vld [vmem:[%s7 + $0x68] sm:$0xff]
      %v8708 = vld [vmem:[%s7 + $0x70] sm:$0xff]
      %v8709 = vld [vmem:[%s7 + $0x78] sm:$0xff]
      %v8710 = vld [vmem:[%s7 + $0x80] sm:$0xff]
      %v8711 = vld [vmem:[%s7 + $0x88] sm:$0xff]
      %v8712 = vld [vmem:[%s7 + $0x90] sm:$0xff]
      %v8713 = vld [vmem:[%s7 + $0x98] sm:$0xff]
      %v8714 = vld [vmem:[%s7 + $0xa0] sm:$0xff]
      %v8715 = vld [vmem:[%s7 + $0xa8] sm:$0xff]
      %v8716 = vld [vmem:[%s7 + $0xb0] sm:$0xff]
      %v8717 = vld [vmem:[%s7 + $0xb8] sm:$0xff]
      %v8718 = vld [vmem:[%s7 + $0xc0] sm:$0xff]
      %v8719 = vld [vmem:[%s7 + $0xc8] sm:$0xff]
      %v8720 = vld [vmem:[%s7 + $0xd0] sm:$0xff]
      %v8721 = vld [vmem:[%s7 + $0xd8] sm:$0xff]
      %v8722 = vld [vmem:[%s7 + $0xe0] sm:$0xff]
      %v8723 = vld [vmem:[%s7 + $0xe8] sm:$0xff]
      %v8724 = vld [vmem:[%s7 + $0xf0] sm:$0xff]
      %v8725 = vld [vmem:[%s7 + $0xf8] sm:$0xff]
      %v8726 = vld [vmem:[%s7 + $0x100] sm:$0xff]
      %v8727 = vld [vmem:[%s7 + $0x108] sm:$0xff]
      %v8728 = vld [vmem:[%s7 + $0x110] sm:$0xff]
      %v8729 = vld [vmem:[%s7 + $0x118] sm:$0xff]
      %v8730 = vld [vmem:[%s7 + $0x120] sm:$0xff]
      %v8731 = vld [vmem:[%s7 + $0x128] sm:$0xff]
      %v8732 = vld [vmem:[%s7 + $0x130] sm:$0xff]
      %v8733 = vld [vmem:[%s7 + $0x138] sm:$0xff]
      %v8734 = vld [vmem:[%s7 + $0x140] sm:$0xff]
      %v8735 = vld [vmem:[%s7 + $0x148] sm:$0xff]
      %v8736 = vld [vmem:[%s7 + $0x150] sm:$0xff]
      %v8737 = vld [vmem:[%s7 + $0x158] sm:$0xff]
      %v8738 = vld [vmem:[%s7 + $0x160] sm:$0xff]
      %v8739 = vld [vmem:[%s7 + $0x168] sm:$0xff]
      %v8740 = vld [vmem:[%s7 + $0x170] sm:$0xff]
      %v8741 = vld [vmem:[%s7 + $0x178] sm:$0xff]
      %v8742 = vld [vmem:[%s7 + $0x180] sm:$0xff]
      %v8743 = vld [vmem:[%s7 + $0x188] sm:$0xff]
      %v8744 = vld [vmem:[%s7 + $0x190] sm:$0xff]
      %v8745 = vld [vmem:[%s7 + $0x198] sm:$0xff]
      %v8746 = vld [vmem:[%s7 + $0x1a0] sm:$0xff]
      %v8747 = vld [vmem:[%s7 + $0x1a8] sm:$0xff]
      %v8748 = vld [vmem:[%s7 + $0x1b0] sm:$0xff]
      %v8749 = vld [vmem:[%s7 + $0x1b8] sm:$0xff]
      %v8750 = vld [vmem:[%s7 + $0x1c0] sm:$0xff]
      %v8751 = vld [vmem:[%s7 + $0x1c8] sm:$0xff]
      %v8752 = vld [vmem:[%s7 + $0x1d0] sm:$0xff]
      %v8753 = vld [vmem:[%s7 + $0x1d8] sm:$0xff]
      %v8754 = vld [vmem:[%s7 + $0x1e0] sm:$0xff]
      %v8755 = vld [vmem:[%s7 + $0x1e8] sm:$0xff]
      %v8756 = vld [vmem:[%s7 + $0x1f0] sm:$0xff]
      %v8757 = vld [vmem:[%s7 + $0x1f8] sm:$0xff]
      %v8758 = vld [vmem:[%s7 + $0x200] sm:$0xff]
      %v8759 = vld [vmem:[%s7 + $0x208] sm:$0xff]
      %v8760 = vld [vmem:[%s7 + $0x210] sm:$0xff]
      %v8761 = vld [vmem:[%s7 + $0x218] sm:$0xff]
      %v8762 = vld [vmem:[%s7 + $0x220] sm:$0xff]
      %v8763 = vld [vmem:[%s7 + $0x228] sm:$0xff]
      %v8764 = vld [vmem:[%s7 + $0x230] sm:$0xff]
      %v8765 = vld [vmem:[%s7 + $0x238] sm:$0xff]
      %v8766 = vld [vmem:[%s7 + $0x240] sm:$0xff]
      %v8767 = vld [vmem:[%s7 + $0x248] sm:$0xff]
      %v8768 = vld [vmem:[%s7 + $0x250] sm:$0xff]
      %v8769 = vld [vmem:[%s7 + $0x258] sm:$0xff]
      %v8770 = vld [vmem:[%s7 + $0x260] sm:$0xff]
      %v8771 = vld [vmem:[%s7 + $0x268] sm:$0xff]
      %v8772 = vld [vmem:[%s7 + $0x270] sm:$0xff]
      %v8773 = vld [vmem:[%s7 + $0x278] sm:$0xff]
      %v8774 = vld [vmem:[%s7 + $0x280] sm:$0xff]
      %v8775 = vld [vmem:[%s7 + $0x288] sm:$0xff]
      %v8776 = vld [vmem:[%s7 + $0x290] sm:$0xff]
      %v8777 = vld [vmem:[%s7 + $0x298] sm:$0xff]
      %v8778 = vld [vmem:[%s7 + $0x2a0] sm:$0xff]
      %v8779 = vld [vmem:[%s7 + $0x2a8] sm:$0xff]
      %v8780 = vld [vmem:[%s7 + $0x2b0] sm:$0xff]
      %v8781 = vld [vmem:[%s7 + $0x2b8] sm:$0xff]
      %v8782 = vld [vmem:[%s7 + $0x2c0] sm:$0xff]
      %v8783 = vld [vmem:[%s7 + $0x2c8] sm:$0xff]
      %v8784 = vld [vmem:[%s7 + $0x2d0] sm:$0xff]
      %v8785 = vld [vmem:[%s7 + $0x2d8] sm:$0xff]
      %v8786 = vld [vmem:[%s7 + $0x2e0] sm:$0xff]
      %v8787 = vld [vmem:[%s7 + $0x2e8] sm:$0xff]
      %v8788 = vld [vmem:[%s7 + $0x2f0] sm:$0xff]
      %v8789 = vld [vmem:[%s7 + $0x2f8] sm:$0xff]
      %v8790 = vld [vmem:[%s7 + $0x300] sm:$0xff]
      %v8791 = vld [vmem:[%s7 + $0x308] sm:$0xff]
      %v8792 = vld [vmem:[%s7 + $0x310] sm:$0xff]
      %v8793 = vld [vmem:[%s7 + $0x318] sm:$0xff]
      %v8794 = vld [vmem:[%s7 + $0x320] sm:$0xff]
      %v8795 = vld [vmem:[%s7 + $0x328] sm:$0xff]
      %v8796 = vld [vmem:[%s7 + $0x330] sm:$0xff]
      %v8797 = vld [vmem:[%s7 + $0x338] sm:$0xff]
      %v8798 = vld [vmem:[%s7 + $0x340] sm:$0xff]
      %v8799 = vld [vmem:[%s7 + $0x348] sm:$0xff]
      %v8800 = vld [vmem:[%s7 + $0x350] sm:$0xff]
      %v8801 = vld [vmem:[%s7 + $0x358] sm:$0xff]
      %v8802 = vld [vmem:[%s7 + $0x360] sm:$0xff]
      %v8803 = vld [vmem:[%s7 + $0x368] sm:$0xff]
      %v8804 = vld [vmem:[%s7 + $0x370] sm:$0xff]
      %v8805 = vld [vmem:[%s7 + $0x378] sm:$0xff]
      %v8806 = vld [vmem:[%s7 + $0x380] sm:$0xff]
      %v8807 = vld [vmem:[%s7 + $0x388] sm:$0xff]
      %v8808 = vld [vmem:[%s7 + $0x390] sm:$0xff]
      %v8809 = vld [vmem:[%s7 + $0x398] sm:$0xff]
      %v8810 = vld [vmem:[%s7 + $0x3a0] sm:$0xff]
      %v8811 = vld [vmem:[%s7 + $0x3a8] sm:$0xff]
      %v8812 = vld [vmem:[%s7 + $0x3b0] sm:$0xff]
      %v8813 = vld [vmem:[%s7 + $0x3b8] sm:$0xff]
      %v8814 = vld [vmem:[%s7 + $0x3c0] sm:$0xff]
      %v8815 = vld [vmem:[%s7 + $0x3c8] sm:$0xff]
      %v8816 = vld [vmem:[%s7 + $0x3d0] sm:$0xff]
      %v8817 = vld [vmem:[%s7 + $0x3d8] sm:$0xff]
      %v8818 = vld [vmem:[%s7 + $0x3e0] sm:$0xff]
      %v8819 = vld [vmem:[%s7 + $0x3e8] sm:$0xff]
      %v8820 = vld [vmem:[%s7 + $0x3f0] sm:$0xff]
      %v8821 = vld [vmem:[%s7 + $0x3f8] sm:$0xff]
      %v8822 = vld [vmem:[%s7 + $0x400] sm:$0xff]
      %v8823 = vld [vmem:[%s7 + $0x408] sm:$0xff]
      %v8824 = vld [vmem:[%s7 + $0x410] sm:$0xff]
      %v8825 = vld [vmem:[%s7 + $0x418] sm:$0xff]
      %v8826 = vld [vmem:[%s7 + $0x420] sm:$0xff]
      %v8827 = vld [vmem:[%s7 + $0x428] sm:$0xff]
      %v8828 = vld [vmem:[%s7 + $0x430] sm:$0xff]
      %v8829 = vld [vmem:[%s7 + $0x438] sm:$0xff]
      %v8830 = vld [vmem:[%s7 + $0x440] sm:$0xff]
      %v8831 = vld [vmem:[%s7 + $0x448] sm:$0xff]
      %v8832 = vld [vmem:[%s7 + $0x450] sm:$0xff]
      %v8833 = vld [vmem:[%s7 + $0x458] sm:$0xff]
      %v8834 = vld [vmem:[%s7 + $0x460] sm:$0xff]
      %v8835 = vld [vmem:[%s7 + $0x468] sm:$0xff]
      %v8836 = vld [vmem:[%s7 + $0x470] sm:$0xff]
      %v8837 = vld [vmem:[%s7 + $0x478] sm:$0xff]
      %v8838 = vld [vmem:[%s7 + $0x480] sm:$0xff]
      %v8839 = vld [vmem:[%s7 + $0x488] sm:$0xff]
      %v8840 = vld [vmem:[%s7 + $0x490] sm:$0xff]
      %v8841 = vld [vmem:[%s7 + $0x498] sm:$0xff]
      %v8842 = vld [vmem:[%s7 + $0x4a0] sm:$0xff]
      %v8843 = vld [vmem:[%s7 + $0x4a8] sm:$0xff]
      %v8844 = vld [vmem:[%s7 + $0x4b0] sm:$0xff]
      %v8845 = vld [vmem:[%s7 + $0x4b8] sm:$0xff]
      %v8846 = vld [vmem:[%s7 + $0x4c0] sm:$0xff]
      %v8847 = vld [vmem:[%s7 + $0x4c8] sm:$0xff]
      %v8848 = vld [vmem:[%s7 + $0x4d0] sm:$0xff]
      %v8849 = vld [vmem:[%s7 + $0x4d8] sm:$0xff]
      %v8850 = vld [vmem:[%s7 + $0x4e0] sm:$0xff]
      %v8851 = vld [vmem:[%s7 + $0x4e8] sm:$0xff]
      %v8852 = vld [vmem:[%s7 + $0x4f0] sm:$0xff]
      %v8853 = vld [vmem:[%s7 + $0x4f8] sm:$0xff]
      %v8854 = vld [vmem:[%s7 + $0x500] sm:$0xff]
      %v8855 = vld [vmem:[%s7 + $0x508] sm:$0xff]
      %v8856 = vld [vmem:[%s7 + $0x510] sm:$0xff]
      %v8857 = vld [vmem:[%s7 + $0x518] sm:$0xff]
      %v8858 = vld [vmem:[%s7 + $0x520] sm:$0xff]
      %v8859 = vld [vmem:[%s7 + $0x528] sm:$0xff]
      %v8860 = vld [vmem:[%s7 + $0x530] sm:$0xff]
      %v8861 = vld [vmem:[%s7 + $0x538] sm:$0xff]
      %v8862 = vld [vmem:[%s7 + $0x540] sm:$0xff]
      %v8863 = vld [vmem:[%s7 + $0x548] sm:$0xff]
      %v8864 = vld [vmem:[%s7 + $0x550] sm:$0xff]
      %v8865 = vld [vmem:[%s7 + $0x558] sm:$0xff]
      %v8866 = vld [vmem:[%s7 + $0x560] sm:$0xff]
      %v8867 = vld [vmem:[%s7 + $0x568] sm:$0xff]
      %v8868 = vld [vmem:[%s7 + $0x570] sm:$0xff]
      %v8869 = vld [vmem:[%s7 + $0x578] sm:$0xff]
      %v8870 = vld [vmem:[%s7 + $0x580] sm:$0xff]
      %v8871 = vld [vmem:[%s7 + $0x588] sm:$0xff]
      %v8872 = vld [vmem:[%s7 + $0x590] sm:$0xff]
      %v8873 = vld [vmem:[%s7 + $0x598] sm:$0xff]
      %v8874 = vld [vmem:[%s7 + $0x5a0] sm:$0xff]
      %v8875 = vld [vmem:[%s7 + $0x5a8] sm:$0xff]
      %v8876 = vld [vmem:[%s7 + $0x5b0] sm:$0xff]
      %v8877 = vld [vmem:[%s7 + $0x5b8] sm:$0xff]
      %v8878 = vld [vmem:[%s7 + $0x5c0] sm:$0xff]
      %v8879 = vld [vmem:[%s7 + $0x5c8] sm:$0xff]
      %v8880 = vld [vmem:[%s7 + $0x5d0] sm:$0xff]
      %v8881 = vld [vmem:[%s7 + $0x5d8] sm:$0xff]
      %v8882 = vld [vmem:[%s7 + $0x5e0] sm:$0xff]
      %v8883 = vld [vmem:[%s7 + $0x5e8] sm:$0xff]
      %v8884 = vld [vmem:[%s7 + $0x5f0] sm:$0xff]
      %v8885 = vld [vmem:[%s7 + $0x5f8] sm:$0xff]
      %v8886 = vld [vmem:[%s7 + $0x600] sm:$0xff]
      %v8887 = vld [vmem:[%s7 + $0x608] sm:$0xff]
      %v8888 = vld [vmem:[%s7 + $0x610] sm:$0xff]
      %v8889 = vld [vmem:[%s7 + $0x618] sm:$0xff]
      %v8890 = vld [vmem:[%s7 + $0x620] sm:$0xff]
      %v8891 = vld [vmem:[%s7 + $0x628] sm:$0xff]
      %v8892 = vld [vmem:[%s7 + $0x630] sm:$0xff]
      %v8893 = vld [vmem:[%s7 + $0x638] sm:$0xff]
      %v8894 = vld [vmem:[%s7 + $0x640] sm:$0xff]
      %v8895 = vld [vmem:[%s7 + $0x648] sm:$0xff]
      %v8896 = vld [vmem:[%s7 + $0x650] sm:$0xff]
      %v8897 = vld [vmem:[%s7 + $0x658] sm:$0xff]
      %v8898 = vld [vmem:[%s7 + $0x660] sm:$0xff]
      %v8899 = vld [vmem:[%s7 + $0x668] sm:$0xff]
      %v8900 = vld [vmem:[%s7 + $0x670] sm:$0xff]
      %v8901 = vld [vmem:[%s7 + $0x678] sm:$0xff]
      %v8902 = vld [vmem:[%s7 + $0x680] sm:$0xff]
      %v8903 = vld [vmem:[%s7 + $0x688] sm:$0xff]
      %v8904 = vld [vmem:[%s7 + $0x690] sm:$0xff]
      %v8905 = vld [vmem:[%s7 + $0x698] sm:$0xff]
      %v8906 = vld [vmem:[%s7 + $0x6a0] sm:$0xff]
      %v8907 = vld [vmem:[%s7 + $0x6a8] sm:$0xff]
      %v8908 = vld [vmem:[%s7 + $0x6b0] sm:$0xff]
      %v8909 = vld [vmem:[%s7 + $0x6b8] sm:$0xff]
      %v8910 = vld [vmem:[%s7 + $0x6c0] sm:$0xff]
      %v8911 = vld [vmem:[%s7 + $0x6c8] sm:$0xff]
      %v8912 = vld [vmem:[%s7 + $0x6d0] sm:$0xff]
      %v8913 = vld [vmem:[%s7 + $0x6d8] sm:$0xff]
      %v8914 = vld [vmem:[%s7 + $0x6e0] sm:$0xff]
      %v8915 = vld [vmem:[%s7 + $0x6e8] sm:$0xff]
      %v8916 = vld [vmem:[%s7 + $0x6f0] sm:$0xff]
      %v8917 = vld [vmem:[%s7 + $0x6f8] sm:$0xff]
      %v8918 = vld [vmem:[%s7 + $0x700] sm:$0xff]
      %v8919 = vld [vmem:[%s7 + $0x708] sm:$0xff]
      %v8920 = vld [vmem:[%s7 + $0x710] sm:$0xff]
      %v8921 = vld [vmem:[%s7 + $0x718] sm:$0xff]
      %v8922 = vld [vmem:[%s7 + $0x720] sm:$0xff]
      %v8923 = vld [vmem:[%s7 + $0x728] sm:$0xff]
      %v8924 = vld [vmem:[%s7 + $0x730] sm:$0xff]
      %v8925 = vld [vmem:[%s7 + $0x738] sm:$0xff]
      %v8926 = vld [vmem:[%s7 + $0x740] sm:$0xff]
      %v8927 = vld [vmem:[%s7 + $0x748] sm:$0xff]
      %v8928 = vld [vmem:[%s7 + $0x750] sm:$0xff]
      %v8929 = vld [vmem:[%s7 + $0x758] sm:$0xff]
      %v8930 = vld [vmem:[%s7 + $0x760] sm:$0xff]
      %v8931 = vld [vmem:[%s7 + $0x768] sm:$0xff]
      %v8932 = vld [vmem:[%s7 + $0x770] sm:$0xff]
      %v8933 = vld [vmem:[%s7 + $0x778] sm:$0xff]
      %v8934 = vld [vmem:[%s7 + $0x780] sm:$0xff]
      %v8935 = vld [vmem:[%s7 + $0x788] sm:$0xff]
      %v8936 = vld [vmem:[%s7 + $0x790] sm:$0xff]
      %v8937 = vld [vmem:[%s7 + $0x798] sm:$0xff]
      %v8938 = vld [vmem:[%s7 + $0x7a0] sm:$0xff]
      %v8939 = vld [vmem:[%s7 + $0x7a8] sm:$0xff]
      %v8940 = vld [vmem:[%s7 + $0x7b0] sm:$0xff]
      %v8941 = vld [vmem:[%s7 + $0x7b8] sm:$0xff]
      %v8942 = vld [vmem:[%s7 + $0x7c0] sm:$0xff]
      %v8943 = vld [vmem:[%s7 + $0x7c8] sm:$0xff]
      %v8944 = vld [vmem:[%s7 + $0x7d0] sm:$0xff]
      %v8945 = vld [vmem:[%s7 + $0x7d8] sm:$0xff]
      %v8946 = vld [vmem:[%s7 + $0x7e0] sm:$0xff]
      %v8947 = vld [vmem:[%s7 + $0x7e8] sm:$0xff]
      %v8948 = vld [vmem:[%s7 + $0x7f0] sm:$0xff]
      %v8949 = vld [vmem:[%s7 + $0x7f8] sm:$0xff]
      %v9206 = vunpack.c.l.b16 %v8694
      %v9207 = vunpack.c.h.b16 %v8694
      %v9208 = vunpack.c.l.b16 %v8695
      %v9209 = vunpack.c.h.b16 %v8695
      %v9210 = vunpack.c.l.b16 %v8696
      %v9211 = vunpack.c.h.b16 %v8696
      %v9212 = vunpack.c.l.b16 %v8697
      %v9213 = vunpack.c.h.b16 %v8697
      %v9214 = vunpack.c.l.b16 %v8698
      %v9215 = vunpack.c.h.b16 %v8698
      %v9216 = vunpack.c.l.b16 %v8699
      %v9217 = vunpack.c.h.b16 %v8699
      %v9218 = vunpack.c.l.b16 %v8700
      %v9219 = vunpack.c.h.b16 %v8700
      %v9220 = vunpack.c.l.b16 %v8701
      %v9221 = vunpack.c.h.b16 %v8701
      %v9222 = vunpack.c.l.b16 %v8702
      %v9223 = vunpack.c.h.b16 %v8702
      %v9224 = vunpack.c.l.b16 %v8703
      %v9225 = vunpack.c.h.b16 %v8703
      %v9226 = vunpack.c.l.b16 %v8704
      %v9227 = vunpack.c.h.b16 %v8704
      %v9228 = vunpack.c.l.b16 %v8705
      %v9229 = vunpack.c.h.b16 %v8705
      %v9230 = vunpack.c.l.b16 %v8706
      %v9231 = vunpack.c.h.b16 %v8706
      %v9232 = vunpack.c.l.b16 %v8707
      %v9233 = vunpack.c.h.b16 %v8707
      %v9234 = vunpack.c.l.b16 %v8708
      %v9235 = vunpack.c.h.b16 %v8708
      %v9236 = vunpack.c.l.b16 %v8709
      %v9237 = vunpack.c.h.b16 %v8709
      %v9238 = vunpack.c.l.b16 %v8710
      %v9239 = vunpack.c.h.b16 %v8710
      %v9240 = vunpack.c.l.b16 %v8711
      %v9241 = vunpack.c.h.b16 %v8711
      %v9242 = vunpack.c.l.b16 %v8712
      %v9243 = vunpack.c.h.b16 %v8712
      %v9244 = vunpack.c.l.b16 %v8713
      %v9245 = vunpack.c.h.b16 %v8713
      %v9246 = vunpack.c.l.b16 %v8714
      %v9247 = vunpack.c.h.b16 %v8714
      %v9248 = vunpack.c.l.b16 %v8715
      %v9249 = vunpack.c.h.b16 %v8715
      %v9250 = vunpack.c.l.b16 %v8716
      %v9251 = vunpack.c.h.b16 %v8716
      %v9252 = vunpack.c.l.b16 %v8717
      %v9253 = vunpack.c.h.b16 %v8717
      %v9254 = vunpack.c.l.b16 %v8718
      %v9255 = vunpack.c.h.b16 %v8718
      %v9256 = vunpack.c.l.b16 %v8719
      %v9257 = vunpack.c.h.b16 %v8719
      %v9258 = vunpack.c.l.b16 %v8720
      %v9259 = vunpack.c.h.b16 %v8720
      %v9260 = vunpack.c.l.b16 %v8721
      %v9261 = vunpack.c.h.b16 %v8721
      %v9262 = vunpack.c.l.b16 %v8722
      %v9263 = vunpack.c.h.b16 %v8722
      %v9264 = vunpack.c.l.b16 %v8723
      %v9265 = vunpack.c.h.b16 %v8723
      %v9266 = vunpack.c.l.b16 %v8724
      %v9267 = vunpack.c.h.b16 %v8724
      %v9268 = vunpack.c.l.b16 %v8725
      %v9269 = vunpack.c.h.b16 %v8725
      %v9270 = vunpack.c.l.b16 %v8726
      %v9271 = vunpack.c.h.b16 %v8726
      %v9272 = vunpack.c.l.b16 %v8727
      %v9273 = vunpack.c.h.b16 %v8727
      %v9274 = vunpack.c.l.b16 %v8728
      %v9275 = vunpack.c.h.b16 %v8728
      %v9276 = vunpack.c.l.b16 %v8729
      %v9277 = vunpack.c.h.b16 %v8729
      %v9278 = vunpack.c.l.b16 %v8730
      %v9279 = vunpack.c.h.b16 %v8730
      %v9280 = vunpack.c.l.b16 %v8731
      %v9281 = vunpack.c.h.b16 %v8731
      %v9282 = vunpack.c.l.b16 %v8732
      %v9283 = vunpack.c.h.b16 %v8732
      %v9284 = vunpack.c.l.b16 %v8733
      %v9285 = vunpack.c.h.b16 %v8733
      %v9286 = vunpack.c.l.b16 %v8734
      %v9287 = vunpack.c.h.b16 %v8734
      %v9288 = vunpack.c.l.b16 %v8735
      %v9289 = vunpack.c.h.b16 %v8735
      %v9290 = vunpack.c.l.b16 %v8736
      %v9291 = vunpack.c.h.b16 %v8736
      %v9292 = vunpack.c.l.b16 %v8737
      %v9293 = vunpack.c.h.b16 %v8737
      %v9294 = vunpack.c.l.b16 %v8738
      %v9295 = vunpack.c.h.b16 %v8738
      %v9296 = vunpack.c.l.b16 %v8739
      %v9297 = vunpack.c.h.b16 %v8739
      %v9298 = vunpack.c.l.b16 %v8740
      %v9299 = vunpack.c.h.b16 %v8740
      %v9300 = vunpack.c.l.b16 %v8741
      %v9301 = vunpack.c.h.b16 %v8741
      %v9302 = vunpack.c.l.b16 %v8742
      %v9303 = vunpack.c.h.b16 %v8742
      %v9304 = vunpack.c.l.b16 %v8743
      %v9305 = vunpack.c.h.b16 %v8743
      %v9306 = vunpack.c.l.b16 %v8744
      %v9307 = vunpack.c.h.b16 %v8744
      %v9308 = vunpack.c.l.b16 %v8745
      %v9309 = vunpack.c.h.b16 %v8745
      %v9310 = vunpack.c.l.b16 %v8746
      %v9311 = vunpack.c.h.b16 %v8746
      %v9312 = vunpack.c.l.b16 %v8747
      %v9313 = vunpack.c.h.b16 %v8747
      %v9314 = vunpack.c.l.b16 %v8748
      %v9315 = vunpack.c.h.b16 %v8748
      %v9316 = vunpack.c.l.b16 %v8749
      %v9317 = vunpack.c.h.b16 %v8749
      %v9318 = vunpack.c.l.b16 %v8750
      %v9319 = vunpack.c.h.b16 %v8750
      %v9320 = vunpack.c.l.b16 %v8751
      %v9321 = vunpack.c.h.b16 %v8751
      %v9322 = vunpack.c.l.b16 %v8752
      %v9323 = vunpack.c.h.b16 %v8752
      %v9324 = vunpack.c.l.b16 %v8753
      %v9325 = vunpack.c.h.b16 %v8753
      %v9326 = vunpack.c.l.b16 %v8754
      %v9327 = vunpack.c.h.b16 %v8754
      %v9328 = vunpack.c.l.b16 %v8755
      %v9329 = vunpack.c.h.b16 %v8755
      %v9330 = vunpack.c.l.b16 %v8756
      %v9331 = vunpack.c.h.b16 %v8756
      %v9332 = vunpack.c.l.b16 %v8757
      %v9333 = vunpack.c.h.b16 %v8757
      %v9334 = vunpack.c.l.b16 %v8758
      %v9335 = vunpack.c.h.b16 %v8758
      %v9336 = vunpack.c.l.b16 %v8759
      %v9337 = vunpack.c.h.b16 %v8759
      %v9338 = vunpack.c.l.b16 %v8760
      %v9339 = vunpack.c.h.b16 %v8760
      %v9340 = vunpack.c.l.b16 %v8761
      %v9341 = vunpack.c.h.b16 %v8761
      %v9342 = vunpack.c.l.b16 %v8762
      %v9343 = vunpack.c.h.b16 %v8762
      %v9344 = vunpack.c.l.b16 %v8763
      %v9345 = vunpack.c.h.b16 %v8763
      %v9346 = vunpack.c.l.b16 %v8764
      %v9347 = vunpack.c.h.b16 %v8764
      %v9348 = vunpack.c.l.b16 %v8765
      %v9349 = vunpack.c.h.b16 %v8765
      %v9350 = vunpack.c.l.b16 %v8766
      %v9351 = vunpack.c.h.b16 %v8766
      %v9352 = vunpack.c.l.b16 %v8767
      %v9353 = vunpack.c.h.b16 %v8767
      %v9354 = vunpack.c.l.b16 %v8768
      %v9355 = vunpack.c.h.b16 %v8768
      %v9356 = vunpack.c.l.b16 %v8769
      %v9357 = vunpack.c.h.b16 %v8769
      %v9358 = vunpack.c.l.b16 %v8770
      %v9359 = vunpack.c.h.b16 %v8770
      %v9360 = vunpack.c.l.b16 %v8771
      %v9361 = vunpack.c.h.b16 %v8771
      %v9362 = vunpack.c.l.b16 %v8772
      %v9363 = vunpack.c.h.b16 %v8772
      %v9364 = vunpack.c.l.b16 %v8773
      %v9365 = vunpack.c.h.b16 %v8773
      %v9366 = vunpack.c.l.b16 %v8774
      %v9367 = vunpack.c.h.b16 %v8774
      %v9368 = vunpack.c.l.b16 %v8775
      %v9369 = vunpack.c.h.b16 %v8775
      %v9370 = vunpack.c.l.b16 %v8776
      %v9371 = vunpack.c.h.b16 %v8776
      %v9372 = vunpack.c.l.b16 %v8777
      %v9373 = vunpack.c.h.b16 %v8777
      %v9374 = vunpack.c.l.b16 %v8778
      %v9375 = vunpack.c.h.b16 %v8778
      %v9376 = vunpack.c.l.b16 %v8779
      %v9377 = vunpack.c.h.b16 %v8779
      %v9378 = vunpack.c.l.b16 %v8780
      %v9379 = vunpack.c.h.b16 %v8780
      %v9380 = vunpack.c.l.b16 %v8781
      %v9381 = vunpack.c.h.b16 %v8781
      %v9382 = vunpack.c.l.b16 %v8782
      %v9383 = vunpack.c.h.b16 %v8782
      %v9384 = vunpack.c.l.b16 %v8783
      %v9385 = vunpack.c.h.b16 %v8783
      %v9386 = vunpack.c.l.b16 %v8784
      %v9387 = vunpack.c.h.b16 %v8784
      %v9388 = vunpack.c.l.b16 %v8785
      %v9389 = vunpack.c.h.b16 %v8785
      %v9390 = vunpack.c.l.b16 %v8786
      %v9391 = vunpack.c.h.b16 %v8786
      %v9392 = vunpack.c.l.b16 %v8787
      %v9393 = vunpack.c.h.b16 %v8787
      %v9394 = vunpack.c.l.b16 %v8788
      %v9395 = vunpack.c.h.b16 %v8788
      %v9396 = vunpack.c.l.b16 %v8789
      %v9397 = vunpack.c.h.b16 %v8789
      %v9398 = vunpack.c.l.b16 %v8790
      %v9399 = vunpack.c.h.b16 %v8790
      %v9400 = vunpack.c.l.b16 %v8791
      %v9401 = vunpack.c.h.b16 %v8791
      %v9402 = vunpack.c.l.b16 %v8792
      %v9403 = vunpack.c.h.b16 %v8792
      %v9404 = vunpack.c.l.b16 %v8793
      %v9405 = vunpack.c.h.b16 %v8793
      %v9406 = vunpack.c.l.b16 %v8794
      %v9407 = vunpack.c.h.b16 %v8794
      %v9408 = vunpack.c.l.b16 %v8795
      %v9409 = vunpack.c.h.b16 %v8795
      %v9410 = vunpack.c.l.b16 %v8796
      %v9411 = vunpack.c.h.b16 %v8796
      %v9412 = vunpack.c.l.b16 %v8797
      %v9413 = vunpack.c.h.b16 %v8797
      %v9414 = vunpack.c.l.b16 %v8798
      %v9415 = vunpack.c.h.b16 %v8798
      %v9416 = vunpack.c.l.b16 %v8799
      %v9417 = vunpack.c.h.b16 %v8799
      %v9418 = vunpack.c.l.b16 %v8800
      %v9419 = vunpack.c.h.b16 %v8800
      %v9420 = vunpack.c.l.b16 %v8801
      %v9421 = vunpack.c.h.b16 %v8801
      %v9422 = vunpack.c.l.b16 %v8802
      %v9423 = vunpack.c.h.b16 %v8802
      %v9424 = vunpack.c.l.b16 %v8803
      %v9425 = vunpack.c.h.b16 %v8803
      %v9426 = vunpack.c.l.b16 %v8804
      %v9427 = vunpack.c.h.b16 %v8804
      %v9428 = vunpack.c.l.b16 %v8805
      %v9429 = vunpack.c.h.b16 %v8805
      %v9430 = vunpack.c.l.b16 %v8806
      %v9431 = vunpack.c.h.b16 %v8806
      %v9432 = vunpack.c.l.b16 %v8807
      %v9433 = vunpack.c.h.b16 %v8807
      %v9434 = vunpack.c.l.b16 %v8808
      %v9435 = vunpack.c.h.b16 %v8808
      %v9436 = vunpack.c.l.b16 %v8809
      %v9437 = vunpack.c.h.b16 %v8809
      %v9438 = vunpack.c.l.b16 %v8810
      %v9439 = vunpack.c.h.b16 %v8810
      %v9440 = vunpack.c.l.b16 %v8811
      %v9441 = vunpack.c.h.b16 %v8811
      %v9442 = vunpack.c.l.b16 %v8812
      %v9443 = vunpack.c.h.b16 %v8812
      %v9444 = vunpack.c.l.b16 %v8813
      %v9445 = vunpack.c.h.b16 %v8813
      %v9446 = vunpack.c.l.b16 %v8814
      %v9447 = vunpack.c.h.b16 %v8814
      %v9448 = vunpack.c.l.b16 %v8815
      %v9449 = vunpack.c.h.b16 %v8815
      %v9450 = vunpack.c.l.b16 %v8816
      %v9451 = vunpack.c.h.b16 %v8816
      %v9452 = vunpack.c.l.b16 %v8817
      %v9453 = vunpack.c.h.b16 %v8817
      %v9454 = vunpack.c.l.b16 %v8818
      %v9455 = vunpack.c.h.b16 %v8818
      %v9456 = vunpack.c.l.b16 %v8819
      %v9457 = vunpack.c.h.b16 %v8819
      %v9458 = vunpack.c.l.b16 %v8820
      %v9459 = vunpack.c.h.b16 %v8820
      %v9460 = vunpack.c.l.b16 %v8821
      %v9461 = vunpack.c.h.b16 %v8821
      %v9462 = vunpack.c.l.b16 %v8822
      %v9463 = vunpack.c.h.b16 %v8822
      %v9464 = vunpack.c.l.b16 %v8823
      %v9465 = vunpack.c.h.b16 %v8823
      %v9466 = vunpack.c.l.b16 %v8824
      %v9467 = vunpack.c.h.b16 %v8824
      %v9468 = vunpack.c.l.b16 %v8825
      %v9469 = vunpack.c.h.b16 %v8825
      %v9470 = vunpack.c.l.b16 %v8826
      %v9471 = vunpack.c.h.b16 %v8826
      %v9472 = vunpack.c.l.b16 %v8827
      %v9473 = vunpack.c.h.b16 %v8827
      %v9474 = vunpack.c.l.b16 %v8828
      %v9475 = vunpack.c.h.b16 %v8828
      %v9476 = vunpack.c.l.b16 %v8829
      %v9477 = vunpack.c.h.b16 %v8829
      %v9478 = vunpack.c.l.b16 %v8830
      %v9479 = vunpack.c.h.b16 %v8830
      %v9480 = vunpack.c.l.b16 %v8831
      %v9481 = vunpack.c.h.b16 %v8831
      %v9482 = vunpack.c.l.b16 %v8832
      %v9483 = vunpack.c.h.b16 %v8832
      %v9484 = vunpack.c.l.b16 %v8833
      %v9485 = vunpack.c.h.b16 %v8833
      %v9486 = vunpack.c.l.b16 %v8834
      %v9487 = vunpack.c.h.b16 %v8834
      %v9488 = vunpack.c.l.b16 %v8835
      %v9489 = vunpack.c.h.b16 %v8835
      %v9490 = vunpack.c.l.b16 %v8836
      %v9491 = vunpack.c.h.b16 %v8836
      %v9492 = vunpack.c.l.b16 %v8837
      %v9493 = vunpack.c.h.b16 %v8837
      %v9494 = vunpack.c.l.b16 %v8838
      %v9495 = vunpack.c.h.b16 %v8838
      %v9496 = vunpack.c.l.b16 %v8839
      %v9497 = vunpack.c.h.b16 %v8839
      %v9498 = vunpack.c.l.b16 %v8840
      %v9499 = vunpack.c.h.b16 %v8840
      %v9500 = vunpack.c.l.b16 %v8841
      %v9501 = vunpack.c.h.b16 %v8841
      %v9502 = vunpack.c.l.b16 %v8842
      %v9503 = vunpack.c.h.b16 %v8842
      %v9504 = vunpack.c.l.b16 %v8843
      %v9505 = vunpack.c.h.b16 %v8843
      %v9506 = vunpack.c.l.b16 %v8844
      %v9507 = vunpack.c.h.b16 %v8844
      %v9508 = vunpack.c.l.b16 %v8845
      %v9509 = vunpack.c.h.b16 %v8845
      %v9510 = vunpack.c.l.b16 %v8846
      %v9511 = vunpack.c.h.b16 %v8846
      %v9512 = vunpack.c.l.b16 %v8847
      %v9513 = vunpack.c.h.b16 %v8847
      %v9514 = vunpack.c.l.b16 %v8848
      %v9515 = vunpack.c.h.b16 %v8848
      %v9516 = vunpack.c.l.b16 %v8849
      %v9517 = vunpack.c.h.b16 %v8849
      %v9518 = vunpack.c.l.b16 %v8850
      %v9519 = vunpack.c.h.b16 %v8850
      %v9520 = vunpack.c.l.b16 %v8851
      %v9521 = vunpack.c.h.b16 %v8851
      %v9522 = vunpack.c.l.b16 %v8852
      %v9523 = vunpack.c.h.b16 %v8852
      %v9524 = vunpack.c.l.b16 %v8853
      %v9525 = vunpack.c.h.b16 %v8853
      %v9526 = vunpack.c.l.b16 %v8854
      %v9527 = vunpack.c.h.b16 %v8854
      %v9528 = vunpack.c.l.b16 %v8855
      %v9529 = vunpack.c.h.b16 %v8855
      %v9530 = vunpack.c.l.b16 %v8856
      %v9531 = vunpack.c.h.b16 %v8856
      %v9532 = vunpack.c.l.b16 %v8857
      %v9533 = vunpack.c.h.b16 %v8857
      %v9534 = vunpack.c.l.b16 %v8858
      %v9535 = vunpack.c.h.b16 %v8858
      %v9536 = vunpack.c.l.b16 %v8859
      %v9537 = vunpack.c.h.b16 %v8859
      %v9538 = vunpack.c.l.b16 %v8860
      %v9539 = vunpack.c.h.b16 %v8860
      %v9540 = vunpack.c.l.b16 %v8861
      %v9541 = vunpack.c.h.b16 %v8861
      %v9542 = vunpack.c.l.b16 %v8862
      %v9543 = vunpack.c.h.b16 %v8862
      %v9544 = vunpack.c.l.b16 %v8863
      %v9545 = vunpack.c.h.b16 %v8863
      %v9546 = vunpack.c.l.b16 %v8864
      %v9547 = vunpack.c.h.b16 %v8864
      %v9548 = vunpack.c.l.b16 %v8865
      %v9549 = vunpack.c.h.b16 %v8865
      %v9550 = vunpack.c.l.b16 %v8866
      %v9551 = vunpack.c.h.b16 %v8866
      %v9552 = vunpack.c.l.b16 %v8867
      %v9553 = vunpack.c.h.b16 %v8867
      %v9554 = vunpack.c.l.b16 %v8868
      %v9555 = vunpack.c.h.b16 %v8868
      %v9556 = vunpack.c.l.b16 %v8869
      %v9557 = vunpack.c.h.b16 %v8869
      %v9558 = vunpack.c.l.b16 %v8870
      %v9559 = vunpack.c.h.b16 %v8870
      %v9560 = vunpack.c.l.b16 %v8871
      %v9561 = vunpack.c.h.b16 %v8871
      %v9562 = vunpack.c.l.b16 %v8872
      %v9563 = vunpack.c.h.b16 %v8872
      %v9564 = vunpack.c.l.b16 %v8873
      %v9565 = vunpack.c.h.b16 %v8873
      %v9566 = vunpack.c.l.b16 %v8874
      %v9567 = vunpack.c.h.b16 %v8874
      %v9568 = vunpack.c.l.b16 %v8875
      %v9569 = vunpack.c.h.b16 %v8875
      %v9570 = vunpack.c.l.b16 %v8876
      %v9571 = vunpack.c.h.b16 %v8876
      %v9572 = vunpack.c.l.b16 %v8877
      %v9573 = vunpack.c.h.b16 %v8877
      %v9574 = vunpack.c.l.b16 %v8878
      %v9575 = vunpack.c.h.b16 %v8878
      %v9576 = vunpack.c.l.b16 %v8879
      %v9577 = vunpack.c.h.b16 %v8879
      %v9578 = vunpack.c.l.b16 %v8880
      %v9579 = vunpack.c.h.b16 %v8880
      %v9580 = vunpack.c.l.b16 %v8881
      %v9581 = vunpack.c.h.b16 %v8881
      %v9582 = vunpack.c.l.b16 %v8882
      %v9583 = vunpack.c.h.b16 %v8882
      %v9584 = vunpack.c.l.b16 %v8883
      %v9585 = vunpack.c.h.b16 %v8883
      %v9586 = vunpack.c.l.b16 %v8884
      %v9587 = vunpack.c.h.b16 %v8884
      %v9588 = vunpack.c.l.b16 %v8885
      %v9589 = vunpack.c.h.b16 %v8885
      %v9590 = vunpack.c.l.b16 %v8886
      %v9591 = vunpack.c.h.b16 %v8886
      %v9592 = vunpack.c.l.b16 %v8887
      %v9593 = vunpack.c.h.b16 %v8887
      %v9594 = vunpack.c.l.b16 %v8888
      %v9595 = vunpack.c.h.b16 %v8888
      %v9596 = vunpack.c.l.b16 %v8889
      %v9597 = vunpack.c.h.b16 %v8889
      %v9598 = vunpack.c.l.b16 %v8890
      %v9599 = vunpack.c.h.b16 %v8890
      %v9600 = vunpack.c.l.b16 %v8891
      %v9601 = vunpack.c.h.b16 %v8891
      %v9602 = vunpack.c.l.b16 %v8892
      %v9603 = vunpack.c.h.b16 %v8892
      %v9604 = vunpack.c.l.b16 %v8893
      %v9605 = vunpack.c.h.b16 %v8893
      %v9606 = vunpack.c.l.b16 %v8894
      %v9607 = vunpack.c.h.b16 %v8894
      %v9608 = vunpack.c.l.b16 %v8895
      %v9609 = vunpack.c.h.b16 %v8895
      %v9610 = vunpack.c.l.b16 %v8896
      %v9611 = vunpack.c.h.b16 %v8896
      %v9612 = vunpack.c.l.b16 %v8897
      %v9613 = vunpack.c.h.b16 %v8897
      %v9614 = vunpack.c.l.b16 %v8898
      %v9615 = vunpack.c.h.b16 %v8898
      %v9616 = vunpack.c.l.b16 %v8899
      %v9617 = vunpack.c.h.b16 %v8899
      %v9618 = vunpack.c.l.b16 %v8900
      %v9619 = vunpack.c.h.b16 %v8900
      %v9620 = vunpack.c.l.b16 %v8901
      %v9621 = vunpack.c.h.b16 %v8901
      %v9622 = vunpack.c.l.b16 %v8902
      %v9623 = vunpack.c.h.b16 %v8902
      %v9624 = vunpack.c.l.b16 %v8903
      %v9625 = vunpack.c.h.b16 %v8903
      %v9626 = vunpack.c.l.b16 %v8904
      %v9627 = vunpack.c.h.b16 %v8904
      %v9628 = vunpack.c.l.b16 %v8905
      %v9629 = vunpack.c.h.b16 %v8905
      %v9630 = vunpack.c.l.b16 %v8906
      %v9631 = vunpack.c.h.b16 %v8906
      %v9632 = vunpack.c.l.b16 %v8907
      %v9633 = vunpack.c.h.b16 %v8907
      %v9634 = vunpack.c.l.b16 %v8908
      %v9635 = vunpack.c.h.b16 %v8908
      %v9636 = vunpack.c.l.b16 %v8909
      %v9637 = vunpack.c.h.b16 %v8909
      %v9638 = vunpack.c.l.b16 %v8910
      %v9639 = vunpack.c.h.b16 %v8910
      %v9640 = vunpack.c.l.b16 %v8911
      %v9641 = vunpack.c.h.b16 %v8911
      %v9642 = vunpack.c.l.b16 %v8912
      %v9643 = vunpack.c.h.b16 %v8912
      %v9644 = vunpack.c.l.b16 %v8913
      %v9645 = vunpack.c.h.b16 %v8913
      %v9646 = vunpack.c.l.b16 %v8914
      %v9647 = vunpack.c.h.b16 %v8914
      %v9648 = vunpack.c.l.b16 %v8915
      %v9649 = vunpack.c.h.b16 %v8915
      %v9650 = vunpack.c.l.b16 %v8916
      %v9651 = vunpack.c.h.b16 %v8916
      %v9652 = vunpack.c.l.b16 %v8917
      %v9653 = vunpack.c.h.b16 %v8917
      %v9654 = vunpack.c.l.b16 %v8918
      %v9655 = vunpack.c.h.b16 %v8918
      %v9656 = vunpack.c.l.b16 %v8919
      %v9657 = vunpack.c.h.b16 %v8919
      %v9658 = vunpack.c.l.b16 %v8920
      %v9659 = vunpack.c.h.b16 %v8920
      %v9660 = vunpack.c.l.b16 %v8921
      %v9661 = vunpack.c.h.b16 %v8921
      %v9662 = vunpack.c.l.b16 %v8922
      %v9663 = vunpack.c.h.b16 %v8922
      %v9664 = vunpack.c.l.b16 %v8923
      %v9665 = vunpack.c.h.b16 %v8923
      %v9666 = vunpack.c.l.b16 %v8924
      %v9667 = vunpack.c.h.b16 %v8924
      %v9668 = vunpack.c.l.b16 %v8925
      %v9669 = vunpack.c.h.b16 %v8925
      %v9670 = vunpack.c.l.b16 %v8926
      %v9671 = vunpack.c.h.b16 %v8926
      %v9672 = vunpack.c.l.b16 %v8927
      %v9673 = vunpack.c.h.b16 %v8927
      %v9674 = vunpack.c.l.b16 %v8928
      %v9675 = vunpack.c.h.b16 %v8928
      %v9676 = vunpack.c.l.b16 %v8929
      %v9677 = vunpack.c.h.b16 %v8929
      %v9678 = vunpack.c.l.b16 %v8930
      %v9679 = vunpack.c.h.b16 %v8930
      %v9680 = vunpack.c.l.b16 %v8931
      %v9681 = vunpack.c.h.b16 %v8931
      %v9682 = vunpack.c.l.b16 %v8932
      %v9683 = vunpack.c.h.b16 %v8932
      %v9684 = vunpack.c.l.b16 %v8933
      %v9685 = vunpack.c.h.b16 %v8933
      %v9686 = vunpack.c.l.b16 %v8934
      %v9687 = vunpack.c.h.b16 %v8934
      %v9688 = vunpack.c.l.b16 %v8935
      %v9689 = vunpack.c.h.b16 %v8935
      %v9690 = vunpack.c.l.b16 %v8936
      %v9691 = vunpack.c.h.b16 %v8936
      %v9692 = vunpack.c.l.b16 %v8937
      %v9693 = vunpack.c.h.b16 %v8937
      %v9694 = vunpack.c.l.b16 %v8938
      %v9695 = vunpack.c.h.b16 %v8938
      %v9696 = vunpack.c.l.b16 %v8939
      %v9697 = vunpack.c.h.b16 %v8939
      %v9698 = vunpack.c.l.b16 %v8940
      %v9699 = vunpack.c.h.b16 %v8940
      %v9700 = vunpack.c.l.b16 %v8941
      %v9701 = vunpack.c.h.b16 %v8941
      %v9702 = vunpack.c.l.b16 %v8942
      %v9703 = vunpack.c.h.b16 %v8942
      %v9704 = vunpack.c.l.b16 %v8943
      %v9705 = vunpack.c.h.b16 %v8943
      %v9706 = vunpack.c.l.b16 %v8944
      %v9707 = vunpack.c.h.b16 %v8944
      %v9708 = vunpack.c.l.b16 %v8945
      %v9709 = vunpack.c.h.b16 %v8945
      %v9710 = vunpack.c.l.b16 %v8946
      %v9711 = vunpack.c.h.b16 %v8946
      %v9712 = vunpack.c.l.b16 %v8947
      %v9713 = vunpack.c.h.b16 %v8947
      %v9714 = vunpack.c.l.b16 %v8948
      %v9715 = vunpack.c.h.b16 %v8948
      %v9716 = vunpack.c.l.b16 %v8949
      %v9717 = vunpack.c.h.b16 %v8949
      %v9718 = vpack.c.b16 %v9208, %v9206
      %v9719 = vpack.c.b16 %v9209, %v9207
      %v9720 = vpack.c.b16 %v9212, %v9210
      %v9721 = vpack.c.b16 %v9213, %v9211
      %v9722 = vpack.c.b16 %v9216, %v9214
      %v9723 = vpack.c.b16 %v9217, %v9215
      %v9724 = vpack.c.b16 %v9220, %v9218
      %v9725 = vpack.c.b16 %v9221, %v9219
      %v9726 = vpack.c.b16 %v9224, %v9222
      %v9727 = vpack.c.b16 %v9225, %v9223
      %v9728 = vpack.c.b16 %v9228, %v9226
      %v9729 = vpack.c.b16 %v9229, %v9227
      %v9730 = vpack.c.b16 %v9232, %v9230
      %v9731 = vpack.c.b16 %v9233, %v9231
      %v9732 = vpack.c.b16 %v9236, %v9234
      %v9733 = vpack.c.b16 %v9237, %v9235
      %v9734 = vpack.c.b16 %v9240, %v9238
      %v9735 = vpack.c.b16 %v9241, %v9239
      %v9736 = vpack.c.b16 %v9244, %v9242
      %v9737 = vpack.c.b16 %v9245, %v9243
      %v9738 = vpack.c.b16 %v9248, %v9246
      %v9739 = vpack.c.b16 %v9249, %v9247
      %v9740 = vpack.c.b16 %v9252, %v9250
      %v9741 = vpack.c.b16 %v9253, %v9251
      %v9742 = vpack.c.b16 %v9256, %v9254
      %v9743 = vpack.c.b16 %v9257, %v9255
      %v9744 = vpack.c.b16 %v9260, %v9258
      %v9745 = vpack.c.b16 %v9261, %v9259
      %v9746 = vpack.c.b16 %v9264, %v9262
      %v9747 = vpack.c.b16 %v9265, %v9263
      %v9748 = vpack.c.b16 %v9268, %v9266
      %v9749 = vpack.c.b16 %v9269, %v9267
      %v9750 = vpack.c.b16 %v9272, %v9270
      %v9751 = vpack.c.b16 %v9273, %v9271
      %v9752 = vpack.c.b16 %v9276, %v9274
      %v9753 = vpack.c.b16 %v9277, %v9275
      %v9754 = vpack.c.b16 %v9280, %v9278
      %v9755 = vpack.c.b16 %v9281, %v9279
      %v9756 = vpack.c.b16 %v9284, %v9282
      %v9757 = vpack.c.b16 %v9285, %v9283
      %v9758 = vpack.c.b16 %v9288, %v9286
      %v9759 = vpack.c.b16 %v9289, %v9287
      %v9760 = vpack.c.b16 %v9292, %v9290
      %v9761 = vpack.c.b16 %v9293, %v9291
      %v9762 = vpack.c.b16 %v9296, %v9294
      %v9763 = vpack.c.b16 %v9297, %v9295
      %v9764 = vpack.c.b16 %v9300, %v9298
      %v9765 = vpack.c.b16 %v9301, %v9299
      %v9766 = vpack.c.b16 %v9304, %v9302
      %v9767 = vpack.c.b16 %v9305, %v9303
      %v9768 = vpack.c.b16 %v9308, %v9306
      %v9769 = vpack.c.b16 %v9309, %v9307
      %v9770 = vpack.c.b16 %v9312, %v9310
      %v9771 = vpack.c.b16 %v9313, %v9311
      %v9772 = vpack.c.b16 %v9316, %v9314
      %v9773 = vpack.c.b16 %v9317, %v9315
      %v9774 = vpack.c.b16 %v9320, %v9318
      %v9775 = vpack.c.b16 %v9321, %v9319
      %v9776 = vpack.c.b16 %v9324, %v9322
      %v9777 = vpack.c.b16 %v9325, %v9323
      %v9778 = vpack.c.b16 %v9328, %v9326
      %v9779 = vpack.c.b16 %v9329, %v9327
      %v9780 = vpack.c.b16 %v9332, %v9330
      %v9781 = vpack.c.b16 %v9333, %v9331
      %v9782 = vpack.c.b16 %v9336, %v9334
      %v9783 = vpack.c.b16 %v9337, %v9335
      %v9784 = vpack.c.b16 %v9340, %v9338
      %v9785 = vpack.c.b16 %v9341, %v9339
      %v9786 = vpack.c.b16 %v9344, %v9342
      %v9787 = vpack.c.b16 %v9345, %v9343
      %v9788 = vpack.c.b16 %v9348, %v9346
      %v9789 = vpack.c.b16 %v9349, %v9347
      %v9790 = vpack.c.b16 %v9352, %v9350
      %v9791 = vpack.c.b16 %v9353, %v9351
      %v9792 = vpack.c.b16 %v9356, %v9354
      %v9793 = vpack.c.b16 %v9357, %v9355
      %v9794 = vpack.c.b16 %v9360, %v9358
      %v9795 = vpack.c.b16 %v9361, %v9359
      %v9796 = vpack.c.b16 %v9364, %v9362
      %v9797 = vpack.c.b16 %v9365, %v9363
      %v9798 = vpack.c.b16 %v9368, %v9366
      %v9799 = vpack.c.b16 %v9369, %v9367
      %v9800 = vpack.c.b16 %v9372, %v9370
      %v9801 = vpack.c.b16 %v9373, %v9371
      %v9802 = vpack.c.b16 %v9376, %v9374
      %v9803 = vpack.c.b16 %v9377, %v9375
      %v9804 = vpack.c.b16 %v9380, %v9378
      %v9805 = vpack.c.b16 %v9381, %v9379
      %v9806 = vpack.c.b16 %v9384, %v9382
      %v9807 = vpack.c.b16 %v9385, %v9383
      %v9808 = vpack.c.b16 %v9388, %v9386
      %v9809 = vpack.c.b16 %v9389, %v9387
      %v9810 = vpack.c.b16 %v9392, %v9390
      %v9811 = vpack.c.b16 %v9393, %v9391
      %v9812 = vpack.c.b16 %v9396, %v9394
      %v9813 = vpack.c.b16 %v9397, %v9395
      %v9814 = vpack.c.b16 %v9400, %v9398
      %v9815 = vpack.c.b16 %v9401, %v9399
      %v9816 = vpack.c.b16 %v9404, %v9402
      %v9817 = vpack.c.b16 %v9405, %v9403
      %v9818 = vpack.c.b16 %v9408, %v9406
      %v9819 = vpack.c.b16 %v9409, %v9407
      %v9820 = vpack.c.b16 %v9412, %v9410
      %v9821 = vpack.c.b16 %v9413, %v9411
      %v9822 = vpack.c.b16 %v9416, %v9414
      %v9823 = vpack.c.b16 %v9417, %v9415
      %v9824 = vpack.c.b16 %v9420, %v9418
      %v9825 = vpack.c.b16 %v9421, %v9419
      %v9826 = vpack.c.b16 %v9424, %v9422
      %v9827 = vpack.c.b16 %v9425, %v9423
      %v9828 = vpack.c.b16 %v9428, %v9426
      %v9829 = vpack.c.b16 %v9429, %v9427
      %v9830 = vpack.c.b16 %v9432, %v9430
      %v9831 = vpack.c.b16 %v9433, %v9431
      %v9832 = vpack.c.b16 %v9436, %v9434
      %v9833 = vpack.c.b16 %v9437, %v9435
      %v9834 = vpack.c.b16 %v9440, %v9438
      %v9835 = vpack.c.b16 %v9441, %v9439
      %v9836 = vpack.c.b16 %v9444, %v9442
      %v9837 = vpack.c.b16 %v9445, %v9443
      %v9838 = vpack.c.b16 %v9448, %v9446
      %v9839 = vpack.c.b16 %v9449, %v9447
      %v9840 = vpack.c.b16 %v9452, %v9450
      %v9841 = vpack.c.b16 %v9453, %v9451
      %v9842 = vpack.c.b16 %v9456, %v9454
      %v9843 = vpack.c.b16 %v9457, %v9455
      %v9844 = vpack.c.b16 %v9460, %v9458
      %v9845 = vpack.c.b16 %v9461, %v9459
      %v9846 = vpack.c.b16 %v9464, %v9462
      %v9847 = vpack.c.b16 %v9465, %v9463
      %v9848 = vpack.c.b16 %v9468, %v9466
      %v9849 = vpack.c.b16 %v9469, %v9467
      %v9850 = vpack.c.b16 %v9472, %v9470
      %v9851 = vpack.c.b16 %v9473, %v9471
      %v9852 = vpack.c.b16 %v9476, %v9474
      %v9853 = vpack.c.b16 %v9477, %v9475
      %v9854 = vpack.c.b16 %v9480, %v9478
      %v9855 = vpack.c.b16 %v9481, %v9479
      %v9856 = vpack.c.b16 %v9484, %v9482
      %v9857 = vpack.c.b16 %v9485, %v9483
      %v9858 = vpack.c.b16 %v9488, %v9486
      %v9859 = vpack.c.b16 %v9489, %v9487
      %v9860 = vpack.c.b16 %v9492, %v9490
      %v9861 = vpack.c.b16 %v9493, %v9491
      %v9862 = vpack.c.b16 %v9496, %v9494
      %v9863 = vpack.c.b16 %v9497, %v9495
      %v9864 = vpack.c.b16 %v9500, %v9498
      %v9865 = vpack.c.b16 %v9501, %v9499
      %v9866 = vpack.c.b16 %v9504, %v9502
      %v9867 = vpack.c.b16 %v9505, %v9503
      %v9868 = vpack.c.b16 %v9508, %v9506
      %v9869 = vpack.c.b16 %v9509, %v9507
      %v9870 = vpack.c.b16 %v9512, %v9510
      %v9871 = vpack.c.b16 %v9513, %v9511
      %v9872 = vpack.c.b16 %v9516, %v9514
      %v9873 = vpack.c.b16 %v9517, %v9515
      %v9874 = vpack.c.b16 %v9520, %v9518
      %v9875 = vpack.c.b16 %v9521, %v9519
      %v9876 = vpack.c.b16 %v9524, %v9522
      %v9877 = vpack.c.b16 %v9525, %v9523
      %v9878 = vpack.c.b16 %v9528, %v9526
      %v9879 = vpack.c.b16 %v9529, %v9527
      %v9880 = vpack.c.b16 %v9532, %v9530
      %v9881 = vpack.c.b16 %v9533, %v9531
      %v9882 = vpack.c.b16 %v9536, %v9534
      %v9883 = vpack.c.b16 %v9537, %v9535
      %v9884 = vpack.c.b16 %v9540, %v9538
      %v9885 = vpack.c.b16 %v9541, %v9539
      %v9886 = vpack.c.b16 %v9544, %v9542
      %v9887 = vpack.c.b16 %v9545, %v9543
      %v9888 = vpack.c.b16 %v9548, %v9546
      %v9889 = vpack.c.b16 %v9549, %v9547
      %v9890 = vpack.c.b16 %v9552, %v9550
      %v9891 = vpack.c.b16 %v9553, %v9551
      %v9892 = vpack.c.b16 %v9556, %v9554
      %v9893 = vpack.c.b16 %v9557, %v9555
      %v9894 = vpack.c.b16 %v9560, %v9558
      %v9895 = vpack.c.b16 %v9561, %v9559
      %v9896 = vpack.c.b16 %v9564, %v9562
      %v9897 = vpack.c.b16 %v9565, %v9563
      %v9898 = vpack.c.b16 %v9568, %v9566
      %v9899 = vpack.c.b16 %v9569, %v9567
      %v9900 = vpack.c.b16 %v9572, %v9570
      %v9901 = vpack.c.b16 %v9573, %v9571
      %v9902 = vpack.c.b16 %v9576, %v9574
      %v9903 = vpack.c.b16 %v9577, %v9575
      %v9904 = vpack.c.b16 %v9580, %v9578
      %v9905 = vpack.c.b16 %v9581, %v9579
      %v9906 = vpack.c.b16 %v9584, %v9582
      %v9907 = vpack.c.b16 %v9585, %v9583
      %v9908 = vpack.c.b16 %v9588, %v9586
      %v9909 = vpack.c.b16 %v9589, %v9587
      %v9910 = vpack.c.b16 %v9592, %v9590
      %v9911 = vpack.c.b16 %v9593, %v9591
      %v9912 = vpack.c.b16 %v9596, %v9594
      %v9913 = vpack.c.b16 %v9597, %v9595
      %v9914 = vpack.c.b16 %v9600, %v9598
      %v9915 = vpack.c.b16 %v9601, %v9599
      %v9916 = vpack.c.b16 %v9604, %v9602
      %v9917 = vpack.c.b16 %v9605, %v9603
      %v9918 = vpack.c.b16 %v9608, %v9606
      %v9919 = vpack.c.b16 %v9609, %v9607
      %v9920 = vpack.c.b16 %v9612, %v9610
      %v9921 = vpack.c.b16 %v9613, %v9611
      %v9922 = vpack.c.b16 %v9616, %v9614
      %v9923 = vpack.c.b16 %v9617, %v9615
      %v9924 = vpack.c.b16 %v9620, %v9618
      %v9925 = vpack.c.b16 %v9621, %v9619
      %v9926 = vpack.c.b16 %v9624, %v9622
      %v9927 = vpack.c.b16 %v9625, %v9623
      %v9928 = vpack.c.b16 %v9628, %v9626
      %v9929 = vpack.c.b16 %v9629, %v9627
      %v9930 = vpack.c.b16 %v9632, %v9630
      %v9931 = vpack.c.b16 %v9633, %v9631
      %v9932 = vpack.c.b16 %v9636, %v9634
      %v9933 = vpack.c.b16 %v9637, %v9635
      %v9934 = vpack.c.b16 %v9640, %v9638
      %v9935 = vpack.c.b16 %v9641, %v9639
      %v9936 = vpack.c.b16 %v9644, %v9642
      %v9937 = vpack.c.b16 %v9645, %v9643
      %v9938 = vpack.c.b16 %v9648, %v9646
      %v9939 = vpack.c.b16 %v9649, %v9647
      %v9940 = vpack.c.b16 %v9652, %v9650
      %v9941 = vpack.c.b16 %v9653, %v9651
      %v9942 = vpack.c.b16 %v9656, %v9654
      %v9943 = vpack.c.b16 %v9657, %v9655
      %v9944 = vpack.c.b16 %v9660, %v9658
      %v9945 = vpack.c.b16 %v9661, %v9659
      %v9946 = vpack.c.b16 %v9664, %v9662
      %v9947 = vpack.c.b16 %v9665, %v9663
      %v9948 = vpack.c.b16 %v9668, %v9666
      %v9949 = vpack.c.b16 %v9669, %v9667
      %v9950 = vpack.c.b16 %v9672, %v9670
      %v9951 = vpack.c.b16 %v9673, %v9671
      %v9952 = vpack.c.b16 %v9676, %v9674
      %v9953 = vpack.c.b16 %v9677, %v9675
      %v9954 = vpack.c.b16 %v9680, %v9678
      %v9955 = vpack.c.b16 %v9681, %v9679
      %v9956 = vpack.c.b16 %v9684, %v9682
      %v9957 = vpack.c.b16 %v9685, %v9683
      %v9958 = vpack.c.b16 %v9688, %v9686
      %v9959 = vpack.c.b16 %v9689, %v9687
      %v9960 = vpack.c.b16 %v9692, %v9690
      %v9961 = vpack.c.b16 %v9693, %v9691
      %v9962 = vpack.c.b16 %v9696, %v9694
      %v9963 = vpack.c.b16 %v9697, %v9695
      %v9964 = vpack.c.b16 %v9700, %v9698
      %v9965 = vpack.c.b16 %v9701, %v9699
      %v9966 = vpack.c.b16 %v9704, %v9702
      %v9967 = vpack.c.b16 %v9705, %v9703
      %v9968 = vpack.c.b16 %v9708, %v9706
      %v9969 = vpack.c.b16 %v9709, %v9707
      %v9970 = vpack.c.b16 %v9712, %v9710
      %v9971 = vpack.c.b16 %v9713, %v9711
      %v9972 = vpack.c.b16 %v9716, %v9714
      %v9973 = vpack.c.b16 %v9717, %v9715
      %10230 = vmatprep.subr.bf16.mxu0 %v9733
      %10231 = vmatpush1.bf16.msra.mxu0 %v9732
      %10232 = vmatprep.subr.bf16.mxu0 %v9731
      %10233 = vmatpush1.bf16.msra.mxu0 %v9730
      %10234 = vmatprep.subr.bf16.mxu0 %v9729
      %10235 = vmatpush1.bf16.msra.mxu0 %v9728
      %10236 = vmatprep.subr.bf16.mxu0 %v9727
      %10237 = vmatpush1.bf16.msra.mxu0 %v9726
      %10238 = vmatprep.subr.bf16.mxu0 %v9725
      %10239 = vmatpush1.bf16.msra.mxu0 %v9724
      %10240 = vmatprep.subr.bf16.mxu0 %v9723
      %10241 = vmatpush1.bf16.msra.mxu0 %v9722
      %10242 = vmatprep.subr.bf16.mxu0 %v9721
      %10243 = vmatpush1.bf16.msra.mxu0 %v9720
      %10244 = vmatprep.subr.bf16.mxu0 %v9719
      %10245 = vmatpush1.bf16.msra.mxu0 %v9718
      %10246 = vmatprep.subr.bf16.mxu0 %v9749
      %10247 = vmatpush2.bf16.msra.mxu0 %v9748
      %10248 = vmatprep.subr.bf16.mxu0 %v9747
      %10249 = vmatpush2.bf16.msra.mxu0 %v9746
      %10250 = vmatprep.subr.bf16.mxu0 %v9745
      %10251 = vmatpush2.bf16.msra.mxu0 %v9744
      %10252 = vmatprep.subr.bf16.mxu0 %v9743
      %10253 = vmatpush2.bf16.msra.mxu0 %v9742
      %10254 = vmatprep.subr.bf16.mxu0 %v9741
      %10255 = vmatpush2.bf16.msra.mxu0 %v9740
      %10256 = vmatprep.subr.bf16.mxu0 %v9739
      %10257 = vmatpush2.bf16.msra.mxu0 %v9738
      %10258 = vmatprep.subr.bf16.mxu0 %v9737
      %10259 = vmatpush2.bf16.msra.mxu0 %v9736
      %10260 = vmatprep.subr.bf16.mxu0 %v9735
      %10261 = vmatpush2.bf16.msra.mxu0 %v9734
      %10262 = vmatprep.mubr.bf16.mxu0 %v8568
      %10263 = vmatmul.mubr.bf16.gmra.mxu0 %v8556
      %v10264 = vpop.f32.mrf.mxu0
      %v10265 = vadd.f32 0.0, %v10264
      %v10266 = vpop.f32.mrf.mxu0
      %v10267 = vadd.f32 0.0, %v10266
      %v10268 = vpop.f32.mrf.mxu0
      %v10269 = vpop.f32.mrf.mxu0
      %10270 = vmatprep.mubr.bf16.mxu0 %v8572
      %10271 = vmatmul.mubr.bf16.gmra.mxu0 0
      %v10272 = vpop.f32.mrf.mxu0
      %v10273 = vpop.f32.mrf.mxu0
      %v10274 = vpop.f32.mrf.mxu0
      %v10275 = vadd.f32 0.0, %v10274
      %v10276 = vpop.f32.mrf.mxu0
      %v10277 = vadd.f32 0.0, %v10276
      %10278 = vmatprep.mubr.bf16.mxu0 %v8575
      %10279 = vmatmul.mubr.bf16.gmra.mxu0 %v8560
      %v10280 = vpop.f32.mrf.mxu0
      %v10281 = vpop.f32.mrf.mxu0
      %v10282 = vpop.f32.mrf.mxu0
      %v10283 = vpop.f32.mrf.mxu0
      %10284 = vdwg.mxu0
      %10285 = vmatprep.subr.bf16.mxu0 %v9765
      %10286 = vmatpush1.bf16.msra.mxu0 %v9764
      %10287 = vmatprep.subr.bf16.mxu0 %v9763
      %10288 = vmatpush1.bf16.msra.mxu0 %v9762
      %10289 = vmatprep.subr.bf16.mxu0 %v9761
      %10290 = vmatpush1.bf16.msra.mxu0 %v9760
      %10291 = vmatprep.subr.bf16.mxu0 %v9759
      %10292 = vmatpush1.bf16.msra.mxu0 %v9758
      %10293 = vmatprep.subr.bf16.mxu0 %v9757
      %10294 = vmatpush1.bf16.msra.mxu0 %v9756
      %10295 = vmatprep.subr.bf16.mxu0 %v9755
      %10296 = vmatpush1.bf16.msra.mxu0 %v9754
      %10297 = vmatprep.subr.bf16.mxu0 %v9753
      %10298 = vmatpush1.bf16.msra.mxu0 %v9752
      %10299 = vmatprep.subr.bf16.mxu0 %v9751
      %10300 = vmatpush1.bf16.msra.mxu0 %v9750
      %10301 = vmatprep.subr.bf16.mxu0 %v9781
      %10302 = vmatpush2.bf16.msra.mxu0 %v9780
      %10303 = vmatprep.subr.bf16.mxu0 %v9779
      %10304 = vmatpush2.bf16.msra.mxu0 %v9778
      %10305 = vmatprep.subr.bf16.mxu0 %v9777
      %10306 = vmatpush2.bf16.msra.mxu0 %v9776
      %10307 = vmatprep.subr.bf16.mxu0 %v9775
      %10308 = vmatpush2.bf16.msra.mxu0 %v9774
      %10309 = vmatprep.subr.bf16.mxu0 %v9773
      %10310 = vmatpush2.bf16.msra.mxu0 %v9772
      %10311 = vmatprep.subr.bf16.mxu0 %v9771
      %10312 = vmatpush2.bf16.msra.mxu0 %v9770
      %10313 = vmatprep.subr.bf16.mxu0 %v9769
      %10314 = vmatpush2.bf16.msra.mxu0 %v9768
      %10315 = vmatprep.subr.bf16.mxu0 %v9767
      %10316 = vmatpush2.bf16.msra.mxu0 %v9766
      %10317 = vmatprep.mubr.bf16.mxu0 %v8587
      %10318 = vmatmul.mubr.bf16.gmra.mxu0 %v8584
      %v10319 = vpop.f32.mrf.mxu0
      %v10320 = vadd.f32 %v10265, %v10319
      %v10321 = vpop.f32.mrf.mxu0
      %v10322 = vadd.f32 %v10267, %v10321
      %v10323 = vpop.f32.mrf.mxu0
      %v10324 = vpop.f32.mrf.mxu0
      %10325 = vmatprep.mubr.bf16.mxu0 %v8591
      %10326 = vmatmul.mubr.bf16.gmra.mxu0 %v8589
      %v10327 = vpop.f32.mrf.mxu0
      %v10328 = vpop.f32.mrf.mxu0
      %v10329 = vpop.f32.mrf.mxu0
      %v10330 = vadd.f32 %v10275, %v10329
      %v10331 = vpop.f32.mrf.mxu0
      %v10332 = vadd.f32 %v10277, %v10331
      %10333 = vmatprep.mubr.bf16.mxu0 %v8590
      %10334 = vmatmul.mubr.bf16.gmra.mxu0 %v8588
      %v10335 = vpop.f32.mrf.mxu0
      %v10336 = vpop.f32.mrf.mxu0
      %v10337 = vpop.f32.mrf.mxu0
      %v10338 = vpop.f32.mrf.mxu0
      %10339 = vdwg.mxu0
      %10340 = vmatprep.subr.bf16.mxu0 %v9797
      %10341 = vmatpush1.bf16.msra.mxu0 %v9796
      %10342 = vmatprep.subr.bf16.mxu0 %v9795
      %10343 = vmatpush1.bf16.msra.mxu0 %v9794
      %10344 = vmatprep.subr.bf16.mxu0 %v9793
      %10345 = vmatpush1.bf16.msra.mxu0 %v9792
      %10346 = vmatprep.subr.bf16.mxu0 %v9791
      %10347 = vmatpush1.bf16.msra.mxu0 %v9790
      %10348 = vmatprep.subr.bf16.mxu0 %v9789
      %10349 = vmatpush1.bf16.msra.mxu0 %v9788
      %10350 = vmatprep.subr.bf16.mxu0 %v9787
      %10351 = vmatpush1.bf16.msra.mxu0 %v9786
      %10352 = vmatprep.subr.bf16.mxu0 %v9785
      %10353 = vmatpush1.bf16.msra.mxu0 %v9784
      %10354 = vmatprep.subr.bf16.mxu0 %v9783
      %10355 = vmatpush1.bf16.msra.mxu0 %v9782
      %10356 = vmatprep.subr.bf16.mxu0 %v9813
      %10357 = vmatpush2.bf16.msra.mxu0 %v9812
      %10358 = vmatprep.subr.bf16.mxu0 %v9811
      %10359 = vmatpush2.bf16.msra.mxu0 %v9810
      %10360 = vmatprep.subr.bf16.mxu0 %v9809
      %10361 = vmatpush2.bf16.msra.mxu0 %v9808
      %10362 = vmatprep.subr.bf16.mxu0 %v9807
      %10363 = vmatpush2.bf16.msra.mxu0 %v9806
      %10364 = vmatprep.subr.bf16.mxu0 %v9805
      %10365 = vmatpush2.bf16.msra.mxu0 %v9804
      %10366 = vmatprep.subr.bf16.mxu0 %v9803
      %10367 = vmatpush2.bf16.msra.mxu0 %v9802
      %10368 = vmatprep.subr.bf16.mxu0 %v9801
      %10369 = vmatpush2.bf16.msra.mxu0 %v9800
      %10370 = vmatprep.subr.bf16.mxu0 %v9799
      %10371 = vmatpush2.bf16.msra.mxu0 %v9798
      %10372 = vmatprep.mubr.bf16.mxu0 %v8603
      %10373 = vmatmul.mubr.bf16.gmra.mxu0 %v8600
      %v10374 = vpop.f32.mrf.mxu0
      %v10375 = vadd.f32 %v10320, %v10374
      %v10376 = vpop.f32.mrf.mxu0
      %v10377 = vadd.f32 %v10322, %v10376
      %v10378 = vpop.f32.mrf.mxu0
      %v10379 = vpop.f32.mrf.mxu0
      %10380 = vmatprep.mubr.bf16.mxu0 %v8613
      %10381 = vmatmul.mubr.bf16.gmra.mxu0 %v8611
      %v10382 = vpop.f32.mrf.mxu0
      %v10383 = vpop.f32.mrf.mxu0
      %v10384 = vpop.f32.mrf.mxu0
      %v10385 = vadd.f32 %v10330, %v10384
      %v10386 = vpop.f32.mrf.mxu0
      %v10387 = vadd.f32 %v10332, %v10386
      %10388 = vmatprep.mubr.bf16.mxu0 %v8612
      %10389 = vmatmul.mubr.bf16.gmra.mxu0 %v8610
      %v10390 = vpop.f32.mrf.mxu0
      %v10391 = vpop.f32.mrf.mxu0
      %v10392 = vpop.f32.mrf.mxu0
      %v10393 = vpop.f32.mrf.mxu0
      %10394 = vdwg.mxu0
      %10395 = vmatprep.subr.bf16.mxu0 %v9829
      %10396 = vmatpush1.bf16.msra.mxu0 %v9828
      %10397 = vmatprep.subr.bf16.mxu0 %v9827
      %10398 = vmatpush1.bf16.msra.mxu0 %v9826
      %10399 = vmatprep.subr.bf16.mxu0 %v9825
      %10400 = vmatpush1.bf16.msra.mxu0 %v9824
      %10401 = vmatprep.subr.bf16.mxu0 %v9823
      %10402 = vmatpush1.bf16.msra.mxu0 %v9822
      %10403 = vmatprep.subr.bf16.mxu0 %v9821
      %10404 = vmatpush1.bf16.msra.mxu0 %v9820
      %10405 = vmatprep.subr.bf16.mxu0 %v9819
      %10406 = vmatpush1.bf16.msra.mxu0 %v9818
      %10407 = vmatprep.subr.bf16.mxu0 %v9817
      %10408 = vmatpush1.bf16.msra.mxu0 %v9816
      %10409 = vmatprep.subr.bf16.mxu0 %v9815
      %10410 = vmatpush1.bf16.msra.mxu0 %v9814
      %10411 = vmatprep.subr.bf16.mxu0 %v9845
      %10412 = vmatpush2.bf16.msra.mxu0 %v9844
      %10413 = vmatprep.subr.bf16.mxu0 %v9843
      %10414 = vmatpush2.bf16.msra.mxu0 %v9842
      %10415 = vmatprep.subr.bf16.mxu0 %v9841
      %10416 = vmatpush2.bf16.msra.mxu0 %v9840
      %10417 = vmatprep.subr.bf16.mxu0 %v9839
      %10418 = vmatpush2.bf16.msra.mxu0 %v9838
      %10419 = vmatprep.subr.bf16.mxu0 %v9837
      %10420 = vmatpush2.bf16.msra.mxu0 %v9836
      %10421 = vmatprep.subr.bf16.mxu0 %v9835
      %10422 = vmatpush2.bf16.msra.mxu0 %v9834
      %10423 = vmatprep.subr.bf16.mxu0 %v9833
      %10424 = vmatpush2.bf16.msra.mxu0 %v9832
      %10425 = vmatprep.subr.bf16.mxu0 %v9831
      %10426 = vmatpush2.bf16.msra.mxu0 %v9830
      %10427 = vmatprep.mubr.bf16.mxu0 %v8609
      %10428 = vmatmul.mubr.bf16.gmra.mxu0 %v8606
      %v10429 = vpop.f32.mrf.mxu0
      %v10430 = vadd.f32 %v10375, %v10429
      %v10431 = vpop.f32.mrf.mxu0
      %v10432 = vadd.f32 %v10377, %v10431
      %v10433 = vpop.f32.mrf.mxu0
      %v10434 = vpop.f32.mrf.mxu0
      %10435 = vmatprep.mubr.bf16.mxu0 %v8617
      %10436 = vmatmul.mubr.bf16.gmra.mxu0 %v8615
      %v10437 = vpop.f32.mrf.mxu0
      %v10438 = vpop.f32.mrf.mxu0
      %v10439 = vpop.f32.mrf.mxu0
      %v10440 = vadd.f32 %v10385, %v10439
      %v10441 = vpop.f32.mrf.mxu0
      %v10442 = vadd.f32 %v10387, %v10441
      %10443 = vmatprep.mubr.bf16.mxu0 %v8616
      %10444 = vmatmul.mubr.bf16.gmra.mxu0 %v8614
      %v10445 = vpop.f32.mrf.mxu0
      %v10446 = vpop.f32.mrf.mxu0
      %v10447 = vpop.f32.mrf.mxu0
      %v10448 = vpop.f32.mrf.mxu0
      %10449 = vdwg.mxu0
      %10450 = vmatprep.subr.bf16.mxu0 %v9861
      %10451 = vmatpush1.bf16.msra.mxu0 %v9860
      %10452 = vmatprep.subr.bf16.mxu0 %v9859
      %10453 = vmatpush1.bf16.msra.mxu0 %v9858
      %10454 = vmatprep.subr.bf16.mxu0 %v9857
      %10455 = vmatpush1.bf16.msra.mxu0 %v9856
      %10456 = vmatprep.subr.bf16.mxu0 %v9855
      %10457 = vmatpush1.bf16.msra.mxu0 %v9854
      %10458 = vmatprep.subr.bf16.mxu0 %v9853
      %10459 = vmatpush1.bf16.msra.mxu0 %v9852
      %10460 = vmatprep.subr.bf16.mxu0 %v9851
      %10461 = vmatpush1.bf16.msra.mxu0 %v9850
      %10462 = vmatprep.subr.bf16.mxu0 %v9849
      %10463 = vmatpush1.bf16.msra.mxu0 %v9848
      %10464 = vmatprep.subr.bf16.mxu0 %v9847
      %10465 = vmatpush1.bf16.msra.mxu0 %v9846
      %10466 = vmatprep.subr.bf16.mxu0 %v9877
      %10467 = vmatpush2.bf16.msra.mxu0 %v9876
      %10468 = vmatprep.subr.bf16.mxu0 %v9875
      %10469 = vmatpush2.bf16.msra.mxu0 %v9874
      %10470 = vmatprep.subr.bf16.mxu0 %v9873
      %10471 = vmatpush2.bf16.msra.mxu0 %v9872
      %10472 = vmatprep.subr.bf16.mxu0 %v9871
      %10473 = vmatpush2.bf16.msra.mxu0 %v9870
      %10474 = vmatprep.subr.bf16.mxu0 %v9869
      %10475 = vmatpush2.bf16.msra.mxu0 %v9868
      %10476 = vmatprep.subr.bf16.mxu0 %v9867
      %10477 = vmatpush2.bf16.msra.mxu0 %v9866
      %10478 = vmatprep.subr.bf16.mxu0 %v9865
      %10479 = vmatpush2.bf16.msra.mxu0 %v9864
      %10480 = vmatprep.subr.bf16.mxu0 %v9863
      %10481 = vmatpush2.bf16.msra.mxu0 %v9862
      %10482 = vmatprep.mubr.bf16.mxu0 %v8635
      %10483 = vmatmul.mubr.bf16.gmra.mxu0 %v8632
      %v10484 = vpop.f32.mrf.mxu0
      %v10485 = vadd.f32 %v10430, %v10484
      %v10486 = vpop.f32.mrf.mxu0
      %v10487 = vadd.f32 %v10432, %v10486
      %v10488 = vpop.f32.mrf.mxu0
      %v10489 = vpop.f32.mrf.mxu0
      %10490 = vmatprep.mubr.bf16.mxu0 %v8657
      %10491 = vmatmul.mubr.bf16.gmra.mxu0 %v8655
      %v10492 = vpop.f32.mrf.mxu0
      %v10493 = vpop.f32.mrf.mxu0
      %v10494 = vpop.f32.mrf.mxu0
      %v10495 = vadd.f32 %v10440, %v10494
      %v10496 = vpop.f32.mrf.mxu0
      %v10497 = vadd.f32 %v10442, %v10496
      %10498 = vmatprep.mubr.bf16.mxu0 %v8656
      %10499 = vmatmul.mubr.bf16.gmra.mxu0 %v8654
      %v10500 = vpop.f32.mrf.mxu0
      %v10501 = vpop.f32.mrf.mxu0
      %v10502 = vpop.f32.mrf.mxu0
      %v10503 = vpop.f32.mrf.mxu0
      %10504 = vdwg.mxu0
      %10505 = vmatprep.subr.bf16.mxu0 %v9893
      %10506 = vmatpush1.bf16.msra.mxu0 %v9892
      %10507 = vmatprep.subr.bf16.mxu0 %v9891
      %10508 = vmatpush1.bf16.msra.mxu0 %v9890
      %10509 = vmatprep.subr.bf16.mxu0 %v9889
      %10510 = vmatpush1.bf16.msra.mxu0 %v9888
      %10511 = vmatprep.subr.bf16.mxu0 %v9887
      %10512 = vmatpush1.bf16.msra.mxu0 %v9886
      %10513 = vmatprep.subr.bf16.mxu0 %v9885
      %10514 = vmatpush1.bf16.msra.mxu0 %v9884
      %10515 = vmatprep.subr.bf16.mxu0 %v9883
      %10516 = vmatpush1.bf16.msra.mxu0 %v9882
      %10517 = vmatprep.subr.bf16.mxu0 %v9881
      %10518 = vmatpush1.bf16.msra.mxu0 %v9880
      %10519 = vmatprep.subr.bf16.mxu0 %v9879
      %10520 = vmatpush1.bf16.msra.mxu0 %v9878
      %10521 = vmatprep.subr.bf16.mxu0 %v9909
      %10522 = vmatpush2.bf16.msra.mxu0 %v9908
      %10523 = vmatprep.subr.bf16.mxu0 %v9907
      %10524 = vmatpush2.bf16.msra.mxu0 %v9906
      %10525 = vmatprep.subr.bf16.mxu0 %v9905
      %10526 = vmatpush2.bf16.msra.mxu0 %v9904
      %10527 = vmatprep.subr.bf16.mxu0 %v9903
      %10528 = vmatpush2.bf16.msra.mxu0 %v9902
      %10529 = vmatprep.subr.bf16.mxu0 %v9901
      %10530 = vmatpush2.bf16.msra.mxu0 %v9900
      %10531 = vmatprep.subr.bf16.mxu0 %v9899
      %10532 = vmatpush2.bf16.msra.mxu0 %v9898
      %10533 = vmatprep.subr.bf16.mxu0 %v9897
      %10534 = vmatpush2.bf16.msra.mxu0 %v9896
      %10535 = vmatprep.subr.bf16.mxu0 %v9895
      %10536 = vmatpush2.bf16.msra.mxu0 %v9894
      %10537 = vmatprep.mubr.bf16.mxu0 %v8641
      %10538 = vmatmul.mubr.bf16.gmra.mxu0 %v8638
      %v10539 = vpop.f32.mrf.mxu0
      %v10540 = vadd.f32 %v10485, %v10539
      %v10541 = vpop.f32.mrf.mxu0
      %v10542 = vadd.f32 %v10487, %v10541
      %v10543 = vpop.f32.mrf.mxu0
      %v10544 = vpop.f32.mrf.mxu0
      %10545 = vmatprep.mubr.bf16.mxu0 %v8661
      %10546 = vmatmul.mubr.bf16.gmra.mxu0 %v8659
      %v10547 = vpop.f32.mrf.mxu0
      %v10548 = vpop.f32.mrf.mxu0
      %v10549 = vpop.f32.mrf.mxu0
      %v10550 = vadd.f32 %v10495, %v10549
      %v10551 = vpop.f32.mrf.mxu0
      %v10552 = vadd.f32 %v10497, %v10551
      %10553 = vmatprep.mubr.bf16.mxu0 %v8660
      %10554 = vmatmul.mubr.bf16.gmra.mxu0 %v8658
      %v10555 = vpop.f32.mrf.mxu0
      %v10556 = vpop.f32.mrf.mxu0
      %v10557 = vpop.f32.mrf.mxu0
      %v10558 = vpop.f32.mrf.mxu0
      %10559 = vdwg.mxu0
      %10560 = vmatprep.subr.bf16.mxu0 %v9925
      %10561 = vmatpush1.bf16.msra.mxu0 %v9924
      %10562 = vmatprep.subr.bf16.mxu0 %v9923
      %10563 = vmatpush1.bf16.msra.mxu0 %v9922
      %10564 = vmatprep.subr.bf16.mxu0 %v9921
      %10565 = vmatpush1.bf16.msra.mxu0 %v9920
      %10566 = vmatprep.subr.bf16.mxu0 %v9919
      %10567 = vmatpush1.bf16.msra.mxu0 %v9918
      %10568 = vmatprep.subr.bf16.mxu0 %v9917
      %10569 = vmatpush1.bf16.msra.mxu0 %v9916
      %10570 = vmatprep.subr.bf16.mxu0 %v9915
      %10571 = vmatpush1.bf16.msra.mxu0 %v9914
      %10572 = vmatprep.subr.bf16.mxu0 %v9913
      %10573 = vmatpush1.bf16.msra.mxu0 %v9912
      %10574 = vmatprep.subr.bf16.mxu0 %v9911
      %10575 = vmatpush1.bf16.msra.mxu0 %v9910
      %10576 = vmatprep.subr.bf16.mxu0 %v9941
      %10577 = vmatpush2.bf16.msra.mxu0 %v9940
      %10578 = vmatprep.subr.bf16.mxu0 %v9939
      %10579 = vmatpush2.bf16.msra.mxu0 %v9938
      %10580 = vmatprep.subr.bf16.mxu0 %v9937
      %10581 = vmatpush2.bf16.msra.mxu0 %v9936
      %10582 = vmatprep.subr.bf16.mxu0 %v9935
      %10583 = vmatpush2.bf16.msra.mxu0 %v9934
      %10584 = vmatprep.subr.bf16.mxu0 %v9933
      %10585 = vmatpush2.bf16.msra.mxu0 %v9932
      %10586 = vmatprep.subr.bf16.mxu0 %v9931
      %10587 = vmatpush2.bf16.msra.mxu0 %v9930
      %10588 = vmatprep.subr.bf16.mxu0 %v9929
      %10589 = vmatpush2.bf16.msra.mxu0 %v9928
      %10590 = vmatprep.subr.bf16.mxu0 %v9927
      %10591 = vmatpush2.bf16.msra.mxu0 %v9926
      %10592 = vmatprep.mubr.bf16.mxu0 %v8647
      %10593 = vmatmul.mubr.bf16.gmra.mxu0 %v8644
      %v10594 = vpop.f32.mrf.mxu0
      %v10595 = vadd.f32 %v10540, %v10594
      %v10596 = vpop.f32.mrf.mxu0
      %v10597 = vadd.f32 %v10542, %v10596
      %v10598 = vpop.f32.mrf.mxu0
      %v10599 = vpop.f32.mrf.mxu0
      %10600 = vmatprep.mubr.bf16.mxu0 %v8665
      %10601 = vmatmul.mubr.bf16.gmra.mxu0 %v8663
      %v10602 = vpop.f32.mrf.mxu0
      %v10603 = vpop.f32.mrf.mxu0
      %v10604 = vpop.f32.mrf.mxu0
      %v10605 = vadd.f32 %v10550, %v10604
      %v10606 = vpop.f32.mrf.mxu0
      %v10607 = vadd.f32 %v10552, %v10606
      %10608 = vmatprep.mubr.bf16.mxu0 %v8664
      %10609 = vmatmul.mubr.bf16.gmra.mxu0 %v8662
      %v10610 = vpop.f32.mrf.mxu0
      %v10611 = vpop.f32.mrf.mxu0
      %v10612 = vpop.f32.mrf.mxu0
      %v10613 = vpop.f32.mrf.mxu0
      %10614 = vdwg.mxu0
      %10615 = vmatprep.subr.bf16.mxu0 %v9957
      %10616 = vmatpush1.bf16.msra.mxu0 %v9956
      %10617 = vmatprep.subr.bf16.mxu0 %v9955
      %10618 = vmatpush1.bf16.msra.mxu0 %v9954
      %10619 = vmatprep.subr.bf16.mxu0 %v9953
      %10620 = vmatpush1.bf16.msra.mxu0 %v9952
      %10621 = vmatprep.subr.bf16.mxu0 %v9951
      %10622 = vmatpush1.bf16.msra.mxu0 %v9950
      %10623 = vmatprep.subr.bf16.mxu0 %v9949
      %10624 = vmatpush1.bf16.msra.mxu0 %v9948
      %10625 = vmatprep.subr.bf16.mxu0 %v9947
      %10626 = vmatpush1.bf16.msra.mxu0 %v9946
      %10627 = vmatprep.subr.bf16.mxu0 %v9945
      %10628 = vmatpush1.bf16.msra.mxu0 %v9944
      %10629 = vmatprep.subr.bf16.mxu0 %v9943
      %10630 = vmatpush1.bf16.msra.mxu0 %v9942
      %10631 = vmatprep.subr.bf16.mxu0 %v9973
      %10632 = vmatpush2.bf16.msra.mxu0 %v9972
      %10633 = vmatprep.subr.bf16.mxu0 %v9971
      %10634 = vmatpush2.bf16.msra.mxu0 %v9970
      %10635 = vmatprep.subr.bf16.mxu0 %v9969
      %10636 = vmatpush2.bf16.msra.mxu0 %v9968
      %10637 = vmatprep.subr.bf16.mxu0 %v9967
      %10638 = vmatpush2.bf16.msra.mxu0 %v9966
      %10639 = vmatprep.subr.bf16.mxu0 %v9965
      %10640 = vmatpush2.bf16.msra.mxu0 %v9964
      %10641 = vmatprep.subr.bf16.mxu0 %v9963
      %10642 = vmatpush2.bf16.msra.mxu0 %v9962
      %10643 = vmatprep.subr.bf16.mxu0 %v9961
      %10644 = vmatpush2.bf16.msra.mxu0 %v9960
      %10645 = vmatprep.subr.bf16.mxu0 %v9959
      %10646 = vmatpush2.bf16.msra.mxu0 %v9958
      %10647 = vmatprep.mubr.bf16.mxu0 %v8653
      %10648 = vmatmul.mubr.bf16.gmra.mxu0 %v8650
      %v10649 = vpop.f32.mrf.mxu0
      %v10650 = vadd.f32 %v10595, %v10649
      %v10651 = vpop.f32.mrf.mxu0
      %v10652 = vadd.f32 %v10597, %v10651
      %v10653 = vpop.f32.mrf.mxu0
      %v10654 = vpop.f32.mrf.mxu0
      %10655 = vmatprep.mubr.bf16.mxu0 %v8669
      %10656 = vmatmul.mubr.bf16.gmra.mxu0 %v8667
      %v10657 = vpop.f32.mrf.mxu0
      %v10658 = vpop.f32.mrf.mxu0
      %v10659 = vpop.f32.mrf.mxu0
      %v10660 = vadd.f32 %v10605, %v10659
      %v10661 = vpop.f32.mrf.mxu0
      %v10662 = vadd.f32 %v10607, %v10661
      %10663 = vmatprep.mubr.bf16.mxu0 %v8668
      %10664 = vmatmul.mubr.bf16.gmra.mxu0 %v8666
      %v10665 = vpop.f32.mrf.mxu0
      %v10666 = vpop.f32.mrf.mxu0
      %v10667 = vpop.f32.mrf.mxu0
      %v10668 = vpop.f32.mrf.mxu0
      %10669 = vdwg.mxu0
      %v10670 = vld [vmem:[%s8] sm:$0x3]
      %v10673 = vcombine.low %v10650, %v10652
      %v10675 = vunpack.c.l.s4 1983009808
      %v10676 = vunpack.c.0.s8 %v10675
      %v10677 = vlaneseq
      %v10678 = vshrl.u32 %v10677, 7
      %v10679 = vsub.s32 %v10676, %v10678
      %v10680 = vrot.slane %v10673, %v10679
      %v10681 = vcombine.high %v10680, %v10680
      %v10683 = vunpack.c.l.s4 1983009808
      %v10684 = vunpack.c.0.s8 %v10683
      %v10685 = vlaneseq
      %v10686 = vshrl.u32 %v10685, 7
      %v10687 = vsub.s32 %v10684, %v10686
      %v10688 = vrot.slane %v10680, %v10687
      %v10689 = vcombine.high %v10688, %v10688
      %v10691 = vunpack.c.l.s4 1983009808
      %v10692 = vunpack.c.0.s8 %v10691
      %v10693 = vlaneseq
      %v10694 = vshrl.u32 %v10693, 7
      %v10695 = vsub.s32 %v10692, %v10694
      %v10696 = vrot.slane %v10681, %v10695
      %v10697 = vcombine.high %v10696, %v10696
      %v10702 = vsel %vm8415, %v10688, -inf
      %v10703 = vrot.slane %v10702, 4
      %v10704 = vmax.f32 %v10702, %v10703
      %v10705 = vrot.slane %v10704, 2
      %v10706 = vmax.f32 %v10704, %v10705
      %v10707 = vrot.slane %v10706, 1
      %v10708 = vmax.f32 %v10706, %v10707
      %v10709 = vsel %vm8415, %v10689, -inf
      %v10710 = vrot.slane %v10709, 4
      %v10711 = vmax.f32 %v10709, %v10710
      %v10712 = vrot.slane %v10711, 2
      %v10713 = vmax.f32 %v10711, %v10712
      %v10714 = vrot.slane %v10713, 1
      %v10715 = vmax.f32 %v10713, %v10714
      %v10716 = vsel %vm8415, %v10696, -inf
      %v10717 = vrot.slane %v10716, 4
      %v10718 = vmax.f32 %v10716, %v10717
      %v10719 = vrot.slane %v10718, 2
      %v10720 = vmax.f32 %v10718, %v10719
      %v10721 = vrot.slane %v10720, 1
      %v10722 = vmax.f32 %v10720, %v10721
      %v10723 = vsel %vm8415, %v10697, -inf
      %v10724 = vrot.slane %v10723, 4
      %v10725 = vmax.f32 %v10723, %v10724
      %v10726 = vrot.slane %v10725, 2
      %v10727 = vmax.f32 %v10725, %v10726
      %v10728 = vrot.slane %v10727, 1
      %v10729 = vmax.f32 %v10727, %v10728
      %v10731 = vlaneseq
      %v10732 = vshrl.u32 %v10731, 7
      %v10733 = vsub.s32 0, %v10732
      %v10734 = vrot.slane %v10670, %v10733
      %v10735 = vlaneseq
      %v10736 = vshrl.u32 %v10735, 7
      %v10737 = vsub.s32 1, %v10736
      %v10738 = vrot.slane %v10670, %v10737
      %v10741 = vadd.f32 %v10708, %v10734
      %v10742 = vadd.f32 %v10715, %v10738
      %v10743 = vadd.f32 %v10722, %v10734
      %v10744 = vadd.f32 %v10729, %v10738
      %v10745 = vmax.f32 %v10741, 0.0
      %v10746 = vmax.f32 %v10742, 0.0
      %v10747 = vmax.f32 %v10743, 0.0
      %v10748 = vmax.f32 %v10744, 0.0
      %v10753 = vrot.slane %v10747, 7
      %v10754 = vsel %vm4251, %v10753, %v10745
      %v10755 = vrot.slane %v10748, 7
      %v10756 = vsel %vm4251, %v10755, %v10746
      %v10759 = vsel %vm8415, %v10754, 0.0
      %v10760 = vrot.slane %v10759, 4
      %v10761 = vadd.f32 %v10759, %v10760
      %v10762 = vrot.slane %v10761, 2
      %v10763 = vadd.f32 %v10761, %v10762
      %v10764 = vrot.slane %v10763, 1
      %v10765 = vadd.f32 %v10763, %v10764
      %v10766 = vsel %vm8415, %v10756, 0.0
      %v10767 = vrot.slane %v10766, 4
      %v10768 = vadd.f32 %v10766, %v10767
      %v10769 = vrot.slane %v10768, 2
      %v10770 = vadd.f32 %v10768, %v10769
      %v10771 = vrot.slane %v10770, 1
      %v10772 = vadd.f32 %v10770, %v10771
      %v10773 = vrcp.pop 2.0
      %v10774 = vmul.f32 %v10765, %v10773
      %v10775 = vmul.f32 %v10772, %v10773
      %v10778 = vcombine.low %v10660, %v10662
      %v10780 = vunpack.c.l.s4 1983009808
      %v10781 = vunpack.c.0.s8 %v10780
      %v10782 = vlaneseq
      %v10783 = vshrl.u32 %v10782, 7
      %v10784 = vsub.s32 %v10781, %v10783
      %v10785 = vrot.slane %v10778, %v10784
      %v10786 = vcombine.high %v10785, %v10785
      %v10788 = vunpack.c.l.s4 1983009808
      %v10789 = vunpack.c.0.s8 %v10788
      %v10790 = vlaneseq
      %v10791 = vshrl.u32 %v10790, 7
      %v10792 = vsub.s32 %v10789, %v10791
      %v10793 = vrot.slane %v10785, %v10792
      %v10794 = vcombine.high %v10793, %v10793
      %v10796 = vunpack.c.l.s4 1983009808
      %v10797 = vunpack.c.0.s8 %v10796
      %v10798 = vlaneseq
      %v10799 = vshrl.u32 %v10798, 7
      %v10800 = vsub.s32 %v10797, %v10799
      %v10801 = vrot.slane %v10786, %v10800
      %v10802 = vcombine.high %v10801, %v10801
      %v10807 = vsel %vm8415, %v10793, -inf
      %v10808 = vrot.slane %v10807, 4
      %v10809 = vmax.f32 %v10807, %v10808
      %v10810 = vrot.slane %v10809, 2
      %v10811 = vmax.f32 %v10809, %v10810
      %v10812 = vrot.slane %v10811, 1
      %v10813 = vmax.f32 %v10811, %v10812
      %v10814 = vsel %vm8415, %v10794, -inf
      %v10815 = vrot.slane %v10814, 4
      %v10816 = vmax.f32 %v10814, %v10815
      %v10817 = vrot.slane %v10816, 2
      %v10818 = vmax.f32 %v10816, %v10817
      %v10819 = vrot.slane %v10818, 1
      %v10820 = vmax.f32 %v10818, %v10819
      %v10821 = vsel %vm8415, %v10801, -inf
      %v10822 = vrot.slane %v10821, 4
      %v10823 = vmax.f32 %v10821, %v10822
      %v10824 = vrot.slane %v10823, 2
      %v10825 = vmax.f32 %v10823, %v10824
      %v10826 = vrot.slane %v10825, 1
      %v10827 = vmax.f32 %v10825, %v10826
      %v10828 = vsel %vm8415, %v10802, -inf
      %v10829 = vrot.slane %v10828, 4
      %v10830 = vmax.f32 %v10828, %v10829
      %v10831 = vrot.slane %v10830, 2
      %v10832 = vmax.f32 %v10830, %v10831
      %v10833 = vrot.slane %v10832, 1
      %v10834 = vmax.f32 %v10832, %v10833
      %v10835 = vadd.f32 %v10813, %v10734
      %v10836 = vadd.f32 %v10820, %v10738
      %v10837 = vadd.f32 %v10827, %v10734
      %v10838 = vadd.f32 %v10834, %v10738
      %v10839 = vmax.f32 %v10835, 0.0
      %v10840 = vmax.f32 %v10836, 0.0
      %v10841 = vmax.f32 %v10837, 0.0
      %v10842 = vmax.f32 %v10838, 0.0
      %v10847 = vrot.slane %v10841, 7
      %v10848 = vsel %vm4251, %v10847, %v10839
      %v10849 = vrot.slane %v10842, 7
      %v10850 = vsel %vm4251, %v10849, %v10840
      %v10853 = vsel %vm8415, %v10848, 0.0
      %v10854 = vrot.slane %v10853, 4
      %v10855 = vadd.f32 %v10853, %v10854
      %v10856 = vrot.slane %v10855, 2
      %v10857 = vadd.f32 %v10855, %v10856
      %v10858 = vrot.slane %v10857, 1
      %v10859 = vadd.f32 %v10857, %v10858
      %v10860 = vsel %vm8415, %v10850, 0.0
      %v10861 = vrot.slane %v10860, 4
      %v10862 = vadd.f32 %v10860, %v10861
      %v10863 = vrot.slane %v10862, 2
      %v10864 = vadd.f32 %v10862, %v10863
      %v10865 = vrot.slane %v10864, 1
      %v10866 = vadd.f32 %v10864, %v10865
      %v10867 = vmul.f32 %v10859, %v10773
      %v10868 = vmul.f32 %v10866, %v10773
      %v10871 = vrot.slane %v10867, 7
      %v10872 = vrot.slane %v10868, 7
      %vm10875 = vcmask 1040384
      %v10876 = vsel %vm10875, %v10774, %v10871
      %v10877 = vsel %vm10875, %v10775, %v10872
      %v10880 = vcombine.low %v10876, %v10877
      %v10882 = vunpack.c.l.s4 1983009808
      %v10883 = vunpack.c.0.s8 %v10882
      %v10884 = vlaneseq
      %v10885 = vshrl.u32 %v10884, 7
      %v10886 = vsub.s32 %v10883, %v10885
      %v10887 = vrot.slane %v10880, %v10886
      %10889 = vst [vmem:[%s366] sm:$0xf] %v10887
      %p10890 = scmp.lt.s32.totalorder %s20, 1
      %s10891 = scalar_select %p10890, %s20, 1
      %s10892 = smul.addr %s10891, 2
      %s10893 = smul.addr %s10892, 2
      %s10894 = scalar_lea.vmem %s9, %s10893
      // Predicated region
      $region57: #{scnn2d_feature_extractor.1} parent=55 // pred_check
        %p10895 = pneg %p242
      $region58: #{scnn2d_feature_extractor.1} parent=55 // pred_check_branch
        %10897 = sbr.rel (%p10895) target = $region60
      $region59: #{scnn2d_feature_extractor.1} parent=55 // pred_region
        _
      $region60: #{scnn2d_feature_extractor.1} parent=55 // pred_fallthru
        _
    $region56: #{scnn2d_feature_extractor.1} parent=5 // pred_fallthru
      _
    %p10898 = scmp.le.s32.totalorder 2, %s15
    // Predicated region
    $region61: #{scnn2d_feature_extractor.1} parent=5 // pred_check
      %p10899 = pneg %p10898
    $region62: #{scnn2d_feature_extractor.1} parent=5 // pred_check_branch
      %10901 = sbr.rel (%p10899) target = $region64
    $region63: #{scnn2d_feature_extractor.1} parent=5 // pred_region
      %s10902 = ssub.s32 %s15, 2
      // Predicated region
      $region65: #{scnn2d_feature_extractor.1} parent=63 // pred_check
        %p10903 = pneg %p248
      $region66: #{scnn2d_feature_extractor.1} parent=63 // pred_check_branch
        %10905 = sbr.rel (%p10903) target = $region68
      $region67: #{scnn2d_feature_extractor.1} parent=63 // pred_region
        %p10906 = scmp.lt.s32.totalorder %s21, 1
        %s10907 = scalar_select %p10906, %s21, 1
        %s10908 = smul.addr %s10907, 2
        %s10909 = smul.addr %s10908, 2
        %s10910 = scalar_lea.vmem %s9, %s10909
      $region68: #{scnn2d_feature_extractor.1} parent=63 // pred_fallthru
        _
    $region64: #{scnn2d_feature_extractor.1} parent=5 // pred_fallthru
      _
  $region6: #{scnn2d_feature_extractor.1} parent=0 // loop_footer
    %s19 = sadd.s32 1, %s15
  $region7: #{scnn2d_feature_extractor.1} parent=0 // loop_footer_branch
    %14 = sbr.rel target = $region3
  $region8: #{scnn2d_feature_extractor.1} parent=0 // loop_exit
    _

</llo_original>
